<compile_context>
chip_gen: v7x
topology: tpu7x:2x2x1
jax: 0.10.0
libtpu: 0.0.40
codegen_flags: <defaults>
</compile_context>

<pallas_src>
import functools

import jax
import jax.numpy as jnp
from jax.experimental import pallas as pl
from jax.experimental.pallas import tpu as pltpu


def _taps_concat(x4, KH, KW, OH, OW, stride):
    """im2col: concat the KH*KW shifted spatial slices along the channel axis."""
    cols = []
    for ky in range(KH):
        for kx in range(KW):
            if stride == 1:
                sl = x4[:, ky:ky + OH, kx:kx + OW, :]
            else:
                sl = x4[:, ky:ky + (OH - 1) * stride + 1:stride,
                        kx:kx + (OW - 1) * stride + 1:stride, :]
            cols.append(sl)
    return jnp.concatenate(cols, axis=-1)          # (N, OH, OW, KH*KW*Cin)


# ----------------------------------------------------------------------------
# Fused kernel: conv1 -> BN(batch stats) -> ReLU -> conv2(+bias) -> ReLU
# ----------------------------------------------------------------------------
def _conv_block_kernel(x_ref, w1_ref, w2_ref, prm_ref, o_ref, *,
                       N, OH1, OW1, OH2, OW2, KH1, KW1, KH2, KW2,
                       Cin, C, stride, eps):
    # x_ref   : (N, Hp, Wp, Cin)        padded NHWC input
    # w1_ref  : (KH1*KW1*Cin, C)        conv1 weights, HWIO-flattened
    # w2_ref  : (KH2*KW2*C, C2P)        conv2 weights, HWIO-flattened, lane-padded
    # prm_ref : (3, C2P)                rows: gamma, beta, b2 (lane-padded)
    # o_ref   : (N*OH2*OW2, C2P)        lane-dense output slab
    x4 = x_ref[...]
    prm = prm_ref[...]
    gamma = prm[0:1, :C]
    beta = prm[1:2, :C]
    b2 = prm[2:3, :]

    # --- conv1: in-kernel im2col + one MXU matmul over the whole batch -------
    # (bias b1 intentionally omitted: it cancels exactly under BatchNorm)
    M1 = N * OH1 * OW1
    p1 = _taps_concat(x4, KH1, KW1, OH1, OW1, stride).reshape(M1, KH1 * KW1 * Cin)
    y1 = jnp.dot(p1, w1_ref[...], preferred_element_type=jnp.float32)   # (M1, C)

    # --- BatchNorm2d (training-mode batch stats), single pass ----------------
    inv_m = 1.0 / M1
    mean = jnp.sum(y1, axis=0, keepdims=True) * inv_m                   # (1, C)
    ex2 = jnp.sum(y1 * y1, axis=0, keepdims=True) * inv_m
    var = ex2 - mean * mean                                             # biased var
    scale = gamma * jax.lax.rsqrt(var + eps)
    shift = beta - mean * scale

    # --- BN affine + ReLU (one FMA + max per element) -------------------------
    h = jnp.maximum(y1 * scale + shift, 0.0)                            # (M1, C)

    # --- conv2: im2col via one concat, ONE matmul, + bias + ReLU --------------
    M2 = N * OH2 * OW2
    h4 = h.reshape(N, OH1, OW1, C)
    p2 = _taps_concat(h4, KH2, KW2, OH2, OW2, 1).reshape(M2, KH2 * KW2 * C)
    y2 = jnp.dot(p2, w2_ref[...], preferred_element_type=jnp.float32) + b2
    o_ref[...] = jnp.maximum(y2, 0.0)                                   # lane-dense store


# ----------------------------------------------------------------------------
# Wrapper: layout conversion, padding, weight flatten / lane-padding
# ----------------------------------------------------------------------------
def conv_block_forward(x_nchw, w1, b1, gamma, beta, w2, b2,
                       *, stride=1, padding=0, eps=1e-5):
    """x_nchw: (N,Cin,H,W); w1: (KH,KW,Cin,C) HWIO; w2: (KH,KW,C,C) HWIO.

    NOTE: PyTorch Conv2d weights are OIHW -- convert to HWIO before calling.
    b1 is accepted for API parity but unused (cancels under BatchNorm).
    """
    N, Cin, H, W = x_nchw.shape
    KH1, KW1, Cin_w, C = w1.shape
    KH2, KW2, Cw, Cout = w2.shape
    assert Cin_w == Cin and Cw == C and Cout == C, "module uses Conv2d(C, C, k)"
    assert gamma.shape == (C,) and beta.shape == (C,) and b2.shape == (Cout,)

    x = jnp.transpose(x_nchw, (0, 2, 3, 1)).astype(jnp.float32)        # NCHW -> NHWC
    if padding:
        x = jnp.pad(x, ((0, 0), (padding, padding), (padding, padding), (0, 0)))
    Hp, Wp = x.shape[1], x.shape[2]
    OH1 = (Hp - KH1) // stride + 1
    OW1 = (Wp - KW1) // stride + 1
    OH2 = OH1 - KH2 + 1
    OW2 = OW1 - KW2 + 1
    M1 = N * OH1 * OW1
    M2 = N * OH2 * OW2

    LANE = 128
    C2P = ((Cout + LANE - 1) // LANE) * LANE          # lane-dense output width

    w1f = w1.reshape(KH1 * KW1 * Cin, C).astype(jnp.float32)
    w2f = w2.reshape(KH2 * KW2 * C, Cout).astype(jnp.float32)
    w2p = jnp.zeros((KH2 * KW2 * C, C2P), jnp.float32).at[:, :Cout].set(w2f)
    prm = (jnp.zeros((3, C2P), jnp.float32)
           .at[0, :C].set(gamma.astype(jnp.float32))
           .at[1, :C].set(beta.astype(jnp.float32))
           .at[2, :Cout].set(b2.astype(jnp.float32)))

    kernel = functools.partial(
        _conv_block_kernel,
        N=N, OH1=OH1, OW1=OW1, OH2=OH2, OW2=OW2,
        KH1=KH1, KW1=KW1, KH2=KH2, KW2=KW2,
        Cin=Cin, C=C, stride=stride, eps=eps)

    flops = int(2 * M1 * (KH1 * KW1 * Cin) * C      # conv1 matmul
                + 6 * M1 * C                        # BN stats + affine + relu
                + 2 * M2 * (KH2 * KW2 * C) * C2P)   # conv2 matmul
    bytes_acc = int(4 * (x.size + w1f.size + w2p.size + prm.size + M2 * C2P))

    out2d = pl.pallas_call(
        kernel,
        out_shape=jax.ShapeDtypeStruct((M2, C2P), jnp.float32),
        grid_spec=pltpu.PrefetchScalarGridSpec(
            num_scalar_prefetch=0,
            grid=(1,),                                # everything fits in VMEM
            in_specs=[
                pl.BlockSpec((N, Hp, Wp, Cin), lambda i: (0, 0, 0, 0)),
                pl.BlockSpec((KH1 * KW1 * Cin, C), lambda i: (0, 0)),
                pl.BlockSpec((KH2 * KW2 * C, C2P), lambda i: (0, 0)),
                pl.BlockSpec((3, C2P), lambda i: (0, 0)),
            ],
            out_specs=pl.BlockSpec((M2, C2P), lambda i: (0, 0)),
        ),
        compiler_params=pltpu.CompilerParams(dimension_semantics=("arbitrary",)),
        cost_estimate=pl.CostEstimate(flops=flops, transcendentals=int(C),
                                      bytes_accessed=bytes_acc),
    )(x, w1f, w2p, prm)

    out = out2d[:, :Cout].reshape(N, OH2, OW2, Cout)
    return jnp.transpose(out, (0, 3, 1, 2))                             # NHWC -> NCHW


# ----------------------------------------------------------------------------
# Pure-JAX reference (same math, two-pass BN, includes b1) for a sanity check
# ----------------------------------------------------------------------------
def _ref_forward(x_nchw, w1, b1, gamma, beta, w2, b2, eps=1e-5):
    x = jnp.transpose(x_nchw, (0, 2, 3, 1))
    dn = jax.lax.conv_dimension_numbers(x.shape, w1.shape, ("NHWC", "HWIO", "NHWC"))
    y1 = jax.lax.conv_general_dilated(x, w1, (1, 1), "VALID", dimension_numbers=dn) + b1
    mean = jnp.mean(y1, axis=(0, 1, 2))
    var = jnp.var(y1, axis=(0, 1, 2))
    h = jnp.maximum((y1 - mean) / jnp.sqrt(var + eps) * gamma + beta, 0.0)
    dn2 = jax.lax.conv_dimension_numbers(h.shape, w2.shape, ("NHWC", "HWIO", "NHWC"))
    y2 = jax.lax.conv_general_dilated(h, w2, (1, 1), "VALID", dimension_numbers=dn2) + b2
    return jnp.transpose(jnp.maximum(y2, 0.0), (0, 3, 1, 2))


if __name__ == "__main__":
    # Small shapes: batch=2, input_channel=4, output_channel=8, spatial=16
    N, Cin, Cout, H, W = 2, 4, 8, 16, 16

    key = jax.random.PRNGKey(0)
    k1, k2, k3, k4, kx = jax.random.split(key, 5)
    w1 = jax.random.normal(k1, (3, 3, Cin, Cout), jnp.float32) * 0.1   # HWIO
    b1 = jax.random.normal(k2, (Cout,), jnp.float32) * 0.05
    w2 = jax.random.normal(k3, (3, 3, Cout, Cout), jnp.float32) * 0.1  # HWIO
    b2 = jax.random.normal(k4, (Cout,), jnp.float32) * 0.05
    gamma = 1.0 + 0.1 * jnp.arange(Cout, dtype=jnp.float32)
    beta = 0.01 * jnp.arange(Cout, dtype=jnp.float32)

    x = jax.random.normal(kx, (N, Cin, H, W), jnp.float32)             # NCHW input

    forward = jax.jit(conv_block_forward)
    out = jax.block_until_ready(forward(x, w1, b1, gamma, beta, w2, b2))
    assert out.shape == (N, Cout, H - 4, W - 4), out.shape             # (2, 8, 12, 12)

    ref = jax.block_until_ready(_ref_forward(x, w1, b1, gamma, beta, w2, b2))
    max_err = float(jnp.max(jnp.abs(out - ref)))
    assert jnp.allclose(out, ref, rtol=5e-4, atol=5e-4), max_err

    print("KERNEL_OK")
</pallas_src>

<mosaic_0001>
module attributes {stable_mosaic.version = 11 : i64} {
  func.func @_conv_block_kernel(%arg0: i32, %arg1: memref<2x16x16x4xf32, #tpu.memory_space<vmem>>, %arg2: memref<36x8xf32, #tpu.memory_space<vmem>>, %arg3: memref<72x128xf32, #tpu.memory_space<vmem>>, %arg4: memref<3x128xf32, #tpu.memory_space<vmem>>, %arg5: memref<288x128xf32, #tpu.memory_space<vmem>>) attributes {dimension_semantics = [#tpu.dimension_semantics<arbitrary>], iteration_bounds = array<i64: 1>, scalar_prefetch = 0 : i64, scratch_operands = 0 : i64, tpu.core_type = #tpu.core_type<tc>, window_params = [{pipeline_mode = #tpu.pipeline_mode<synchronous>, transform_indices = @transform_0, window_bounds = array<i64: 2, 16, 16, 4>}, {pipeline_mode = #tpu.pipeline_mode<synchronous>, transform_indices = @transform_1, window_bounds = array<i64: 36, 8>}, {pipeline_mode = #tpu.pipeline_mode<synchronous>, transform_indices = @transform_2, window_bounds = array<i64: 72, 128>}, {pipeline_mode = #tpu.pipeline_mode<synchronous>, transform_indices = @transform_3, window_bounds = array<i64: 3, 128>}, {pipeline_mode = #tpu.pipeline_mode<synchronous>, transform_indices = @transform_4, window_bounds = array<i64: 288, 128>}]} {
    %c0 = arith.constant 0 : index
    %c0_0 = arith.constant 0 : index
    %c0_1 = arith.constant 0 : index
    %c0_2 = arith.constant 0 : index
    %0 = vector.load %arg1[%c0, %c0_0, %c0_1, %c0_2] : memref<2x16x16x4xf32, #tpu.memory_space<vmem>>, vector<2x16x16x4xf32>
    %c0_3 = arith.constant 0 : index
    %c0_4 = arith.constant 0 : index
    %1 = vector.load %arg4[%c0_3, %c0_4] : memref<3x128xf32, #tpu.memory_space<vmem>>, vector<3x128xf32>
    %2 = vector.extract_strided_slice %1 {offsets = [0, 0], sizes = [1, 8], strides = [1, 1]} : vector<3x128xf32> to vector<1x8xf32>
    %3 = vector.extract_strided_slice %1 {offsets = [1, 0], sizes = [1, 8], strides = [1, 1]} : vector<3x128xf32> to vector<1x8xf32>
    %4 = vector.extract_strided_slice %1 {offsets = [2, 0], sizes = [1, 128], strides = [1, 1]} : vector<3x128xf32> to vector<1x128xf32>
    %5 = vector.extract_strided_slice %0 {offsets = [0, 0, 0, 0], sizes = [2, 14, 14, 4], strides = [1, 1, 1, 1]} : vector<2x16x16x4xf32> to vector<2x14x14x4xf32>
    %6 = vector.extract_strided_slice %0 {offsets = [0, 0, 1, 0], sizes = [2, 14, 14, 4], strides = [1, 1, 1, 1]} : vector<2x16x16x4xf32> to vector<2x14x14x4xf32>
    %7 = vector.extract_strided_slice %0 {offsets = [0, 0, 2, 0], sizes = [2, 14, 14, 4], strides = [1, 1, 1, 1]} : vector<2x16x16x4xf32> to vector<2x14x14x4xf32>
    %8 = vector.extract_strided_slice %0 {offsets = [0, 1, 0, 0], sizes = [2, 14, 14, 4], strides = [1, 1, 1, 1]} : vector<2x16x16x4xf32> to vector<2x14x14x4xf32>
    %9 = vector.extract_strided_slice %0 {offsets = [0, 1, 1, 0], sizes = [2, 14, 14, 4], strides = [1, 1, 1, 1]} : vector<2x16x16x4xf32> to vector<2x14x14x4xf32>
    %10 = vector.extract_strided_slice %0 {offsets = [0, 1, 2, 0], sizes = [2, 14, 14, 4], strides = [1, 1, 1, 1]} : vector<2x16x16x4xf32> to vector<2x14x14x4xf32>
    %11 = vector.extract_strided_slice %0 {offsets = [0, 2, 0, 0], sizes = [2, 14, 14, 4], strides = [1, 1, 1, 1]} : vector<2x16x16x4xf32> to vector<2x14x14x4xf32>
    %12 = vector.extract_strided_slice %0 {offsets = [0, 2, 1, 0], sizes = [2, 14, 14, 4], strides = [1, 1, 1, 1]} : vector<2x16x16x4xf32> to vector<2x14x14x4xf32>
    %13 = vector.extract_strided_slice %0 {offsets = [0, 2, 2, 0], sizes = [2, 14, 14, 4], strides = [1, 1, 1, 1]} : vector<2x16x16x4xf32> to vector<2x14x14x4xf32>
    %14 = tpu.concatenate %5, %6, %7, %8, %9, %10, %11, %12, %13 in 3 : vector<2x14x14x4xf32>, vector<2x14x14x4xf32>, vector<2x14x14x4xf32>, vector<2x14x14x4xf32>, vector<2x14x14x4xf32>, vector<2x14x14x4xf32>, vector<2x14x14x4xf32>, vector<2x14x14x4xf32>, vector<2x14x14x4xf32> -> vector<2x14x14x36xf32>
    %15 = vector.shape_cast %14 : vector<2x14x14x36xf32> to vector<392x36xf32>
    %c0_5 = arith.constant 0 : index
    %c0_6 = arith.constant 0 : index
    %16 = vector.load %arg2[%c0_5, %c0_6] : memref<36x8xf32, #tpu.memory_space<vmem>>, vector<36x8xf32>
    %cst = arith.constant dense<0.000000e+00> : vector<392x8xf32>
    %17 = tpu.matmul %15, %16, %cst {dimension_numbers = #tpu.dot_dimension_numbers<[1], [0], [0], [1], [0, 0, 1, 1], [], []>} : vector<392x36xf32>, vector<36x8xf32>, vector<392x8xf32> -> vector<392x8xf32>
    %cst_7 = arith.constant dense<0.000000e+00> : vector<8xf32>
    %18 = vector.multi_reduction <add>, %17, %cst_7 [0] : vector<392x8xf32> to vector<8xf32>
    %19 = vector.shape_cast %18 : vector<8xf32> to vector<1x8xf32>
    %cst_8 = arith.constant 0.00255102036 : f32
    %20 = vector.broadcast %cst_8 : f32 to vector<1x8xf32>
    %21 = arith.mulf %19, %20 : vector<1x8xf32>
    %22 = arith.mulf %17, %17 : vector<392x8xf32>
    %cst_9 = arith.constant dense<0.000000e+00> : vector<8xf32>
    %23 = vector.multi_reduction <add>, %22, %cst_9 [0] : vector<392x8xf32> to vector<8xf32>
    %24 = vector.shape_cast %23 : vector<8xf32> to vector<1x8xf32>
    %cst_10 = arith.constant 0.00255102036 : f32
    %25 = vector.broadcast %cst_10 : f32 to vector<1x8xf32>
    %26 = arith.mulf %24, %25 : vector<1x8xf32>
    %27 = arith.mulf %21, %21 : vector<1x8xf32>
    %28 = arith.subf %26, %27 : vector<1x8xf32>
    %cst_11 = arith.constant 9.99999974E-6 : f32
    %29 = vector.broadcast %cst_11 : f32 to vector<1x8xf32>
    %30 = arith.addf %28, %29 : vector<1x8xf32>
    %31 = math.rsqrt %30 : vector<1x8xf32>
    %32 = arith.mulf %2, %31 : vector<1x8xf32>
    %33 = arith.mulf %21, %32 : vector<1x8xf32>
    %34 = arith.subf %3, %33 : vector<1x8xf32>
    %35 = vector.broadcast %32 : vector<1x8xf32> to vector<392x8xf32>
    %36 = arith.mulf %17, %35 : vector<392x8xf32>
    %37 = vector.broadcast %34 : vector<1x8xf32> to vector<392x8xf32>
    %38 = arith.addf %36, %37 : vector<392x8xf32>
    %cst_12 = arith.constant 0.000000e+00 : f32
    %39 = vector.broadcast %cst_12 : f32 to vector<392x8xf32>
    %40 = arith.maximumf %38, %39 : vector<392x8xf32>
    %41 = vector.shape_cast %40 : vector<392x8xf32> to vector<2x14x14x8xf32>
    %42 = vector.extract_strided_slice %41 {offsets = [0, 0, 0, 0], sizes = [2, 12, 12, 8], strides = [1, 1, 1, 1]} : vector<2x14x14x8xf32> to vector<2x12x12x8xf32>
    %43 = vector.extract_strided_slice %41 {offsets = [0, 0, 1, 0], sizes = [2, 12, 12, 8], strides = [1, 1, 1, 1]} : vector<2x14x14x8xf32> to vector<2x12x12x8xf32>
    %44 = vector.extract_strided_slice %41 {offsets = [0, 0, 2, 0], sizes = [2, 12, 12, 8], strides = [1, 1, 1, 1]} : vector<2x14x14x8xf32> to vector<2x12x12x8xf32>
    %45 = vector.extract_strided_slice %41 {offsets = [0, 1, 0, 0], sizes = [2, 12, 12, 8], strides = [1, 1, 1, 1]} : vector<2x14x14x8xf32> to vector<2x12x12x8xf32>
    %46 = vector.extract_strided_slice %41 {offsets = [0, 1, 1, 0], sizes = [2, 12, 12, 8], strides = [1, 1, 1, 1]} : vector<2x14x14x8xf32> to vector<2x12x12x8xf32>
    %47 = vector.extract_strided_slice %41 {offsets = [0, 1, 2, 0], sizes = [2, 12, 12, 8], strides = [1, 1, 1, 1]} : vector<2x14x14x8xf32> to vector<2x12x12x8xf32>
    %48 = vector.extract_strided_slice %41 {offsets = [0, 2, 0, 0], sizes = [2, 12, 12, 8], strides = [1, 1, 1, 1]} : vector<2x14x14x8xf32> to vector<2x12x12x8xf32>
    %49 = vector.extract_strided_slice %41 {offsets = [0, 2, 1, 0], sizes = [2, 12, 12, 8], strides = [1, 1, 1, 1]} : vector<2x14x14x8xf32> to vector<2x12x12x8xf32>
    %50 = vector.extract_strided_slice %41 {offsets = [0, 2, 2, 0], sizes = [2, 12, 12, 8], strides = [1, 1, 1, 1]} : vector<2x14x14x8xf32> to vector<2x12x12x8xf32>
    %51 = tpu.concatenate %42, %43, %44, %45, %46, %47, %48, %49, %50 in 3 : vector<2x12x12x8xf32>, vector<2x12x12x8xf32>, vector<2x12x12x8xf32>, vector<2x12x12x8xf32>, vector<2x12x12x8xf32>, vector<2x12x12x8xf32>, vector<2x12x12x8xf32>, vector<2x12x12x8xf32>, vector<2x12x12x8xf32> -> vector<2x12x12x72xf32>
    %52 = vector.shape_cast %51 : vector<2x12x12x72xf32> to vector<288x72xf32>
    %c0_13 = arith.constant 0 : index
    %c0_14 = arith.constant 0 : index
    %53 = vector.load %arg3[%c0_13, %c0_14] : memref<72x128xf32, #tpu.memory_space<vmem>>, vector<72x128xf32>
    %cst_15 = arith.constant dense<0.000000e+00> : vector<288x128xf32>
    %54 = tpu.matmul %52, %53, %cst_15 {dimension_numbers = #tpu.dot_dimension_numbers<[1], [0], [0], [1], [0, 0, 1, 1], [], []>} : vector<288x72xf32>, vector<72x128xf32>, vector<288x128xf32> -> vector<288x128xf32>
    %55 = vector.broadcast %4 : vector<1x128xf32> to vector<288x128xf32>
    %56 = arith.addf %54, %55 : vector<288x128xf32>
    %cst_16 = arith.constant 0.000000e+00 : f32
    %57 = vector.broadcast %cst_16 : f32 to vector<288x128xf32>
    %58 = arith.maximumf %56, %57 : vector<288x128xf32>
    %c0_17 = arith.constant 0 : index
    %c0_18 = arith.constant 0 : index
    %59 = vector.load %arg5[%c0_17, %c0_18] : memref<288x128xf32, #tpu.memory_space<vmem>>, vector<288x128xf32>
    tpu.vector_store %arg5[%c0_17, %c0_18], %58 {strides = array<i32>} : memref<288x128xf32, #tpu.memory_space<vmem>>, vector<288x128xf32>,
    return
  }
  func.func @transform_0(%arg0: i32) -> (i32, i32, i32, i32) {
    %c0_i32 = arith.constant 0 : i32
    %c0_i32_0 = arith.constant 0 : i32
    %c0_i32_1 = arith.constant 0 : i32
    %c0_i32_2 = arith.constant 0 : i32
    %c0_i32_3 = arith.constant 0 : i32
    return %c0_i32, %c0_i32_0, %c0_i32_1, %c0_i32_2 : i32, i32, i32, i32
  }
  func.func @transform_1(%arg0: i32) -> (i32, i32) {
    %c0_i32 = arith.constant 0 : i32
    %c0_i32_0 = arith.constant 0 : i32
    %c0_i32_1 = arith.constant 0 : i32
    return %c0_i32, %c0_i32_0 : i32, i32
  }
  func.func @transform_2(%arg0: i32) -> (i32, i32) {
    %c0_i32 = arith.constant 0 : i32
    %c0_i32_0 = arith.constant 0 : i32
    %c0_i32_1 = arith.constant 0 : i32
    return %c0_i32, %c0_i32_0 : i32, i32
  }
  func.func @transform_3(%arg0: i32) -> (i32, i32) {
    %c0_i32 = arith.constant 0 : i32
    %c0_i32_0 = arith.constant 0 : i32
    %c0_i32_1 = arith.constant 0 : i32
    return %c0_i32, %c0_i32_0 : i32, i32
  }
  func.func @transform_4(%arg0: i32) -> (i32, i32) {
    %c0_i32 = arith.constant 0 : i32
    %c0_i32_0 = arith.constant 0 : i32
    %c0_i32_1 = arith.constant 0 : i32
    return %c0_i32, %c0_i32_0 : i32, i32
  }
}

</mosaic_0001>

<llo_original>
// kernel: conv_block_forward.1
$region0: #{conv_block_forward.1}
  #allocation0 [shape = 'u32[]', space=smem, size = 0x4, offset = 0x4, fixed_abs, tag = 'smem constant byte address 0x4 - core index']
  #allocation1 [shape = 'u32[144,128]{1,0:T(1,128)}', space=vmem, size = 0x12000, scoped, tag = 'internal scratch']
  %s0 = inlined_call_operand.vmem [shape: f32[2,16,16,4], index: 0, kind: input, shape index: {}]
  %s1 = inlined_call_operand.vmem [shape: f32[36,8], index: 1, kind: input, shape index: {}]
  %s2 = inlined_call_operand.vmem [shape: f32[72,128], index: 2, kind: input, shape index: {}]
  %s3 = inlined_call_operand.vmem [shape: f32[3,128], index: 3, kind: input, shape index: {}]
  %s4 = inlined_call_operand.vmem [shape: f32[288,128], index: 4, kind: output, shape index: {}]
  %s5 = sld [smem:[#allocation0]]
  $region26: #{conv_block_forward.1} parent=0
    _
  %s7 = ssub.s32 1, %s5
  %s8 = scalar_select 0, %s7, %s5
  // Predicated region
  $region2: #{conv_block_forward.1} parent=0 // pred_check
    _
  $region3: #{conv_block_forward.1} parent=0 // pred_check_branch
    %10 = sbr.rel (0) target = $region5
  $region4: #{conv_block_forward.1} parent=0 // pred_region
    _
  $region5: #{conv_block_forward.1} parent=0 // pred_fallthru
    _
  // Predicated region
  $region6: #{conv_block_forward.1} parent=0 // pred_check
    _
  $region7: #{conv_block_forward.1} parent=0 // pred_check_branch
    %12 = sbr.rel (0) target = $region9
  $region8: #{conv_block_forward.1} parent=0 // pred_region
    _
  $region9: #{conv_block_forward.1} parent=0 // pred_fallthru
    _
  // Predicated region
  $region10: #{conv_block_forward.1} parent=0 // pred_check
    _
  $region11: #{conv_block_forward.1} parent=0 // pred_check_branch
    %14 = sbr.rel (0) target = $region13
  $region12: #{conv_block_forward.1} parent=0 // pred_region
    _
  $region13: #{conv_block_forward.1} parent=0 // pred_fallthru
    _
  // Predicated region
  $region14: #{conv_block_forward.1} parent=0 // pred_check
    _
  $region15: #{conv_block_forward.1} parent=0 // pred_check_branch
    %16 = sbr.rel (0) target = $region17
  $region16: #{conv_block_forward.1} parent=0 // pred_region
    _
  $region17: #{conv_block_forward.1} parent=0 // pred_fallthru
    _
  %v17 = vld [vmem:[%s0] sm:$0xff]
  %v18 = vld [vmem:[%s0 + $0x8] sm:$0xff]
  %v19 = vld [vmem:[%s0 + $0x10] sm:$0xff]
  %v20 = vld [vmem:[%s0 + $0x18] sm:$0xff]
  %v21 = vld [vmem:[%s0 + $0x20] sm:$0xff]
  %v22 = vld [vmem:[%s0 + $0x28] sm:$0xff]
  %v23 = vld [vmem:[%s0 + $0x30] sm:$0xff]
  %v24 = vld [vmem:[%s0 + $0x38] sm:$0xff]
  %v25 = vld [vmem:[%s0 + $0x40] sm:$0xff]
  %v26 = vld [vmem:[%s0 + $0x48] sm:$0xff]
  %v27 = vld [vmem:[%s0 + $0x50] sm:$0xff]
  %v28 = vld [vmem:[%s0 + $0x58] sm:$0xff]
  %v29 = vld [vmem:[%s0 + $0x60] sm:$0xff]
  %v30 = vld [vmem:[%s0 + $0x68] sm:$0xff]
  %v31 = vld [vmem:[%s0 + $0x70] sm:$0xff]
  %v32 = vld [vmem:[%s0 + $0x78] sm:$0xff]
  %v33 = vld [vmem:[%s0 + $0x80] sm:$0xff]
  %v34 = vld [vmem:[%s0 + $0x88] sm:$0xff]
  %v35 = vld [vmem:[%s0 + $0x90] sm:$0xff]
  %v36 = vld [vmem:[%s0 + $0x98] sm:$0xff]
  %v37 = vld [vmem:[%s0 + $0xa0] sm:$0xff]
  %v38 = vld [vmem:[%s0 + $0xa8] sm:$0xff]
  %v39 = vld [vmem:[%s0 + $0xb0] sm:$0xff]
  %v40 = vld [vmem:[%s0 + $0xb8] sm:$0xff]
  %v41 = vld [vmem:[%s0 + $0xc0] sm:$0xff]
  %v42 = vld [vmem:[%s0 + $0xc8] sm:$0xff]
  %v43 = vld [vmem:[%s0 + $0xd0] sm:$0xff]
  %v44 = vld [vmem:[%s0 + $0xd8] sm:$0xff]
  %v45 = vld [vmem:[%s0 + $0xe0] sm:$0xff]
  %v46 = vld [vmem:[%s0 + $0xe8] sm:$0xff]
  %v47 = vld [vmem:[%s0 + $0xf0] sm:$0xff]
  %v48 = vld [vmem:[%s0 + $0xf8] sm:$0xff]
  %v49 = vld [vmem:[%s0 + $0x100] sm:$0xff]
  %v50 = vld [vmem:[%s0 + $0x108] sm:$0xff]
  %v51 = vld [vmem:[%s0 + $0x110] sm:$0xff]
  %v52 = vld [vmem:[%s0 + $0x118] sm:$0xff]
  %v53 = vld [vmem:[%s0 + $0x120] sm:$0xff]
  %v54 = vld [vmem:[%s0 + $0x128] sm:$0xff]
  %v55 = vld [vmem:[%s0 + $0x130] sm:$0xff]
  %v56 = vld [vmem:[%s0 + $0x138] sm:$0xff]
  %v57 = vld [vmem:[%s0 + $0x140] sm:$0xff]
  %v58 = vld [vmem:[%s0 + $0x148] sm:$0xff]
  %v59 = vld [vmem:[%s0 + $0x150] sm:$0xff]
  %v60 = vld [vmem:[%s0 + $0x158] sm:$0xff]
  %v61 = vld [vmem:[%s0 + $0x160] sm:$0xff]
  %v62 = vld [vmem:[%s0 + $0x168] sm:$0xff]
  %v63 = vld [vmem:[%s0 + $0x170] sm:$0xff]
  %v64 = vld [vmem:[%s0 + $0x178] sm:$0xff]
  %v65 = vld [vmem:[%s0 + $0x180] sm:$0xff]
  %v66 = vld [vmem:[%s0 + $0x188] sm:$0xff]
  %v67 = vld [vmem:[%s0 + $0x190] sm:$0xff]
  %v68 = vld [vmem:[%s0 + $0x198] sm:$0xff]
  %v69 = vld [vmem:[%s0 + $0x1a0] sm:$0xff]
  %v70 = vld [vmem:[%s0 + $0x1a8] sm:$0xff]
  %v71 = vld [vmem:[%s0 + $0x1b0] sm:$0xff]
  %v72 = vld [vmem:[%s0 + $0x1b8] sm:$0xff]
  %v73 = vld [vmem:[%s0 + $0x1c0] sm:$0xff]
  %v74 = vld [vmem:[%s0 + $0x1c8] sm:$0xff]
  %v75 = vld [vmem:[%s0 + $0x1d0] sm:$0xff]
  %v76 = vld [vmem:[%s0 + $0x1d8] sm:$0xff]
  %v77 = vld [vmem:[%s0 + $0x1e0] sm:$0xff]
  %v78 = vld [vmem:[%s0 + $0x1e8] sm:$0xff]
  %v79 = vld [vmem:[%s0 + $0x1f0] sm:$0xff]
  %v80 = vld [vmem:[%s0 + $0x1f8] sm:$0xff]
  %v81 = vld [vmem:[%s3] sm:$0x7]
  %vm138 = vcmask 1046528
  %v139 = vrot.slane %v17, 1
  %v140 = vrot.slane %v18, 1
  %v141 = vsel %vm138, %v139, %v140
  %v142 = vrot.slane %v19, 1
  %v143 = vrot.slane %v20, 1
  %v144 = vsel %vm138, %v142, %v143
  %v145 = vrot.slane %v21, 1
  %v146 = vrot.slane %v22, 1
  %v147 = vsel %vm138, %v145, %v146
  %v148 = vrot.slane %v23, 1
  %v149 = vrot.slane %v24, 1
  %v150 = vsel %vm138, %v148, %v149
  %v151 = vrot.slane %v25, 1
  %v152 = vrot.slane %v26, 1
  %v153 = vsel %vm138, %v151, %v152
  %v154 = vrot.slane %v27, 1
  %v155 = vrot.slane %v28, 1
  %v156 = vsel %vm138, %v154, %v155
  %v157 = vrot.slane %v29, 1
  %v158 = vrot.slane %v30, 1
  %v159 = vsel %vm138, %v157, %v158
  %v160 = vrot.slane %v31, 1
  %v161 = vrot.slane %v32, 1
  %v162 = vsel %vm138, %v160, %v161
  %v163 = vrot.slane %v33, 1
  %v164 = vrot.slane %v34, 1
  %v165 = vsel %vm138, %v163, %v164
  %v166 = vrot.slane %v35, 1
  %v167 = vrot.slane %v36, 1
  %v168 = vsel %vm138, %v166, %v167
  %v169 = vrot.slane %v37, 1
  %v170 = vrot.slane %v38, 1
  %v171 = vsel %vm138, %v169, %v170
  %v172 = vrot.slane %v39, 1
  %v173 = vrot.slane %v40, 1
  %v174 = vsel %vm138, %v172, %v173
  %v175 = vrot.slane %v41, 1
  %v176 = vrot.slane %v42, 1
  %v177 = vsel %vm138, %v175, %v176
  %v178 = vrot.slane %v43, 1
  %v179 = vrot.slane %v44, 1
  %v180 = vsel %vm138, %v178, %v179
  %v181 = vrot.slane %v49, 1
  %v182 = vrot.slane %v50, 1
  %v183 = vsel %vm138, %v181, %v182
  %v184 = vrot.slane %v51, 1
  %v185 = vrot.slane %v52, 1
  %v186 = vsel %vm138, %v184, %v185
  %v187 = vrot.slane %v53, 1
  %v188 = vrot.slane %v54, 1
  %v189 = vsel %vm138, %v187, %v188
  %v190 = vrot.slane %v55, 1
  %v191 = vrot.slane %v56, 1
  %v192 = vsel %vm138, %v190, %v191
  %v193 = vrot.slane %v57, 1
  %v194 = vrot.slane %v58, 1
  %v195 = vsel %vm138, %v193, %v194
  %v196 = vrot.slane %v59, 1
  %v197 = vrot.slane %v60, 1
  %v198 = vsel %vm138, %v196, %v197
  %v199 = vrot.slane %v61, 1
  %v200 = vrot.slane %v62, 1
  %v201 = vsel %vm138, %v199, %v200
  %v202 = vrot.slane %v63, 1
  %v203 = vrot.slane %v64, 1
  %v204 = vsel %vm138, %v202, %v203
  %v205 = vrot.slane %v65, 1
  %v206 = vrot.slane %v66, 1
  %v207 = vsel %vm138, %v205, %v206
  %v208 = vrot.slane %v67, 1
  %v209 = vrot.slane %v68, 1
  %v210 = vsel %vm138, %v208, %v209
  %v211 = vrot.slane %v69, 1
  %v212 = vrot.slane %v70, 1
  %v213 = vsel %vm138, %v211, %v212
  %v214 = vrot.slane %v71, 1
  %v215 = vrot.slane %v72, 1
  %v216 = vsel %vm138, %v214, %v215
  %v217 = vrot.slane %v73, 1
  %v218 = vrot.slane %v74, 1
  %v219 = vsel %vm138, %v217, %v218
  %v220 = vrot.slane %v75, 1
  %v221 = vrot.slane %v76, 1
  %v222 = vsel %vm138, %v220, %v221
  %223 = vrot.lane.b32.xlu0 %v141, 4
  %v224 = vpop.permute.xlu0 %223
  %225 = vrot.lane.b32.xlu0 %v140, 4
  %v226 = vpop.permute.xlu0 %225
  %227 = vrot.lane.b32.xlu0 %v144, 4
  %v228 = vpop.permute.xlu0 %227
  %229 = vrot.lane.b32.xlu0 %v143, 4
  %v230 = vpop.permute.xlu0 %229
  %231 = vrot.lane.b32.xlu0 %v147, 4
  %v232 = vpop.permute.xlu0 %231
  %233 = vrot.lane.b32.xlu0 %v146, 4
  %v234 = vpop.permute.xlu0 %233
  %235 = vrot.lane.b32.xlu0 %v150, 4
  %v236 = vpop.permute.xlu0 %235
  %237 = vrot.lane.b32.xlu0 %v149, 4
  %v238 = vpop.permute.xlu0 %237
  %239 = vrot.lane.b32.xlu0 %v153, 4
  %v240 = vpop.permute.xlu0 %239
  %241 = vrot.lane.b32.xlu0 %v152, 4
  %v242 = vpop.permute.xlu0 %241
  %243 = vrot.lane.b32.xlu0 %v156, 4
  %v244 = vpop.permute.xlu0 %243
  %245 = vrot.lane.b32.xlu0 %v155, 4
  %v246 = vpop.permute.xlu0 %245
  %247 = vrot.lane.b32.xlu0 %v159, 4
  %v248 = vpop.permute.xlu0 %247
  %249 = vrot.lane.b32.xlu0 %v158, 4
  %v250 = vpop.permute.xlu0 %249
  %251 = vrot.lane.b32.xlu0 %v162, 4
  %v252 = vpop.permute.xlu0 %251
  %253 = vrot.lane.b32.xlu0 %v161, 4
  %v254 = vpop.permute.xlu0 %253
  %255 = vrot.lane.b32.xlu0 %v165, 4
  %v256 = vpop.permute.xlu0 %255
  %257 = vrot.lane.b32.xlu0 %v164, 4
  %v258 = vpop.permute.xlu0 %257
  %259 = vrot.lane.b32.xlu0 %v168, 4
  %v260 = vpop.permute.xlu0 %259
  %261 = vrot.lane.b32.xlu0 %v167, 4
  %v262 = vpop.permute.xlu0 %261
  %263 = vrot.lane.b32.xlu0 %v171, 4
  %v264 = vpop.permute.xlu0 %263
  %265 = vrot.lane.b32.xlu0 %v170, 4
  %v266 = vpop.permute.xlu0 %265
  %267 = vrot.lane.b32.xlu0 %v174, 4
  %v268 = vpop.permute.xlu0 %267
  %269 = vrot.lane.b32.xlu0 %v173, 4
  %v270 = vpop.permute.xlu0 %269
  %271 = vrot.lane.b32.xlu0 %v177, 4
  %v272 = vpop.permute.xlu0 %271
  %273 = vrot.lane.b32.xlu0 %v176, 4
  %v274 = vpop.permute.xlu0 %273
  %275 = vrot.lane.b32.xlu0 %v180, 4
  %v276 = vpop.permute.xlu0 %275
  %277 = vrot.lane.b32.xlu0 %v179, 4
  %v278 = vpop.permute.xlu0 %277
  %279 = vrot.lane.b32.xlu0 %v183, 4
  %v280 = vpop.permute.xlu0 %279
  %281 = vrot.lane.b32.xlu0 %v182, 4
  %v282 = vpop.permute.xlu0 %281
  %283 = vrot.lane.b32.xlu0 %v186, 4
  %v284 = vpop.permute.xlu0 %283
  %285 = vrot.lane.b32.xlu0 %v185, 4
  %v286 = vpop.permute.xlu0 %285
  %287 = vrot.lane.b32.xlu0 %v189, 4
  %v288 = vpop.permute.xlu0 %287
  %289 = vrot.lane.b32.xlu0 %v188, 4
  %v290 = vpop.permute.xlu0 %289
  %291 = vrot.lane.b32.xlu0 %v192, 4
  %v292 = vpop.permute.xlu0 %291
  %293 = vrot.lane.b32.xlu0 %v191, 4
  %v294 = vpop.permute.xlu0 %293
  %295 = vrot.lane.b32.xlu0 %v195, 4
  %v296 = vpop.permute.xlu0 %295
  %297 = vrot.lane.b32.xlu0 %v194, 4
  %v298 = vpop.permute.xlu0 %297
  %299 = vrot.lane.b32.xlu0 %v198, 4
  %v300 = vpop.permute.xlu0 %299
  %301 = vrot.lane.b32.xlu0 %v197, 4
  %v302 = vpop.permute.xlu0 %301
  %303 = vrot.lane.b32.xlu0 %v201, 4
  %v304 = vpop.permute.xlu0 %303
  %305 = vrot.lane.b32.xlu0 %v200, 4
  %v306 = vpop.permute.xlu0 %305
  %307 = vrot.lane.b32.xlu0 %v204, 4
  %v308 = vpop.permute.xlu0 %307
  %309 = vrot.lane.b32.xlu0 %v203, 4
  %v310 = vpop.permute.xlu0 %309
  %311 = vrot.lane.b32.xlu0 %v207, 4
  %v312 = vpop.permute.xlu0 %311
  %313 = vrot.lane.b32.xlu0 %v206, 4
  %v314 = vpop.permute.xlu0 %313
  %315 = vrot.lane.b32.xlu0 %v210, 4
  %v316 = vpop.permute.xlu0 %315
  %317 = vrot.lane.b32.xlu0 %v209, 4
  %v318 = vpop.permute.xlu0 %317
  %319 = vrot.lane.b32.xlu0 %v213, 4
  %v320 = vpop.permute.xlu0 %319
  %321 = vrot.lane.b32.xlu0 %v212, 4
  %v322 = vpop.permute.xlu0 %321
  %323 = vrot.lane.b32.xlu0 %v216, 4
  %v324 = vpop.permute.xlu0 %323
  %325 = vrot.lane.b32.xlu0 %v215, 4
  %v326 = vpop.permute.xlu0 %325
  %327 = vrot.lane.b32.xlu0 %v219, 4
  %v328 = vpop.permute.xlu0 %327
  %329 = vrot.lane.b32.xlu0 %v218, 4
  %v330 = vpop.permute.xlu0 %329
  %331 = vrot.lane.b32.xlu0 %v222, 4
  %v332 = vpop.permute.xlu0 %331
  %333 = vrot.lane.b32.xlu0 %v221, 4
  %v334 = vpop.permute.xlu0 %333
  %vm391 = vcmask 1045504
  %v392 = vrot.slane %v17, 2
  %v393 = vrot.slane %v18, 2
  %v394 = vsel %vm391, %v392, %v393
  %v395 = vrot.slane %v19, 2
  %v396 = vrot.slane %v20, 2
  %v397 = vsel %vm391, %v395, %v396
  %v398 = vrot.slane %v21, 2
  %v399 = vrot.slane %v22, 2
  %v400 = vsel %vm391, %v398, %v399
  %v401 = vrot.slane %v23, 2
  %v402 = vrot.slane %v24, 2
  %v403 = vsel %vm391, %v401, %v402
  %v404 = vrot.slane %v25, 2
  %v405 = vrot.slane %v26, 2
  %v406 = vsel %vm391, %v404, %v405
  %v407 = vrot.slane %v27, 2
  %v408 = vrot.slane %v28, 2
  %v409 = vsel %vm391, %v407, %v408
  %v410 = vrot.slane %v29, 2
  %v411 = vrot.slane %v30, 2
  %v412 = vsel %vm391, %v410, %v411
  %v413 = vrot.slane %v31, 2
  %v414 = vrot.slane %v32, 2
  %v415 = vsel %vm391, %v413, %v414
  %v416 = vrot.slane %v33, 2
  %v417 = vrot.slane %v34, 2
  %v418 = vsel %vm391, %v416, %v417
  %v419 = vrot.slane %v35, 2
  %v420 = vrot.slane %v36, 2
  %v421 = vsel %vm391, %v419, %v420
  %v422 = vrot.slane %v37, 2
  %v423 = vrot.slane %v38, 2
  %v424 = vsel %vm391, %v422, %v423
  %v425 = vrot.slane %v39, 2
  %v426 = vrot.slane %v40, 2
  %v427 = vsel %vm391, %v425, %v426
  %v428 = vrot.slane %v41, 2
  %v429 = vrot.slane %v42, 2
  %v430 = vsel %vm391, %v428, %v429
  %v431 = vrot.slane %v43, 2
  %v432 = vrot.slane %v44, 2
  %v433 = vsel %vm391, %v431, %v432
  %v434 = vrot.slane %v49, 2
  %v435 = vrot.slane %v50, 2
  %v436 = vsel %vm391, %v434, %v435
  %v437 = vrot.slane %v51, 2
  %v438 = vrot.slane %v52, 2
  %v439 = vsel %vm391, %v437, %v438
  %v440 = vrot.slane %v53, 2
  %v441 = vrot.slane %v54, 2
  %v442 = vsel %vm391, %v440, %v441
  %v443 = vrot.slane %v55, 2
  %v444 = vrot.slane %v56, 2
  %v445 = vsel %vm391, %v443, %v444
  %v446 = vrot.slane %v57, 2
  %v447 = vrot.slane %v58, 2
  %v448 = vsel %vm391, %v446, %v447
  %v449 = vrot.slane %v59, 2
  %v450 = vrot.slane %v60, 2
  %v451 = vsel %vm391, %v449, %v450
  %v452 = vrot.slane %v61, 2
  %v453 = vrot.slane %v62, 2
  %v454 = vsel %vm391, %v452, %v453
  %v455 = vrot.slane %v63, 2
  %v456 = vrot.slane %v64, 2
  %v457 = vsel %vm391, %v455, %v456
  %v458 = vrot.slane %v65, 2
  %v459 = vrot.slane %v66, 2
  %v460 = vsel %vm391, %v458, %v459
  %v461 = vrot.slane %v67, 2
  %v462 = vrot.slane %v68, 2
  %v463 = vsel %vm391, %v461, %v462
  %v464 = vrot.slane %v69, 2
  %v465 = vrot.slane %v70, 2
  %v466 = vsel %vm391, %v464, %v465
  %v467 = vrot.slane %v71, 2
  %v468 = vrot.slane %v72, 2
  %v469 = vsel %vm391, %v467, %v468
  %v470 = vrot.slane %v73, 2
  %v471 = vrot.slane %v74, 2
  %v472 = vsel %vm391, %v470, %v471
  %v473 = vrot.slane %v75, 2
  %v474 = vrot.slane %v76, 2
  %v475 = vsel %vm391, %v473, %v474
  %476 = vrot.lane.b32.xlu0 %v394, 8
  %v477 = vpop.permute.xlu0 %476
  %478 = vrot.lane.b32.xlu0 %v393, 8
  %v479 = vpop.permute.xlu0 %478
  %480 = vrot.lane.b32.xlu0 %v397, 8
  %v481 = vpop.permute.xlu0 %480
  %482 = vrot.lane.b32.xlu0 %v396, 8
  %v483 = vpop.permute.xlu0 %482
  %484 = vrot.lane.b32.xlu0 %v400, 8
  %v485 = vpop.permute.xlu0 %484
  %486 = vrot.lane.b32.xlu0 %v399, 8
  %v487 = vpop.permute.xlu0 %486
  %488 = vrot.lane.b32.xlu0 %v403, 8
  %v489 = vpop.permute.xlu0 %488
  %490 = vrot.lane.b32.xlu0 %v402, 8
  %v491 = vpop.permute.xlu0 %490
  %492 = vrot.lane.b32.xlu0 %v406, 8
  %v493 = vpop.permute.xlu0 %492
  %494 = vrot.lane.b32.xlu0 %v405, 8
  %v495 = vpop.permute.xlu0 %494
  %496 = vrot.lane.b32.xlu0 %v409, 8
  %v497 = vpop.permute.xlu0 %496
  %498 = vrot.lane.b32.xlu0 %v408, 8
  %v499 = vpop.permute.xlu0 %498
  %500 = vrot.lane.b32.xlu0 %v412, 8
  %v501 = vpop.permute.xlu0 %500
  %502 = vrot.lane.b32.xlu0 %v411, 8
  %v503 = vpop.permute.xlu0 %502
  %504 = vrot.lane.b32.xlu0 %v415, 8
  %v505 = vpop.permute.xlu0 %504
  %506 = vrot.lane.b32.xlu0 %v414, 8
  %v507 = vpop.permute.xlu0 %506
  %508 = vrot.lane.b32.xlu0 %v418, 8
  %v509 = vpop.permute.xlu0 %508
  %510 = vrot.lane.b32.xlu0 %v417, 8
  %v511 = vpop.permute.xlu0 %510
  %512 = vrot.lane.b32.xlu0 %v421, 8
  %v513 = vpop.permute.xlu0 %512
  %514 = vrot.lane.b32.xlu0 %v420, 8
  %v515 = vpop.permute.xlu0 %514
  %516 = vrot.lane.b32.xlu0 %v424, 8
  %v517 = vpop.permute.xlu0 %516
  %518 = vrot.lane.b32.xlu0 %v423, 8
  %v519 = vpop.permute.xlu0 %518
  %520 = vrot.lane.b32.xlu0 %v427, 8
  %v521 = vpop.permute.xlu0 %520
  %522 = vrot.lane.b32.xlu0 %v426, 8
  %v523 = vpop.permute.xlu0 %522
  %524 = vrot.lane.b32.xlu0 %v430, 8
  %v525 = vpop.permute.xlu0 %524
  %526 = vrot.lane.b32.xlu0 %v429, 8
  %v527 = vpop.permute.xlu0 %526
  %528 = vrot.lane.b32.xlu0 %v433, 8
  %v529 = vpop.permute.xlu0 %528
  %530 = vrot.lane.b32.xlu0 %v432, 8
  %v531 = vpop.permute.xlu0 %530
  %532 = vrot.lane.b32.xlu0 %v436, 8
  %v533 = vpop.permute.xlu0 %532
  %534 = vrot.lane.b32.xlu0 %v435, 8
  %v535 = vpop.permute.xlu0 %534
  %536 = vrot.lane.b32.xlu0 %v439, 8
  %v537 = vpop.permute.xlu0 %536
  %538 = vrot.lane.b32.xlu0 %v438, 8
  %v539 = vpop.permute.xlu0 %538
  %540 = vrot.lane.b32.xlu0 %v442, 8
  %v541 = vpop.permute.xlu0 %540
  %542 = vrot.lane.b32.xlu0 %v441, 8
  %v543 = vpop.permute.xlu0 %542
  %544 = vrot.lane.b32.xlu0 %v445, 8
  %v545 = vpop.permute.xlu0 %544
  %546 = vrot.lane.b32.xlu0 %v444, 8
  %v547 = vpop.permute.xlu0 %546
  %548 = vrot.lane.b32.xlu0 %v448, 8
  %v549 = vpop.permute.xlu0 %548
  %550 = vrot.lane.b32.xlu0 %v447, 8
  %v551 = vpop.permute.xlu0 %550
  %552 = vrot.lane.b32.xlu0 %v451, 8
  %v553 = vpop.permute.xlu0 %552
  %554 = vrot.lane.b32.xlu0 %v450, 8
  %v555 = vpop.permute.xlu0 %554
  %556 = vrot.lane.b32.xlu0 %v454, 8
  %v557 = vpop.permute.xlu0 %556
  %558 = vrot.lane.b32.xlu0 %v453, 8
  %v559 = vpop.permute.xlu0 %558
  %560 = vrot.lane.b32.xlu0 %v457, 8
  %v561 = vpop.permute.xlu0 %560
  %562 = vrot.lane.b32.xlu0 %v456, 8
  %v563 = vpop.permute.xlu0 %562
  %564 = vrot.lane.b32.xlu0 %v460, 8
  %v565 = vpop.permute.xlu0 %564
  %566 = vrot.lane.b32.xlu0 %v459, 8
  %v567 = vpop.permute.xlu0 %566
  %568 = vrot.lane.b32.xlu0 %v463, 8
  %v569 = vpop.permute.xlu0 %568
  %570 = vrot.lane.b32.xlu0 %v462, 8
  %v571 = vpop.permute.xlu0 %570
  %572 = vrot.lane.b32.xlu0 %v466, 8
  %v573 = vpop.permute.xlu0 %572
  %574 = vrot.lane.b32.xlu0 %v465, 8
  %v575 = vpop.permute.xlu0 %574
  %576 = vrot.lane.b32.xlu0 %v469, 8
  %v577 = vpop.permute.xlu0 %576
  %578 = vrot.lane.b32.xlu0 %v468, 8
  %v579 = vpop.permute.xlu0 %578
  %580 = vrot.lane.b32.xlu0 %v472, 8
  %v581 = vpop.permute.xlu0 %580
  %582 = vrot.lane.b32.xlu0 %v471, 8
  %v583 = vpop.permute.xlu0 %582
  %584 = vrot.lane.b32.xlu0 %v475, 8
  %v585 = vpop.permute.xlu0 %584
  %586 = vrot.lane.b32.xlu0 %v474, 8
  %v587 = vpop.permute.xlu0 %586
  %648 = vrot.lane.b32.xlu0 %v19, 12
  %v649 = vpop.permute.xlu0 %648
  %650 = vrot.lane.b32.xlu0 %v20, 12
  %v651 = vpop.permute.xlu0 %650
  %652 = vrot.lane.b32.xlu0 %v21, 12
  %v653 = vpop.permute.xlu0 %652
  %654 = vrot.lane.b32.xlu0 %v22, 12
  %v655 = vpop.permute.xlu0 %654
  %656 = vrot.lane.b32.xlu0 %v23, 12
  %v657 = vpop.permute.xlu0 %656
  %658 = vrot.lane.b32.xlu0 %v24, 12
  %v659 = vpop.permute.xlu0 %658
  %660 = vrot.lane.b32.xlu0 %v25, 12
  %v661 = vpop.permute.xlu0 %660
  %662 = vrot.lane.b32.xlu0 %v26, 12
  %v663 = vpop.permute.xlu0 %662
  %664 = vrot.lane.b32.xlu0 %v27, 12
  %v665 = vpop.permute.xlu0 %664
  %666 = vrot.lane.b32.xlu0 %v28, 12
  %v667 = vpop.permute.xlu0 %666
  %668 = vrot.lane.b32.xlu0 %v29, 12
  %v669 = vpop.permute.xlu0 %668
  %670 = vrot.lane.b32.xlu0 %v30, 12
  %v671 = vpop.permute.xlu0 %670
  %672 = vrot.lane.b32.xlu0 %v31, 12
  %v673 = vpop.permute.xlu0 %672
  %674 = vrot.lane.b32.xlu0 %v32, 12
  %v675 = vpop.permute.xlu0 %674
  %676 = vrot.lane.b32.xlu0 %v33, 12
  %v677 = vpop.permute.xlu0 %676
  %678 = vrot.lane.b32.xlu0 %v34, 12
  %v679 = vpop.permute.xlu0 %678
  %680 = vrot.lane.b32.xlu0 %v35, 12
  %v681 = vpop.permute.xlu0 %680
  %682 = vrot.lane.b32.xlu0 %v36, 12
  %v683 = vpop.permute.xlu0 %682
  %684 = vrot.lane.b32.xlu0 %v37, 12
  %v685 = vpop.permute.xlu0 %684
  %686 = vrot.lane.b32.xlu0 %v38, 12
  %v687 = vpop.permute.xlu0 %686
  %688 = vrot.lane.b32.xlu0 %v39, 12
  %v689 = vpop.permute.xlu0 %688
  %690 = vrot.lane.b32.xlu0 %v40, 12
  %v691 = vpop.permute.xlu0 %690
  %692 = vrot.lane.b32.xlu0 %v41, 12
  %v693 = vpop.permute.xlu0 %692
  %694 = vrot.lane.b32.xlu0 %v42, 12
  %v695 = vpop.permute.xlu0 %694
  %696 = vrot.lane.b32.xlu0 %v43, 12
  %v697 = vpop.permute.xlu0 %696
  %698 = vrot.lane.b32.xlu0 %v44, 12
  %v699 = vpop.permute.xlu0 %698
  %700 = vrot.lane.b32.xlu0 %v45, 12
  %v701 = vpop.permute.xlu0 %700
  %702 = vrot.lane.b32.xlu0 %v46, 12
  %v703 = vpop.permute.xlu0 %702
  %704 = vrot.lane.b32.xlu0 %v51, 12
  %v705 = vpop.permute.xlu0 %704
  %706 = vrot.lane.b32.xlu0 %v52, 12
  %v707 = vpop.permute.xlu0 %706
  %708 = vrot.lane.b32.xlu0 %v53, 12
  %v709 = vpop.permute.xlu0 %708
  %710 = vrot.lane.b32.xlu0 %v54, 12
  %v711 = vpop.permute.xlu0 %710
  %712 = vrot.lane.b32.xlu0 %v55, 12
  %v713 = vpop.permute.xlu0 %712
  %714 = vrot.lane.b32.xlu0 %v56, 12
  %v715 = vpop.permute.xlu0 %714
  %716 = vrot.lane.b32.xlu0 %v57, 12
  %v717 = vpop.permute.xlu0 %716
  %718 = vrot.lane.b32.xlu0 %v58, 12
  %v719 = vpop.permute.xlu0 %718
  %720 = vrot.lane.b32.xlu0 %v59, 12
  %v721 = vpop.permute.xlu0 %720
  %722 = vrot.lane.b32.xlu0 %v60, 12
  %v723 = vpop.permute.xlu0 %722
  %724 = vrot.lane.b32.xlu0 %v61, 12
  %v725 = vpop.permute.xlu0 %724
  %726 = vrot.lane.b32.xlu0 %v62, 12
  %v727 = vpop.permute.xlu0 %726
  %728 = vrot.lane.b32.xlu0 %v63, 12
  %v729 = vpop.permute.xlu0 %728
  %730 = vrot.lane.b32.xlu0 %v64, 12
  %v731 = vpop.permute.xlu0 %730
  %732 = vrot.lane.b32.xlu0 %v65, 12
  %v733 = vpop.permute.xlu0 %732
  %734 = vrot.lane.b32.xlu0 %v66, 12
  %v735 = vpop.permute.xlu0 %734
  %736 = vrot.lane.b32.xlu0 %v67, 12
  %v737 = vpop.permute.xlu0 %736
  %738 = vrot.lane.b32.xlu0 %v68, 12
  %v739 = vpop.permute.xlu0 %738
  %740 = vrot.lane.b32.xlu0 %v69, 12
  %v741 = vpop.permute.xlu0 %740
  %742 = vrot.lane.b32.xlu0 %v70, 12
  %v743 = vpop.permute.xlu0 %742
  %744 = vrot.lane.b32.xlu0 %v71, 12
  %v745 = vpop.permute.xlu0 %744
  %746 = vrot.lane.b32.xlu0 %v72, 12
  %v747 = vpop.permute.xlu0 %746
  %748 = vrot.lane.b32.xlu0 %v73, 12
  %v749 = vpop.permute.xlu0 %748
  %750 = vrot.lane.b32.xlu0 %v74, 12
  %v751 = vpop.permute.xlu0 %750
  %752 = vrot.lane.b32.xlu0 %v75, 12
  %v753 = vpop.permute.xlu0 %752
  %754 = vrot.lane.b32.xlu0 %v76, 12
  %v755 = vpop.permute.xlu0 %754
  %756 = vrot.lane.b32.xlu0 %v77, 12
  %v757 = vpop.permute.xlu0 %756
  %758 = vrot.lane.b32.xlu0 %v78, 12
  %v759 = vpop.permute.xlu0 %758
  %v816 = vrot.slane %v45, 1
  %v817 = vrot.slane %v46, 1
  %v818 = vsel %vm138, %v816, %v817
  %v819 = vrot.slane %v77, 1
  %v820 = vrot.slane %v78, 1
  %v821 = vsel %vm138, %v819, %v820
  %822 = vrot.lane.b32.xlu0 %v144, 16
  %v823 = vpop.permute.xlu0 %822
  %824 = vrot.lane.b32.xlu0 %v143, 16
  %v825 = vpop.permute.xlu0 %824
  %826 = vrot.lane.b32.xlu0 %v147, 16
  %v827 = vpop.permute.xlu0 %826
  %828 = vrot.lane.b32.xlu0 %v146, 16
  %v829 = vpop.permute.xlu0 %828
  %830 = vrot.lane.b32.xlu0 %v150, 16
  %v831 = vpop.permute.xlu0 %830
  %832 = vrot.lane.b32.xlu0 %v149, 16
  %v833 = vpop.permute.xlu0 %832
  %834 = vrot.lane.b32.xlu0 %v153, 16
  %v835 = vpop.permute.xlu0 %834
  %836 = vrot.lane.b32.xlu0 %v152, 16
  %v837 = vpop.permute.xlu0 %836
  %838 = vrot.lane.b32.xlu0 %v156, 16
  %v839 = vpop.permute.xlu0 %838
  %840 = vrot.lane.b32.xlu0 %v155, 16
  %v841 = vpop.permute.xlu0 %840
  %842 = vrot.lane.b32.xlu0 %v159, 16
  %v843 = vpop.permute.xlu0 %842
  %844 = vrot.lane.b32.xlu0 %v158, 16
  %v845 = vpop.permute.xlu0 %844
  %846 = vrot.lane.b32.xlu0 %v162, 16
  %v847 = vpop.permute.xlu0 %846
  %848 = vrot.lane.b32.xlu0 %v161, 16
  %v849 = vpop.permute.xlu0 %848
  %850 = vrot.lane.b32.xlu0 %v165, 16
  %v851 = vpop.permute.xlu0 %850
  %852 = vrot.lane.b32.xlu0 %v164, 16
  %v853 = vpop.permute.xlu0 %852
  %854 = vrot.lane.b32.xlu0 %v168, 16
  %v855 = vpop.permute.xlu0 %854
  %856 = vrot.lane.b32.xlu0 %v167, 16
  %v857 = vpop.permute.xlu0 %856
  %858 = vrot.lane.b32.xlu0 %v171, 16
  %v859 = vpop.permute.xlu0 %858
  %860 = vrot.lane.b32.xlu0 %v170, 16
  %v861 = vpop.permute.xlu0 %860
  %862 = vrot.lane.b32.xlu0 %v174, 16
  %v863 = vpop.permute.xlu0 %862
  %864 = vrot.lane.b32.xlu0 %v173, 16
  %v865 = vpop.permute.xlu0 %864
  %866 = vrot.lane.b32.xlu0 %v177, 16
  %v867 = vpop.permute.xlu0 %866
  %868 = vrot.lane.b32.xlu0 %v176, 16
  %v869 = vpop.permute.xlu0 %868
  %870 = vrot.lane.b32.xlu0 %v180, 16
  %v871 = vpop.permute.xlu0 %870
  %872 = vrot.lane.b32.xlu0 %v179, 16
  %v873 = vpop.permute.xlu0 %872
  %874 = vrot.lane.b32.xlu0 %v818, 16
  %v875 = vpop.permute.xlu0 %874
  %876 = vrot.lane.b32.xlu0 %v817, 16
  %v877 = vpop.permute.xlu0 %876
  %878 = vrot.lane.b32.xlu0 %v186, 16
  %v879 = vpop.permute.xlu0 %878
  %880 = vrot.lane.b32.xlu0 %v185, 16
  %v881 = vpop.permute.xlu0 %880
  %882 = vrot.lane.b32.xlu0 %v189, 16
  %v883 = vpop.permute.xlu0 %882
  %884 = vrot.lane.b32.xlu0 %v188, 16
  %v885 = vpop.permute.xlu0 %884
  %886 = vrot.lane.b32.xlu0 %v192, 16
  %v887 = vpop.permute.xlu0 %886
  %888 = vrot.lane.b32.xlu0 %v191, 16
  %v889 = vpop.permute.xlu0 %888
  %890 = vrot.lane.b32.xlu0 %v195, 16
  %v891 = vpop.permute.xlu0 %890
  %892 = vrot.lane.b32.xlu0 %v194, 16
  %v893 = vpop.permute.xlu0 %892
  %894 = vrot.lane.b32.xlu0 %v198, 16
  %v895 = vpop.permute.xlu0 %894
  %896 = vrot.lane.b32.xlu0 %v197, 16
  %v897 = vpop.permute.xlu0 %896
  %898 = vrot.lane.b32.xlu0 %v201, 16
  %v899 = vpop.permute.xlu0 %898
  %900 = vrot.lane.b32.xlu0 %v200, 16
  %v901 = vpop.permute.xlu0 %900
  %902 = vrot.lane.b32.xlu0 %v204, 16
  %v903 = vpop.permute.xlu0 %902
  %904 = vrot.lane.b32.xlu0 %v203, 16
  %v905 = vpop.permute.xlu0 %904
  %906 = vrot.lane.b32.xlu0 %v207, 16
  %v907 = vpop.permute.xlu0 %906
  %908 = vrot.lane.b32.xlu0 %v206, 16
  %v909 = vpop.permute.xlu0 %908
  %910 = vrot.lane.b32.xlu0 %v210, 16
  %v911 = vpop.permute.xlu0 %910
  %912 = vrot.lane.b32.xlu0 %v209, 16
  %v913 = vpop.permute.xlu0 %912
  %914 = vrot.lane.b32.xlu0 %v213, 16
  %v915 = vpop.permute.xlu0 %914
  %916 = vrot.lane.b32.xlu0 %v212, 16
  %v917 = vpop.permute.xlu0 %916
  %918 = vrot.lane.b32.xlu0 %v216, 16
  %v919 = vpop.permute.xlu0 %918
  %920 = vrot.lane.b32.xlu0 %v215, 16
  %v921 = vpop.permute.xlu0 %920
  %922 = vrot.lane.b32.xlu0 %v219, 16
  %v923 = vpop.permute.xlu0 %922
  %924 = vrot.lane.b32.xlu0 %v218, 16
  %v925 = vpop.permute.xlu0 %924
  %926 = vrot.lane.b32.xlu0 %v222, 16
  %v927 = vpop.permute.xlu0 %926
  %928 = vrot.lane.b32.xlu0 %v221, 16
  %v929 = vpop.permute.xlu0 %928
  %930 = vrot.lane.b32.xlu0 %v821, 16
  %v931 = vpop.permute.xlu0 %930
  %932 = vrot.lane.b32.xlu0 %v820, 16
  %v933 = vpop.permute.xlu0 %932
  %v990 = vrot.slane %v45, 2
  %v991 = vrot.slane %v46, 2
  %v992 = vsel %vm391, %v990, %v991
  %v993 = vrot.slane %v77, 2
  %v994 = vrot.slane %v78, 2
  %v995 = vsel %vm391, %v993, %v994
  %996 = vrot.lane.b32.xlu0 %v397, 20
  %v997 = vpop.permute.xlu0 %996
  %998 = vrot.lane.b32.xlu0 %v396, 20
  %v999 = vpop.permute.xlu0 %998
  %1000 = vrot.lane.b32.xlu0 %v400, 20
  %v1001 = vpop.permute.xlu0 %1000
  %1002 = vrot.lane.b32.xlu0 %v399, 20
  %v1003 = vpop.permute.xlu0 %1002
  %1004 = vrot.lane.b32.xlu0 %v403, 20
  %v1005 = vpop.permute.xlu0 %1004
  %1006 = vrot.lane.b32.xlu0 %v402, 20
  %v1007 = vpop.permute.xlu0 %1006
  %1008 = vrot.lane.b32.xlu0 %v406, 20
  %v1009 = vpop.permute.xlu0 %1008
  %1010 = vrot.lane.b32.xlu0 %v405, 20
  %v1011 = vpop.permute.xlu0 %1010
  %1012 = vrot.lane.b32.xlu0 %v409, 20
  %v1013 = vpop.permute.xlu0 %1012
  %1014 = vrot.lane.b32.xlu0 %v408, 20
  %v1015 = vpop.permute.xlu0 %1014
  %1016 = vrot.lane.b32.xlu0 %v412, 20
  %v1017 = vpop.permute.xlu0 %1016
  %1018 = vrot.lane.b32.xlu0 %v411, 20
  %v1019 = vpop.permute.xlu0 %1018
  %1020 = vrot.lane.b32.xlu0 %v415, 20
  %v1021 = vpop.permute.xlu0 %1020
  %1022 = vrot.lane.b32.xlu0 %v414, 20
  %v1023 = vpop.permute.xlu0 %1022
  %1024 = vrot.lane.b32.xlu0 %v418, 20
  %v1025 = vpop.permute.xlu0 %1024
  %1026 = vrot.lane.b32.xlu0 %v417, 20
  %v1027 = vpop.permute.xlu0 %1026
  %1028 = vrot.lane.b32.xlu0 %v421, 20
  %v1029 = vpop.permute.xlu0 %1028
  %1030 = vrot.lane.b32.xlu0 %v420, 20
  %v1031 = vpop.permute.xlu0 %1030
  %1032 = vrot.lane.b32.xlu0 %v424, 20
  %v1033 = vpop.permute.xlu0 %1032
  %1034 = vrot.lane.b32.xlu0 %v423, 20
  %v1035 = vpop.permute.xlu0 %1034
  %1036 = vrot.lane.b32.xlu0 %v427, 20
  %v1037 = vpop.permute.xlu0 %1036
  %1038 = vrot.lane.b32.xlu0 %v426, 20
  %v1039 = vpop.permute.xlu0 %1038
  %1040 = vrot.lane.b32.xlu0 %v430, 20
  %v1041 = vpop.permute.xlu0 %1040
  %1042 = vrot.lane.b32.xlu0 %v429, 20
  %v1043 = vpop.permute.xlu0 %1042
  %1044 = vrot.lane.b32.xlu0 %v433, 20
  %v1045 = vpop.permute.xlu0 %1044
  %1046 = vrot.lane.b32.xlu0 %v432, 20
  %v1047 = vpop.permute.xlu0 %1046
  %1048 = vrot.lane.b32.xlu0 %v992, 20
  %v1049 = vpop.permute.xlu0 %1048
  %1050 = vrot.lane.b32.xlu0 %v991, 20
  %v1051 = vpop.permute.xlu0 %1050
  %1052 = vrot.lane.b32.xlu0 %v439, 20
  %v1053 = vpop.permute.xlu0 %1052
  %1054 = vrot.lane.b32.xlu0 %v438, 20
  %v1055 = vpop.permute.xlu0 %1054
  %1056 = vrot.lane.b32.xlu0 %v442, 20
  %v1057 = vpop.permute.xlu0 %1056
  %1058 = vrot.lane.b32.xlu0 %v441, 20
  %v1059 = vpop.permute.xlu0 %1058
  %1060 = vrot.lane.b32.xlu0 %v445, 20
  %v1061 = vpop.permute.xlu0 %1060
  %1062 = vrot.lane.b32.xlu0 %v444, 20
  %v1063 = vpop.permute.xlu0 %1062
  %1064 = vrot.lane.b32.xlu0 %v448, 20
  %v1065 = vpop.permute.xlu0 %1064
  %1066 = vrot.lane.b32.xlu0 %v447, 20
  %v1067 = vpop.permute.xlu0 %1066
  %1068 = vrot.lane.b32.xlu0 %v451, 20
  %v1069 = vpop.permute.xlu0 %1068
  %1070 = vrot.lane.b32.xlu0 %v450, 20
  %v1071 = vpop.permute.xlu0 %1070
  %1072 = vrot.lane.b32.xlu0 %v454, 20
  %v1073 = vpop.permute.xlu0 %1072
  %1074 = vrot.lane.b32.xlu0 %v453, 20
  %v1075 = vpop.permute.xlu0 %1074
  %1076 = vrot.lane.b32.xlu0 %v457, 20
  %v1077 = vpop.permute.xlu0 %1076
  %1078 = vrot.lane.b32.xlu0 %v456, 20
  %v1079 = vpop.permute.xlu0 %1078
  %1080 = vrot.lane.b32.xlu0 %v460, 20
  %v1081 = vpop.permute.xlu0 %1080
  %1082 = vrot.lane.b32.xlu0 %v459, 20
  %v1083 = vpop.permute.xlu0 %1082
  %1084 = vrot.lane.b32.xlu0 %v463, 20
  %v1085 = vpop.permute.xlu0 %1084
  %1086 = vrot.lane.b32.xlu0 %v462, 20
  %v1087 = vpop.permute.xlu0 %1086
  %1088 = vrot.lane.b32.xlu0 %v466, 20
  %v1089 = vpop.permute.xlu0 %1088
  %1090 = vrot.lane.b32.xlu0 %v465, 20
  %v1091 = vpop.permute.xlu0 %1090
  %1092 = vrot.lane.b32.xlu0 %v469, 20
  %v1093 = vpop.permute.xlu0 %1092
  %1094 = vrot.lane.b32.xlu0 %v468, 20
  %v1095 = vpop.permute.xlu0 %1094
  %1096 = vrot.lane.b32.xlu0 %v472, 20
  %v1097 = vpop.permute.xlu0 %1096
  %1098 = vrot.lane.b32.xlu0 %v471, 20
  %v1099 = vpop.permute.xlu0 %1098
  %1100 = vrot.lane.b32.xlu0 %v475, 20
  %v1101 = vpop.permute.xlu0 %1100
  %1102 = vrot.lane.b32.xlu0 %v474, 20
  %v1103 = vpop.permute.xlu0 %1102
  %1104 = vrot.lane.b32.xlu0 %v995, 20
  %v1105 = vpop.permute.xlu0 %1104
  %1106 = vrot.lane.b32.xlu0 %v994, 20
  %v1107 = vpop.permute.xlu0 %1106
  %1168 = vrot.lane.b32.xlu0 %v21, 24
  %v1169 = vpop.permute.xlu0 %1168
  %1170 = vrot.lane.b32.xlu0 %v22, 24
  %v1171 = vpop.permute.xlu0 %1170
  %1172 = vrot.lane.b32.xlu0 %v23, 24
  %v1173 = vpop.permute.xlu0 %1172
  %1174 = vrot.lane.b32.xlu0 %v24, 24
  %v1175 = vpop.permute.xlu0 %1174
  %1176 = vrot.lane.b32.xlu0 %v25, 24
  %v1177 = vpop.permute.xlu0 %1176
  %1178 = vrot.lane.b32.xlu0 %v26, 24
  %v1179 = vpop.permute.xlu0 %1178
  %1180 = vrot.lane.b32.xlu0 %v27, 24
  %v1181 = vpop.permute.xlu0 %1180
  %1182 = vrot.lane.b32.xlu0 %v28, 24
  %v1183 = vpop.permute.xlu0 %1182
  %1184 = vrot.lane.b32.xlu0 %v29, 24
  %v1185 = vpop.permute.xlu0 %1184
  %1186 = vrot.lane.b32.xlu0 %v30, 24
  %v1187 = vpop.permute.xlu0 %1186
  %1188 = vrot.lane.b32.xlu0 %v31, 24
  %v1189 = vpop.permute.xlu0 %1188
  %1190 = vrot.lane.b32.xlu0 %v32, 24
  %v1191 = vpop.permute.xlu0 %1190
  %1192 = vrot.lane.b32.xlu0 %v33, 24
  %v1193 = vpop.permute.xlu0 %1192
  %1194 = vrot.lane.b32.xlu0 %v34, 24
  %v1195 = vpop.permute.xlu0 %1194
  %1196 = vrot.lane.b32.xlu0 %v35, 24
  %v1197 = vpop.permute.xlu0 %1196
  %1198 = vrot.lane.b32.xlu0 %v36, 24
  %v1199 = vpop.permute.xlu0 %1198
  %1200 = vrot.lane.b32.xlu0 %v37, 24
  %v1201 = vpop.permute.xlu0 %1200
  %1202 = vrot.lane.b32.xlu0 %v38, 24
  %v1203 = vpop.permute.xlu0 %1202
  %1204 = vrot.lane.b32.xlu0 %v39, 24
  %v1205 = vpop.permute.xlu0 %1204
  %1206 = vrot.lane.b32.xlu0 %v40, 24
  %v1207 = vpop.permute.xlu0 %1206
  %1208 = vrot.lane.b32.xlu0 %v41, 24
  %v1209 = vpop.permute.xlu0 %1208
  %1210 = vrot.lane.b32.xlu0 %v42, 24
  %v1211 = vpop.permute.xlu0 %1210
  %1212 = vrot.lane.b32.xlu0 %v43, 24
  %v1213 = vpop.permute.xlu0 %1212
  %1214 = vrot.lane.b32.xlu0 %v44, 24
  %v1215 = vpop.permute.xlu0 %1214
  %1216 = vrot.lane.b32.xlu0 %v45, 24
  %v1217 = vpop.permute.xlu0 %1216
  %1218 = vrot.lane.b32.xlu0 %v46, 24
  %v1219 = vpop.permute.xlu0 %1218
  %1220 = vrot.lane.b32.xlu0 %v47, 24
  %v1221 = vpop.permute.xlu0 %1220
  %1222 = vrot.lane.b32.xlu0 %v48, 24
  %v1223 = vpop.permute.xlu0 %1222
  %1224 = vrot.lane.b32.xlu0 %v53, 24
  %v1225 = vpop.permute.xlu0 %1224
  %1226 = vrot.lane.b32.xlu0 %v54, 24
  %v1227 = vpop.permute.xlu0 %1226
  %1228 = vrot.lane.b32.xlu0 %v55, 24
  %v1229 = vpop.permute.xlu0 %1228
  %1230 = vrot.lane.b32.xlu0 %v56, 24
  %v1231 = vpop.permute.xlu0 %1230
  %1232 = vrot.lane.b32.xlu0 %v57, 24
  %v1233 = vpop.permute.xlu0 %1232
  %1234 = vrot.lane.b32.xlu0 %v58, 24
  %v1235 = vpop.permute.xlu0 %1234
  %1236 = vrot.lane.b32.xlu0 %v59, 24
  %v1237 = vpop.permute.xlu0 %1236
  %1238 = vrot.lane.b32.xlu0 %v60, 24
  %v1239 = vpop.permute.xlu0 %1238
  %1240 = vrot.lane.b32.xlu0 %v61, 24
  %v1241 = vpop.permute.xlu0 %1240
  %1242 = vrot.lane.b32.xlu0 %v62, 24
  %v1243 = vpop.permute.xlu0 %1242
  %1244 = vrot.lane.b32.xlu0 %v63, 24
  %v1245 = vpop.permute.xlu0 %1244
  %1246 = vrot.lane.b32.xlu0 %v64, 24
  %v1247 = vpop.permute.xlu0 %1246
  %1248 = vrot.lane.b32.xlu0 %v65, 24
  %v1249 = vpop.permute.xlu0 %1248
  %1250 = vrot.lane.b32.xlu0 %v66, 24
  %v1251 = vpop.permute.xlu0 %1250
  %1252 = vrot.lane.b32.xlu0 %v67, 24
  %v1253 = vpop.permute.xlu0 %1252
  %1254 = vrot.lane.b32.xlu0 %v68, 24
  %v1255 = vpop.permute.xlu0 %1254
  %1256 = vrot.lane.b32.xlu0 %v69, 24
  %v1257 = vpop.permute.xlu0 %1256
  %1258 = vrot.lane.b32.xlu0 %v70, 24
  %v1259 = vpop.permute.xlu0 %1258
  %1260 = vrot.lane.b32.xlu0 %v71, 24
  %v1261 = vpop.permute.xlu0 %1260
  %1262 = vrot.lane.b32.xlu0 %v72, 24
  %v1263 = vpop.permute.xlu0 %1262
  %1264 = vrot.lane.b32.xlu0 %v73, 24
  %v1265 = vpop.permute.xlu0 %1264
  %1266 = vrot.lane.b32.xlu0 %v74, 24
  %v1267 = vpop.permute.xlu0 %1266
  %1268 = vrot.lane.b32.xlu0 %v75, 24
  %v1269 = vpop.permute.xlu0 %1268
  %1270 = vrot.lane.b32.xlu0 %v76, 24
  %v1271 = vpop.permute.xlu0 %1270
  %1272 = vrot.lane.b32.xlu0 %v77, 24
  %v1273 = vpop.permute.xlu0 %1272
  %1274 = vrot.lane.b32.xlu0 %v78, 24
  %v1275 = vpop.permute.xlu0 %1274
  %1276 = vrot.lane.b32.xlu0 %v79, 24
  %v1277 = vpop.permute.xlu0 %1276
  %1278 = vrot.lane.b32.xlu0 %v80, 24
  %v1279 = vpop.permute.xlu0 %1278
  %v1336 = vrot.slane %v47, 1
  %v1337 = vrot.slane %v48, 1
  %v1338 = vsel %vm138, %v1336, %v1337
  %v1339 = vrot.slane %v79, 1
  %v1340 = vrot.slane %v80, 1
  %v1341 = vsel %vm138, %v1339, %v1340
  %1342 = vrot.lane.b32.xlu0 %v147, 28
  %v1343 = vpop.permute.xlu0 %1342
  %1344 = vrot.lane.b32.xlu0 %v146, 28
  %v1345 = vpop.permute.xlu0 %1344
  %1346 = vrot.lane.b32.xlu0 %v150, 28
  %v1347 = vpop.permute.xlu0 %1346
  %1348 = vrot.lane.b32.xlu0 %v149, 28
  %v1349 = vpop.permute.xlu0 %1348
  %1350 = vrot.lane.b32.xlu0 %v153, 28
  %v1351 = vpop.permute.xlu0 %1350
  %1352 = vrot.lane.b32.xlu0 %v152, 28
  %v1353 = vpop.permute.xlu0 %1352
  %1354 = vrot.lane.b32.xlu0 %v156, 28
  %v1355 = vpop.permute.xlu0 %1354
  %1356 = vrot.lane.b32.xlu0 %v155, 28
  %v1357 = vpop.permute.xlu0 %1356
  %1358 = vrot.lane.b32.xlu0 %v159, 28
  %v1359 = vpop.permute.xlu0 %1358
  %1360 = vrot.lane.b32.xlu0 %v158, 28
  %v1361 = vpop.permute.xlu0 %1360
  %1362 = vrot.lane.b32.xlu0 %v162, 28
  %v1363 = vpop.permute.xlu0 %1362
  %1364 = vrot.lane.b32.xlu0 %v161, 28
  %v1365 = vpop.permute.xlu0 %1364
  %1366 = vrot.lane.b32.xlu0 %v165, 28
  %v1367 = vpop.permute.xlu0 %1366
  %1368 = vrot.lane.b32.xlu0 %v164, 28
  %v1369 = vpop.permute.xlu0 %1368
  %1370 = vrot.lane.b32.xlu0 %v168, 28
  %v1371 = vpop.permute.xlu0 %1370
  %1372 = vrot.lane.b32.xlu0 %v167, 28
  %v1373 = vpop.permute.xlu0 %1372
  %1374 = vrot.lane.b32.xlu0 %v171, 28
  %v1375 = vpop.permute.xlu0 %1374
  %1376 = vrot.lane.b32.xlu0 %v170, 28
  %v1377 = vpop.permute.xlu0 %1376
  %1378 = vrot.lane.b32.xlu0 %v174, 28
  %v1379 = vpop.permute.xlu0 %1378
  %1380 = vrot.lane.b32.xlu0 %v173, 28
  %v1381 = vpop.permute.xlu0 %1380
  %1382 = vrot.lane.b32.xlu0 %v177, 28
  %v1383 = vpop.permute.xlu0 %1382
  %1384 = vrot.lane.b32.xlu0 %v176, 28
  %v1385 = vpop.permute.xlu0 %1384
  %1386 = vrot.lane.b32.xlu0 %v180, 28
  %v1387 = vpop.permute.xlu0 %1386
  %1388 = vrot.lane.b32.xlu0 %v179, 28
  %v1389 = vpop.permute.xlu0 %1388
  %1390 = vrot.lane.b32.xlu0 %v818, 28
  %v1391 = vpop.permute.xlu0 %1390
  %1392 = vrot.lane.b32.xlu0 %v817, 28
  %v1393 = vpop.permute.xlu0 %1392
  %1394 = vrot.lane.b32.xlu0 %v1338, 28
  %v1395 = vpop.permute.xlu0 %1394
  %1396 = vrot.lane.b32.xlu0 %v1337, 28
  %v1397 = vpop.permute.xlu0 %1396
  %1398 = vrot.lane.b32.xlu0 %v189, 28
  %v1399 = vpop.permute.xlu0 %1398
  %1400 = vrot.lane.b32.xlu0 %v188, 28
  %v1401 = vpop.permute.xlu0 %1400
  %1402 = vrot.lane.b32.xlu0 %v192, 28
  %v1403 = vpop.permute.xlu0 %1402
  %1404 = vrot.lane.b32.xlu0 %v191, 28
  %v1405 = vpop.permute.xlu0 %1404
  %1406 = vrot.lane.b32.xlu0 %v195, 28
  %v1407 = vpop.permute.xlu0 %1406
  %1408 = vrot.lane.b32.xlu0 %v194, 28
  %v1409 = vpop.permute.xlu0 %1408
  %1410 = vrot.lane.b32.xlu0 %v198, 28
  %v1411 = vpop.permute.xlu0 %1410
  %1412 = vrot.lane.b32.xlu0 %v197, 28
  %v1413 = vpop.permute.xlu0 %1412
  %1414 = vrot.lane.b32.xlu0 %v201, 28
  %v1415 = vpop.permute.xlu0 %1414
  %1416 = vrot.lane.b32.xlu0 %v200, 28
  %v1417 = vpop.permute.xlu0 %1416
  %1418 = vrot.lane.b32.xlu0 %v204, 28
  %v1419 = vpop.permute.xlu0 %1418
  %1420 = vrot.lane.b32.xlu0 %v203, 28
  %v1421 = vpop.permute.xlu0 %1420
  %1422 = vrot.lane.b32.xlu0 %v207, 28
  %v1423 = vpop.permute.xlu0 %1422
  %1424 = vrot.lane.b32.xlu0 %v206, 28
  %v1425 = vpop.permute.xlu0 %1424
  %1426 = vrot.lane.b32.xlu0 %v210, 28
  %v1427 = vpop.permute.xlu0 %1426
  %1428 = vrot.lane.b32.xlu0 %v209, 28
  %v1429 = vpop.permute.xlu0 %1428
  %1430 = vrot.lane.b32.xlu0 %v213, 28
  %v1431 = vpop.permute.xlu0 %1430
  %1432 = vrot.lane.b32.xlu0 %v212, 28
  %v1433 = vpop.permute.xlu0 %1432
  %1434 = vrot.lane.b32.xlu0 %v216, 28
  %v1435 = vpop.permute.xlu0 %1434
  %1436 = vrot.lane.b32.xlu0 %v215, 28
  %v1437 = vpop.permute.xlu0 %1436
  %1438 = vrot.lane.b32.xlu0 %v219, 28
  %v1439 = vpop.permute.xlu0 %1438
  %1440 = vrot.lane.b32.xlu0 %v218, 28
  %v1441 = vpop.permute.xlu0 %1440
  %1442 = vrot.lane.b32.xlu0 %v222, 28
  %v1443 = vpop.permute.xlu0 %1442
  %1444 = vrot.lane.b32.xlu0 %v221, 28
  %v1445 = vpop.permute.xlu0 %1444
  %1446 = vrot.lane.b32.xlu0 %v821, 28
  %v1447 = vpop.permute.xlu0 %1446
  %1448 = vrot.lane.b32.xlu0 %v820, 28
  %v1449 = vpop.permute.xlu0 %1448
  %1450 = vrot.lane.b32.xlu0 %v1341, 28
  %v1451 = vpop.permute.xlu0 %1450
  %1452 = vrot.lane.b32.xlu0 %v1340, 28
  %v1453 = vpop.permute.xlu0 %1452
  %v1510 = vrot.slane %v47, 2
  %v1511 = vrot.slane %v48, 2
  %v1512 = vsel %vm391, %v1510, %v1511
  %v1513 = vrot.slane %v79, 2
  %v1514 = vrot.slane %v80, 2
  %v1515 = vsel %vm391, %v1513, %v1514
  %1516 = vrot.lane.b32.xlu0 %v400, 32
  %v1517 = vpop.permute.xlu0 %1516
  %1518 = vrot.lane.b32.xlu0 %v399, 32
  %v1519 = vpop.permute.xlu0 %1518
  %1520 = vrot.lane.b32.xlu0 %v403, 32
  %v1521 = vpop.permute.xlu0 %1520
  %1522 = vrot.lane.b32.xlu0 %v402, 32
  %v1523 = vpop.permute.xlu0 %1522
  %1524 = vrot.lane.b32.xlu0 %v406, 32
  %v1525 = vpop.permute.xlu0 %1524
  %1526 = vrot.lane.b32.xlu0 %v405, 32
  %v1527 = vpop.permute.xlu0 %1526
  %1528 = vrot.lane.b32.xlu0 %v409, 32
  %v1529 = vpop.permute.xlu0 %1528
  %1530 = vrot.lane.b32.xlu0 %v408, 32
  %v1531 = vpop.permute.xlu0 %1530
  %1532 = vrot.lane.b32.xlu0 %v412, 32
  %v1533 = vpop.permute.xlu0 %1532
  %1534 = vrot.lane.b32.xlu0 %v411, 32
  %v1535 = vpop.permute.xlu0 %1534
  %1536 = vrot.lane.b32.xlu0 %v415, 32
  %v1537 = vpop.permute.xlu0 %1536
  %1538 = vrot.lane.b32.xlu0 %v414, 32
  %v1539 = vpop.permute.xlu0 %1538
  %1540 = vrot.lane.b32.xlu0 %v418, 32
  %v1541 = vpop.permute.xlu0 %1540
  %1542 = vrot.lane.b32.xlu0 %v417, 32
  %v1543 = vpop.permute.xlu0 %1542
  %1544 = vrot.lane.b32.xlu0 %v421, 32
  %v1545 = vpop.permute.xlu0 %1544
  %1546 = vrot.lane.b32.xlu0 %v420, 32
  %v1547 = vpop.permute.xlu0 %1546
  %1548 = vrot.lane.b32.xlu0 %v424, 32
  %v1549 = vpop.permute.xlu0 %1548
  %1550 = vrot.lane.b32.xlu0 %v423, 32
  %v1551 = vpop.permute.xlu0 %1550
  %1552 = vrot.lane.b32.xlu0 %v427, 32
  %v1553 = vpop.permute.xlu0 %1552
  %1554 = vrot.lane.b32.xlu0 %v426, 32
  %v1555 = vpop.permute.xlu0 %1554
  %1556 = vrot.lane.b32.xlu0 %v430, 32
  %v1557 = vpop.permute.xlu0 %1556
  %1558 = vrot.lane.b32.xlu0 %v429, 32
  %v1559 = vpop.permute.xlu0 %1558
  %1560 = vrot.lane.b32.xlu0 %v433, 32
  %v1561 = vpop.permute.xlu0 %1560
  %1562 = vrot.lane.b32.xlu0 %v432, 32
  %v1563 = vpop.permute.xlu0 %1562
  %1564 = vrot.lane.b32.xlu0 %v992, 32
  %v1565 = vpop.permute.xlu0 %1564
  %1566 = vrot.lane.b32.xlu0 %v991, 32
  %v1567 = vpop.permute.xlu0 %1566
  %1568 = vrot.lane.b32.xlu0 %v1512, 32
  %v1569 = vpop.permute.xlu0 %1568
  %1570 = vrot.lane.b32.xlu0 %v1511, 32
  %v1571 = vpop.permute.xlu0 %1570
  %1572 = vrot.lane.b32.xlu0 %v442, 32
  %v1573 = vpop.permute.xlu0 %1572
  %1574 = vrot.lane.b32.xlu0 %v441, 32
  %v1575 = vpop.permute.xlu0 %1574
  %1576 = vrot.lane.b32.xlu0 %v445, 32
  %v1577 = vpop.permute.xlu0 %1576
  %1578 = vrot.lane.b32.xlu0 %v444, 32
  %v1579 = vpop.permute.xlu0 %1578
  %1580 = vrot.lane.b32.xlu0 %v448, 32
  %v1581 = vpop.permute.xlu0 %1580
  %1582 = vrot.lane.b32.xlu0 %v447, 32
  %v1583 = vpop.permute.xlu0 %1582
  %1584 = vrot.lane.b32.xlu0 %v451, 32
  %v1585 = vpop.permute.xlu0 %1584
  %1586 = vrot.lane.b32.xlu0 %v450, 32
  %v1587 = vpop.permute.xlu0 %1586
  %1588 = vrot.lane.b32.xlu0 %v454, 32
  %v1589 = vpop.permute.xlu0 %1588
  %1590 = vrot.lane.b32.xlu0 %v453, 32
  %v1591 = vpop.permute.xlu0 %1590
  %1592 = vrot.lane.b32.xlu0 %v457, 32
  %v1593 = vpop.permute.xlu0 %1592
  %1594 = vrot.lane.b32.xlu0 %v456, 32
  %v1595 = vpop.permute.xlu0 %1594
  %1596 = vrot.lane.b32.xlu0 %v460, 32
  %v1597 = vpop.permute.xlu0 %1596
  %1598 = vrot.lane.b32.xlu0 %v459, 32
  %v1599 = vpop.permute.xlu0 %1598
  %1600 = vrot.lane.b32.xlu0 %v463, 32
  %v1601 = vpop.permute.xlu0 %1600
  %1602 = vrot.lane.b32.xlu0 %v462, 32
  %v1603 = vpop.permute.xlu0 %1602
  %1604 = vrot.lane.b32.xlu0 %v466, 32
  %v1605 = vpop.permute.xlu0 %1604
  %1606 = vrot.lane.b32.xlu0 %v465, 32
  %v1607 = vpop.permute.xlu0 %1606
  %1608 = vrot.lane.b32.xlu0 %v469, 32
  %v1609 = vpop.permute.xlu0 %1608
  %1610 = vrot.lane.b32.xlu0 %v468, 32
  %v1611 = vpop.permute.xlu0 %1610
  %1612 = vrot.lane.b32.xlu0 %v472, 32
  %v1613 = vpop.permute.xlu0 %1612
  %1614 = vrot.lane.b32.xlu0 %v471, 32
  %v1615 = vpop.permute.xlu0 %1614
  %1616 = vrot.lane.b32.xlu0 %v475, 32
  %v1617 = vpop.permute.xlu0 %1616
  %1618 = vrot.lane.b32.xlu0 %v474, 32
  %v1619 = vpop.permute.xlu0 %1618
  %1620 = vrot.lane.b32.xlu0 %v995, 32
  %v1621 = vpop.permute.xlu0 %1620
  %1622 = vrot.lane.b32.xlu0 %v994, 32
  %v1623 = vpop.permute.xlu0 %1622
  %1624 = vrot.lane.b32.xlu0 %v1515, 32
  %v1625 = vpop.permute.xlu0 %1624
  %1626 = vrot.lane.b32.xlu0 %v1514, 32
  %v1627 = vpop.permute.xlu0 %1626
  %vm1684 = vcmask 31744
  %v1685 = vsel %vm1684, %v17, %v224
  %v1686 = vsel %vm1684, %v18, %v226
  %v1687 = vsel %vm1684, %v19, %v228
  %v1688 = vsel %vm1684, %v20, %v230
  %v1689 = vsel %vm1684, %v21, %v232
  %v1690 = vsel %vm1684, %v22, %v234
  %v1691 = vsel %vm1684, %v23, %v236
  %v1692 = vsel %vm1684, %v24, %v238
  %v1693 = vsel %vm1684, %v25, %v240
  %v1694 = vsel %vm1684, %v26, %v242
  %v1695 = vsel %vm1684, %v27, %v244
  %v1696 = vsel %vm1684, %v28, %v246
  %v1697 = vsel %vm1684, %v29, %v248
  %v1698 = vsel %vm1684, %v30, %v250
  %v1699 = vsel %vm1684, %v31, %v252
  %v1700 = vsel %vm1684, %v32, %v254
  %v1701 = vsel %vm1684, %v33, %v256
  %v1702 = vsel %vm1684, %v34, %v258
  %v1703 = vsel %vm1684, %v35, %v260
  %v1704 = vsel %vm1684, %v36, %v262
  %v1705 = vsel %vm1684, %v37, %v264
  %v1706 = vsel %vm1684, %v38, %v266
  %v1707 = vsel %vm1684, %v39, %v268
  %v1708 = vsel %vm1684, %v40, %v270
  %v1709 = vsel %vm1684, %v41, %v272
  %v1710 = vsel %vm1684, %v42, %v274
  %v1711 = vsel %vm1684, %v43, %v276
  %v1712 = vsel %vm1684, %v44, %v278
  %v1713 = vsel %vm1684, %v49, %v280
  %v1714 = vsel %vm1684, %v50, %v282
  %v1715 = vsel %vm1684, %v51, %v284
  %v1716 = vsel %vm1684, %v52, %v286
  %v1717 = vsel %vm1684, %v53, %v288
  %v1718 = vsel %vm1684, %v54, %v290
  %v1719 = vsel %vm1684, %v55, %v292
  %v1720 = vsel %vm1684, %v56, %v294
  %v1721 = vsel %vm1684, %v57, %v296
  %v1722 = vsel %vm1684, %v58, %v298
  %v1723 = vsel %vm1684, %v59, %v300
  %v1724 = vsel %vm1684, %v60, %v302
  %v1725 = vsel %vm1684, %v61, %v304
  %v1726 = vsel %vm1684, %v62, %v306
  %v1727 = vsel %vm1684, %v63, %v308
  %v1728 = vsel %vm1684, %v64, %v310
  %v1729 = vsel %vm1684, %v65, %v312
  %v1730 = vsel %vm1684, %v66, %v314
  %v1731 = vsel %vm1684, %v67, %v316
  %v1732 = vsel %vm1684, %v68, %v318
  %v1733 = vsel %vm1684, %v69, %v320
  %v1734 = vsel %vm1684, %v70, %v322
  %v1735 = vsel %vm1684, %v71, %v324
  %v1736 = vsel %vm1684, %v72, %v326
  %v1737 = vsel %vm1684, %v73, %v328
  %v1738 = vsel %vm1684, %v74, %v330
  %v1739 = vsel %vm1684, %v75, %v332
  %v1740 = vsel %vm1684, %v76, %v334
  %vm1741 = vcmask 64512
  %v1742 = vsel %vm1741, %v1685, %v477
  %v1743 = vsel %vm1741, %v1686, %v479
  %v1744 = vsel %vm1741, %v1687, %v481
  %v1745 = vsel %vm1741, %v1688, %v483
  %v1746 = vsel %vm1741, %v1689, %v485
  %v1747 = vsel %vm1741, %v1690, %v487
  %v1748 = vsel %vm1741, %v1691, %v489
  %v1749 = vsel %vm1741, %v1692, %v491
  %v1750 = vsel %vm1741, %v1693, %v493
  %v1751 = vsel %vm1741, %v1694, %v495
  %v1752 = vsel %vm1741, %v1695, %v497
  %v1753 = vsel %vm1741, %v1696, %v499
  %v1754 = vsel %vm1741, %v1697, %v501
  %v1755 = vsel %vm1741, %v1698, %v503
  %v1756 = vsel %vm1741, %v1699, %v505
  %v1757 = vsel %vm1741, %v1700, %v507
  %v1758 = vsel %vm1741, %v1701, %v509
  %v1759 = vsel %vm1741, %v1702, %v511
  %v1760 = vsel %vm1741, %v1703, %v513
  %v1761 = vsel %vm1741, %v1704, %v515
  %v1762 = vsel %vm1741, %v1705, %v517
  %v1763 = vsel %vm1741, %v1706, %v519
  %v1764 = vsel %vm1741, %v1707, %v521
  %v1765 = vsel %vm1741, %v1708, %v523
  %v1766 = vsel %vm1741, %v1709, %v525
  %v1767 = vsel %vm1741, %v1710, %v527
  %v1768 = vsel %vm1741, %v1711, %v529
  %v1769 = vsel %vm1741, %v1712, %v531
  %v1770 = vsel %vm1741, %v1713, %v533
  %v1771 = vsel %vm1741, %v1714, %v535
  %v1772 = vsel %vm1741, %v1715, %v537
  %v1773 = vsel %vm1741, %v1716, %v539
  %v1774 = vsel %vm1741, %v1717, %v541
  %v1775 = vsel %vm1741, %v1718, %v543
  %v1776 = vsel %vm1741, %v1719, %v545
  %v1777 = vsel %vm1741, %v1720, %v547
  %v1778 = vsel %vm1741, %v1721, %v549
  %v1779 = vsel %vm1741, %v1722, %v551
  %v1780 = vsel %vm1741, %v1723, %v553
  %v1781 = vsel %vm1741, %v1724, %v555
  %v1782 = vsel %vm1741, %v1725, %v557
  %v1783 = vsel %vm1741, %v1726, %v559
  %v1784 = vsel %vm1741, %v1727, %v561
  %v1785 = vsel %vm1741, %v1728, %v563
  %v1786 = vsel %vm1741, %v1729, %v565
  %v1787 = vsel %vm1741, %v1730, %v567
  %v1788 = vsel %vm1741, %v1731, %v569
  %v1789 = vsel %vm1741, %v1732, %v571
  %v1790 = vsel %vm1741, %v1733, %v573
  %v1791 = vsel %vm1741, %v1734, %v575
  %v1792 = vsel %vm1741, %v1735, %v577
  %v1793 = vsel %vm1741, %v1736, %v579
  %v1794 = vsel %vm1741, %v1737, %v581
  %v1795 = vsel %vm1741, %v1738, %v583
  %v1796 = vsel %vm1741, %v1739, %v585
  %v1797 = vsel %vm1741, %v1740, %v587
  %vm1798 = vcmask 97280
  %v1799 = vsel %vm1798, %v1742, %v649
  %v1800 = vsel %vm1798, %v1743, %v651
  %v1801 = vsel %vm1798, %v1744, %v653
  %v1802 = vsel %vm1798, %v1745, %v655
  %v1803 = vsel %vm1798, %v1746, %v657
  %v1804 = vsel %vm1798, %v1747, %v659
  %v1805 = vsel %vm1798, %v1748, %v661
  %v1806 = vsel %vm1798, %v1749, %v663
  %v1807 = vsel %vm1798, %v1750, %v665
  %v1808 = vsel %vm1798, %v1751, %v667
  %v1809 = vsel %vm1798, %v1752, %v669
  %v1810 = vsel %vm1798, %v1753, %v671
  %v1811 = vsel %vm1798, %v1754, %v673
  %v1812 = vsel %vm1798, %v1755, %v675
  %v1813 = vsel %vm1798, %v1756, %v677
  %v1814 = vsel %vm1798, %v1757, %v679
  %v1815 = vsel %vm1798, %v1758, %v681
  %v1816 = vsel %vm1798, %v1759, %v683
  %v1817 = vsel %vm1798, %v1760, %v685
  %v1818 = vsel %vm1798, %v1761, %v687
  %v1819 = vsel %vm1798, %v1762, %v689
  %v1820 = vsel %vm1798, %v1763, %v691
  %v1821 = vsel %vm1798, %v1764, %v693
  %v1822 = vsel %vm1798, %v1765, %v695
  %v1823 = vsel %vm1798, %v1766, %v697
  %v1824 = vsel %vm1798, %v1767, %v699
  %v1825 = vsel %vm1798, %v1768, %v701
  %v1826 = vsel %vm1798, %v1769, %v703
  %v1827 = vsel %vm1798, %v1770, %v705
  %v1828 = vsel %vm1798, %v1771, %v707
  %v1829 = vsel %vm1798, %v1772, %v709
  %v1830 = vsel %vm1798, %v1773, %v711
  %v1831 = vsel %vm1798, %v1774, %v713
  %v1832 = vsel %vm1798, %v1775, %v715
  %v1833 = vsel %vm1798, %v1776, %v717
  %v1834 = vsel %vm1798, %v1777, %v719
  %v1835 = vsel %vm1798, %v1778, %v721
  %v1836 = vsel %vm1798, %v1779, %v723
  %v1837 = vsel %vm1798, %v1780, %v725
  %v1838 = vsel %vm1798, %v1781, %v727
  %v1839 = vsel %vm1798, %v1782, %v729
  %v1840 = vsel %vm1798, %v1783, %v731
  %v1841 = vsel %vm1798, %v1784, %v733
  %v1842 = vsel %vm1798, %v1785, %v735
  %v1843 = vsel %vm1798, %v1786, %v737
  %v1844 = vsel %vm1798, %v1787, %v739
  %v1845 = vsel %vm1798, %v1788, %v741
  %v1846 = vsel %vm1798, %v1789, %v743
  %v1847 = vsel %vm1798, %v1790, %v745
  %v1848 = vsel %vm1798, %v1791, %v747
  %v1849 = vsel %vm1798, %v1792, %v749
  %v1850 = vsel %vm1798, %v1793, %v751
  %v1851 = vsel %vm1798, %v1794, %v753
  %v1852 = vsel %vm1798, %v1795, %v755
  %v1853 = vsel %vm1798, %v1796, %v757
  %v1854 = vsel %vm1798, %v1797, %v759
  %vm1855 = vcmask 130048
  %v1856 = vsel %vm1855, %v1799, %v823
  %v1857 = vsel %vm1855, %v1800, %v825
  %v1858 = vsel %vm1855, %v1801, %v827
  %v1859 = vsel %vm1855, %v1802, %v829
  %v1860 = vsel %vm1855, %v1803, %v831
  %v1861 = vsel %vm1855, %v1804, %v833
  %v1862 = vsel %vm1855, %v1805, %v835
  %v1863 = vsel %vm1855, %v1806, %v837
  %v1864 = vsel %vm1855, %v1807, %v839
  %v1865 = vsel %vm1855, %v1808, %v841
  %v1866 = vsel %vm1855, %v1809, %v843
  %v1867 = vsel %vm1855, %v1810, %v845
  %v1868 = vsel %vm1855, %v1811, %v847
  %v1869 = vsel %vm1855, %v1812, %v849
  %v1870 = vsel %vm1855, %v1813, %v851
  %v1871 = vsel %vm1855, %v1814, %v853
  %v1872 = vsel %vm1855, %v1815, %v855
  %v1873 = vsel %vm1855, %v1816, %v857
  %v1874 = vsel %vm1855, %v1817, %v859
  %v1875 = vsel %vm1855, %v1818, %v861
  %v1876 = vsel %vm1855, %v1819, %v863
  %v1877 = vsel %vm1855, %v1820, %v865
  %v1878 = vsel %vm1855, %v1821, %v867
  %v1879 = vsel %vm1855, %v1822, %v869
  %v1880 = vsel %vm1855, %v1823, %v871
  %v1881 = vsel %vm1855, %v1824, %v873
  %v1882 = vsel %vm1855, %v1825, %v875
  %v1883 = vsel %vm1855, %v1826, %v877
  %v1884 = vsel %vm1855, %v1827, %v879
  %v1885 = vsel %vm1855, %v1828, %v881
  %v1886 = vsel %vm1855, %v1829, %v883
  %v1887 = vsel %vm1855, %v1830, %v885
  %v1888 = vsel %vm1855, %v1831, %v887
  %v1889 = vsel %vm1855, %v1832, %v889
  %v1890 = vsel %vm1855, %v1833, %v891
  %v1891 = vsel %vm1855, %v1834, %v893
  %v1892 = vsel %vm1855, %v1835, %v895
  %v1893 = vsel %vm1855, %v1836, %v897
  %v1894 = vsel %vm1855, %v1837, %v899
  %v1895 = vsel %vm1855, %v1838, %v901
  %v1896 = vsel %vm1855, %v1839, %v903
  %v1897 = vsel %vm1855, %v1840, %v905
  %v1898 = vsel %vm1855, %v1841, %v907
  %v1899 = vsel %vm1855, %v1842, %v909
  %v1900 = vsel %vm1855, %v1843, %v911
  %v1901 = vsel %vm1855, %v1844, %v913
  %v1902 = vsel %vm1855, %v1845, %v915
  %v1903 = vsel %vm1855, %v1846, %v917
  %v1904 = vsel %vm1855, %v1847, %v919
  %v1905 = vsel %vm1855, %v1848, %v921
  %v1906 = vsel %vm1855, %v1849, %v923
  %v1907 = vsel %vm1855, %v1850, %v925
  %v1908 = vsel %vm1855, %v1851, %v927
  %v1909 = vsel %vm1855, %v1852, %v929
  %v1910 = vsel %vm1855, %v1853, %v931
  %v1911 = vsel %vm1855, %v1854, %v933
  %vm1912 = vcmask 162816
  %v1913 = vsel %vm1912, %v1856, %v997
  %v1914 = vsel %vm1912, %v1857, %v999
  %v1915 = vsel %vm1912, %v1858, %v1001
  %v1916 = vsel %vm1912, %v1859, %v1003
  %v1917 = vsel %vm1912, %v1860, %v1005
  %v1918 = vsel %vm1912, %v1861, %v1007
  %v1919 = vsel %vm1912, %v1862, %v1009
  %v1920 = vsel %vm1912, %v1863, %v1011
  %v1921 = vsel %vm1912, %v1864, %v1013
  %v1922 = vsel %vm1912, %v1865, %v1015
  %v1923 = vsel %vm1912, %v1866, %v1017
  %v1924 = vsel %vm1912, %v1867, %v1019
  %v1925 = vsel %vm1912, %v1868, %v1021
  %v1926 = vsel %vm1912, %v1869, %v1023
  %v1927 = vsel %vm1912, %v1870, %v1025
  %v1928 = vsel %vm1912, %v1871, %v1027
  %v1929 = vsel %vm1912, %v1872, %v1029
  %v1930 = vsel %vm1912, %v1873, %v1031
  %v1931 = vsel %vm1912, %v1874, %v1033
  %v1932 = vsel %vm1912, %v1875, %v1035
  %v1933 = vsel %vm1912, %v1876, %v1037
  %v1934 = vsel %vm1912, %v1877, %v1039
  %v1935 = vsel %vm1912, %v1878, %v1041
  %v1936 = vsel %vm1912, %v1879, %v1043
  %v1937 = vsel %vm1912, %v1880, %v1045
  %v1938 = vsel %vm1912, %v1881, %v1047
  %v1939 = vsel %vm1912, %v1882, %v1049
  %v1940 = vsel %vm1912, %v1883, %v1051
  %v1941 = vsel %vm1912, %v1884, %v1053
  %v1942 = vsel %vm1912, %v1885, %v1055
  %v1943 = vsel %vm1912, %v1886, %v1057
  %v1944 = vsel %vm1912, %v1887, %v1059
  %v1945 = vsel %vm1912, %v1888, %v1061
  %v1946 = vsel %vm1912, %v1889, %v1063
  %v1947 = vsel %vm1912, %v1890, %v1065
  %v1948 = vsel %vm1912, %v1891, %v1067
  %v1949 = vsel %vm1912, %v1892, %v1069
  %v1950 = vsel %vm1912, %v1893, %v1071
  %v1951 = vsel %vm1912, %v1894, %v1073
  %v1952 = vsel %vm1912, %v1895, %v1075
  %v1953 = vsel %vm1912, %v1896, %v1077
  %v1954 = vsel %vm1912, %v1897, %v1079
  %v1955 = vsel %vm1912, %v1898, %v1081
  %v1956 = vsel %vm1912, %v1899, %v1083
  %v1957 = vsel %vm1912, %v1900, %v1085
  %v1958 = vsel %vm1912, %v1901, %v1087
  %v1959 = vsel %vm1912, %v1902, %v1089
  %v1960 = vsel %vm1912, %v1903, %v1091
  %v1961 = vsel %vm1912, %v1904, %v1093
  %v1962 = vsel %vm1912, %v1905, %v1095
  %v1963 = vsel %vm1912, %v1906, %v1097
  %v1964 = vsel %vm1912, %v1907, %v1099
  %v1965 = vsel %vm1912, %v1908, %v1101
  %v1966 = vsel %vm1912, %v1909, %v1103
  %v1967 = vsel %vm1912, %v1910, %v1105
  %v1968 = vsel %vm1912, %v1911, %v1107
  %vm1969 = vcmask 195584
  %v1970 = vsel %vm1969, %v1913, %v1169
  %v1971 = vsel %vm1969, %v1914, %v1171
  %v1972 = vsel %vm1969, %v1915, %v1173
  %v1973 = vsel %vm1969, %v1916, %v1175
  %v1974 = vsel %vm1969, %v1917, %v1177
  %v1975 = vsel %vm1969, %v1918, %v1179
  %v1976 = vsel %vm1969, %v1919, %v1181
  %v1977 = vsel %vm1969, %v1920, %v1183
  %v1978 = vsel %vm1969, %v1921, %v1185
  %v1979 = vsel %vm1969, %v1922, %v1187
  %v1980 = vsel %vm1969, %v1923, %v1189
  %v1981 = vsel %vm1969, %v1924, %v1191
  %v1982 = vsel %vm1969, %v1925, %v1193
  %v1983 = vsel %vm1969, %v1926, %v1195
  %v1984 = vsel %vm1969, %v1927, %v1197
  %v1985 = vsel %vm1969, %v1928, %v1199
  %v1986 = vsel %vm1969, %v1929, %v1201
  %v1987 = vsel %vm1969, %v1930, %v1203
  %v1988 = vsel %vm1969, %v1931, %v1205
  %v1989 = vsel %vm1969, %v1932, %v1207
  %v1990 = vsel %vm1969, %v1933, %v1209
  %v1991 = vsel %vm1969, %v1934, %v1211
  %v1992 = vsel %vm1969, %v1935, %v1213
  %v1993 = vsel %vm1969, %v1936, %v1215
  %v1994 = vsel %vm1969, %v1937, %v1217
  %v1995 = vsel %vm1969, %v1938, %v1219
  %v1996 = vsel %vm1969, %v1939, %v1221
  %v1997 = vsel %vm1969, %v1940, %v1223
  %v1998 = vsel %vm1969, %v1941, %v1225
  %v1999 = vsel %vm1969, %v1942, %v1227
  %v2000 = vsel %vm1969, %v1943, %v1229
  %v2001 = vsel %vm1969, %v1944, %v1231
  %v2002 = vsel %vm1969, %v1945, %v1233
  %v2003 = vsel %vm1969, %v1946, %v1235
  %v2004 = vsel %vm1969, %v1947, %v1237
  %v2005 = vsel %vm1969, %v1948, %v1239
  %v2006 = vsel %vm1969, %v1949, %v1241
  %v2007 = vsel %vm1969, %v1950, %v1243
  %v2008 = vsel %vm1969, %v1951, %v1245
  %v2009 = vsel %vm1969, %v1952, %v1247
  %v2010 = vsel %vm1969, %v1953, %v1249
  %v2011 = vsel %vm1969, %v1954, %v1251
  %v2012 = vsel %vm1969, %v1955, %v1253
  %v2013 = vsel %vm1969, %v1956, %v1255
  %v2014 = vsel %vm1969, %v1957, %v1257
  %v2015 = vsel %vm1969, %v1958, %v1259
  %v2016 = vsel %vm1969, %v1959, %v1261
  %v2017 = vsel %vm1969, %v1960, %v1263
  %v2018 = vsel %vm1969, %v1961, %v1265
  %v2019 = vsel %vm1969, %v1962, %v1267
  %v2020 = vsel %vm1969, %v1963, %v1269
  %v2021 = vsel %vm1969, %v1964, %v1271
  %v2022 = vsel %vm1969, %v1965, %v1273
  %v2023 = vsel %vm1969, %v1966, %v1275
  %v2024 = vsel %vm1969, %v1967, %v1277
  %v2025 = vsel %vm1969, %v1968, %v1279
  %vm2026 = vcmask 228352
  %v2027 = vsel %vm2026, %v1970, %v1343
  %v2028 = vsel %vm2026, %v1971, %v1345
  %v2029 = vsel %vm2026, %v1972, %v1347
  %v2030 = vsel %vm2026, %v1973, %v1349
  %v2031 = vsel %vm2026, %v1974, %v1351
  %v2032 = vsel %vm2026, %v1975, %v1353
  %v2033 = vsel %vm2026, %v1976, %v1355
  %v2034 = vsel %vm2026, %v1977, %v1357
  %v2035 = vsel %vm2026, %v1978, %v1359
  %v2036 = vsel %vm2026, %v1979, %v1361
  %v2037 = vsel %vm2026, %v1980, %v1363
  %v2038 = vsel %vm2026, %v1981, %v1365
  %v2039 = vsel %vm2026, %v1982, %v1367
  %v2040 = vsel %vm2026, %v1983, %v1369
  %v2041 = vsel %vm2026, %v1984, %v1371
  %v2042 = vsel %vm2026, %v1985, %v1373
  %v2043 = vsel %vm2026, %v1986, %v1375
  %v2044 = vsel %vm2026, %v1987, %v1377
  %v2045 = vsel %vm2026, %v1988, %v1379
  %v2046 = vsel %vm2026, %v1989, %v1381
  %v2047 = vsel %vm2026, %v1990, %v1383
  %v2048 = vsel %vm2026, %v1991, %v1385
  %v2049 = vsel %vm2026, %v1992, %v1387
  %v2050 = vsel %vm2026, %v1993, %v1389
  %v2051 = vsel %vm2026, %v1994, %v1391
  %v2052 = vsel %vm2026, %v1995, %v1393
  %v2053 = vsel %vm2026, %v1996, %v1395
  %v2054 = vsel %vm2026, %v1997, %v1397
  %v2055 = vsel %vm2026, %v1998, %v1399
  %v2056 = vsel %vm2026, %v1999, %v1401
  %v2057 = vsel %vm2026, %v2000, %v1403
  %v2058 = vsel %vm2026, %v2001, %v1405
  %v2059 = vsel %vm2026, %v2002, %v1407
  %v2060 = vsel %vm2026, %v2003, %v1409
  %v2061 = vsel %vm2026, %v2004, %v1411
  %v2062 = vsel %vm2026, %v2005, %v1413
  %v2063 = vsel %vm2026, %v2006, %v1415
  %v2064 = vsel %vm2026, %v2007, %v1417
  %v2065 = vsel %vm2026, %v2008, %v1419
  %v2066 = vsel %vm2026, %v2009, %v1421
  %v2067 = vsel %vm2026, %v2010, %v1423
  %v2068 = vsel %vm2026, %v2011, %v1425
  %v2069 = vsel %vm2026, %v2012, %v1427
  %v2070 = vsel %vm2026, %v2013, %v1429
  %v2071 = vsel %vm2026, %v2014, %v1431
  %v2072 = vsel %vm2026, %v2015, %v1433
  %v2073 = vsel %vm2026, %v2016, %v1435
  %v2074 = vsel %vm2026, %v2017, %v1437
  %v2075 = vsel %vm2026, %v2018, %v1439
  %v2076 = vsel %vm2026, %v2019, %v1441
  %v2077 = vsel %vm2026, %v2020, %v1443
  %v2078 = vsel %vm2026, %v2021, %v1445
  %v2079 = vsel %vm2026, %v2022, %v1447
  %v2080 = vsel %vm2026, %v2023, %v1449
  %v2081 = vsel %vm2026, %v2024, %v1451
  %v2082 = vsel %vm2026, %v2025, %v1453
  %vm2083 = vcmask 261120
  %v2084 = vsel %vm2083, %v2027, %v1517
  %v2085 = vsel %vm2083, %v2028, %v1519
  %v2086 = vsel %vm2083, %v2029, %v1521
  %v2087 = vsel %vm2083, %v2030, %v1523
  %v2088 = vsel %vm2083, %v2031, %v1525
  %v2089 = vsel %vm2083, %v2032, %v1527
  %v2090 = vsel %vm2083, %v2033, %v1529
  %v2091 = vsel %vm2083, %v2034, %v1531
  %v2092 = vsel %vm2083, %v2035, %v1533
  %v2093 = vsel %vm2083, %v2036, %v1535
  %v2094 = vsel %vm2083, %v2037, %v1537
  %v2095 = vsel %vm2083, %v2038, %v1539
  %v2096 = vsel %vm2083, %v2039, %v1541
  %v2097 = vsel %vm2083, %v2040, %v1543
  %v2098 = vsel %vm2083, %v2041, %v1545
  %v2099 = vsel %vm2083, %v2042, %v1547
  %v2100 = vsel %vm2083, %v2043, %v1549
  %v2101 = vsel %vm2083, %v2044, %v1551
  %v2102 = vsel %vm2083, %v2045, %v1553
  %v2103 = vsel %vm2083, %v2046, %v1555
  %v2104 = vsel %vm2083, %v2047, %v1557
  %v2105 = vsel %vm2083, %v2048, %v1559
  %v2106 = vsel %vm2083, %v2049, %v1561
  %v2107 = vsel %vm2083, %v2050, %v1563
  %v2108 = vsel %vm2083, %v2051, %v1565
  %v2109 = vsel %vm2083, %v2052, %v1567
  %v2110 = vsel %vm2083, %v2053, %v1569
  %v2111 = vsel %vm2083, %v2054, %v1571
  %v2112 = vsel %vm2083, %v2055, %v1573
  %v2113 = vsel %vm2083, %v2056, %v1575
  %v2114 = vsel %vm2083, %v2057, %v1577
  %v2115 = vsel %vm2083, %v2058, %v1579
  %v2116 = vsel %vm2083, %v2059, %v1581
  %v2117 = vsel %vm2083, %v2060, %v1583
  %v2118 = vsel %vm2083, %v2061, %v1585
  %v2119 = vsel %vm2083, %v2062, %v1587
  %v2120 = vsel %vm2083, %v2063, %v1589
  %v2121 = vsel %vm2083, %v2064, %v1591
  %v2122 = vsel %vm2083, %v2065, %v1593
  %v2123 = vsel %vm2083, %v2066, %v1595
  %v2124 = vsel %vm2083, %v2067, %v1597
  %v2125 = vsel %vm2083, %v2068, %v1599
  %v2126 = vsel %vm2083, %v2069, %v1601
  %v2127 = vsel %vm2083, %v2070, %v1603
  %v2128 = vsel %vm2083, %v2071, %v1605
  %v2129 = vsel %vm2083, %v2072, %v1607
  %v2130 = vsel %vm2083, %v2073, %v1609
  %v2131 = vsel %vm2083, %v2074, %v1611
  %v2132 = vsel %vm2083, %v2075, %v1613
  %v2133 = vsel %vm2083, %v2076, %v1615
  %v2134 = vsel %vm2083, %v2077, %v1617
  %v2135 = vsel %vm2083, %v2078, %v1619
  %v2136 = vsel %vm2083, %v2079, %v1621
  %v2137 = vsel %vm2083, %v2080, %v1623
  %v2138 = vsel %vm2083, %v2081, %v1625
  %v2139 = vsel %vm2083, %v2082, %v1627
  %v2196 = vcombine.high %v2084, %v2084
  %v2198 = vunpack.c.l.s4 1983009808
  %v2199 = vunpack.c.0.s8 %v2198
  %v2200 = vlaneseq
  %v2201 = vshrl.u32 %v2200, 7
  %v2202 = vsub.s32 %v2199, %v2201
  %v2203 = vrot.slane %v2084, %v2202
  %v2205 = vunpack.c.l.s4 1983009808
  %v2206 = vunpack.c.0.s8 %v2205
  %v2207 = vlaneseq
  %v2208 = vshrl.u32 %v2207, 7
  %v2209 = vsub.s32 %v2206, %v2208
  %v2210 = vrot.slane %v2196, %v2209
  %v2211 = vcombine.high %v2203, %v2203
  %v2212 = vcombine.high %v2210, %v2210
  %v2213 = vcombine.high %v2085, %v2085
  %v2215 = vunpack.c.l.s4 1983009808
  %v2216 = vunpack.c.0.s8 %v2215
  %v2217 = vlaneseq
  %v2218 = vshrl.u32 %v2217, 7
  %v2219 = vsub.s32 %v2216, %v2218
  %v2220 = vrot.slane %v2085, %v2219
  %v2222 = vunpack.c.l.s4 1983009808
  %v2223 = vunpack.c.0.s8 %v2222
  %v2224 = vlaneseq
  %v2225 = vshrl.u32 %v2224, 7
  %v2226 = vsub.s32 %v2223, %v2225
  %v2227 = vrot.slane %v2213, %v2226
  %v2228 = vcombine.high %v2220, %v2220
  %v2229 = vcombine.high %v2086, %v2086
  %v2231 = vunpack.c.l.s4 1983009808
  %v2232 = vunpack.c.0.s8 %v2231
  %v2233 = vlaneseq
  %v2234 = vshrl.u32 %v2233, 7
  %v2235 = vsub.s32 %v2232, %v2234
  %v2236 = vrot.slane %v2086, %v2235
  %v2238 = vunpack.c.l.s4 1983009808
  %v2239 = vunpack.c.0.s8 %v2238
  %v2240 = vlaneseq
  %v2241 = vshrl.u32 %v2240, 7
  %v2242 = vsub.s32 %v2239, %v2241
  %v2243 = vrot.slane %v2229, %v2242
  %v2244 = vcombine.high %v2236, %v2236
  %v2245 = vcombine.high %v2243, %v2243
  %v2246 = vcombine.high %v2087, %v2087
  %v2248 = vunpack.c.l.s4 1983009808
  %v2249 = vunpack.c.0.s8 %v2248
  %v2250 = vlaneseq
  %v2251 = vshrl.u32 %v2250, 7
  %v2252 = vsub.s32 %v2249, %v2251
  %v2253 = vrot.slane %v2087, %v2252
  %v2255 = vunpack.c.l.s4 1983009808
  %v2256 = vunpack.c.0.s8 %v2255
  %v2257 = vlaneseq
  %v2258 = vshrl.u32 %v2257, 7
  %v2259 = vsub.s32 %v2256, %v2258
  %v2260 = vrot.slane %v2246, %v2259
  %v2261 = vcombine.high %v2253, %v2253
  %v2262 = vcombine.high %v2088, %v2088
  %v2264 = vunpack.c.l.s4 1983009808
  %v2265 = vunpack.c.0.s8 %v2264
  %v2266 = vlaneseq
  %v2267 = vshrl.u32 %v2266, 7
  %v2268 = vsub.s32 %v2265, %v2267
  %v2269 = vrot.slane %v2088, %v2268
  %v2271 = vunpack.c.l.s4 1983009808
  %v2272 = vunpack.c.0.s8 %v2271
  %v2273 = vlaneseq
  %v2274 = vshrl.u32 %v2273, 7
  %v2275 = vsub.s32 %v2272, %v2274
  %v2276 = vrot.slane %v2262, %v2275
  %v2277 = vcombine.high %v2269, %v2269
  %v2278 = vcombine.high %v2276, %v2276
  %v2279 = vcombine.high %v2089, %v2089
  %v2281 = vunpack.c.l.s4 1983009808
  %v2282 = vunpack.c.0.s8 %v2281
  %v2283 = vlaneseq
  %v2284 = vshrl.u32 %v2283, 7
  %v2285 = vsub.s32 %v2282, %v2284
  %v2286 = vrot.slane %v2089, %v2285
  %v2288 = vunpack.c.l.s4 1983009808
  %v2289 = vunpack.c.0.s8 %v2288
  %v2290 = vlaneseq
  %v2291 = vshrl.u32 %v2290, 7
  %v2292 = vsub.s32 %v2289, %v2291
  %v2293 = vrot.slane %v2279, %v2292
  %v2294 = vcombine.high %v2286, %v2286
  %v2295 = vcombine.high %v2090, %v2090
  %v2297 = vunpack.c.l.s4 1983009808
  %v2298 = vunpack.c.0.s8 %v2297
  %v2299 = vlaneseq
  %v2300 = vshrl.u32 %v2299, 7
  %v2301 = vsub.s32 %v2298, %v2300
  %v2302 = vrot.slane %v2090, %v2301
  %v2304 = vunpack.c.l.s4 1983009808
  %v2305 = vunpack.c.0.s8 %v2304
  %v2306 = vlaneseq
  %v2307 = vshrl.u32 %v2306, 7
  %v2308 = vsub.s32 %v2305, %v2307
  %v2309 = vrot.slane %v2295, %v2308
  %v2310 = vcombine.high %v2302, %v2302
  %v2311 = vcombine.high %v2309, %v2309
  %v2312 = vcombine.high %v2091, %v2091
  %v2314 = vunpack.c.l.s4 1983009808
  %v2315 = vunpack.c.0.s8 %v2314
  %v2316 = vlaneseq
  %v2317 = vshrl.u32 %v2316, 7
  %v2318 = vsub.s32 %v2315, %v2317
  %v2319 = vrot.slane %v2091, %v2318
  %v2321 = vunpack.c.l.s4 1983009808
  %v2322 = vunpack.c.0.s8 %v2321
  %v2323 = vlaneseq
  %v2324 = vshrl.u32 %v2323, 7
  %v2325 = vsub.s32 %v2322, %v2324
  %v2326 = vrot.slane %v2312, %v2325
  %v2327 = vcombine.high %v2319, %v2319
  %v2328 = vcombine.high %v2092, %v2092
  %v2330 = vunpack.c.l.s4 1983009808
  %v2331 = vunpack.c.0.s8 %v2330
  %v2332 = vlaneseq
  %v2333 = vshrl.u32 %v2332, 7
  %v2334 = vsub.s32 %v2331, %v2333
  %v2335 = vrot.slane %v2092, %v2334
  %v2337 = vunpack.c.l.s4 1983009808
  %v2338 = vunpack.c.0.s8 %v2337
  %v2339 = vlaneseq
  %v2340 = vshrl.u32 %v2339, 7
  %v2341 = vsub.s32 %v2338, %v2340
  %v2342 = vrot.slane %v2328, %v2341
  %v2343 = vcombine.high %v2335, %v2335
  %v2344 = vcombine.high %v2342, %v2342
  %v2345 = vcombine.high %v2093, %v2093
  %v2347 = vunpack.c.l.s4 1983009808
  %v2348 = vunpack.c.0.s8 %v2347
  %v2349 = vlaneseq
  %v2350 = vshrl.u32 %v2349, 7
  %v2351 = vsub.s32 %v2348, %v2350
  %v2352 = vrot.slane %v2093, %v2351
  %v2354 = vunpack.c.l.s4 1983009808
  %v2355 = vunpack.c.0.s8 %v2354
  %v2356 = vlaneseq
  %v2357 = vshrl.u32 %v2356, 7
  %v2358 = vsub.s32 %v2355, %v2357
  %v2359 = vrot.slane %v2345, %v2358
  %v2360 = vcombine.high %v2352, %v2352
  %v2361 = vcombine.high %v2094, %v2094
  %v2363 = vunpack.c.l.s4 1983009808
  %v2364 = vunpack.c.0.s8 %v2363
  %v2365 = vlaneseq
  %v2366 = vshrl.u32 %v2365, 7
  %v2367 = vsub.s32 %v2364, %v2366
  %v2368 = vrot.slane %v2094, %v2367
  %v2370 = vunpack.c.l.s4 1983009808
  %v2371 = vunpack.c.0.s8 %v2370
  %v2372 = vlaneseq
  %v2373 = vshrl.u32 %v2372, 7
  %v2374 = vsub.s32 %v2371, %v2373
  %v2375 = vrot.slane %v2361, %v2374
  %v2376 = vcombine.high %v2368, %v2368
  %v2377 = vcombine.high %v2375, %v2375
  %v2378 = vcombine.high %v2095, %v2095
  %v2380 = vunpack.c.l.s4 1983009808
  %v2381 = vunpack.c.0.s8 %v2380
  %v2382 = vlaneseq
  %v2383 = vshrl.u32 %v2382, 7
  %v2384 = vsub.s32 %v2381, %v2383
  %v2385 = vrot.slane %v2095, %v2384
  %v2387 = vunpack.c.l.s4 1983009808
  %v2388 = vunpack.c.0.s8 %v2387
  %v2389 = vlaneseq
  %v2390 = vshrl.u32 %v2389, 7
  %v2391 = vsub.s32 %v2388, %v2390
  %v2392 = vrot.slane %v2378, %v2391
  %v2393 = vcombine.high %v2385, %v2385
  %v2394 = vcombine.high %v2096, %v2096
  %v2396 = vunpack.c.l.s4 1983009808
  %v2397 = vunpack.c.0.s8 %v2396
  %v2398 = vlaneseq
  %v2399 = vshrl.u32 %v2398, 7
  %v2400 = vsub.s32 %v2397, %v2399
  %v2401 = vrot.slane %v2096, %v2400
  %v2403 = vunpack.c.l.s4 1983009808
  %v2404 = vunpack.c.0.s8 %v2403
  %v2405 = vlaneseq
  %v2406 = vshrl.u32 %v2405, 7
  %v2407 = vsub.s32 %v2404, %v2406
  %v2408 = vrot.slane %v2394, %v2407
  %v2409 = vcombine.high %v2401, %v2401
  %v2410 = vcombine.high %v2408, %v2408
  %v2411 = vcombine.high %v2097, %v2097
  %v2413 = vunpack.c.l.s4 1983009808
  %v2414 = vunpack.c.0.s8 %v2413
  %v2415 = vlaneseq
  %v2416 = vshrl.u32 %v2415, 7
  %v2417 = vsub.s32 %v2414, %v2416
  %v2418 = vrot.slane %v2097, %v2417
  %v2420 = vunpack.c.l.s4 1983009808
  %v2421 = vunpack.c.0.s8 %v2420
  %v2422 = vlaneseq
  %v2423 = vshrl.u32 %v2422, 7
  %v2424 = vsub.s32 %v2421, %v2423
  %v2425 = vrot.slane %v2411, %v2424
  %v2426 = vcombine.high %v2418, %v2418
  %v2427 = vcombine.high %v2098, %v2098
  %v2429 = vunpack.c.l.s4 1983009808
  %v2430 = vunpack.c.0.s8 %v2429
  %v2431 = vlaneseq
  %v2432 = vshrl.u32 %v2431, 7
  %v2433 = vsub.s32 %v2430, %v2432
  %v2434 = vrot.slane %v2098, %v2433
  %v2436 = vunpack.c.l.s4 1983009808
  %v2437 = vunpack.c.0.s8 %v2436
  %v2438 = vlaneseq
  %v2439 = vshrl.u32 %v2438, 7
  %v2440 = vsub.s32 %v2437, %v2439
  %v2441 = vrot.slane %v2427, %v2440
  %v2442 = vcombine.high %v2434, %v2434
  %v2443 = vcombine.high %v2441, %v2441
  %v2444 = vcombine.high %v2099, %v2099
  %v2446 = vunpack.c.l.s4 1983009808
  %v2447 = vunpack.c.0.s8 %v2446
  %v2448 = vlaneseq
  %v2449 = vshrl.u32 %v2448, 7
  %v2450 = vsub.s32 %v2447, %v2449
  %v2451 = vrot.slane %v2099, %v2450
  %v2453 = vunpack.c.l.s4 1983009808
  %v2454 = vunpack.c.0.s8 %v2453
  %v2455 = vlaneseq
  %v2456 = vshrl.u32 %v2455, 7
  %v2457 = vsub.s32 %v2454, %v2456
  %v2458 = vrot.slane %v2444, %v2457
  %v2459 = vcombine.high %v2451, %v2451
  %v2460 = vcombine.high %v2100, %v2100
  %v2462 = vunpack.c.l.s4 1983009808
  %v2463 = vunpack.c.0.s8 %v2462
  %v2464 = vlaneseq
  %v2465 = vshrl.u32 %v2464, 7
  %v2466 = vsub.s32 %v2463, %v2465
  %v2467 = vrot.slane %v2100, %v2466
  %v2469 = vunpack.c.l.s4 1983009808
  %v2470 = vunpack.c.0.s8 %v2469
  %v2471 = vlaneseq
  %v2472 = vshrl.u32 %v2471, 7
  %v2473 = vsub.s32 %v2470, %v2472
  %v2474 = vrot.slane %v2460, %v2473
  %v2475 = vcombine.high %v2467, %v2467
  %v2476 = vcombine.high %v2474, %v2474
  %v2477 = vcombine.high %v2101, %v2101
  %v2479 = vunpack.c.l.s4 1983009808
  %v2480 = vunpack.c.0.s8 %v2479
  %v2481 = vlaneseq
  %v2482 = vshrl.u32 %v2481, 7
  %v2483 = vsub.s32 %v2480, %v2482
  %v2484 = vrot.slane %v2101, %v2483
  %v2486 = vunpack.c.l.s4 1983009808
  %v2487 = vunpack.c.0.s8 %v2486
  %v2488 = vlaneseq
  %v2489 = vshrl.u32 %v2488, 7
  %v2490 = vsub.s32 %v2487, %v2489
  %v2491 = vrot.slane %v2477, %v2490
  %v2492 = vcombine.high %v2484, %v2484
  %v2493 = vcombine.high %v2102, %v2102
  %v2495 = vunpack.c.l.s4 1983009808
  %v2496 = vunpack.c.0.s8 %v2495
  %v2497 = vlaneseq
  %v2498 = vshrl.u32 %v2497, 7
  %v2499 = vsub.s32 %v2496, %v2498
  %v2500 = vrot.slane %v2102, %v2499
  %v2502 = vunpack.c.l.s4 1983009808
  %v2503 = vunpack.c.0.s8 %v2502
  %v2504 = vlaneseq
  %v2505 = vshrl.u32 %v2504, 7
  %v2506 = vsub.s32 %v2503, %v2505
  %v2507 = vrot.slane %v2493, %v2506
  %v2508 = vcombine.high %v2500, %v2500
  %v2509 = vcombine.high %v2507, %v2507
  %v2510 = vcombine.high %v2103, %v2103
  %v2512 = vunpack.c.l.s4 1983009808
  %v2513 = vunpack.c.0.s8 %v2512
  %v2514 = vlaneseq
  %v2515 = vshrl.u32 %v2514, 7
  %v2516 = vsub.s32 %v2513, %v2515
  %v2517 = vrot.slane %v2103, %v2516
  %v2519 = vunpack.c.l.s4 1983009808
  %v2520 = vunpack.c.0.s8 %v2519
  %v2521 = vlaneseq
  %v2522 = vshrl.u32 %v2521, 7
  %v2523 = vsub.s32 %v2520, %v2522
  %v2524 = vrot.slane %v2510, %v2523
  %v2525 = vcombine.high %v2517, %v2517
  %v2526 = vcombine.high %v2104, %v2104
  %v2528 = vunpack.c.l.s4 1983009808
  %v2529 = vunpack.c.0.s8 %v2528
  %v2530 = vlaneseq
  %v2531 = vshrl.u32 %v2530, 7
  %v2532 = vsub.s32 %v2529, %v2531
  %v2533 = vrot.slane %v2104, %v2532
  %v2535 = vunpack.c.l.s4 1983009808
  %v2536 = vunpack.c.0.s8 %v2535
  %v2537 = vlaneseq
  %v2538 = vshrl.u32 %v2537, 7
  %v2539 = vsub.s32 %v2536, %v2538
  %v2540 = vrot.slane %v2526, %v2539
  %v2541 = vcombine.high %v2533, %v2533
  %v2542 = vcombine.high %v2540, %v2540
  %v2543 = vcombine.high %v2105, %v2105
  %v2545 = vunpack.c.l.s4 1983009808
  %v2546 = vunpack.c.0.s8 %v2545
  %v2547 = vlaneseq
  %v2548 = vshrl.u32 %v2547, 7
  %v2549 = vsub.s32 %v2546, %v2548
  %v2550 = vrot.slane %v2105, %v2549
  %v2552 = vunpack.c.l.s4 1983009808
  %v2553 = vunpack.c.0.s8 %v2552
  %v2554 = vlaneseq
  %v2555 = vshrl.u32 %v2554, 7
  %v2556 = vsub.s32 %v2553, %v2555
  %v2557 = vrot.slane %v2543, %v2556
  %v2558 = vcombine.high %v2550, %v2550
  %v2559 = vcombine.high %v2106, %v2106
  %v2561 = vunpack.c.l.s4 1983009808
  %v2562 = vunpack.c.0.s8 %v2561
  %v2563 = vlaneseq
  %v2564 = vshrl.u32 %v2563, 7
  %v2565 = vsub.s32 %v2562, %v2564
  %v2566 = vrot.slane %v2106, %v2565
  %v2568 = vunpack.c.l.s4 1983009808
  %v2569 = vunpack.c.0.s8 %v2568
  %v2570 = vlaneseq
  %v2571 = vshrl.u32 %v2570, 7
  %v2572 = vsub.s32 %v2569, %v2571
  %v2573 = vrot.slane %v2559, %v2572
  %v2574 = vcombine.high %v2566, %v2566
  %v2575 = vcombine.high %v2573, %v2573
  %v2576 = vcombine.high %v2107, %v2107
  %v2578 = vunpack.c.l.s4 1983009808
  %v2579 = vunpack.c.0.s8 %v2578
  %v2580 = vlaneseq
  %v2581 = vshrl.u32 %v2580, 7
  %v2582 = vsub.s32 %v2579, %v2581
  %v2583 = vrot.slane %v2107, %v2582
  %v2585 = vunpack.c.l.s4 1983009808
  %v2586 = vunpack.c.0.s8 %v2585
  %v2587 = vlaneseq
  %v2588 = vshrl.u32 %v2587, 7
  %v2589 = vsub.s32 %v2586, %v2588
  %v2590 = vrot.slane %v2576, %v2589
  %v2591 = vcombine.high %v2583, %v2583
  %v2592 = vcombine.high %v2108, %v2108
  %v2594 = vunpack.c.l.s4 1983009808
  %v2595 = vunpack.c.0.s8 %v2594
  %v2596 = vlaneseq
  %v2597 = vshrl.u32 %v2596, 7
  %v2598 = vsub.s32 %v2595, %v2597
  %v2599 = vrot.slane %v2108, %v2598
  %v2601 = vunpack.c.l.s4 1983009808
  %v2602 = vunpack.c.0.s8 %v2601
  %v2603 = vlaneseq
  %v2604 = vshrl.u32 %v2603, 7
  %v2605 = vsub.s32 %v2602, %v2604
  %v2606 = vrot.slane %v2592, %v2605
  %v2607 = vcombine.high %v2599, %v2599
  %v2608 = vcombine.high %v2606, %v2606
  %v2609 = vcombine.high %v2109, %v2109
  %v2611 = vunpack.c.l.s4 1983009808
  %v2612 = vunpack.c.0.s8 %v2611
  %v2613 = vlaneseq
  %v2614 = vshrl.u32 %v2613, 7
  %v2615 = vsub.s32 %v2612, %v2614
  %v2616 = vrot.slane %v2109, %v2615
  %v2618 = vunpack.c.l.s4 1983009808
  %v2619 = vunpack.c.0.s8 %v2618
  %v2620 = vlaneseq
  %v2621 = vshrl.u32 %v2620, 7
  %v2622 = vsub.s32 %v2619, %v2621
  %v2623 = vrot.slane %v2609, %v2622
  %v2624 = vcombine.high %v2616, %v2616
  %v2625 = vcombine.high %v2110, %v2110
  %v2627 = vunpack.c.l.s4 1983009808
  %v2628 = vunpack.c.0.s8 %v2627
  %v2629 = vlaneseq
  %v2630 = vshrl.u32 %v2629, 7
  %v2631 = vsub.s32 %v2628, %v2630
  %v2632 = vrot.slane %v2110, %v2631
  %v2634 = vunpack.c.l.s4 1983009808
  %v2635 = vunpack.c.0.s8 %v2634
  %v2636 = vlaneseq
  %v2637 = vshrl.u32 %v2636, 7
  %v2638 = vsub.s32 %v2635, %v2637
  %v2639 = vrot.slane %v2625, %v2638
  %v2640 = vcombine.high %v2632, %v2632
  %v2641 = vcombine.high %v2639, %v2639
  %v2642 = vcombine.high %v2111, %v2111
  %v2644 = vunpack.c.l.s4 1983009808
  %v2645 = vunpack.c.0.s8 %v2644
  %v2646 = vlaneseq
  %v2647 = vshrl.u32 %v2646, 7
  %v2648 = vsub.s32 %v2645, %v2647
  %v2649 = vrot.slane %v2111, %v2648
  %v2651 = vunpack.c.l.s4 1983009808
  %v2652 = vunpack.c.0.s8 %v2651
  %v2653 = vlaneseq
  %v2654 = vshrl.u32 %v2653, 7
  %v2655 = vsub.s32 %v2652, %v2654
  %v2656 = vrot.slane %v2642, %v2655
  %v2657 = vcombine.high %v2649, %v2649
  %v2658 = vcombine.high %v2112, %v2112
  %v2660 = vunpack.c.l.s4 1983009808
  %v2661 = vunpack.c.0.s8 %v2660
  %v2662 = vlaneseq
  %v2663 = vshrl.u32 %v2662, 7
  %v2664 = vsub.s32 %v2661, %v2663
  %v2665 = vrot.slane %v2112, %v2664
  %v2667 = vunpack.c.l.s4 1983009808
  %v2668 = vunpack.c.0.s8 %v2667
  %v2669 = vlaneseq
  %v2670 = vshrl.u32 %v2669, 7
  %v2671 = vsub.s32 %v2668, %v2670
  %v2672 = vrot.slane %v2658, %v2671
  %v2673 = vcombine.high %v2665, %v2665
  %v2674 = vcombine.high %v2672, %v2672
  %v2675 = vcombine.high %v2113, %v2113
  %v2677 = vunpack.c.l.s4 1983009808
  %v2678 = vunpack.c.0.s8 %v2677
  %v2679 = vlaneseq
  %v2680 = vshrl.u32 %v2679, 7
  %v2681 = vsub.s32 %v2678, %v2680
  %v2682 = vrot.slane %v2113, %v2681
  %v2684 = vunpack.c.l.s4 1983009808
  %v2685 = vunpack.c.0.s8 %v2684
  %v2686 = vlaneseq
  %v2687 = vshrl.u32 %v2686, 7
  %v2688 = vsub.s32 %v2685, %v2687
  %v2689 = vrot.slane %v2675, %v2688
  %v2690 = vcombine.high %v2682, %v2682
  %v2691 = vcombine.high %v2114, %v2114
  %v2693 = vunpack.c.l.s4 1983009808
  %v2694 = vunpack.c.0.s8 %v2693
  %v2695 = vlaneseq
  %v2696 = vshrl.u32 %v2695, 7
  %v2697 = vsub.s32 %v2694, %v2696
  %v2698 = vrot.slane %v2114, %v2697
  %v2700 = vunpack.c.l.s4 1983009808
  %v2701 = vunpack.c.0.s8 %v2700
  %v2702 = vlaneseq
  %v2703 = vshrl.u32 %v2702, 7
  %v2704 = vsub.s32 %v2701, %v2703
  %v2705 = vrot.slane %v2691, %v2704
  %v2706 = vcombine.high %v2698, %v2698
  %v2707 = vcombine.high %v2705, %v2705
  %v2708 = vcombine.high %v2115, %v2115
  %v2710 = vunpack.c.l.s4 1983009808
  %v2711 = vunpack.c.0.s8 %v2710
  %v2712 = vlaneseq
  %v2713 = vshrl.u32 %v2712, 7
  %v2714 = vsub.s32 %v2711, %v2713
  %v2715 = vrot.slane %v2115, %v2714
  %v2717 = vunpack.c.l.s4 1983009808
  %v2718 = vunpack.c.0.s8 %v2717
  %v2719 = vlaneseq
  %v2720 = vshrl.u32 %v2719, 7
  %v2721 = vsub.s32 %v2718, %v2720
  %v2722 = vrot.slane %v2708, %v2721
  %v2723 = vcombine.high %v2715, %v2715
  %v2724 = vcombine.high %v2116, %v2116
  %v2726 = vunpack.c.l.s4 1983009808
  %v2727 = vunpack.c.0.s8 %v2726
  %v2728 = vlaneseq
  %v2729 = vshrl.u32 %v2728, 7
  %v2730 = vsub.s32 %v2727, %v2729
  %v2731 = vrot.slane %v2116, %v2730
  %v2733 = vunpack.c.l.s4 1983009808
  %v2734 = vunpack.c.0.s8 %v2733
  %v2735 = vlaneseq
  %v2736 = vshrl.u32 %v2735, 7
  %v2737 = vsub.s32 %v2734, %v2736
  %v2738 = vrot.slane %v2724, %v2737
  %v2739 = vcombine.high %v2731, %v2731
  %v2740 = vcombine.high %v2738, %v2738
  %v2741 = vcombine.high %v2117, %v2117
  %v2743 = vunpack.c.l.s4 1983009808
  %v2744 = vunpack.c.0.s8 %v2743
  %v2745 = vlaneseq
  %v2746 = vshrl.u32 %v2745, 7
  %v2747 = vsub.s32 %v2744, %v2746
  %v2748 = vrot.slane %v2117, %v2747
  %v2750 = vunpack.c.l.s4 1983009808
  %v2751 = vunpack.c.0.s8 %v2750
  %v2752 = vlaneseq
  %v2753 = vshrl.u32 %v2752, 7
  %v2754 = vsub.s32 %v2751, %v2753
  %v2755 = vrot.slane %v2741, %v2754
  %v2756 = vcombine.high %v2748, %v2748
  %v2757 = vcombine.high %v2118, %v2118
  %v2759 = vunpack.c.l.s4 1983009808
  %v2760 = vunpack.c.0.s8 %v2759
  %v2761 = vlaneseq
  %v2762 = vshrl.u32 %v2761, 7
  %v2763 = vsub.s32 %v2760, %v2762
  %v2764 = vrot.slane %v2118, %v2763
  %v2766 = vunpack.c.l.s4 1983009808
  %v2767 = vunpack.c.0.s8 %v2766
  %v2768 = vlaneseq
  %v2769 = vshrl.u32 %v2768, 7
  %v2770 = vsub.s32 %v2767, %v2769
  %v2771 = vrot.slane %v2757, %v2770
  %v2772 = vcombine.high %v2764, %v2764
  %v2773 = vcombine.high %v2771, %v2771
  %v2774 = vcombine.high %v2119, %v2119
  %v2776 = vunpack.c.l.s4 1983009808
  %v2777 = vunpack.c.0.s8 %v2776
  %v2778 = vlaneseq
  %v2779 = vshrl.u32 %v2778, 7
  %v2780 = vsub.s32 %v2777, %v2779
  %v2781 = vrot.slane %v2119, %v2780
  %v2783 = vunpack.c.l.s4 1983009808
  %v2784 = vunpack.c.0.s8 %v2783
  %v2785 = vlaneseq
  %v2786 = vshrl.u32 %v2785, 7
  %v2787 = vsub.s32 %v2784, %v2786
  %v2788 = vrot.slane %v2774, %v2787
  %v2789 = vcombine.high %v2781, %v2781
  %v2790 = vcombine.high %v2120, %v2120
  %v2792 = vunpack.c.l.s4 1983009808
  %v2793 = vunpack.c.0.s8 %v2792
  %v2794 = vlaneseq
  %v2795 = vshrl.u32 %v2794, 7
  %v2796 = vsub.s32 %v2793, %v2795
  %v2797 = vrot.slane %v2120, %v2796
  %v2799 = vunpack.c.l.s4 1983009808
  %v2800 = vunpack.c.0.s8 %v2799
  %v2801 = vlaneseq
  %v2802 = vshrl.u32 %v2801, 7
  %v2803 = vsub.s32 %v2800, %v2802
  %v2804 = vrot.slane %v2790, %v2803
  %v2805 = vcombine.high %v2797, %v2797
  %v2806 = vcombine.high %v2804, %v2804
  %v2807 = vcombine.high %v2121, %v2121
  %v2809 = vunpack.c.l.s4 1983009808
  %v2810 = vunpack.c.0.s8 %v2809
  %v2811 = vlaneseq
  %v2812 = vshrl.u32 %v2811, 7
  %v2813 = vsub.s32 %v2810, %v2812
  %v2814 = vrot.slane %v2121, %v2813
  %v2816 = vunpack.c.l.s4 1983009808
  %v2817 = vunpack.c.0.s8 %v2816
  %v2818 = vlaneseq
  %v2819 = vshrl.u32 %v2818, 7
  %v2820 = vsub.s32 %v2817, %v2819
  %v2821 = vrot.slane %v2807, %v2820
  %v2822 = vcombine.high %v2814, %v2814
  %v2823 = vcombine.high %v2122, %v2122
  %v2825 = vunpack.c.l.s4 1983009808
  %v2826 = vunpack.c.0.s8 %v2825
  %v2827 = vlaneseq
  %v2828 = vshrl.u32 %v2827, 7
  %v2829 = vsub.s32 %v2826, %v2828
  %v2830 = vrot.slane %v2122, %v2829
  %v2832 = vunpack.c.l.s4 1983009808
  %v2833 = vunpack.c.0.s8 %v2832
  %v2834 = vlaneseq
  %v2835 = vshrl.u32 %v2834, 7
  %v2836 = vsub.s32 %v2833, %v2835
  %v2837 = vrot.slane %v2823, %v2836
  %v2838 = vcombine.high %v2830, %v2830
  %v2839 = vcombine.high %v2837, %v2837
  %v2840 = vcombine.high %v2123, %v2123
  %v2842 = vunpack.c.l.s4 1983009808
  %v2843 = vunpack.c.0.s8 %v2842
  %v2844 = vlaneseq
  %v2845 = vshrl.u32 %v2844, 7
  %v2846 = vsub.s32 %v2843, %v2845
  %v2847 = vrot.slane %v2123, %v2846
  %v2849 = vunpack.c.l.s4 1983009808
  %v2850 = vunpack.c.0.s8 %v2849
  %v2851 = vlaneseq
  %v2852 = vshrl.u32 %v2851, 7
  %v2853 = vsub.s32 %v2850, %v2852
  %v2854 = vrot.slane %v2840, %v2853
  %v2855 = vcombine.high %v2847, %v2847
  %v2856 = vcombine.high %v2124, %v2124
  %v2858 = vunpack.c.l.s4 1983009808
  %v2859 = vunpack.c.0.s8 %v2858
  %v2860 = vlaneseq
  %v2861 = vshrl.u32 %v2860, 7
  %v2862 = vsub.s32 %v2859, %v2861
  %v2863 = vrot.slane %v2124, %v2862
  %v2865 = vunpack.c.l.s4 1983009808
  %v2866 = vunpack.c.0.s8 %v2865
  %v2867 = vlaneseq
  %v2868 = vshrl.u32 %v2867, 7
  %v2869 = vsub.s32 %v2866, %v2868
  %v2870 = vrot.slane %v2856, %v2869
  %v2871 = vcombine.high %v2863, %v2863
  %v2872 = vcombine.high %v2870, %v2870
  %v2873 = vcombine.high %v2125, %v2125
  %v2875 = vunpack.c.l.s4 1983009808
  %v2876 = vunpack.c.0.s8 %v2875
  %v2877 = vlaneseq
  %v2878 = vshrl.u32 %v2877, 7
  %v2879 = vsub.s32 %v2876, %v2878
  %v2880 = vrot.slane %v2125, %v2879
  %v2882 = vunpack.c.l.s4 1983009808
  %v2883 = vunpack.c.0.s8 %v2882
  %v2884 = vlaneseq
  %v2885 = vshrl.u32 %v2884, 7
  %v2886 = vsub.s32 %v2883, %v2885
  %v2887 = vrot.slane %v2873, %v2886
  %v2888 = vcombine.high %v2880, %v2880
  %v2889 = vcombine.high %v2126, %v2126
  %v2891 = vunpack.c.l.s4 1983009808
  %v2892 = vunpack.c.0.s8 %v2891
  %v2893 = vlaneseq
  %v2894 = vshrl.u32 %v2893, 7
  %v2895 = vsub.s32 %v2892, %v2894
  %v2896 = vrot.slane %v2126, %v2895
  %v2898 = vunpack.c.l.s4 1983009808
  %v2899 = vunpack.c.0.s8 %v2898
  %v2900 = vlaneseq
  %v2901 = vshrl.u32 %v2900, 7
  %v2902 = vsub.s32 %v2899, %v2901
  %v2903 = vrot.slane %v2889, %v2902
  %v2904 = vcombine.high %v2896, %v2896
  %v2905 = vcombine.high %v2903, %v2903
  %v2906 = vcombine.high %v2127, %v2127
  %v2908 = vunpack.c.l.s4 1983009808
  %v2909 = vunpack.c.0.s8 %v2908
  %v2910 = vlaneseq
  %v2911 = vshrl.u32 %v2910, 7
  %v2912 = vsub.s32 %v2909, %v2911
  %v2913 = vrot.slane %v2127, %v2912
  %v2915 = vunpack.c.l.s4 1983009808
  %v2916 = vunpack.c.0.s8 %v2915
  %v2917 = vlaneseq
  %v2918 = vshrl.u32 %v2917, 7
  %v2919 = vsub.s32 %v2916, %v2918
  %v2920 = vrot.slane %v2906, %v2919
  %v2921 = vcombine.high %v2913, %v2913
  %v2922 = vcombine.high %v2128, %v2128
  %v2924 = vunpack.c.l.s4 1983009808
  %v2925 = vunpack.c.0.s8 %v2924
  %v2926 = vlaneseq
  %v2927 = vshrl.u32 %v2926, 7
  %v2928 = vsub.s32 %v2925, %v2927
  %v2929 = vrot.slane %v2128, %v2928
  %v2931 = vunpack.c.l.s4 1983009808
  %v2932 = vunpack.c.0.s8 %v2931
  %v2933 = vlaneseq
  %v2934 = vshrl.u32 %v2933, 7
  %v2935 = vsub.s32 %v2932, %v2934
  %v2936 = vrot.slane %v2922, %v2935
  %v2937 = vcombine.high %v2929, %v2929
  %v2938 = vcombine.high %v2936, %v2936
  %v2939 = vcombine.high %v2129, %v2129
  %v2941 = vunpack.c.l.s4 1983009808
  %v2942 = vunpack.c.0.s8 %v2941
  %v2943 = vlaneseq
  %v2944 = vshrl.u32 %v2943, 7
  %v2945 = vsub.s32 %v2942, %v2944
  %v2946 = vrot.slane %v2129, %v2945
  %v2948 = vunpack.c.l.s4 1983009808
  %v2949 = vunpack.c.0.s8 %v2948
  %v2950 = vlaneseq
  %v2951 = vshrl.u32 %v2950, 7
  %v2952 = vsub.s32 %v2949, %v2951
  %v2953 = vrot.slane %v2939, %v2952
  %v2954 = vcombine.high %v2946, %v2946
  %v2955 = vcombine.high %v2130, %v2130
  %v2957 = vunpack.c.l.s4 1983009808
  %v2958 = vunpack.c.0.s8 %v2957
  %v2959 = vlaneseq
  %v2960 = vshrl.u32 %v2959, 7
  %v2961 = vsub.s32 %v2958, %v2960
  %v2962 = vrot.slane %v2130, %v2961
  %v2964 = vunpack.c.l.s4 1983009808
  %v2965 = vunpack.c.0.s8 %v2964
  %v2966 = vlaneseq
  %v2967 = vshrl.u32 %v2966, 7
  %v2968 = vsub.s32 %v2965, %v2967
  %v2969 = vrot.slane %v2955, %v2968
  %v2970 = vcombine.high %v2962, %v2962
  %v2971 = vcombine.high %v2969, %v2969
  %v2972 = vcombine.high %v2131, %v2131
  %v2974 = vunpack.c.l.s4 1983009808
  %v2975 = vunpack.c.0.s8 %v2974
  %v2976 = vlaneseq
  %v2977 = vshrl.u32 %v2976, 7
  %v2978 = vsub.s32 %v2975, %v2977
  %v2979 = vrot.slane %v2131, %v2978
  %v2981 = vunpack.c.l.s4 1983009808
  %v2982 = vunpack.c.0.s8 %v2981
  %v2983 = vlaneseq
  %v2984 = vshrl.u32 %v2983, 7
  %v2985 = vsub.s32 %v2982, %v2984
  %v2986 = vrot.slane %v2972, %v2985
  %v2987 = vcombine.high %v2979, %v2979
  %v2988 = vcombine.high %v2132, %v2132
  %v2990 = vunpack.c.l.s4 1983009808
  %v2991 = vunpack.c.0.s8 %v2990
  %v2992 = vlaneseq
  %v2993 = vshrl.u32 %v2992, 7
  %v2994 = vsub.s32 %v2991, %v2993
  %v2995 = vrot.slane %v2132, %v2994
  %v2997 = vunpack.c.l.s4 1983009808
  %v2998 = vunpack.c.0.s8 %v2997
  %v2999 = vlaneseq
  %v3000 = vshrl.u32 %v2999, 7
  %v3001 = vsub.s32 %v2998, %v3000
  %v3002 = vrot.slane %v2988, %v3001
  %v3003 = vcombine.high %v2995, %v2995
  %v3004 = vcombine.high %v3002, %v3002
  %v3005 = vcombine.high %v2133, %v2133
  %v3007 = vunpack.c.l.s4 1983009808
  %v3008 = vunpack.c.0.s8 %v3007
  %v3009 = vlaneseq
  %v3010 = vshrl.u32 %v3009, 7
  %v3011 = vsub.s32 %v3008, %v3010
  %v3012 = vrot.slane %v2133, %v3011
  %v3014 = vunpack.c.l.s4 1983009808
  %v3015 = vunpack.c.0.s8 %v3014
  %v3016 = vlaneseq
  %v3017 = vshrl.u32 %v3016, 7
  %v3018 = vsub.s32 %v3015, %v3017
  %v3019 = vrot.slane %v3005, %v3018
  %v3020 = vcombine.high %v3012, %v3012
  %v3021 = vcombine.high %v2134, %v2134
  %v3023 = vunpack.c.l.s4 1983009808
  %v3024 = vunpack.c.0.s8 %v3023
  %v3025 = vlaneseq
  %v3026 = vshrl.u32 %v3025, 7
  %v3027 = vsub.s32 %v3024, %v3026
  %v3028 = vrot.slane %v2134, %v3027
  %v3030 = vunpack.c.l.s4 1983009808
  %v3031 = vunpack.c.0.s8 %v3030
  %v3032 = vlaneseq
  %v3033 = vshrl.u32 %v3032, 7
  %v3034 = vsub.s32 %v3031, %v3033
  %v3035 = vrot.slane %v3021, %v3034
  %v3036 = vcombine.high %v3028, %v3028
  %v3037 = vcombine.high %v3035, %v3035
  %v3038 = vcombine.high %v2135, %v2135
  %v3040 = vunpack.c.l.s4 1983009808
  %v3041 = vunpack.c.0.s8 %v3040
  %v3042 = vlaneseq
  %v3043 = vshrl.u32 %v3042, 7
  %v3044 = vsub.s32 %v3041, %v3043
  %v3045 = vrot.slane %v2135, %v3044
  %v3047 = vunpack.c.l.s4 1983009808
  %v3048 = vunpack.c.0.s8 %v3047
  %v3049 = vlaneseq
  %v3050 = vshrl.u32 %v3049, 7
  %v3051 = vsub.s32 %v3048, %v3050
  %v3052 = vrot.slane %v3038, %v3051
  %v3053 = vcombine.high %v3045, %v3045
  %v3054 = vcombine.high %v2136, %v2136
  %v3056 = vunpack.c.l.s4 1983009808
  %v3057 = vunpack.c.0.s8 %v3056
  %v3058 = vlaneseq
  %v3059 = vshrl.u32 %v3058, 7
  %v3060 = vsub.s32 %v3057, %v3059
  %v3061 = vrot.slane %v2136, %v3060
  %v3063 = vunpack.c.l.s4 1983009808
  %v3064 = vunpack.c.0.s8 %v3063
  %v3065 = vlaneseq
  %v3066 = vshrl.u32 %v3065, 7
  %v3067 = vsub.s32 %v3064, %v3066
  %v3068 = vrot.slane %v3054, %v3067
  %v3069 = vcombine.high %v3061, %v3061
  %v3070 = vcombine.high %v3068, %v3068
  %v3071 = vcombine.high %v2137, %v2137
  %v3073 = vunpack.c.l.s4 1983009808
  %v3074 = vunpack.c.0.s8 %v3073
  %v3075 = vlaneseq
  %v3076 = vshrl.u32 %v3075, 7
  %v3077 = vsub.s32 %v3074, %v3076
  %v3078 = vrot.slane %v2137, %v3077
  %v3080 = vunpack.c.l.s4 1983009808
  %v3081 = vunpack.c.0.s8 %v3080
  %v3082 = vlaneseq
  %v3083 = vshrl.u32 %v3082, 7
  %v3084 = vsub.s32 %v3081, %v3083
  %v3085 = vrot.slane %v3071, %v3084
  %v3086 = vcombine.high %v3078, %v3078
  %v3087 = vcombine.high %v2138, %v2138
  %v3089 = vunpack.c.l.s4 1983009808
  %v3090 = vunpack.c.0.s8 %v3089
  %v3091 = vlaneseq
  %v3092 = vshrl.u32 %v3091, 7
  %v3093 = vsub.s32 %v3090, %v3092
  %v3094 = vrot.slane %v2138, %v3093
  %v3096 = vunpack.c.l.s4 1983009808
  %v3097 = vunpack.c.0.s8 %v3096
  %v3098 = vlaneseq
  %v3099 = vshrl.u32 %v3098, 7
  %v3100 = vsub.s32 %v3097, %v3099
  %v3101 = vrot.slane %v3087, %v3100
  %v3102 = vcombine.high %v3094, %v3094
  %v3103 = vcombine.high %v3101, %v3101
  %v3104 = vcombine.high %v2139, %v2139
  %v3106 = vunpack.c.l.s4 1983009808
  %v3107 = vunpack.c.0.s8 %v3106
  %v3108 = vlaneseq
  %v3109 = vshrl.u32 %v3108, 7
  %v3110 = vsub.s32 %v3107, %v3109
  %v3111 = vrot.slane %v2139, %v3110
  %v3113 = vunpack.c.l.s4 1983009808
  %v3114 = vunpack.c.0.s8 %v3113
  %v3115 = vlaneseq
  %v3116 = vshrl.u32 %v3115, 7
  %v3117 = vsub.s32 %v3114, %v3116
  %v3118 = vrot.slane %v3104, %v3117
  %v3119 = vcombine.high %v3111, %v3111
  %v3120 = vld [vmem:[%s1] sm:$0xff]
  %v3121 = vld [vmem:[%s1 + $0x8] sm:$0xff]
  %v3122 = vld [vmem:[%s1 + $0x10] sm:$0xff]
  %v3123 = vld [vmem:[%s1 + $0x18] sm:$0xff]
  %v3124 = vld [vmem:[%s1 + $0x20] sm:$0xf]
  %v3125 = vcombine.low %v2203, %v2211
  %v3126 = vcombine.low %v2210, %v2212
  %v3128 = vunpack.c.l.s4 1983009808
  %v3129 = vunpack.c.0.s8 %v3128
  %v3130 = vlaneseq
  %v3131 = vshrl.u32 %v3130, 7
  %v3132 = vsub.s32 %v3129, %v3131
  %v3133 = vrot.slane %v3125, %v3132
  %v3135 = vunpack.c.l.s4 1983009808
  %v3136 = vunpack.c.0.s8 %v3135
  %v3137 = vlaneseq
  %v3138 = vshrl.u32 %v3137, 7
  %v3139 = vsub.s32 %v3136, %v3138
  %v3140 = vrot.slane %v3126, %v3139
  %v3141 = vcombine.low %v3133, %v3140
  %v3142 = vcombine.low %v2220, %v2228
  %v3143 = vcombine.low %v2227, %v2236
  %v3145 = vunpack.c.l.s4 1983009808
  %v3146 = vunpack.c.0.s8 %v3145
  %v3147 = vlaneseq
  %v3148 = vshrl.u32 %v3147, 7
  %v3149 = vsub.s32 %v3146, %v3148
  %v3150 = vrot.slane %v3142, %v3149
  %v3152 = vunpack.c.l.s4 1983009808
  %v3153 = vunpack.c.0.s8 %v3152
  %v3154 = vlaneseq
  %v3155 = vshrl.u32 %v3154, 7
  %v3156 = vsub.s32 %v3153, %v3155
  %v3157 = vrot.slane %v3143, %v3156
  %v3158 = vcombine.low %v3150, %v3157
  %v3159 = vcombine.low %v2244, %v2243
  %v3160 = vcombine.low %v2245, %v2253
  %v3162 = vunpack.c.l.s4 1983009808
  %v3163 = vunpack.c.0.s8 %v3162
  %v3164 = vlaneseq
  %v3165 = vshrl.u32 %v3164, 7
  %v3166 = vsub.s32 %v3163, %v3165
  %v3167 = vrot.slane %v3159, %v3166
  %v3169 = vunpack.c.l.s4 1983009808
  %v3170 = vunpack.c.0.s8 %v3169
  %v3171 = vlaneseq
  %v3172 = vshrl.u32 %v3171, 7
  %v3173 = vsub.s32 %v3170, %v3172
  %v3174 = vrot.slane %v3160, %v3173
  %v3175 = vcombine.low %v3167, %v3174
  %v3176 = vcombine.low %v2261, %v2260
  %v3177 = vcombine.low %v2269, %v2277
  %v3179 = vunpack.c.l.s4 1983009808
  %v3180 = vunpack.c.0.s8 %v3179
  %v3181 = vlaneseq
  %v3182 = vshrl.u32 %v3181, 7
  %v3183 = vsub.s32 %v3180, %v3182
  %v3184 = vrot.slane %v3176, %v3183
  %v3186 = vunpack.c.l.s4 1983009808
  %v3187 = vunpack.c.0.s8 %v3186
  %v3188 = vlaneseq
  %v3189 = vshrl.u32 %v3188, 7
  %v3190 = vsub.s32 %v3187, %v3189
  %v3191 = vrot.slane %v3177, %v3190
  %v3192 = vcombine.low %v3184, %v3191
  %v3193 = vcombine.low %v2276, %v2278
  %v3194 = vcombine.low %v2286, %v2294
  %v3196 = vunpack.c.l.s4 1983009808
  %v3197 = vunpack.c.0.s8 %v3196
  %v3198 = vlaneseq
  %v3199 = vshrl.u32 %v3198, 7
  %v3200 = vsub.s32 %v3197, %v3199
  %v3201 = vrot.slane %v3193, %v3200
  %v3203 = vunpack.c.l.s4 1983009808
  %v3204 = vunpack.c.0.s8 %v3203
  %v3205 = vlaneseq
  %v3206 = vshrl.u32 %v3205, 7
  %v3207 = vsub.s32 %v3204, %v3206
  %v3208 = vrot.slane %v3194, %v3207
  %v3209 = vcombine.low %v3201, %v3208
  %v3210 = vcombine.low %v2293, %v2302
  %v3211 = vcombine.low %v2310, %v2309
  %v3213 = vunpack.c.l.s4 1983009808
  %v3214 = vunpack.c.0.s8 %v3213
  %v3215 = vlaneseq
  %v3216 = vshrl.u32 %v3215, 7
  %v3217 = vsub.s32 %v3214, %v3216
  %v3218 = vrot.slane %v3210, %v3217
  %v3220 = vunpack.c.l.s4 1983009808
  %v3221 = vunpack.c.0.s8 %v3220
  %v3222 = vlaneseq
  %v3223 = vshrl.u32 %v3222, 7
  %v3224 = vsub.s32 %v3221, %v3223
  %v3225 = vrot.slane %v3211, %v3224
  %v3226 = vcombine.low %v3218, %v3225
  %v3227 = vcombine.low %v2311, %v2319
  %v3228 = vcombine.low %v2327, %v2326
  %v3230 = vunpack.c.l.s4 1983009808
  %v3231 = vunpack.c.0.s8 %v3230
  %v3232 = vlaneseq
  %v3233 = vshrl.u32 %v3232, 7
  %v3234 = vsub.s32 %v3231, %v3233
  %v3235 = vrot.slane %v3227, %v3234
  %v3237 = vunpack.c.l.s4 1983009808
  %v3238 = vunpack.c.0.s8 %v3237
  %v3239 = vlaneseq
  %v3240 = vshrl.u32 %v3239, 7
  %v3241 = vsub.s32 %v3238, %v3240
  %v3242 = vrot.slane %v3228, %v3241
  %v3243 = vcombine.low %v3235, %v3242
  %v3244 = vcombine.low %v2335, %v2343
  %v3245 = vcombine.low %v2342, %v2344
  %v3247 = vunpack.c.l.s4 1983009808
  %v3248 = vunpack.c.0.s8 %v3247
  %v3249 = vlaneseq
  %v3250 = vshrl.u32 %v3249, 7
  %v3251 = vsub.s32 %v3248, %v3250
  %v3252 = vrot.slane %v3244, %v3251
  %v3254 = vunpack.c.l.s4 1983009808
  %v3255 = vunpack.c.0.s8 %v3254
  %v3256 = vlaneseq
  %v3257 = vshrl.u32 %v3256, 7
  %v3258 = vsub.s32 %v3255, %v3257
  %v3259 = vrot.slane %v3245, %v3258
  %v3260 = vcombine.low %v3252, %v3259
  %v3261 = vcombine.low %v2352, %v2360
  %v3262 = vcombine.low %v2359, %v2368
  %v3264 = vunpack.c.l.s4 1983009808
  %v3265 = vunpack.c.0.s8 %v3264
  %v3266 = vlaneseq
  %v3267 = vshrl.u32 %v3266, 7
  %v3268 = vsub.s32 %v3265, %v3267
  %v3269 = vrot.slane %v3261, %v3268
  %v3271 = vunpack.c.l.s4 1983009808
  %v3272 = vunpack.c.0.s8 %v3271
  %v3273 = vlaneseq
  %v3274 = vshrl.u32 %v3273, 7
  %v3275 = vsub.s32 %v3272, %v3274
  %v3276 = vrot.slane %v3262, %v3275
  %v3277 = vcombine.low %v3269, %v3276
  %v3278 = vcombine.low %v2376, %v2375
  %v3279 = vcombine.low %v2377, %v2385
  %v3281 = vunpack.c.l.s4 1983009808
  %v3282 = vunpack.c.0.s8 %v3281
  %v3283 = vlaneseq
  %v3284 = vshrl.u32 %v3283, 7
  %v3285 = vsub.s32 %v3282, %v3284
  %v3286 = vrot.slane %v3278, %v3285
  %v3288 = vunpack.c.l.s4 1983009808
  %v3289 = vunpack.c.0.s8 %v3288
  %v3290 = vlaneseq
  %v3291 = vshrl.u32 %v3290, 7
  %v3292 = vsub.s32 %v3289, %v3291
  %v3293 = vrot.slane %v3279, %v3292
  %v3294 = vcombine.low %v3286, %v3293
  %v3295 = vcombine.low %v2393, %v2392
  %v3296 = vcombine.low %v2401, %v2409
  %v3298 = vunpack.c.l.s4 1983009808
  %v3299 = vunpack.c.0.s8 %v3298
  %v3300 = vlaneseq
  %v3301 = vshrl.u32 %v3300, 7
  %v3302 = vsub.s32 %v3299, %v3301
  %v3303 = vrot.slane %v3295, %v3302
  %v3305 = vunpack.c.l.s4 1983009808
  %v3306 = vunpack.c.0.s8 %v3305
  %v3307 = vlaneseq
  %v3308 = vshrl.u32 %v3307, 7
  %v3309 = vsub.s32 %v3306, %v3308
  %v3310 = vrot.slane %v3296, %v3309
  %v3311 = vcombine.low %v3303, %v3310
  %v3312 = vcombine.low %v2408, %v2410
  %v3313 = vcombine.low %v2418, %v2426
  %v3315 = vunpack.c.l.s4 1983009808
  %v3316 = vunpack.c.0.s8 %v3315
  %v3317 = vlaneseq
  %v3318 = vshrl.u32 %v3317, 7
  %v3319 = vsub.s32 %v3316, %v3318
  %v3320 = vrot.slane %v3312, %v3319
  %v3322 = vunpack.c.l.s4 1983009808
  %v3323 = vunpack.c.0.s8 %v3322
  %v3324 = vlaneseq
  %v3325 = vshrl.u32 %v3324, 7
  %v3326 = vsub.s32 %v3323, %v3325
  %v3327 = vrot.slane %v3313, %v3326
  %v3328 = vcombine.low %v3320, %v3327
  %v3329 = vcombine.low %v2425, %v2434
  %v3330 = vcombine.low %v2442, %v2441
  %v3332 = vunpack.c.l.s4 1983009808
  %v3333 = vunpack.c.0.s8 %v3332
  %v3334 = vlaneseq
  %v3335 = vshrl.u32 %v3334, 7
  %v3336 = vsub.s32 %v3333, %v3335
  %v3337 = vrot.slane %v3329, %v3336
  %v3339 = vunpack.c.l.s4 1983009808
  %v3340 = vunpack.c.0.s8 %v3339
  %v3341 = vlaneseq
  %v3342 = vshrl.u32 %v3341, 7
  %v3343 = vsub.s32 %v3340, %v3342
  %v3344 = vrot.slane %v3330, %v3343
  %v3345 = vcombine.low %v3337, %v3344
  %v3346 = vcombine.low %v2443, %v2451
  %v3347 = vcombine.low %v2459, %v2458
  %v3349 = vunpack.c.l.s4 1983009808
  %v3350 = vunpack.c.0.s8 %v3349
  %v3351 = vlaneseq
  %v3352 = vshrl.u32 %v3351, 7
  %v3353 = vsub.s32 %v3350, %v3352
  %v3354 = vrot.slane %v3346, %v3353
  %v3356 = vunpack.c.l.s4 1983009808
  %v3357 = vunpack.c.0.s8 %v3356
  %v3358 = vlaneseq
  %v3359 = vshrl.u32 %v3358, 7
  %v3360 = vsub.s32 %v3357, %v3359
  %v3361 = vrot.slane %v3347, %v3360
  %v3362 = vcombine.low %v3354, %v3361
  %v3363 = vcombine.low %v2467, %v2475
  %v3364 = vcombine.low %v2474, %v2476
  %v3366 = vunpack.c.l.s4 1983009808
  %v3367 = vunpack.c.0.s8 %v3366
  %v3368 = vlaneseq
  %v3369 = vshrl.u32 %v3368, 7
  %v3370 = vsub.s32 %v3367, %v3369
  %v3371 = vrot.slane %v3363, %v3370
  %v3373 = vunpack.c.l.s4 1983009808
  %v3374 = vunpack.c.0.s8 %v3373
  %v3375 = vlaneseq
  %v3376 = vshrl.u32 %v3375, 7
  %v3377 = vsub.s32 %v3374, %v3376
  %v3378 = vrot.slane %v3364, %v3377
  %v3379 = vcombine.low %v3371, %v3378
  %v3380 = vcombine.low %v2484, %v2492
  %v3381 = vcombine.low %v2491, %v2500
  %v3383 = vunpack.c.l.s4 1983009808
  %v3384 = vunpack.c.0.s8 %v3383
  %v3385 = vlaneseq
  %v3386 = vshrl.u32 %v3385, 7
  %v3387 = vsub.s32 %v3384, %v3386
  %v3388 = vrot.slane %v3380, %v3387
  %v3390 = vunpack.c.l.s4 1983009808
  %v3391 = vunpack.c.0.s8 %v3390
  %v3392 = vlaneseq
  %v3393 = vshrl.u32 %v3392, 7
  %v3394 = vsub.s32 %v3391, %v3393
  %v3395 = vrot.slane %v3381, %v3394
  %v3396 = vcombine.low %v3388, %v3395
  %v3397 = vcombine.low %v2508, %v2507
  %v3398 = vcombine.low %v2509, %v2517
  %v3400 = vunpack.c.l.s4 1983009808
  %v3401 = vunpack.c.0.s8 %v3400
  %v3402 = vlaneseq
  %v3403 = vshrl.u32 %v3402, 7
  %v3404 = vsub.s32 %v3401, %v3403
  %v3405 = vrot.slane %v3397, %v3404
  %v3407 = vunpack.c.l.s4 1983009808
  %v3408 = vunpack.c.0.s8 %v3407
  %v3409 = vlaneseq
  %v3410 = vshrl.u32 %v3409, 7
  %v3411 = vsub.s32 %v3408, %v3410
  %v3412 = vrot.slane %v3398, %v3411
  %v3413 = vcombine.low %v3405, %v3412
  %v3414 = vcombine.low %v2525, %v2524
  %v3415 = vcombine.low %v2533, %v2541
  %v3417 = vunpack.c.l.s4 1983009808
  %v3418 = vunpack.c.0.s8 %v3417
  %v3419 = vlaneseq
  %v3420 = vshrl.u32 %v3419, 7
  %v3421 = vsub.s32 %v3418, %v3420
  %v3422 = vrot.slane %v3414, %v3421
  %v3424 = vunpack.c.l.s4 1983009808
  %v3425 = vunpack.c.0.s8 %v3424
  %v3426 = vlaneseq
  %v3427 = vshrl.u32 %v3426, 7
  %v3428 = vsub.s32 %v3425, %v3427
  %v3429 = vrot.slane %v3415, %v3428
  %v3430 = vcombine.low %v3422, %v3429
  %v3431 = vcombine.low %v2540, %v2542
  %v3432 = vcombine.low %v2550, %v2558
  %v3434 = vunpack.c.l.s4 1983009808
  %v3435 = vunpack.c.0.s8 %v3434
  %v3436 = vlaneseq
  %v3437 = vshrl.u32 %v3436, 7
  %v3438 = vsub.s32 %v3435, %v3437
  %v3439 = vrot.slane %v3431, %v3438
  %v3441 = vunpack.c.l.s4 1983009808
  %v3442 = vunpack.c.0.s8 %v3441
  %v3443 = vlaneseq
  %v3444 = vshrl.u32 %v3443, 7
  %v3445 = vsub.s32 %v3442, %v3444
  %v3446 = vrot.slane %v3432, %v3445
  %v3447 = vcombine.low %v3439, %v3446
  %v3448 = vcombine.low %v2557, %v2566
  %v3449 = vcombine.low %v2574, %v2573
  %v3451 = vunpack.c.l.s4 1983009808
  %v3452 = vunpack.c.0.s8 %v3451
  %v3453 = vlaneseq
  %v3454 = vshrl.u32 %v3453, 7
  %v3455 = vsub.s32 %v3452, %v3454
  %v3456 = vrot.slane %v3448, %v3455
  %v3458 = vunpack.c.l.s4 1983009808
  %v3459 = vunpack.c.0.s8 %v3458
  %v3460 = vlaneseq
  %v3461 = vshrl.u32 %v3460, 7
  %v3462 = vsub.s32 %v3459, %v3461
  %v3463 = vrot.slane %v3449, %v3462
  %v3464 = vcombine.low %v3456, %v3463
  %v3465 = vcombine.low %v2575, %v2583
  %v3466 = vcombine.low %v2591, %v2590
  %v3468 = vunpack.c.l.s4 1983009808
  %v3469 = vunpack.c.0.s8 %v3468
  %v3470 = vlaneseq
  %v3471 = vshrl.u32 %v3470, 7
  %v3472 = vsub.s32 %v3469, %v3471
  %v3473 = vrot.slane %v3465, %v3472
  %v3475 = vunpack.c.l.s4 1983009808
  %v3476 = vunpack.c.0.s8 %v3475
  %v3477 = vlaneseq
  %v3478 = vshrl.u32 %v3477, 7
  %v3479 = vsub.s32 %v3476, %v3478
  %v3480 = vrot.slane %v3466, %v3479
  %v3481 = vcombine.low %v3473, %v3480
  %v3482 = vcombine.low %v2599, %v2607
  %v3483 = vcombine.low %v2606, %v2608
  %v3485 = vunpack.c.l.s4 1983009808
  %v3486 = vunpack.c.0.s8 %v3485
  %v3487 = vlaneseq
  %v3488 = vshrl.u32 %v3487, 7
  %v3489 = vsub.s32 %v3486, %v3488
  %v3490 = vrot.slane %v3482, %v3489
  %v3492 = vunpack.c.l.s4 1983009808
  %v3493 = vunpack.c.0.s8 %v3492
  %v3494 = vlaneseq
  %v3495 = vshrl.u32 %v3494, 7
  %v3496 = vsub.s32 %v3493, %v3495
  %v3497 = vrot.slane %v3483, %v3496
  %v3498 = vcombine.low %v3490, %v3497
  %v3499 = vcombine.low %v2616, %v2624
  %v3500 = vcombine.low %v2623, %v2632
  %v3502 = vunpack.c.l.s4 1983009808
  %v3503 = vunpack.c.0.s8 %v3502
  %v3504 = vlaneseq
  %v3505 = vshrl.u32 %v3504, 7
  %v3506 = vsub.s32 %v3503, %v3505
  %v3507 = vrot.slane %v3499, %v3506
  %v3509 = vunpack.c.l.s4 1983009808
  %v3510 = vunpack.c.0.s8 %v3509
  %v3511 = vlaneseq
  %v3512 = vshrl.u32 %v3511, 7
  %v3513 = vsub.s32 %v3510, %v3512
  %v3514 = vrot.slane %v3500, %v3513
  %v3515 = vcombine.low %v3507, %v3514
  %v3516 = vcombine.low %v2640, %v2639
  %v3517 = vcombine.low %v2641, %v2649
  %v3519 = vunpack.c.l.s4 1983009808
  %v3520 = vunpack.c.0.s8 %v3519
  %v3521 = vlaneseq
  %v3522 = vshrl.u32 %v3521, 7
  %v3523 = vsub.s32 %v3520, %v3522
  %v3524 = vrot.slane %v3516, %v3523
  %v3526 = vunpack.c.l.s4 1983009808
  %v3527 = vunpack.c.0.s8 %v3526
  %v3528 = vlaneseq
  %v3529 = vshrl.u32 %v3528, 7
  %v3530 = vsub.s32 %v3527, %v3529
  %v3531 = vrot.slane %v3517, %v3530
  %v3532 = vcombine.low %v3524, %v3531
  %v3533 = vcombine.low %v2657, %v2656
  %v3534 = vcombine.low %v2665, %v2673
  %v3536 = vunpack.c.l.s4 1983009808
  %v3537 = vunpack.c.0.s8 %v3536
  %v3538 = vlaneseq
  %v3539 = vshrl.u32 %v3538, 7
  %v3540 = vsub.s32 %v3537, %v3539
  %v3541 = vrot.slane %v3533, %v3540
  %v3543 = vunpack.c.l.s4 1983009808
  %v3544 = vunpack.c.0.s8 %v3543
  %v3545 = vlaneseq
  %v3546 = vshrl.u32 %v3545, 7
  %v3547 = vsub.s32 %v3544, %v3546
  %v3548 = vrot.slane %v3534, %v3547
  %v3549 = vcombine.low %v3541, %v3548
  %v3550 = vcombine.low %v2672, %v2674
  %v3551 = vcombine.low %v2682, %v2690
  %v3553 = vunpack.c.l.s4 1983009808
  %v3554 = vunpack.c.0.s8 %v3553
  %v3555 = vlaneseq
  %v3556 = vshrl.u32 %v3555, 7
  %v3557 = vsub.s32 %v3554, %v3556
  %v3558 = vrot.slane %v3550, %v3557
  %v3560 = vunpack.c.l.s4 1983009808
  %v3561 = vunpack.c.0.s8 %v3560
  %v3562 = vlaneseq
  %v3563 = vshrl.u32 %v3562, 7
  %v3564 = vsub.s32 %v3561, %v3563
  %v3565 = vrot.slane %v3551, %v3564
  %v3566 = vcombine.low %v3558, %v3565
  %v3567 = vcombine.low %v2689, %v2698
  %v3568 = vcombine.low %v2706, %v2705
  %v3570 = vunpack.c.l.s4 1983009808
  %v3571 = vunpack.c.0.s8 %v3570
  %v3572 = vlaneseq
  %v3573 = vshrl.u32 %v3572, 7
  %v3574 = vsub.s32 %v3571, %v3573
  %v3575 = vrot.slane %v3567, %v3574
  %v3577 = vunpack.c.l.s4 1983009808
  %v3578 = vunpack.c.0.s8 %v3577
  %v3579 = vlaneseq
  %v3580 = vshrl.u32 %v3579, 7
  %v3581 = vsub.s32 %v3578, %v3580
  %v3582 = vrot.slane %v3568, %v3581
  %v3583 = vcombine.low %v3575, %v3582
  %v3584 = vcombine.low %v2707, %v2715
  %v3585 = vcombine.low %v2723, %v2722
  %v3587 = vunpack.c.l.s4 1983009808
  %v3588 = vunpack.c.0.s8 %v3587
  %v3589 = vlaneseq
  %v3590 = vshrl.u32 %v3589, 7
  %v3591 = vsub.s32 %v3588, %v3590
  %v3592 = vrot.slane %v3584, %v3591
  %v3594 = vunpack.c.l.s4 1983009808
  %v3595 = vunpack.c.0.s8 %v3594
  %v3596 = vlaneseq
  %v3597 = vshrl.u32 %v3596, 7
  %v3598 = vsub.s32 %v3595, %v3597
  %v3599 = vrot.slane %v3585, %v3598
  %v3600 = vcombine.low %v3592, %v3599
  %v3601 = vcombine.low %v2731, %v2739
  %v3602 = vcombine.low %v2738, %v2740
  %v3604 = vunpack.c.l.s4 1983009808
  %v3605 = vunpack.c.0.s8 %v3604
  %v3606 = vlaneseq
  %v3607 = vshrl.u32 %v3606, 7
  %v3608 = vsub.s32 %v3605, %v3607
  %v3609 = vrot.slane %v3601, %v3608
  %v3611 = vunpack.c.l.s4 1983009808
  %v3612 = vunpack.c.0.s8 %v3611
  %v3613 = vlaneseq
  %v3614 = vshrl.u32 %v3613, 7
  %v3615 = vsub.s32 %v3612, %v3614
  %v3616 = vrot.slane %v3602, %v3615
  %v3617 = vcombine.low %v3609, %v3616
  %v3618 = vcombine.low %v2748, %v2756
  %v3619 = vcombine.low %v2755, %v2764
  %v3621 = vunpack.c.l.s4 1983009808
  %v3622 = vunpack.c.0.s8 %v3621
  %v3623 = vlaneseq
  %v3624 = vshrl.u32 %v3623, 7
  %v3625 = vsub.s32 %v3622, %v3624
  %v3626 = vrot.slane %v3618, %v3625
  %v3628 = vunpack.c.l.s4 1983009808
  %v3629 = vunpack.c.0.s8 %v3628
  %v3630 = vlaneseq
  %v3631 = vshrl.u32 %v3630, 7
  %v3632 = vsub.s32 %v3629, %v3631
  %v3633 = vrot.slane %v3619, %v3632
  %v3634 = vcombine.low %v3626, %v3633
  %v3635 = vcombine.low %v2772, %v2771
  %v3636 = vcombine.low %v2773, %v2781
  %v3638 = vunpack.c.l.s4 1983009808
  %v3639 = vunpack.c.0.s8 %v3638
  %v3640 = vlaneseq
  %v3641 = vshrl.u32 %v3640, 7
  %v3642 = vsub.s32 %v3639, %v3641
  %v3643 = vrot.slane %v3635, %v3642
  %v3645 = vunpack.c.l.s4 1983009808
  %v3646 = vunpack.c.0.s8 %v3645
  %v3647 = vlaneseq
  %v3648 = vshrl.u32 %v3647, 7
  %v3649 = vsub.s32 %v3646, %v3648
  %v3650 = vrot.slane %v3636, %v3649
  %v3651 = vcombine.low %v3643, %v3650
  %v3652 = vcombine.low %v2789, %v2788
  %v3653 = vcombine.low %v2797, %v2805
  %v3655 = vunpack.c.l.s4 1983009808
  %v3656 = vunpack.c.0.s8 %v3655
  %v3657 = vlaneseq
  %v3658 = vshrl.u32 %v3657, 7
  %v3659 = vsub.s32 %v3656, %v3658
  %v3660 = vrot.slane %v3652, %v3659
  %v3662 = vunpack.c.l.s4 1983009808
  %v3663 = vunpack.c.0.s8 %v3662
  %v3664 = vlaneseq
  %v3665 = vshrl.u32 %v3664, 7
  %v3666 = vsub.s32 %v3663, %v3665
  %v3667 = vrot.slane %v3653, %v3666
  %v3668 = vcombine.low %v3660, %v3667
  %v3669 = vcombine.low %v2804, %v2806
  %v3670 = vcombine.low %v2814, %v2822
  %v3672 = vunpack.c.l.s4 1983009808
  %v3673 = vunpack.c.0.s8 %v3672
  %v3674 = vlaneseq
  %v3675 = vshrl.u32 %v3674, 7
  %v3676 = vsub.s32 %v3673, %v3675
  %v3677 = vrot.slane %v3669, %v3676
  %v3679 = vunpack.c.l.s4 1983009808
  %v3680 = vunpack.c.0.s8 %v3679
  %v3681 = vlaneseq
  %v3682 = vshrl.u32 %v3681, 7
  %v3683 = vsub.s32 %v3680, %v3682
  %v3684 = vrot.slane %v3670, %v3683
  %v3685 = vcombine.low %v3677, %v3684
  %v3686 = vcombine.low %v2821, %v2830
  %v3687 = vcombine.low %v2838, %v2837
  %v3689 = vunpack.c.l.s4 1983009808
  %v3690 = vunpack.c.0.s8 %v3689
  %v3691 = vlaneseq
  %v3692 = vshrl.u32 %v3691, 7
  %v3693 = vsub.s32 %v3690, %v3692
  %v3694 = vrot.slane %v3686, %v3693
  %v3696 = vunpack.c.l.s4 1983009808
  %v3697 = vunpack.c.0.s8 %v3696
  %v3698 = vlaneseq
  %v3699 = vshrl.u32 %v3698, 7
  %v3700 = vsub.s32 %v3697, %v3699
  %v3701 = vrot.slane %v3687, %v3700
  %v3702 = vcombine.low %v3694, %v3701
  %v3703 = vcombine.low %v2839, %v2847
  %v3704 = vcombine.low %v2855, %v2854
  %v3706 = vunpack.c.l.s4 1983009808
  %v3707 = vunpack.c.0.s8 %v3706
  %v3708 = vlaneseq
  %v3709 = vshrl.u32 %v3708, 7
  %v3710 = vsub.s32 %v3707, %v3709
  %v3711 = vrot.slane %v3703, %v3710
  %v3713 = vunpack.c.l.s4 1983009808
  %v3714 = vunpack.c.0.s8 %v3713
  %v3715 = vlaneseq
  %v3716 = vshrl.u32 %v3715, 7
  %v3717 = vsub.s32 %v3714, %v3716
  %v3718 = vrot.slane %v3704, %v3717
  %v3719 = vcombine.low %v3711, %v3718
  %v3720 = vcombine.low %v2863, %v2871
  %v3721 = vcombine.low %v2870, %v2872
  %v3723 = vunpack.c.l.s4 1983009808
  %v3724 = vunpack.c.0.s8 %v3723
  %v3725 = vlaneseq
  %v3726 = vshrl.u32 %v3725, 7
  %v3727 = vsub.s32 %v3724, %v3726
  %v3728 = vrot.slane %v3720, %v3727
  %v3730 = vunpack.c.l.s4 1983009808
  %v3731 = vunpack.c.0.s8 %v3730
  %v3732 = vlaneseq
  %v3733 = vshrl.u32 %v3732, 7
  %v3734 = vsub.s32 %v3731, %v3733
  %v3735 = vrot.slane %v3721, %v3734
  %v3736 = vcombine.low %v3728, %v3735
  %v3737 = vcombine.low %v2880, %v2888
  %v3738 = vcombine.low %v2887, %v2896
  %v3740 = vunpack.c.l.s4 1983009808
  %v3741 = vunpack.c.0.s8 %v3740
  %v3742 = vlaneseq
  %v3743 = vshrl.u32 %v3742, 7
  %v3744 = vsub.s32 %v3741, %v3743
  %v3745 = vrot.slane %v3737, %v3744
  %v3747 = vunpack.c.l.s4 1983009808
  %v3748 = vunpack.c.0.s8 %v3747
  %v3749 = vlaneseq
  %v3750 = vshrl.u32 %v3749, 7
  %v3751 = vsub.s32 %v3748, %v3750
  %v3752 = vrot.slane %v3738, %v3751
  %v3753 = vcombine.low %v3745, %v3752
  %v3754 = vcombine.low %v2904, %v2903
  %v3755 = vcombine.low %v2905, %v2913
  %v3757 = vunpack.c.l.s4 1983009808
  %v3758 = vunpack.c.0.s8 %v3757
  %v3759 = vlaneseq
  %v3760 = vshrl.u32 %v3759, 7
  %v3761 = vsub.s32 %v3758, %v3760
  %v3762 = vrot.slane %v3754, %v3761
  %v3764 = vunpack.c.l.s4 1983009808
  %v3765 = vunpack.c.0.s8 %v3764
  %v3766 = vlaneseq
  %v3767 = vshrl.u32 %v3766, 7
  %v3768 = vsub.s32 %v3765, %v3767
  %v3769 = vrot.slane %v3755, %v3768
  %v3770 = vcombine.low %v3762, %v3769
  %v3771 = vcombine.low %v2921, %v2920
  %v3772 = vcombine.low %v2929, %v2937
  %v3774 = vunpack.c.l.s4 1983009808
  %v3775 = vunpack.c.0.s8 %v3774
  %v3776 = vlaneseq
  %v3777 = vshrl.u32 %v3776, 7
  %v3778 = vsub.s32 %v3775, %v3777
  %v3779 = vrot.slane %v3771, %v3778
  %v3781 = vunpack.c.l.s4 1983009808
  %v3782 = vunpack.c.0.s8 %v3781
  %v3783 = vlaneseq
  %v3784 = vshrl.u32 %v3783, 7
  %v3785 = vsub.s32 %v3782, %v3784
  %v3786 = vrot.slane %v3772, %v3785
  %v3787 = vcombine.low %v3779, %v3786
  %v3788 = vcombine.low %v2936, %v2938
  %v3789 = vcombine.low %v2946, %v2954
  %v3791 = vunpack.c.l.s4 1983009808
  %v3792 = vunpack.c.0.s8 %v3791
  %v3793 = vlaneseq
  %v3794 = vshrl.u32 %v3793, 7
  %v3795 = vsub.s32 %v3792, %v3794
  %v3796 = vrot.slane %v3788, %v3795
  %v3798 = vunpack.c.l.s4 1983009808
  %v3799 = vunpack.c.0.s8 %v3798
  %v3800 = vlaneseq
  %v3801 = vshrl.u32 %v3800, 7
  %v3802 = vsub.s32 %v3799, %v3801
  %v3803 = vrot.slane %v3789, %v3802
  %v3804 = vcombine.low %v3796, %v3803
  %v3805 = vcombine.low %v2953, %v2962
  %v3806 = vcombine.low %v2970, %v2969
  %v3808 = vunpack.c.l.s4 1983009808
  %v3809 = vunpack.c.0.s8 %v3808
  %v3810 = vlaneseq
  %v3811 = vshrl.u32 %v3810, 7
  %v3812 = vsub.s32 %v3809, %v3811
  %v3813 = vrot.slane %v3805, %v3812
  %v3815 = vunpack.c.l.s4 1983009808
  %v3816 = vunpack.c.0.s8 %v3815
  %v3817 = vlaneseq
  %v3818 = vshrl.u32 %v3817, 7
  %v3819 = vsub.s32 %v3816, %v3818
  %v3820 = vrot.slane %v3806, %v3819
  %v3821 = vcombine.low %v3813, %v3820
  %v3822 = vcombine.low %v2971, %v2979
  %v3823 = vcombine.low %v2987, %v2986
  %v3825 = vunpack.c.l.s4 1983009808
  %v3826 = vunpack.c.0.s8 %v3825
  %v3827 = vlaneseq
  %v3828 = vshrl.u32 %v3827, 7
  %v3829 = vsub.s32 %v3826, %v3828
  %v3830 = vrot.slane %v3822, %v3829
  %v3832 = vunpack.c.l.s4 1983009808
  %v3833 = vunpack.c.0.s8 %v3832
  %v3834 = vlaneseq
  %v3835 = vshrl.u32 %v3834, 7
  %v3836 = vsub.s32 %v3833, %v3835
  %v3837 = vrot.slane %v3823, %v3836
  %v3838 = vcombine.low %v3830, %v3837
  %v3839 = vcombine.low %v2995, %v3003
  %v3840 = vcombine.low %v3002, %v3004
  %v3842 = vunpack.c.l.s4 1983009808
  %v3843 = vunpack.c.0.s8 %v3842
  %v3844 = vlaneseq
  %v3845 = vshrl.u32 %v3844, 7
  %v3846 = vsub.s32 %v3843, %v3845
  %v3847 = vrot.slane %v3839, %v3846
  %v3849 = vunpack.c.l.s4 1983009808
  %v3850 = vunpack.c.0.s8 %v3849
  %v3851 = vlaneseq
  %v3852 = vshrl.u32 %v3851, 7
  %v3853 = vsub.s32 %v3850, %v3852
  %v3854 = vrot.slane %v3840, %v3853
  %v3855 = vcombine.low %v3847, %v3854
  %v3856 = vcombine.low %v3012, %v3020
  %v3857 = vcombine.low %v3019, %v3028
  %v3859 = vunpack.c.l.s4 1983009808
  %v3860 = vunpack.c.0.s8 %v3859
  %v3861 = vlaneseq
  %v3862 = vshrl.u32 %v3861, 7
  %v3863 = vsub.s32 %v3860, %v3862
  %v3864 = vrot.slane %v3856, %v3863
  %v3866 = vunpack.c.l.s4 1983009808
  %v3867 = vunpack.c.0.s8 %v3866
  %v3868 = vlaneseq
  %v3869 = vshrl.u32 %v3868, 7
  %v3870 = vsub.s32 %v3867, %v3869
  %v3871 = vrot.slane %v3857, %v3870
  %v3872 = vcombine.low %v3864, %v3871
  %v3873 = vcombine.low %v3036, %v3035
  %v3874 = vcombine.low %v3037, %v3045
  %v3876 = vunpack.c.l.s4 1983009808
  %v3877 = vunpack.c.0.s8 %v3876
  %v3878 = vlaneseq
  %v3879 = vshrl.u32 %v3878, 7
  %v3880 = vsub.s32 %v3877, %v3879
  %v3881 = vrot.slane %v3873, %v3880
  %v3883 = vunpack.c.l.s4 1983009808
  %v3884 = vunpack.c.0.s8 %v3883
  %v3885 = vlaneseq
  %v3886 = vshrl.u32 %v3885, 7
  %v3887 = vsub.s32 %v3884, %v3886
  %v3888 = vrot.slane %v3874, %v3887
  %v3889 = vcombine.low %v3881, %v3888
  %v3890 = vcombine.low %v3053, %v3052
  %v3891 = vcombine.low %v3061, %v3069
  %v3893 = vunpack.c.l.s4 1983009808
  %v3894 = vunpack.c.0.s8 %v3893
  %v3895 = vlaneseq
  %v3896 = vshrl.u32 %v3895, 7
  %v3897 = vsub.s32 %v3894, %v3896
  %v3898 = vrot.slane %v3890, %v3897
  %v3900 = vunpack.c.l.s4 1983009808
  %v3901 = vunpack.c.0.s8 %v3900
  %v3902 = vlaneseq
  %v3903 = vshrl.u32 %v3902, 7
  %v3904 = vsub.s32 %v3901, %v3903
  %v3905 = vrot.slane %v3891, %v3904
  %v3906 = vcombine.low %v3898, %v3905
  %v3907 = vcombine.low %v3068, %v3070
  %v3908 = vcombine.low %v3078, %v3086
  %v3910 = vunpack.c.l.s4 1983009808
  %v3911 = vunpack.c.0.s8 %v3910
  %v3912 = vlaneseq
  %v3913 = vshrl.u32 %v3912, 7
  %v3914 = vsub.s32 %v3911, %v3913
  %v3915 = vrot.slane %v3907, %v3914
  %v3917 = vunpack.c.l.s4 1983009808
  %v3918 = vunpack.c.0.s8 %v3917
  %v3919 = vlaneseq
  %v3920 = vshrl.u32 %v3919, 7
  %v3921 = vsub.s32 %v3918, %v3920
  %v3922 = vrot.slane %v3908, %v3921
  %v3923 = vcombine.low %v3915, %v3922
  %v3924 = vcombine.low %v3085, %v3094
  %v3925 = vcombine.low %v3102, %v3101
  %v3927 = vunpack.c.l.s4 1983009808
  %v3928 = vunpack.c.0.s8 %v3927
  %v3929 = vlaneseq
  %v3930 = vshrl.u32 %v3929, 7
  %v3931 = vsub.s32 %v3928, %v3930
  %v3932 = vrot.slane %v3924, %v3931
  %v3934 = vunpack.c.l.s4 1983009808
  %v3935 = vunpack.c.0.s8 %v3934
  %v3936 = vlaneseq
  %v3937 = vshrl.u32 %v3936, 7
  %v3938 = vsub.s32 %v3935, %v3937
  %v3939 = vrot.slane %v3925, %v3938
  %v3940 = vcombine.low %v3932, %v3939
  %v3941 = vcombine.low %v3103, %v3111
  %v3942 = vcombine.low %v3119, %v3118
  %v3944 = vunpack.c.l.s4 1983009808
  %v3945 = vunpack.c.0.s8 %v3944
  %v3946 = vlaneseq
  %v3947 = vshrl.u32 %v3946, 7
  %v3948 = vsub.s32 %v3945, %v3947
  %v3949 = vrot.slane %v3941, %v3948
  %v3951 = vunpack.c.l.s4 1983009808
  %v3952 = vunpack.c.0.s8 %v3951
  %v3953 = vlaneseq
  %v3954 = vshrl.u32 %v3953, 7
  %v3955 = vsub.s32 %v3952, %v3954
  %v3956 = vrot.slane %v3942, %v3955
  %v3957 = vcombine.low %v3949, %v3956
  %vm3958 = vcmask 293888
  %v3959 = vsel %vm3958, %v3141, 0
  %v3961 = vsel %vm3958, %v3158, 0
  %v3963 = vsel %vm3958, %v3175, 0
  %v3965 = vsel %vm3958, %v3192, 0
  %v3967 = vsel %vm3958, %v3209, 0
  %v3969 = vsel %vm3958, %v3226, 0
  %v3971 = vsel %vm3958, %v3243, 0
  %v3973 = vsel %vm3958, %v3260, 0
  %v3975 = vsel %vm3958, %v3277, 0
  %v3977 = vsel %vm3958, %v3294, 0
  %v3979 = vsel %vm3958, %v3311, 0
  %v3981 = vsel %vm3958, %v3328, 0
  %v3983 = vsel %vm3958, %v3345, 0
  %v3985 = vsel %vm3958, %v3362, 0
  %v3987 = vsel %vm3958, %v3379, 0
  %v3989 = vsel %vm3958, %v3396, 0
  %v3991 = vsel %vm3958, %v3413, 0
  %v3993 = vsel %vm3958, %v3430, 0
  %v3995 = vsel %vm3958, %v3447, 0
  %v3997 = vsel %vm3958, %v3464, 0
  %v3999 = vsel %vm3958, %v3481, 0
  %v4001 = vsel %vm3958, %v3498, 0
  %v4003 = vsel %vm3958, %v3515, 0
  %v4005 = vsel %vm3958, %v3532, 0
  %v4007 = vsel %vm3958, %v3549, 0
  %v4009 = vsel %vm3958, %v3566, 0
  %v4011 = vsel %vm3958, %v3583, 0
  %v4013 = vsel %vm3958, %v3600, 0
  %v4015 = vsel %vm3958, %v3617, 0
  %v4017 = vsel %vm3958, %v3634, 0
  %v4019 = vsel %vm3958, %v3651, 0
  %v4021 = vsel %vm3958, %v3668, 0
  %v4023 = vsel %vm3958, %v3685, 0
  %v4025 = vsel %vm3958, %v3702, 0
  %v4027 = vsel %vm3958, %v3719, 0
  %v4029 = vsel %vm3958, %v3736, 0
  %v4031 = vsel %vm3958, %v3753, 0
  %v4033 = vsel %vm3958, %v3770, 0
  %v4035 = vsel %vm3958, %v3787, 0
  %v4037 = vsel %vm3958, %v3804, 0
  %v4039 = vsel %vm3958, %v3821, 0
  %v4041 = vsel %vm3958, %v3838, 0
  %v4043 = vsel %vm3958, %v3855, 0
  %v4045 = vsel %vm3958, %v3872, 0
  %v4047 = vsel %vm3958, %v3889, 0
  %v4049 = vsel %vm3958, %v3906, 0
  %v4051 = vsel %vm3958, %v3923, 0
  %v4053 = vsel %vm3958, %v3940, 0
  %v4055 = vsel %vm3958, %v3957, 0
  %vm4057 = vcmask 1043456
  %v4059 = vsel %vm4057, %v3124, 0
  %4061 = vmatprep.subr.mxu0 0.0
  %4062 = vmatpush1.msra.mxu0 %v3120
  %4063 = vmatprep.subr.mxu0 0.0
  %4064 = vmatpush1.msra.mxu0 %v3121
  %4065 = vmatprep.subr.mxu0 0.0
  %4066 = vmatpush1.msra.mxu0 %v3122
  %4067 = vmatprep.subr.mxu0 0.0
  %4068 = vmatpush1.msra.mxu0 %v3123
  %4069 = vmatprep.subr.mxu0 0.0
  %4070 = vmatpush1.msra.mxu0 %v4059
  %4071 = vmatprep.subr.mxu0 0.0
  %4072 = vmatpush1.msra.mxu0 0.0
  %4073 = vmatprep.subr.mxu0 0.0
  %4074 = vmatpush1.msra.mxu0 0.0
  %4075 = vmatprep.subr.mxu0 0.0
  %4076 = vmatpush1.msra.mxu0 0.0
  %4077 = vmatprep.subr.mxu0 0.0
  %4078 = vmatpush1.msra.mxu0 0.0
  %4079 = vmatprep.subr.mxu0 0.0
  %4080 = vmatpush1.msra.mxu0 0.0
  %4081 = vmatprep.subr.mxu0 0.0
  %4082 = vmatpush1.msra.mxu0 0.0
  %4083 = vmatprep.subr.mxu0 0.0
  %4084 = vmatpush1.msra.mxu0 0.0
  %4085 = vmatprep.subr.mxu0 0.0
  %4086 = vmatpush1.msra.mxu0 0.0
  %4087 = vmatprep.subr.mxu0 0.0
  %4088 = vmatpush1.msra.mxu0 0.0
  %4089 = vmatprep.subr.mxu0 0.0
  %4090 = vmatpush1.msra.mxu0 0.0
  %4091 = vmatprep.subr.mxu0 0.0
  %4092 = vmatpush1.msra.mxu0 0.0
  %4093 = vmatprep.subr.mxu0 0.0
  %4094 = vmatpush1.msra.mxu0 0.0
  %4095 = vmatprep.subr.mxu0 0.0
  %4096 = vmatpush1.msra.mxu0 0.0
  %4097 = vmatprep.subr.mxu0 0.0
  %4098 = vmatpush1.msra.mxu0 0.0
  %4099 = vmatprep.subr.mxu0 0.0
  %4100 = vmatpush1.msra.mxu0 0.0
  %4101 = vmatprep.subr.mxu0 0.0
  %4102 = vmatpush1.msra.mxu0 0.0
  %4103 = vmatprep.subr.mxu0 0.0
  %4104 = vmatpush1.msra.mxu0 0.0
  %4105 = vmatprep.subr.mxu0 0.0
  %4106 = vmatpush1.msra.mxu0 0.0
  %4107 = vmatprep.subr.mxu0 0.0
  %4108 = vmatpush1.msra.mxu0 0.0
  %4109 = vmatprep.subr.mxu0 0.0
  %4110 = vmatpush1.msra.mxu0 0.0
  %4111 = vmatprep.subr.mxu0 0.0
  %4112 = vmatpush1.msra.mxu0 0.0
  %4113 = vmatprep.subr.mxu0 0.0
  %4114 = vmatpush1.msra.mxu0 0.0
  %4115 = vmatprep.subr.mxu0 0.0
  %4116 = vmatpush1.msra.mxu0 0.0
  %4117 = vmatprep.subr.mxu0 0.0
  %4118 = vmatpush1.msra.mxu0 0.0
  %4119 = vmatprep.subr.mxu0 0.0
  %4120 = vmatpush1.msra.mxu0 0.0
  %4121 = vmatprep.subr.mxu0 0.0
  %4122 = vmatpush1.msra.mxu0 0.0
  %4123 = vmatprep.subr.mxu0 0.0
  %4124 = vmatpush1.msra.mxu0 0.0
  %4125 = vmatprep.mubr.f32.mxu0 0.0
  %4126 = vmatmul.mubr.f32.gmra.mrb[0].mxu0 %v3959
  %v4127 = vpop.f32.mrb[0].mxu0
  %v4128 = vadd.f32 0.0, %v4127
  %v4129 = vpop.f32.mrb[0].mxu0
  %4130 = vmatprep.mubr.f32.mxu0 0.0
  %4131 = vmatmul.mubr.f32.gmra.mrb[0].mxu0 %v3961
  %v4132 = vpop.f32.mrb[0].mxu0
  %v4133 = vadd.f32 0.0, %v4132
  %v4134 = vpop.f32.mrb[0].mxu0
  %4135 = vmatprep.mubr.f32.mxu0 0.0
  %4136 = vmatmul.mubr.f32.gmra.mrb[0].mxu0 %v3963
  %v4137 = vpop.f32.mrb[0].mxu0
  %v4138 = vadd.f32 0.0, %v4137
  %v4139 = vpop.f32.mrb[0].mxu0
  %4140 = vmatprep.mubr.f32.mxu0 0.0
  %4141 = vmatmul.mubr.f32.gmra.mrb[0].mxu0 %v3965
  %v4142 = vpop.f32.mrb[0].mxu0
  %v4143 = vadd.f32 0.0, %v4142
  %v4144 = vpop.f32.mrb[0].mxu0
  %4145 = vmatprep.mubr.f32.mxu0 0.0
  %4146 = vmatmul.mubr.f32.gmra.mrb[0].mxu0 %v3967
  %v4147 = vpop.f32.mrb[0].mxu0
  %v4148 = vadd.f32 0.0, %v4147
  %v4149 = vpop.f32.mrb[0].mxu0
  %4150 = vmatprep.mubr.f32.mxu0 0.0
  %4151 = vmatmul.mubr.f32.gmra.mrb[0].mxu0 %v3969
  %v4152 = vpop.f32.mrb[0].mxu0
  %v4153 = vadd.f32 0.0, %v4152
  %v4154 = vpop.f32.mrb[0].mxu0
  %4155 = vmatprep.mubr.f32.mxu0 0.0
  %4156 = vmatmul.mubr.f32.gmra.mrb[0].mxu0 %v3971
  %v4157 = vpop.f32.mrb[0].mxu0
  %v4158 = vadd.f32 0.0, %v4157
  %v4159 = vpop.f32.mrb[0].mxu0
  %4160 = vmatprep.mubr.f32.mxu0 0.0
  %4161 = vmatmul.mubr.f32.gmra.mrb[0].mxu0 %v3973
  %v4162 = vpop.f32.mrb[0].mxu0
  %v4163 = vadd.f32 0.0, %v4162
  %v4164 = vpop.f32.mrb[0].mxu0
  %4165 = vmatprep.mubr.f32.mxu0 0.0
  %4166 = vmatmul.mubr.f32.gmra.mrb[0].mxu0 %v3975
  %v4167 = vpop.f32.mrb[0].mxu0
  %v4168 = vadd.f32 0.0, %v4167
  %v4169 = vpop.f32.mrb[0].mxu0
  %4170 = vmatprep.mubr.f32.mxu0 0.0
  %4171 = vmatmul.mubr.f32.gmra.mrb[0].mxu0 %v3977
  %v4172 = vpop.f32.mrb[0].mxu0
  %v4173 = vadd.f32 0.0, %v4172
  %v4174 = vpop.f32.mrb[0].mxu0
  %4175 = vmatprep.mubr.f32.mxu0 0.0
  %4176 = vmatmul.mubr.f32.gmra.mrb[0].mxu0 %v3979
  %v4177 = vpop.f32.mrb[0].mxu0
  %v4178 = vadd.f32 0.0, %v4177
  %v4179 = vpop.f32.mrb[0].mxu0
  %4180 = vmatprep.mubr.f32.mxu0 0.0
  %4181 = vmatmul.mubr.f32.gmra.mrb[0].mxu0 %v3981
  %v4182 = vpop.f32.mrb[0].mxu0
  %v4183 = vadd.f32 0.0, %v4182
  %v4184 = vpop.f32.mrb[0].mxu0
  %4185 = vmatprep.mubr.f32.mxu0 0.0
  %4186 = vmatmul.mubr.f32.gmra.mrb[0].mxu0 %v3983
  %v4187 = vpop.f32.mrb[0].mxu0
  %v4188 = vadd.f32 0.0, %v4187
  %v4189 = vpop.f32.mrb[0].mxu0
  %4190 = vmatprep.mubr.f32.mxu0 0.0
  %4191 = vmatmul.mubr.f32.gmra.mrb[0].mxu0 %v3985
  %v4192 = vpop.f32.mrb[0].mxu0
  %v4193 = vadd.f32 0.0, %v4192
  %v4194 = vpop.f32.mrb[0].mxu0
  %4195 = vmatprep.mubr.f32.mxu0 0.0
  %4196 = vmatmul.mubr.f32.gmra.mrb[0].mxu0 %v3987
  %v4197 = vpop.f32.mrb[0].mxu0
  %v4198 = vadd.f32 0.0, %v4197
  %v4199 = vpop.f32.mrb[0].mxu0
  %4200 = vmatprep.mubr.f32.mxu0 0.0
  %4201 = vmatmul.mubr.f32.gmra.mrb[0].mxu0 %v3989
  %v4202 = vpop.f32.mrb[0].mxu0
  %v4203 = vadd.f32 0.0, %v4202
  %v4204 = vpop.f32.mrb[0].mxu0
  %4205 = vmatprep.mubr.f32.mxu0 0.0
  %4206 = vmatmul.mubr.f32.gmra.mrb[0].mxu0 %v3991
  %v4207 = vpop.f32.mrb[0].mxu0
  %v4208 = vadd.f32 0.0, %v4207
  %v4209 = vpop.f32.mrb[0].mxu0
  %4210 = vmatprep.mubr.f32.mxu0 0.0
  %4211 = vmatmul.mubr.f32.gmra.mrb[0].mxu0 %v3993
  %v4212 = vpop.f32.mrb[0].mxu0
  %v4213 = vadd.f32 0.0, %v4212
  %v4214 = vpop.f32.mrb[0].mxu0
  %4215 = vmatprep.mubr.f32.mxu0 0.0
  %4216 = vmatmul.mubr.f32.gmra.mrb[0].mxu0 %v3995
  %v4217 = vpop.f32.mrb[0].mxu0
  %v4218 = vadd.f32 0.0, %v4217
  %v4219 = vpop.f32.mrb[0].mxu0
  %4220 = vmatprep.mubr.f32.mxu0 0.0
  %4221 = vmatmul.mubr.f32.gmra.mrb[0].mxu0 %v3997
  %v4222 = vpop.f32.mrb[0].mxu0
  %v4223 = vadd.f32 0.0, %v4222
  %v4224 = vpop.f32.mrb[0].mxu0
  %4225 = vmatprep.mubr.f32.mxu0 0.0
  %4226 = vmatmul.mubr.f32.gmra.mrb[0].mxu0 %v3999
  %v4227 = vpop.f32.mrb[0].mxu0
  %v4228 = vadd.f32 0.0, %v4227
  %v4229 = vpop.f32.mrb[0].mxu0
  %4230 = vmatprep.mubr.f32.mxu0 0.0
  %4231 = vmatmul.mubr.f32.gmra.mrb[0].mxu0 %v4001
  %v4232 = vpop.f32.mrb[0].mxu0
  %v4233 = vadd.f32 0.0, %v4232
  %v4234 = vpop.f32.mrb[0].mxu0
  %4235 = vmatprep.mubr.f32.mxu0 0.0
  %4236 = vmatmul.mubr.f32.gmra.mrb[0].mxu0 %v4003
  %v4237 = vpop.f32.mrb[0].mxu0
  %v4238 = vadd.f32 0.0, %v4237
  %v4239 = vpop.f32.mrb[0].mxu0
  %4240 = vmatprep.mubr.f32.mxu0 0.0
  %4241 = vmatmul.mubr.f32.gmra.mrb[0].mxu0 %v4005
  %v4242 = vpop.f32.mrb[0].mxu0
  %v4243 = vadd.f32 0.0, %v4242
  %v4244 = vpop.f32.mrb[0].mxu0
  %4245 = vmatprep.mubr.f32.mxu0 0.0
  %4246 = vmatmul.mubr.f32.gmra.mrb[0].mxu0 %v4007
  %v4247 = vpop.f32.mrb[0].mxu0
  %v4248 = vadd.f32 0.0, %v4247
  %v4249 = vpop.f32.mrb[0].mxu0
  %4250 = vmatprep.mubr.f32.mxu0 0.0
  %4251 = vmatmul.mubr.f32.gmra.mrb[0].mxu0 %v4009
  %v4252 = vpop.f32.mrb[0].mxu0
  %v4253 = vadd.f32 0.0, %v4252
  %v4254 = vpop.f32.mrb[0].mxu0
  %4255 = vmatprep.mubr.f32.mxu0 0.0
  %4256 = vmatmul.mubr.f32.gmra.mrb[0].mxu0 %v4011
  %v4257 = vpop.f32.mrb[0].mxu0
  %v4258 = vadd.f32 0.0, %v4257
  %v4259 = vpop.f32.mrb[0].mxu0
  %4260 = vmatprep.mubr.f32.mxu0 0.0
  %4261 = vmatmul.mubr.f32.gmra.mrb[0].mxu0 %v4013
  %v4262 = vpop.f32.mrb[0].mxu0
  %v4263 = vadd.f32 0.0, %v4262
  %v4264 = vpop.f32.mrb[0].mxu0
  %4265 = vmatprep.mubr.f32.mxu0 0.0
  %4266 = vmatmul.mubr.f32.gmra.mrb[0].mxu0 %v4015
  %v4267 = vpop.f32.mrb[0].mxu0
  %v4268 = vadd.f32 0.0, %v4267
  %v4269 = vpop.f32.mrb[0].mxu0
  %4270 = vmatprep.mubr.f32.mxu0 0.0
  %4271 = vmatmul.mubr.f32.gmra.mrb[0].mxu0 %v4017
  %v4272 = vpop.f32.mrb[0].mxu0
  %v4273 = vadd.f32 0.0, %v4272
  %v4274 = vpop.f32.mrb[0].mxu0
  %4275 = vmatprep.mubr.f32.mxu0 0.0
  %4276 = vmatmul.mubr.f32.gmra.mrb[0].mxu0 %v4019
  %v4277 = vpop.f32.mrb[0].mxu0
  %v4278 = vadd.f32 0.0, %v4277
  %v4279 = vpop.f32.mrb[0].mxu0
  %4280 = vmatprep.mubr.f32.mxu0 0.0
  %4281 = vmatmul.mubr.f32.gmra.mrb[0].mxu0 %v4021
  %v4282 = vpop.f32.mrb[0].mxu0
  %v4283 = vadd.f32 0.0, %v4282
  %v4284 = vpop.f32.mrb[0].mxu0
  %4285 = vmatprep.mubr.f32.mxu0 0.0
  %4286 = vmatmul.mubr.f32.gmra.mrb[0].mxu0 %v4023
  %v4287 = vpop.f32.mrb[0].mxu0
  %v4288 = vadd.f32 0.0, %v4287
  %v4289 = vpop.f32.mrb[0].mxu0
  %4290 = vmatprep.mubr.f32.mxu0 0.0
  %4291 = vmatmul.mubr.f32.gmra.mrb[0].mxu0 %v4025
  %v4292 = vpop.f32.mrb[0].mxu0
  %v4293 = vadd.f32 0.0, %v4292
  %v4294 = vpop.f32.mrb[0].mxu0
  %4295 = vmatprep.mubr.f32.mxu0 0.0
  %4296 = vmatmul.mubr.f32.gmra.mrb[0].mxu0 %v4027
  %v4297 = vpop.f32.mrb[0].mxu0
  %v4298 = vadd.f32 0.0, %v4297
  %v4299 = vpop.f32.mrb[0].mxu0
  %4300 = vmatprep.mubr.f32.mxu0 0.0
  %4301 = vmatmul.mubr.f32.gmra.mrb[0].mxu0 %v4029
  %v4302 = vpop.f32.mrb[0].mxu0
  %v4303 = vadd.f32 0.0, %v4302
  %v4304 = vpop.f32.mrb[0].mxu0
  %4305 = vmatprep.mubr.f32.mxu0 0.0
  %4306 = vmatmul.mubr.f32.gmra.mrb[0].mxu0 %v4031
  %v4307 = vpop.f32.mrb[0].mxu0
  %v4308 = vadd.f32 0.0, %v4307
  %v4309 = vpop.f32.mrb[0].mxu0
  %4310 = vmatprep.mubr.f32.mxu0 0.0
  %4311 = vmatmul.mubr.f32.gmra.mrb[0].mxu0 %v4033
  %v4312 = vpop.f32.mrb[0].mxu0
  %v4313 = vadd.f32 0.0, %v4312
  %v4314 = vpop.f32.mrb[0].mxu0
  %4315 = vmatprep.mubr.f32.mxu0 0.0
  %4316 = vmatmul.mubr.f32.gmra.mrb[0].mxu0 %v4035
  %v4317 = vpop.f32.mrb[0].mxu0
  %v4318 = vadd.f32 0.0, %v4317
  %v4319 = vpop.f32.mrb[0].mxu0
  %4320 = vmatprep.mubr.f32.mxu0 0.0
  %4321 = vmatmul.mubr.f32.gmra.mrb[0].mxu0 %v4037
  %v4322 = vpop.f32.mrb[0].mxu0
  %v4323 = vadd.f32 0.0, %v4322
  %v4324 = vpop.f32.mrb[0].mxu0
  %4325 = vmatprep.mubr.f32.mxu0 0.0
  %4326 = vmatmul.mubr.f32.gmra.mrb[0].mxu0 %v4039
  %v4327 = vpop.f32.mrb[0].mxu0
  %v4328 = vadd.f32 0.0, %v4327
  %v4329 = vpop.f32.mrb[0].mxu0
  %4330 = vmatprep.mubr.f32.mxu0 0.0
  %4331 = vmatmul.mubr.f32.gmra.mrb[0].mxu0 %v4041
  %v4332 = vpop.f32.mrb[0].mxu0
  %v4333 = vadd.f32 0.0, %v4332
  %v4334 = vpop.f32.mrb[0].mxu0
  %4335 = vmatprep.mubr.f32.mxu0 0.0
  %4336 = vmatmul.mubr.f32.gmra.mrb[0].mxu0 %v4043
  %v4337 = vpop.f32.mrb[0].mxu0
  %v4338 = vadd.f32 0.0, %v4337
  %v4339 = vpop.f32.mrb[0].mxu0
  %4340 = vmatprep.mubr.f32.mxu0 0.0
  %4341 = vmatmul.mubr.f32.gmra.mrb[0].mxu0 %v4045
  %v4342 = vpop.f32.mrb[0].mxu0
  %v4343 = vadd.f32 0.0, %v4342
  %v4344 = vpop.f32.mrb[0].mxu0
  %4345 = vmatprep.mubr.f32.mxu0 0.0
  %4346 = vmatmul.mubr.f32.gmra.mrb[0].mxu0 %v4047
  %v4347 = vpop.f32.mrb[0].mxu0
  %v4348 = vadd.f32 0.0, %v4347
  %v4349 = vpop.f32.mrb[0].mxu0
  %4350 = vmatprep.mubr.f32.mxu0 0.0
  %4351 = vmatmul.mubr.f32.gmra.mrb[0].mxu0 %v4049
  %v4352 = vpop.f32.mrb[0].mxu0
  %v4353 = vadd.f32 0.0, %v4352
  %v4354 = vpop.f32.mrb[0].mxu0
  %4355 = vmatprep.mubr.f32.mxu0 0.0
  %4356 = vmatmul.mubr.f32.gmra.mrb[0].mxu0 %v4051
  %v4357 = vpop.f32.mrb[0].mxu0
  %v4358 = vadd.f32 0.0, %v4357
  %v4359 = vpop.f32.mrb[0].mxu0
  %4360 = vmatprep.mubr.f32.mxu0 0.0
  %4361 = vmatmul.mubr.f32.gmra.mrb[0].mxu0 %v4053
  %v4362 = vpop.f32.mrb[0].mxu0
  %v4363 = vadd.f32 0.0, %v4362
  %v4364 = vpop.f32.mrb[0].mxu0
  %4365 = vmatprep.mubr.f32.mxu0 0.0
  %4366 = vmatmul.mubr.f32.gmra.mrb[0].mxu0 %v4055
  %v4367 = vpop.f32.mrb[0].mxu0
  %v4368 = vadd.f32 0.0, %v4367
  %v4369 = vpop.f32.mrb[0].mxu0
  %4370 = vdwg.mxu0
  %v4371 = vsel %vm1741, %v4128, 0.0
  %v4372 = vsel %vm1741, %v4133, 0.0
  %v4373 = vadd.f32 %v4371, %v4372
  %v4374 = vsel %vm1741, %v4138, 0.0
  %v4375 = vadd.f32 %v4373, %v4374
  %v4376 = vsel %vm1741, %v4143, 0.0
  %v4377 = vadd.f32 %v4375, %v4376
  %v4378 = vsel %vm1741, %v4148, 0.0
  %v4379 = vadd.f32 %v4377, %v4378
  %v4380 = vsel %vm1741, %v4153, 0.0
  %v4381 = vadd.f32 %v4379, %v4380
  %v4382 = vsel %vm1741, %v4158, 0.0
  %v4383 = vadd.f32 %v4381, %v4382
  %v4384 = vsel %vm1741, %v4163, 0.0
  %v4385 = vadd.f32 %v4383, %v4384
  %v4386 = vsel %vm1741, %v4168, 0.0
  %v4387 = vadd.f32 %v4385, %v4386
  %v4388 = vsel %vm1741, %v4173, 0.0
  %v4389 = vadd.f32 %v4387, %v4388
  %v4390 = vsel %vm1741, %v4178, 0.0
  %v4391 = vadd.f32 %v4389, %v4390
  %v4392 = vsel %vm1741, %v4183, 0.0
  %v4393 = vadd.f32 %v4391, %v4392
  %v4394 = vsel %vm1741, %v4188, 0.0
  %v4395 = vadd.f32 %v4393, %v4394
  %v4396 = vsel %vm1741, %v4193, 0.0
  %v4397 = vadd.f32 %v4395, %v4396
  %v4398 = vsel %vm1741, %v4198, 0.0
  %v4399 = vadd.f32 %v4397, %v4398
  %v4400 = vsel %vm1741, %v4203, 0.0
  %v4401 = vadd.f32 %v4399, %v4400
  %v4402 = vsel %vm1741, %v4208, 0.0
  %v4403 = vadd.f32 %v4401, %v4402
  %v4404 = vsel %vm1741, %v4213, 0.0
  %v4405 = vadd.f32 %v4403, %v4404
  %v4406 = vsel %vm1741, %v4218, 0.0
  %v4407 = vadd.f32 %v4405, %v4406
  %v4408 = vsel %vm1741, %v4223, 0.0
  %v4409 = vadd.f32 %v4407, %v4408
  %v4410 = vsel %vm1741, %v4228, 0.0
  %v4411 = vadd.f32 %v4409, %v4410
  %v4412 = vsel %vm1741, %v4233, 0.0
  %v4413 = vadd.f32 %v4411, %v4412
  %v4414 = vsel %vm1741, %v4238, 0.0
  %v4415 = vadd.f32 %v4413, %v4414
  %v4416 = vsel %vm1741, %v4243, 0.0
  %v4417 = vadd.f32 %v4415, %v4416
  %v4418 = vsel %vm1741, %v4248, 0.0
  %v4419 = vadd.f32 %v4417, %v4418
  %v4420 = vsel %vm1741, %v4253, 0.0
  %v4421 = vadd.f32 %v4419, %v4420
  %v4422 = vsel %vm1741, %v4258, 0.0
  %v4423 = vadd.f32 %v4421, %v4422
  %v4424 = vsel %vm1741, %v4263, 0.0
  %v4425 = vadd.f32 %v4423, %v4424
  %v4426 = vsel %vm1741, %v4268, 0.0
  %v4427 = vadd.f32 %v4425, %v4426
  %v4428 = vsel %vm1741, %v4273, 0.0
  %v4429 = vadd.f32 %v4427, %v4428
  %v4430 = vsel %vm1741, %v4278, 0.0
  %v4431 = vadd.f32 %v4429, %v4430
  %v4432 = vsel %vm1741, %v4283, 0.0
  %v4433 = vadd.f32 %v4431, %v4432
  %v4434 = vsel %vm1741, %v4288, 0.0
  %v4435 = vadd.f32 %v4433, %v4434
  %v4436 = vsel %vm1741, %v4293, 0.0
  %v4437 = vadd.f32 %v4435, %v4436
  %v4438 = vsel %vm1741, %v4298, 0.0
  %v4439 = vadd.f32 %v4437, %v4438
  %v4440 = vsel %vm1741, %v4303, 0.0
  %v4441 = vadd.f32 %v4439, %v4440
  %v4442 = vsel %vm1741, %v4308, 0.0
  %v4443 = vadd.f32 %v4441, %v4442
  %v4444 = vsel %vm1741, %v4313, 0.0
  %v4445 = vadd.f32 %v4443, %v4444
  %v4446 = vsel %vm1741, %v4318, 0.0
  %v4447 = vadd.f32 %v4445, %v4446
  %v4448 = vsel %vm1741, %v4323, 0.0
  %v4449 = vadd.f32 %v4447, %v4448
  %v4450 = vsel %vm1741, %v4328, 0.0
  %v4451 = vadd.f32 %v4449, %v4450
  %v4452 = vsel %vm1741, %v4333, 0.0
  %v4453 = vadd.f32 %v4451, %v4452
  %v4454 = vsel %vm1741, %v4338, 0.0
  %v4455 = vadd.f32 %v4453, %v4454
  %v4456 = vsel %vm1741, %v4343, 0.0
  %v4457 = vadd.f32 %v4455, %v4456
  %v4458 = vsel %vm1741, %v4348, 0.0
  %v4459 = vadd.f32 %v4457, %v4458
  %v4460 = vsel %vm1741, %v4353, 0.0
  %v4461 = vadd.f32 %v4459, %v4460
  %v4462 = vsel %vm1741, %v4358, 0.0
  %v4463 = vadd.f32 %v4461, %v4462
  %v4464 = vsel %vm1741, %v4363, 0.0
  %v4465 = vadd.f32 %v4463, %v4464
  %v4466 = vsel %vm1741, %v4368, 0.0
  %v4467 = vadd.f32 %v4465, %v4466
  %v4468 = vrot.slane %v4467, 4
  %v4469 = vadd.f32 %v4467, %v4468
  %v4470 = vrot.slane %v4469, 2
  %v4471 = vadd.f32 %v4469, %v4470
  %v4472 = vrot.slane %v4471, 1
  %v4473 = vadd.f32 %v4471, %v4472
  %v4474 = vmul.f32 %v4473, 0.0025510204
  %v4475 = vmul.f32 %v4128, %v4128
  %v4476 = vmul.f32 %v4133, %v4133
  %v4477 = vmul.f32 %v4138, %v4138
  %v4478 = vmul.f32 %v4143, %v4143
  %v4479 = vmul.f32 %v4148, %v4148
  %v4480 = vmul.f32 %v4153, %v4153
  %v4481 = vmul.f32 %v4158, %v4158
  %v4482 = vmul.f32 %v4163, %v4163
  %v4483 = vmul.f32 %v4168, %v4168
  %v4484 = vmul.f32 %v4173, %v4173
  %v4485 = vmul.f32 %v4178, %v4178
  %v4486 = vmul.f32 %v4183, %v4183
  %v4487 = vmul.f32 %v4188, %v4188
  %v4488 = vmul.f32 %v4193, %v4193
  %v4489 = vmul.f32 %v4198, %v4198
  %v4490 = vmul.f32 %v4203, %v4203
  %v4491 = vmul.f32 %v4208, %v4208
  %v4492 = vmul.f32 %v4213, %v4213
  %v4493 = vmul.f32 %v4218, %v4218
  %v4494 = vmul.f32 %v4223, %v4223
  %v4495 = vmul.f32 %v4228, %v4228
  %v4496 = vmul.f32 %v4233, %v4233
  %v4497 = vmul.f32 %v4238, %v4238
  %v4498 = vmul.f32 %v4243, %v4243
  %v4499 = vmul.f32 %v4248, %v4248
  %v4500 = vmul.f32 %v4253, %v4253
  %v4501 = vmul.f32 %v4258, %v4258
  %v4502 = vmul.f32 %v4263, %v4263
  %v4503 = vmul.f32 %v4268, %v4268
  %v4504 = vmul.f32 %v4273, %v4273
  %v4505 = vmul.f32 %v4278, %v4278
  %v4506 = vmul.f32 %v4283, %v4283
  %v4507 = vmul.f32 %v4288, %v4288
  %v4508 = vmul.f32 %v4293, %v4293
  %v4509 = vmul.f32 %v4298, %v4298
  %v4510 = vmul.f32 %v4303, %v4303
  %v4511 = vmul.f32 %v4308, %v4308
  %v4512 = vmul.f32 %v4313, %v4313
  %v4513 = vmul.f32 %v4318, %v4318
  %v4514 = vmul.f32 %v4323, %v4323
  %v4515 = vmul.f32 %v4328, %v4328
  %v4516 = vmul.f32 %v4333, %v4333
  %v4517 = vmul.f32 %v4338, %v4338
  %v4518 = vmul.f32 %v4343, %v4343
  %v4519 = vmul.f32 %v4348, %v4348
  %v4520 = vmul.f32 %v4353, %v4353
  %v4521 = vmul.f32 %v4358, %v4358
  %v4522 = vmul.f32 %v4363, %v4363
  %v4523 = vmul.f32 %v4368, %v4368
  %v4524 = vsel %vm1741, %v4475, 0.0
  %v4525 = vsel %vm1741, %v4476, 0.0
  %v4526 = vadd.f32 %v4524, %v4525
  %v4527 = vsel %vm1741, %v4477, 0.0
  %v4528 = vadd.f32 %v4526, %v4527
  %v4529 = vsel %vm1741, %v4478, 0.0
  %v4530 = vadd.f32 %v4528, %v4529
  %v4531 = vsel %vm1741, %v4479, 0.0
  %v4532 = vadd.f32 %v4530, %v4531
  %v4533 = vsel %vm1741, %v4480, 0.0
  %v4534 = vadd.f32 %v4532, %v4533
  %v4535 = vsel %vm1741, %v4481, 0.0
  %v4536 = vadd.f32 %v4534, %v4535
  %v4537 = vsel %vm1741, %v4482, 0.0
  %v4538 = vadd.f32 %v4536, %v4537
  %v4539 = vsel %vm1741, %v4483, 0.0
  %v4540 = vadd.f32 %v4538, %v4539
  %v4541 = vsel %vm1741, %v4484, 0.0
  %v4542 = vadd.f32 %v4540, %v4541
  %v4543 = vsel %vm1741, %v4485, 0.0
  %v4544 = vadd.f32 %v4542, %v4543
  %v4545 = vsel %vm1741, %v4486, 0.0
  %v4546 = vadd.f32 %v4544, %v4545
  %v4547 = vsel %vm1741, %v4487, 0.0
  %v4548 = vadd.f32 %v4546, %v4547
  %v4549 = vsel %vm1741, %v4488, 0.0
  %v4550 = vadd.f32 %v4548, %v4549
  %v4551 = vsel %vm1741, %v4489, 0.0
  %v4552 = vadd.f32 %v4550, %v4551
  %v4553 = vsel %vm1741, %v4490, 0.0
  %v4554 = vadd.f32 %v4552, %v4553
  %v4555 = vsel %vm1741, %v4491, 0.0
  %v4556 = vadd.f32 %v4554, %v4555
  %v4557 = vsel %vm1741, %v4492, 0.0
  %v4558 = vadd.f32 %v4556, %v4557
  %v4559 = vsel %vm1741, %v4493, 0.0
  %v4560 = vadd.f32 %v4558, %v4559
  %v4561 = vsel %vm1741, %v4494, 0.0
  %v4562 = vadd.f32 %v4560, %v4561
  %v4563 = vsel %vm1741, %v4495, 0.0
  %v4564 = vadd.f32 %v4562, %v4563
  %v4565 = vsel %vm1741, %v4496, 0.0
  %v4566 = vadd.f32 %v4564, %v4565
  %v4567 = vsel %vm1741, %v4497, 0.0
  %v4568 = vadd.f32 %v4566, %v4567
  %v4569 = vsel %vm1741, %v4498, 0.0
  %v4570 = vadd.f32 %v4568, %v4569
  %v4571 = vsel %vm1741, %v4499, 0.0
  %v4572 = vadd.f32 %v4570, %v4571
  %v4573 = vsel %vm1741, %v4500, 0.0
  %v4574 = vadd.f32 %v4572, %v4573
  %v4575 = vsel %vm1741, %v4501, 0.0
  %v4576 = vadd.f32 %v4574, %v4575
  %v4577 = vsel %vm1741, %v4502, 0.0
  %v4578 = vadd.f32 %v4576, %v4577
  %v4579 = vsel %vm1741, %v4503, 0.0
  %v4580 = vadd.f32 %v4578, %v4579
  %v4581 = vsel %vm1741, %v4504, 0.0
  %v4582 = vadd.f32 %v4580, %v4581
  %v4583 = vsel %vm1741, %v4505, 0.0
  %v4584 = vadd.f32 %v4582, %v4583
  %v4585 = vsel %vm1741, %v4506, 0.0
  %v4586 = vadd.f32 %v4584, %v4585
  %v4587 = vsel %vm1741, %v4507, 0.0
  %v4588 = vadd.f32 %v4586, %v4587
  %v4589 = vsel %vm1741, %v4508, 0.0
  %v4590 = vadd.f32 %v4588, %v4589
  %v4591 = vsel %vm1741, %v4509, 0.0
  %v4592 = vadd.f32 %v4590, %v4591
  %v4593 = vsel %vm1741, %v4510, 0.0
  %v4594 = vadd.f32 %v4592, %v4593
  %v4595 = vsel %vm1741, %v4511, 0.0
  %v4596 = vadd.f32 %v4594, %v4595
  %v4597 = vsel %vm1741, %v4512, 0.0
  %v4598 = vadd.f32 %v4596, %v4597
  %v4599 = vsel %vm1741, %v4513, 0.0
  %v4600 = vadd.f32 %v4598, %v4599
  %v4601 = vsel %vm1741, %v4514, 0.0
  %v4602 = vadd.f32 %v4600, %v4601
  %v4603 = vsel %vm1741, %v4515, 0.0
  %v4604 = vadd.f32 %v4602, %v4603
  %v4605 = vsel %vm1741, %v4516, 0.0
  %v4606 = vadd.f32 %v4604, %v4605
  %v4607 = vsel %vm1741, %v4517, 0.0
  %v4608 = vadd.f32 %v4606, %v4607
  %v4609 = vsel %vm1741, %v4518, 0.0
  %v4610 = vadd.f32 %v4608, %v4609
  %v4611 = vsel %vm1741, %v4519, 0.0
  %v4612 = vadd.f32 %v4610, %v4611
  %v4613 = vsel %vm1741, %v4520, 0.0
  %v4614 = vadd.f32 %v4612, %v4613
  %v4615 = vsel %vm1741, %v4521, 0.0
  %v4616 = vadd.f32 %v4614, %v4615
  %v4617 = vsel %vm1741, %v4522, 0.0
  %v4618 = vadd.f32 %v4616, %v4617
  %v4619 = vsel %vm1741, %v4523, 0.0
  %v4620 = vadd.f32 %v4618, %v4619
  %v4621 = vrot.slane %v4620, 4
  %v4622 = vadd.f32 %v4620, %v4621
  %v4623 = vrot.slane %v4622, 2
  %v4624 = vadd.f32 %v4622, %v4623
  %v4625 = vrot.slane %v4624, 1
  %v4626 = vadd.f32 %v4624, %v4625
  %v4627 = vmul.f32 %v4626, 0.0025510204
  %v4628 = vmul.f32 %v4474, %v4474
  %v4629 = vsub.f32 %v4627, %v4628
  %v4630 = vadd.f32 %v4629, 1e-05
  %v4631 = vrsqrt.pop %v4630
  %v4632 = vmul.f32 %v81, %v4631
  %v4633 = vmul.f32 %v4474, %v4632
  %v4635 = vrot.slane %v4633, 7
  %v4637 = vsub.f32 %v81, %v4635
  %v4638 = vlaneseq
  %v4639 = vshrl.u32 %v4638, 7
  %v4640 = vsub.s32 0, %v4639
  %v4641 = vrot.slane %v4632, %v4640
  %v4642 = vmul.f32 %v4128, %v4641
  %v4643 = vmul.f32 %v4133, %v4641
  %v4644 = vmul.f32 %v4138, %v4641
  %v4645 = vmul.f32 %v4143, %v4641
  %v4646 = vmul.f32 %v4148, %v4641
  %v4647 = vmul.f32 %v4153, %v4641
  %v4648 = vmul.f32 %v4158, %v4641
  %v4649 = vmul.f32 %v4163, %v4641
  %v4650 = vmul.f32 %v4168, %v4641
  %v4651 = vmul.f32 %v4173, %v4641
  %v4652 = vmul.f32 %v4178, %v4641
  %v4653 = vmul.f32 %v4183, %v4641
  %v4654 = vmul.f32 %v4188, %v4641
  %v4655 = vmul.f32 %v4193, %v4641
  %v4656 = vmul.f32 %v4198, %v4641
  %v4657 = vmul.f32 %v4203, %v4641
  %v4658 = vmul.f32 %v4208, %v4641
  %v4659 = vmul.f32 %v4213, %v4641
  %v4660 = vmul.f32 %v4218, %v4641
  %v4661 = vmul.f32 %v4223, %v4641
  %v4662 = vmul.f32 %v4228, %v4641
  %v4663 = vmul.f32 %v4233, %v4641
  %v4664 = vmul.f32 %v4238, %v4641
  %v4665 = vmul.f32 %v4243, %v4641
  %v4666 = vmul.f32 %v4248, %v4641
  %v4667 = vmul.f32 %v4253, %v4641
  %v4668 = vmul.f32 %v4258, %v4641
  %v4669 = vmul.f32 %v4263, %v4641
  %v4670 = vmul.f32 %v4268, %v4641
  %v4671 = vmul.f32 %v4273, %v4641
  %v4672 = vmul.f32 %v4278, %v4641
  %v4673 = vmul.f32 %v4283, %v4641
  %v4674 = vmul.f32 %v4288, %v4641
  %v4675 = vmul.f32 %v4293, %v4641
  %v4676 = vmul.f32 %v4298, %v4641
  %v4677 = vmul.f32 %v4303, %v4641
  %v4678 = vmul.f32 %v4308, %v4641
  %v4679 = vmul.f32 %v4313, %v4641
  %v4680 = vmul.f32 %v4318, %v4641
  %v4681 = vmul.f32 %v4323, %v4641
  %v4682 = vmul.f32 %v4328, %v4641
  %v4683 = vmul.f32 %v4333, %v4641
  %v4684 = vmul.f32 %v4338, %v4641
  %v4685 = vmul.f32 %v4343, %v4641
  %v4686 = vmul.f32 %v4348, %v4641
  %v4687 = vmul.f32 %v4353, %v4641
  %v4688 = vmul.f32 %v4358, %v4641
  %v4689 = vmul.f32 %v4363, %v4641
  %v4690 = vmul.f32 %v4368, %v4641
  %v4691 = vlaneseq
  %v4692 = vshrl.u32 %v4691, 7
  %v4693 = vsub.s32 1, %v4692
  %v4694 = vrot.slane %v4637, %v4693
  %v4695 = vadd.f32 %v4642, %v4694
  %v4696 = vadd.f32 %v4643, %v4694
  %v4697 = vadd.f32 %v4644, %v4694
  %v4698 = vadd.f32 %v4645, %v4694
  %v4699 = vadd.f32 %v4646, %v4694
  %v4700 = vadd.f32 %v4647, %v4694
  %v4701 = vadd.f32 %v4648, %v4694
  %v4702 = vadd.f32 %v4649, %v4694
  %v4703 = vadd.f32 %v4650, %v4694
  %v4704 = vadd.f32 %v4651, %v4694
  %v4705 = vadd.f32 %v4652, %v4694
  %v4706 = vadd.f32 %v4653, %v4694
  %v4707 = vadd.f32 %v4654, %v4694
  %v4708 = vadd.f32 %v4655, %v4694
  %v4709 = vadd.f32 %v4656, %v4694
  %v4710 = vadd.f32 %v4657, %v4694
  %v4711 = vadd.f32 %v4658, %v4694
  %v4712 = vadd.f32 %v4659, %v4694
  %v4713 = vadd.f32 %v4660, %v4694
  %v4714 = vadd.f32 %v4661, %v4694
  %v4715 = vadd.f32 %v4662, %v4694
  %v4716 = vadd.f32 %v4663, %v4694
  %v4717 = vadd.f32 %v4664, %v4694
  %v4718 = vadd.f32 %v4665, %v4694
  %v4719 = vadd.f32 %v4666, %v4694
  %v4720 = vadd.f32 %v4667, %v4694
  %v4721 = vadd.f32 %v4668, %v4694
  %v4722 = vadd.f32 %v4669, %v4694
  %v4723 = vadd.f32 %v4670, %v4694
  %v4724 = vadd.f32 %v4671, %v4694
  %v4725 = vadd.f32 %v4672, %v4694
  %v4726 = vadd.f32 %v4673, %v4694
  %v4727 = vadd.f32 %v4674, %v4694
  %v4728 = vadd.f32 %v4675, %v4694
  %v4729 = vadd.f32 %v4676, %v4694
  %v4730 = vadd.f32 %v4677, %v4694
  %v4731 = vadd.f32 %v4678, %v4694
  %v4732 = vadd.f32 %v4679, %v4694
  %v4733 = vadd.f32 %v4680, %v4694
  %v4734 = vadd.f32 %v4681, %v4694
  %v4735 = vadd.f32 %v4682, %v4694
  %v4736 = vadd.f32 %v4683, %v4694
  %v4737 = vadd.f32 %v4684, %v4694
  %v4738 = vadd.f32 %v4685, %v4694
  %v4739 = vadd.f32 %v4686, %v4694
  %v4740 = vadd.f32 %v4687, %v4694
  %v4741 = vadd.f32 %v4688, %v4694
  %v4742 = vadd.f32 %v4689, %v4694
  %v4743 = vadd.f32 %v4690, %v4694
  %v4744 = vmax.f32 %v4695, 0.0
  %v4745 = vmax.f32 %v4696, 0.0
  %v4746 = vmax.f32 %v4697, 0.0
  %v4747 = vmax.f32 %v4698, 0.0
  %v4748 = vmax.f32 %v4699, 0.0
  %v4749 = vmax.f32 %v4700, 0.0
  %v4750 = vmax.f32 %v4701, 0.0
  %v4751 = vmax.f32 %v4702, 0.0
  %v4752 = vmax.f32 %v4703, 0.0
  %v4753 = vmax.f32 %v4704, 0.0
  %v4754 = vmax.f32 %v4705, 0.0
  %v4755 = vmax.f32 %v4706, 0.0
  %v4756 = vmax.f32 %v4707, 0.0
  %v4757 = vmax.f32 %v4708, 0.0
  %v4758 = vmax.f32 %v4709, 0.0
  %v4759 = vmax.f32 %v4710, 0.0
  %v4760 = vmax.f32 %v4711, 0.0
  %v4761 = vmax.f32 %v4712, 0.0
  %v4762 = vmax.f32 %v4713, 0.0
  %v4763 = vmax.f32 %v4714, 0.0
  %v4764 = vmax.f32 %v4715, 0.0
  %v4765 = vmax.f32 %v4716, 0.0
  %v4766 = vmax.f32 %v4717, 0.0
  %v4767 = vmax.f32 %v4718, 0.0
  %v4768 = vmax.f32 %v4719, 0.0
  %v4769 = vmax.f32 %v4720, 0.0
  %v4770 = vmax.f32 %v4721, 0.0
  %v4771 = vmax.f32 %v4722, 0.0
  %v4772 = vmax.f32 %v4723, 0.0
  %v4773 = vmax.f32 %v4724, 0.0
  %v4774 = vmax.f32 %v4725, 0.0
  %v4775 = vmax.f32 %v4726, 0.0
  %v4776 = vmax.f32 %v4727, 0.0
  %v4777 = vmax.f32 %v4728, 0.0
  %v4778 = vmax.f32 %v4729, 0.0
  %v4779 = vmax.f32 %v4730, 0.0
  %v4780 = vmax.f32 %v4731, 0.0
  %v4781 = vmax.f32 %v4732, 0.0
  %v4782 = vmax.f32 %v4733, 0.0
  %v4783 = vmax.f32 %v4734, 0.0
  %v4784 = vmax.f32 %v4735, 0.0
  %v4785 = vmax.f32 %v4736, 0.0
  %v4786 = vmax.f32 %v4737, 0.0
  %v4787 = vmax.f32 %v4738, 0.0
  %v4788 = vmax.f32 %v4739, 0.0
  %v4789 = vmax.f32 %v4740, 0.0
  %v4790 = vmax.f32 %v4741, 0.0
  %v4791 = vmax.f32 %v4742, 0.0
  %v4792 = vmax.f32 %v4743, 0.0
  %v4842 = vcombine.high %v4744, %v4744
  %v4844 = vunpack.c.l.s4 1983009808
  %v4845 = vunpack.c.0.s8 %v4844
  %v4846 = vlaneseq
  %v4847 = vshrl.u32 %v4846, 7
  %v4848 = vsub.s32 %v4845, %v4847
  %v4849 = vrot.slane %v4744, %v4848
  %v4851 = vunpack.c.l.s4 1983009808
  %v4852 = vunpack.c.0.s8 %v4851
  %v4853 = vlaneseq
  %v4854 = vshrl.u32 %v4853, 7
  %v4855 = vsub.s32 %v4852, %v4854
  %v4856 = vrot.slane %v4842, %v4855
  %v4857 = vcombine.high %v4849, %v4849
  %v4858 = vcombine.high %v4856, %v4856
  %v4859 = vcombine.high %v4745, %v4745
  %v4861 = vunpack.c.l.s4 1983009808
  %v4862 = vunpack.c.0.s8 %v4861
  %v4863 = vlaneseq
  %v4864 = vshrl.u32 %v4863, 7
  %v4865 = vsub.s32 %v4862, %v4864
  %v4866 = vrot.slane %v4745, %v4865
  %v4868 = vunpack.c.l.s4 1983009808
  %v4869 = vunpack.c.0.s8 %v4868
  %v4870 = vlaneseq
  %v4871 = vshrl.u32 %v4870, 7
  %v4872 = vsub.s32 %v4869, %v4871
  %v4873 = vrot.slane %v4859, %v4872
  %v4874 = vcombine.high %v4866, %v4866
  %v4875 = vcombine.high %v4873, %v4873
  %v4876 = vcombine.high %v4746, %v4746
  %v4878 = vunpack.c.l.s4 1983009808
  %v4879 = vunpack.c.0.s8 %v4878
  %v4880 = vlaneseq
  %v4881 = vshrl.u32 %v4880, 7
  %v4882 = vsub.s32 %v4879, %v4881
  %v4883 = vrot.slane %v4746, %v4882
  %v4885 = vunpack.c.l.s4 1983009808
  %v4886 = vunpack.c.0.s8 %v4885
  %v4887 = vlaneseq
  %v4888 = vshrl.u32 %v4887, 7
  %v4889 = vsub.s32 %v4886, %v4888
  %v4890 = vrot.slane %v4876, %v4889
  %v4891 = vcombine.high %v4883, %v4883
  %v4892 = vcombine.high %v4890, %v4890
  %v4893 = vcombine.high %v4747, %v4747
  %v4895 = vunpack.c.l.s4 1983009808
  %v4896 = vunpack.c.0.s8 %v4895
  %v4897 = vlaneseq
  %v4898 = vshrl.u32 %v4897, 7
  %v4899 = vsub.s32 %v4896, %v4898
  %v4900 = vrot.slane %v4747, %v4899
  %v4902 = vunpack.c.l.s4 1983009808
  %v4903 = vunpack.c.0.s8 %v4902
  %v4904 = vlaneseq
  %v4905 = vshrl.u32 %v4904, 7
  %v4906 = vsub.s32 %v4903, %v4905
  %v4907 = vrot.slane %v4893, %v4906
  %v4908 = vcombine.high %v4900, %v4900
  %v4909 = vcombine.high %v4907, %v4907
  %v4910 = vcombine.high %v4748, %v4748
  %v4912 = vunpack.c.l.s4 1983009808
  %v4913 = vunpack.c.0.s8 %v4912
  %v4914 = vlaneseq
  %v4915 = vshrl.u32 %v4914, 7
  %v4916 = vsub.s32 %v4913, %v4915
  %v4917 = vrot.slane %v4748, %v4916
  %v4919 = vunpack.c.l.s4 1983009808
  %v4920 = vunpack.c.0.s8 %v4919
  %v4921 = vlaneseq
  %v4922 = vshrl.u32 %v4921, 7
  %v4923 = vsub.s32 %v4920, %v4922
  %v4924 = vrot.slane %v4910, %v4923
  %v4925 = vcombine.high %v4917, %v4917
  %v4926 = vcombine.high %v4924, %v4924
  %v4927 = vcombine.high %v4749, %v4749
  %v4929 = vunpack.c.l.s4 1983009808
  %v4930 = vunpack.c.0.s8 %v4929
  %v4931 = vlaneseq
  %v4932 = vshrl.u32 %v4931, 7
  %v4933 = vsub.s32 %v4930, %v4932
  %v4934 = vrot.slane %v4749, %v4933
  %v4936 = vunpack.c.l.s4 1983009808
  %v4937 = vunpack.c.0.s8 %v4936
  %v4938 = vlaneseq
  %v4939 = vshrl.u32 %v4938, 7
  %v4940 = vsub.s32 %v4937, %v4939
  %v4941 = vrot.slane %v4927, %v4940
  %v4942 = vcombine.high %v4934, %v4934
  %v4943 = vcombine.high %v4941, %v4941
  %v4944 = vcombine.high %v4750, %v4750
  %v4946 = vunpack.c.l.s4 1983009808
  %v4947 = vunpack.c.0.s8 %v4946
  %v4948 = vlaneseq
  %v4949 = vshrl.u32 %v4948, 7
  %v4950 = vsub.s32 %v4947, %v4949
  %v4951 = vrot.slane %v4750, %v4950
  %v4953 = vunpack.c.l.s4 1983009808
  %v4954 = vunpack.c.0.s8 %v4953
  %v4955 = vlaneseq
  %v4956 = vshrl.u32 %v4955, 7
  %v4957 = vsub.s32 %v4954, %v4956
  %v4958 = vrot.slane %v4944, %v4957
  %v4959 = vcombine.high %v4951, %v4951
  %v4960 = vcombine.high %v4958, %v4958
  %v4961 = vcombine.high %v4751, %v4751
  %v4963 = vunpack.c.l.s4 1983009808
  %v4964 = vunpack.c.0.s8 %v4963
  %v4965 = vlaneseq
  %v4966 = vshrl.u32 %v4965, 7
  %v4967 = vsub.s32 %v4964, %v4966
  %v4968 = vrot.slane %v4751, %v4967
  %v4970 = vunpack.c.l.s4 1983009808
  %v4971 = vunpack.c.0.s8 %v4970
  %v4972 = vlaneseq
  %v4973 = vshrl.u32 %v4972, 7
  %v4974 = vsub.s32 %v4971, %v4973
  %v4975 = vrot.slane %v4961, %v4974
  %v4976 = vcombine.high %v4968, %v4968
  %v4977 = vcombine.high %v4975, %v4975
  %v4978 = vcombine.high %v4752, %v4752
  %v4980 = vunpack.c.l.s4 1983009808
  %v4981 = vunpack.c.0.s8 %v4980
  %v4982 = vlaneseq
  %v4983 = vshrl.u32 %v4982, 7
  %v4984 = vsub.s32 %v4981, %v4983
  %v4985 = vrot.slane %v4752, %v4984
  %v4987 = vunpack.c.l.s4 1983009808
  %v4988 = vunpack.c.0.s8 %v4987
  %v4989 = vlaneseq
  %v4990 = vshrl.u32 %v4989, 7
  %v4991 = vsub.s32 %v4988, %v4990
  %v4992 = vrot.slane %v4978, %v4991
  %v4993 = vcombine.high %v4985, %v4985
  %v4994 = vcombine.high %v4992, %v4992
  %v4995 = vcombine.high %v4753, %v4753
  %v4997 = vunpack.c.l.s4 1983009808
  %v4998 = vunpack.c.0.s8 %v4997
  %v4999 = vlaneseq
  %v5000 = vshrl.u32 %v4999, 7
  %v5001 = vsub.s32 %v4998, %v5000
  %v5002 = vrot.slane %v4753, %v5001
  %v5004 = vunpack.c.l.s4 1983009808
  %v5005 = vunpack.c.0.s8 %v5004
  %v5006 = vlaneseq
  %v5007 = vshrl.u32 %v5006, 7
  %v5008 = vsub.s32 %v5005, %v5007
  %v5009 = vrot.slane %v4995, %v5008
  %v5010 = vcombine.high %v5002, %v5002
  %v5011 = vcombine.high %v5009, %v5009
  %v5012 = vcombine.high %v4754, %v4754
  %v5014 = vunpack.c.l.s4 1983009808
  %v5015 = vunpack.c.0.s8 %v5014
  %v5016 = vlaneseq
  %v5017 = vshrl.u32 %v5016, 7
  %v5018 = vsub.s32 %v5015, %v5017
  %v5019 = vrot.slane %v4754, %v5018
  %v5021 = vunpack.c.l.s4 1983009808
  %v5022 = vunpack.c.0.s8 %v5021
  %v5023 = vlaneseq
  %v5024 = vshrl.u32 %v5023, 7
  %v5025 = vsub.s32 %v5022, %v5024
  %v5026 = vrot.slane %v5012, %v5025
  %v5027 = vcombine.high %v5019, %v5019
  %v5028 = vcombine.high %v5026, %v5026
  %v5029 = vcombine.high %v4755, %v4755
  %v5031 = vunpack.c.l.s4 1983009808
  %v5032 = vunpack.c.0.s8 %v5031
  %v5033 = vlaneseq
  %v5034 = vshrl.u32 %v5033, 7
  %v5035 = vsub.s32 %v5032, %v5034
  %v5036 = vrot.slane %v4755, %v5035
  %v5038 = vunpack.c.l.s4 1983009808
  %v5039 = vunpack.c.0.s8 %v5038
  %v5040 = vlaneseq
  %v5041 = vshrl.u32 %v5040, 7
  %v5042 = vsub.s32 %v5039, %v5041
  %v5043 = vrot.slane %v5029, %v5042
  %v5044 = vcombine.high %v5036, %v5036
  %v5045 = vcombine.high %v5043, %v5043
  %v5046 = vcombine.high %v4756, %v4756
  %v5048 = vunpack.c.l.s4 1983009808
  %v5049 = vunpack.c.0.s8 %v5048
  %v5050 = vlaneseq
  %v5051 = vshrl.u32 %v5050, 7
  %v5052 = vsub.s32 %v5049, %v5051
  %v5053 = vrot.slane %v4756, %v5052
  %v5055 = vunpack.c.l.s4 1983009808
  %v5056 = vunpack.c.0.s8 %v5055
  %v5057 = vlaneseq
  %v5058 = vshrl.u32 %v5057, 7
  %v5059 = vsub.s32 %v5056, %v5058
  %v5060 = vrot.slane %v5046, %v5059
  %v5061 = vcombine.high %v5053, %v5053
  %v5062 = vcombine.high %v5060, %v5060
  %v5063 = vcombine.high %v4757, %v4757
  %v5065 = vunpack.c.l.s4 1983009808
  %v5066 = vunpack.c.0.s8 %v5065
  %v5067 = vlaneseq
  %v5068 = vshrl.u32 %v5067, 7
  %v5069 = vsub.s32 %v5066, %v5068
  %v5070 = vrot.slane %v4757, %v5069
  %v5072 = vunpack.c.l.s4 1983009808
  %v5073 = vunpack.c.0.s8 %v5072
  %v5074 = vlaneseq
  %v5075 = vshrl.u32 %v5074, 7
  %v5076 = vsub.s32 %v5073, %v5075
  %v5077 = vrot.slane %v5063, %v5076
  %v5078 = vcombine.high %v5070, %v5070
  %v5079 = vcombine.high %v5077, %v5077
  %v5080 = vcombine.high %v4758, %v4758
  %v5082 = vunpack.c.l.s4 1983009808
  %v5083 = vunpack.c.0.s8 %v5082
  %v5084 = vlaneseq
  %v5085 = vshrl.u32 %v5084, 7
  %v5086 = vsub.s32 %v5083, %v5085
  %v5087 = vrot.slane %v4758, %v5086
  %v5089 = vunpack.c.l.s4 1983009808
  %v5090 = vunpack.c.0.s8 %v5089
  %v5091 = vlaneseq
  %v5092 = vshrl.u32 %v5091, 7
  %v5093 = vsub.s32 %v5090, %v5092
  %v5094 = vrot.slane %v5080, %v5093
  %v5095 = vcombine.high %v5087, %v5087
  %v5096 = vcombine.high %v5094, %v5094
  %v5097 = vcombine.high %v4759, %v4759
  %v5099 = vunpack.c.l.s4 1983009808
  %v5100 = vunpack.c.0.s8 %v5099
  %v5101 = vlaneseq
  %v5102 = vshrl.u32 %v5101, 7
  %v5103 = vsub.s32 %v5100, %v5102
  %v5104 = vrot.slane %v4759, %v5103
  %v5106 = vunpack.c.l.s4 1983009808
  %v5107 = vunpack.c.0.s8 %v5106
  %v5108 = vlaneseq
  %v5109 = vshrl.u32 %v5108, 7
  %v5110 = vsub.s32 %v5107, %v5109
  %v5111 = vrot.slane %v5097, %v5110
  %v5112 = vcombine.high %v5104, %v5104
  %v5113 = vcombine.high %v5111, %v5111
  %v5114 = vcombine.high %v4760, %v4760
  %v5116 = vunpack.c.l.s4 1983009808
  %v5117 = vunpack.c.0.s8 %v5116
  %v5118 = vlaneseq
  %v5119 = vshrl.u32 %v5118, 7
  %v5120 = vsub.s32 %v5117, %v5119
  %v5121 = vrot.slane %v4760, %v5120
  %v5123 = vunpack.c.l.s4 1983009808
  %v5124 = vunpack.c.0.s8 %v5123
  %v5125 = vlaneseq
  %v5126 = vshrl.u32 %v5125, 7
  %v5127 = vsub.s32 %v5124, %v5126
  %v5128 = vrot.slane %v5114, %v5127
  %v5129 = vcombine.high %v5121, %v5121
  %v5130 = vcombine.high %v5128, %v5128
  %v5131 = vcombine.high %v4761, %v4761
  %v5133 = vunpack.c.l.s4 1983009808
  %v5134 = vunpack.c.0.s8 %v5133
  %v5135 = vlaneseq
  %v5136 = vshrl.u32 %v5135, 7
  %v5137 = vsub.s32 %v5134, %v5136
  %v5138 = vrot.slane %v4761, %v5137
  %v5140 = vunpack.c.l.s4 1983009808
  %v5141 = vunpack.c.0.s8 %v5140
  %v5142 = vlaneseq
  %v5143 = vshrl.u32 %v5142, 7
  %v5144 = vsub.s32 %v5141, %v5143
  %v5145 = vrot.slane %v5131, %v5144
  %v5146 = vcombine.high %v5138, %v5138
  %v5147 = vcombine.high %v5145, %v5145
  %v5148 = vcombine.high %v4762, %v4762
  %v5150 = vunpack.c.l.s4 1983009808
  %v5151 = vunpack.c.0.s8 %v5150
  %v5152 = vlaneseq
  %v5153 = vshrl.u32 %v5152, 7
  %v5154 = vsub.s32 %v5151, %v5153
  %v5155 = vrot.slane %v4762, %v5154
  %v5157 = vunpack.c.l.s4 1983009808
  %v5158 = vunpack.c.0.s8 %v5157
  %v5159 = vlaneseq
  %v5160 = vshrl.u32 %v5159, 7
  %v5161 = vsub.s32 %v5158, %v5160
  %v5162 = vrot.slane %v5148, %v5161
  %v5163 = vcombine.high %v5155, %v5155
  %v5164 = vcombine.high %v5162, %v5162
  %v5165 = vcombine.high %v4763, %v4763
  %v5167 = vunpack.c.l.s4 1983009808
  %v5168 = vunpack.c.0.s8 %v5167
  %v5169 = vlaneseq
  %v5170 = vshrl.u32 %v5169, 7
  %v5171 = vsub.s32 %v5168, %v5170
  %v5172 = vrot.slane %v4763, %v5171
  %v5174 = vunpack.c.l.s4 1983009808
  %v5175 = vunpack.c.0.s8 %v5174
  %v5176 = vlaneseq
  %v5177 = vshrl.u32 %v5176, 7
  %v5178 = vsub.s32 %v5175, %v5177
  %v5179 = vrot.slane %v5165, %v5178
  %v5180 = vcombine.high %v5172, %v5172
  %v5181 = vcombine.high %v5179, %v5179
  %v5182 = vcombine.high %v4764, %v4764
  %v5184 = vunpack.c.l.s4 1983009808
  %v5185 = vunpack.c.0.s8 %v5184
  %v5186 = vlaneseq
  %v5187 = vshrl.u32 %v5186, 7
  %v5188 = vsub.s32 %v5185, %v5187
  %v5189 = vrot.slane %v4764, %v5188
  %v5191 = vunpack.c.l.s4 1983009808
  %v5192 = vunpack.c.0.s8 %v5191
  %v5193 = vlaneseq
  %v5194 = vshrl.u32 %v5193, 7
  %v5195 = vsub.s32 %v5192, %v5194
  %v5196 = vrot.slane %v5182, %v5195
  %v5197 = vcombine.high %v5189, %v5189
  %v5198 = vcombine.high %v5196, %v5196
  %v5199 = vcombine.high %v4765, %v4765
  %v5201 = vunpack.c.l.s4 1983009808
  %v5202 = vunpack.c.0.s8 %v5201
  %v5203 = vlaneseq
  %v5204 = vshrl.u32 %v5203, 7
  %v5205 = vsub.s32 %v5202, %v5204
  %v5206 = vrot.slane %v4765, %v5205
  %v5208 = vunpack.c.l.s4 1983009808
  %v5209 = vunpack.c.0.s8 %v5208
  %v5210 = vlaneseq
  %v5211 = vshrl.u32 %v5210, 7
  %v5212 = vsub.s32 %v5209, %v5211
  %v5213 = vrot.slane %v5199, %v5212
  %v5214 = vcombine.high %v5206, %v5206
  %v5215 = vcombine.high %v5213, %v5213
  %v5216 = vcombine.high %v4766, %v4766
  %v5218 = vunpack.c.l.s4 1983009808
  %v5219 = vunpack.c.0.s8 %v5218
  %v5220 = vlaneseq
  %v5221 = vshrl.u32 %v5220, 7
  %v5222 = vsub.s32 %v5219, %v5221
  %v5223 = vrot.slane %v4766, %v5222
  %v5225 = vunpack.c.l.s4 1983009808
  %v5226 = vunpack.c.0.s8 %v5225
  %v5227 = vlaneseq
  %v5228 = vshrl.u32 %v5227, 7
  %v5229 = vsub.s32 %v5226, %v5228
  %v5230 = vrot.slane %v5216, %v5229
  %v5231 = vcombine.high %v5223, %v5223
  %v5232 = vcombine.high %v5230, %v5230
  %v5233 = vcombine.high %v4767, %v4767
  %v5235 = vunpack.c.l.s4 1983009808
  %v5236 = vunpack.c.0.s8 %v5235
  %v5237 = vlaneseq
  %v5238 = vshrl.u32 %v5237, 7
  %v5239 = vsub.s32 %v5236, %v5238
  %v5240 = vrot.slane %v4767, %v5239
  %v5242 = vunpack.c.l.s4 1983009808
  %v5243 = vunpack.c.0.s8 %v5242
  %v5244 = vlaneseq
  %v5245 = vshrl.u32 %v5244, 7
  %v5246 = vsub.s32 %v5243, %v5245
  %v5247 = vrot.slane %v5233, %v5246
  %v5248 = vcombine.high %v5240, %v5240
  %v5249 = vcombine.high %v5247, %v5247
  %v5250 = vcombine.high %v4768, %v4768
  %v5252 = vunpack.c.l.s4 1983009808
  %v5253 = vunpack.c.0.s8 %v5252
  %v5254 = vlaneseq
  %v5255 = vshrl.u32 %v5254, 7
  %v5256 = vsub.s32 %v5253, %v5255
  %v5257 = vrot.slane %v4768, %v5256
  %v5259 = vunpack.c.l.s4 1983009808
  %v5260 = vunpack.c.0.s8 %v5259
  %v5261 = vlaneseq
  %v5262 = vshrl.u32 %v5261, 7
  %v5263 = vsub.s32 %v5260, %v5262
  %v5264 = vrot.slane %v5250, %v5263
  %v5265 = vcombine.high %v5257, %v5257
  %v5266 = vcombine.high %v5264, %v5264
  %v5267 = vcombine.high %v4769, %v4769
  %v5269 = vunpack.c.l.s4 1983009808
  %v5270 = vunpack.c.0.s8 %v5269
  %v5271 = vlaneseq
  %v5272 = vshrl.u32 %v5271, 7
  %v5273 = vsub.s32 %v5270, %v5272
  %v5274 = vrot.slane %v4769, %v5273
  %v5276 = vunpack.c.l.s4 1983009808
  %v5277 = vunpack.c.0.s8 %v5276
  %v5278 = vlaneseq
  %v5279 = vshrl.u32 %v5278, 7
  %v5280 = vsub.s32 %v5277, %v5279
  %v5281 = vrot.slane %v5267, %v5280
  %v5282 = vcombine.high %v5274, %v5274
  %v5283 = vcombine.high %v5281, %v5281
  %v5284 = vcombine.high %v4770, %v4770
  %v5286 = vunpack.c.l.s4 1983009808
  %v5287 = vunpack.c.0.s8 %v5286
  %v5288 = vlaneseq
  %v5289 = vshrl.u32 %v5288, 7
  %v5290 = vsub.s32 %v5287, %v5289
  %v5291 = vrot.slane %v4770, %v5290
  %v5293 = vunpack.c.l.s4 1983009808
  %v5294 = vunpack.c.0.s8 %v5293
  %v5295 = vlaneseq
  %v5296 = vshrl.u32 %v5295, 7
  %v5297 = vsub.s32 %v5294, %v5296
  %v5298 = vrot.slane %v5284, %v5297
  %v5299 = vcombine.high %v5291, %v5291
  %v5300 = vcombine.high %v5298, %v5298
  %v5301 = vcombine.high %v4771, %v4771
  %v5303 = vunpack.c.l.s4 1983009808
  %v5304 = vunpack.c.0.s8 %v5303
  %v5305 = vlaneseq
  %v5306 = vshrl.u32 %v5305, 7
  %v5307 = vsub.s32 %v5304, %v5306
  %v5308 = vrot.slane %v4771, %v5307
  %v5310 = vunpack.c.l.s4 1983009808
  %v5311 = vunpack.c.0.s8 %v5310
  %v5312 = vlaneseq
  %v5313 = vshrl.u32 %v5312, 7
  %v5314 = vsub.s32 %v5311, %v5313
  %v5315 = vrot.slane %v5301, %v5314
  %v5316 = vcombine.high %v5308, %v5308
  %v5317 = vcombine.high %v5315, %v5315
  %v5318 = vcombine.high %v4772, %v4772
  %v5320 = vunpack.c.l.s4 1983009808
  %v5321 = vunpack.c.0.s8 %v5320
  %v5322 = vlaneseq
  %v5323 = vshrl.u32 %v5322, 7
  %v5324 = vsub.s32 %v5321, %v5323
  %v5325 = vrot.slane %v4772, %v5324
  %v5327 = vunpack.c.l.s4 1983009808
  %v5328 = vunpack.c.0.s8 %v5327
  %v5329 = vlaneseq
  %v5330 = vshrl.u32 %v5329, 7
  %v5331 = vsub.s32 %v5328, %v5330
  %v5332 = vrot.slane %v5318, %v5331
  %v5333 = vcombine.high %v5325, %v5325
  %v5334 = vcombine.high %v5332, %v5332
  %v5335 = vcombine.high %v4773, %v4773
  %v5337 = vunpack.c.l.s4 1983009808
  %v5338 = vunpack.c.0.s8 %v5337
  %v5339 = vlaneseq
  %v5340 = vshrl.u32 %v5339, 7
  %v5341 = vsub.s32 %v5338, %v5340
  %v5342 = vrot.slane %v4773, %v5341
  %v5344 = vunpack.c.l.s4 1983009808
  %v5345 = vunpack.c.0.s8 %v5344
  %v5346 = vlaneseq
  %v5347 = vshrl.u32 %v5346, 7
  %v5348 = vsub.s32 %v5345, %v5347
  %v5349 = vrot.slane %v5335, %v5348
  %v5350 = vcombine.high %v5342, %v5342
  %v5351 = vcombine.high %v5349, %v5349
  %v5352 = vcombine.high %v4774, %v4774
  %v5354 = vunpack.c.l.s4 1983009808
  %v5355 = vunpack.c.0.s8 %v5354
  %v5356 = vlaneseq
  %v5357 = vshrl.u32 %v5356, 7
  %v5358 = vsub.s32 %v5355, %v5357
  %v5359 = vrot.slane %v4774, %v5358
  %v5361 = vunpack.c.l.s4 1983009808
  %v5362 = vunpack.c.0.s8 %v5361
  %v5363 = vlaneseq
  %v5364 = vshrl.u32 %v5363, 7
  %v5365 = vsub.s32 %v5362, %v5364
  %v5366 = vrot.slane %v5352, %v5365
  %v5367 = vcombine.high %v5359, %v5359
  %v5368 = vcombine.high %v5366, %v5366
  %v5369 = vcombine.high %v4775, %v4775
  %v5371 = vunpack.c.l.s4 1983009808
  %v5372 = vunpack.c.0.s8 %v5371
  %v5373 = vlaneseq
  %v5374 = vshrl.u32 %v5373, 7
  %v5375 = vsub.s32 %v5372, %v5374
  %v5376 = vrot.slane %v4775, %v5375
  %v5378 = vunpack.c.l.s4 1983009808
  %v5379 = vunpack.c.0.s8 %v5378
  %v5380 = vlaneseq
  %v5381 = vshrl.u32 %v5380, 7
  %v5382 = vsub.s32 %v5379, %v5381
  %v5383 = vrot.slane %v5369, %v5382
  %v5384 = vcombine.high %v5376, %v5376
  %v5385 = vcombine.high %v5383, %v5383
  %v5386 = vcombine.high %v4776, %v4776
  %v5388 = vunpack.c.l.s4 1983009808
  %v5389 = vunpack.c.0.s8 %v5388
  %v5390 = vlaneseq
  %v5391 = vshrl.u32 %v5390, 7
  %v5392 = vsub.s32 %v5389, %v5391
  %v5393 = vrot.slane %v4776, %v5392
  %v5395 = vunpack.c.l.s4 1983009808
  %v5396 = vunpack.c.0.s8 %v5395
  %v5397 = vlaneseq
  %v5398 = vshrl.u32 %v5397, 7
  %v5399 = vsub.s32 %v5396, %v5398
  %v5400 = vrot.slane %v5386, %v5399
  %v5401 = vcombine.high %v5393, %v5393
  %v5402 = vcombine.high %v5400, %v5400
  %v5403 = vcombine.high %v4777, %v4777
  %v5405 = vunpack.c.l.s4 1983009808
  %v5406 = vunpack.c.0.s8 %v5405
  %v5407 = vlaneseq
  %v5408 = vshrl.u32 %v5407, 7
  %v5409 = vsub.s32 %v5406, %v5408
  %v5410 = vrot.slane %v4777, %v5409
  %v5412 = vunpack.c.l.s4 1983009808
  %v5413 = vunpack.c.0.s8 %v5412
  %v5414 = vlaneseq
  %v5415 = vshrl.u32 %v5414, 7
  %v5416 = vsub.s32 %v5413, %v5415
  %v5417 = vrot.slane %v5403, %v5416
  %v5418 = vcombine.high %v5410, %v5410
  %v5419 = vcombine.high %v5417, %v5417
  %v5420 = vcombine.high %v4778, %v4778
  %v5422 = vunpack.c.l.s4 1983009808
  %v5423 = vunpack.c.0.s8 %v5422
  %v5424 = vlaneseq
  %v5425 = vshrl.u32 %v5424, 7
  %v5426 = vsub.s32 %v5423, %v5425
  %v5427 = vrot.slane %v4778, %v5426
  %v5429 = vunpack.c.l.s4 1983009808
  %v5430 = vunpack.c.0.s8 %v5429
  %v5431 = vlaneseq
  %v5432 = vshrl.u32 %v5431, 7
  %v5433 = vsub.s32 %v5430, %v5432
  %v5434 = vrot.slane %v5420, %v5433
  %v5435 = vcombine.high %v5427, %v5427
  %v5436 = vcombine.high %v5434, %v5434
  %v5437 = vcombine.high %v4779, %v4779
  %v5439 = vunpack.c.l.s4 1983009808
  %v5440 = vunpack.c.0.s8 %v5439
  %v5441 = vlaneseq
  %v5442 = vshrl.u32 %v5441, 7
  %v5443 = vsub.s32 %v5440, %v5442
  %v5444 = vrot.slane %v4779, %v5443
  %v5446 = vunpack.c.l.s4 1983009808
  %v5447 = vunpack.c.0.s8 %v5446
  %v5448 = vlaneseq
  %v5449 = vshrl.u32 %v5448, 7
  %v5450 = vsub.s32 %v5447, %v5449
  %v5451 = vrot.slane %v5437, %v5450
  %v5452 = vcombine.high %v5444, %v5444
  %v5453 = vcombine.high %v5451, %v5451
  %v5454 = vcombine.high %v4780, %v4780
  %v5456 = vunpack.c.l.s4 1983009808
  %v5457 = vunpack.c.0.s8 %v5456
  %v5458 = vlaneseq
  %v5459 = vshrl.u32 %v5458, 7
  %v5460 = vsub.s32 %v5457, %v5459
  %v5461 = vrot.slane %v4780, %v5460
  %v5463 = vunpack.c.l.s4 1983009808
  %v5464 = vunpack.c.0.s8 %v5463
  %v5465 = vlaneseq
  %v5466 = vshrl.u32 %v5465, 7
  %v5467 = vsub.s32 %v5464, %v5466
  %v5468 = vrot.slane %v5454, %v5467
  %v5469 = vcombine.high %v5461, %v5461
  %v5470 = vcombine.high %v5468, %v5468
  %v5471 = vcombine.high %v4781, %v4781
  %v5473 = vunpack.c.l.s4 1983009808
  %v5474 = vunpack.c.0.s8 %v5473
  %v5475 = vlaneseq
  %v5476 = vshrl.u32 %v5475, 7
  %v5477 = vsub.s32 %v5474, %v5476
  %v5478 = vrot.slane %v4781, %v5477
  %v5480 = vunpack.c.l.s4 1983009808
  %v5481 = vunpack.c.0.s8 %v5480
  %v5482 = vlaneseq
  %v5483 = vshrl.u32 %v5482, 7
  %v5484 = vsub.s32 %v5481, %v5483
  %v5485 = vrot.slane %v5471, %v5484
  %v5486 = vcombine.high %v5478, %v5478
  %v5487 = vcombine.high %v5485, %v5485
  %v5488 = vcombine.high %v4782, %v4782
  %v5490 = vunpack.c.l.s4 1983009808
  %v5491 = vunpack.c.0.s8 %v5490
  %v5492 = vlaneseq
  %v5493 = vshrl.u32 %v5492, 7
  %v5494 = vsub.s32 %v5491, %v5493
  %v5495 = vrot.slane %v4782, %v5494
  %v5497 = vunpack.c.l.s4 1983009808
  %v5498 = vunpack.c.0.s8 %v5497
  %v5499 = vlaneseq
  %v5500 = vshrl.u32 %v5499, 7
  %v5501 = vsub.s32 %v5498, %v5500
  %v5502 = vrot.slane %v5488, %v5501
  %v5503 = vcombine.high %v5495, %v5495
  %v5504 = vcombine.high %v5502, %v5502
  %v5505 = vcombine.high %v4783, %v4783
  %v5507 = vunpack.c.l.s4 1983009808
  %v5508 = vunpack.c.0.s8 %v5507
  %v5509 = vlaneseq
  %v5510 = vshrl.u32 %v5509, 7
  %v5511 = vsub.s32 %v5508, %v5510
  %v5512 = vrot.slane %v4783, %v5511
  %v5514 = vunpack.c.l.s4 1983009808
  %v5515 = vunpack.c.0.s8 %v5514
  %v5516 = vlaneseq
  %v5517 = vshrl.u32 %v5516, 7
  %v5518 = vsub.s32 %v5515, %v5517
  %v5519 = vrot.slane %v5505, %v5518
  %v5520 = vcombine.high %v5512, %v5512
  %v5521 = vcombine.high %v5519, %v5519
  %v5522 = vcombine.high %v4784, %v4784
  %v5524 = vunpack.c.l.s4 1983009808
  %v5525 = vunpack.c.0.s8 %v5524
  %v5526 = vlaneseq
  %v5527 = vshrl.u32 %v5526, 7
  %v5528 = vsub.s32 %v5525, %v5527
  %v5529 = vrot.slane %v4784, %v5528
  %v5531 = vunpack.c.l.s4 1983009808
  %v5532 = vunpack.c.0.s8 %v5531
  %v5533 = vlaneseq
  %v5534 = vshrl.u32 %v5533, 7
  %v5535 = vsub.s32 %v5532, %v5534
  %v5536 = vrot.slane %v5522, %v5535
  %v5537 = vcombine.high %v5529, %v5529
  %v5538 = vcombine.high %v5536, %v5536
  %v5539 = vcombine.high %v4785, %v4785
  %v5541 = vunpack.c.l.s4 1983009808
  %v5542 = vunpack.c.0.s8 %v5541
  %v5543 = vlaneseq
  %v5544 = vshrl.u32 %v5543, 7
  %v5545 = vsub.s32 %v5542, %v5544
  %v5546 = vrot.slane %v4785, %v5545
  %v5548 = vunpack.c.l.s4 1983009808
  %v5549 = vunpack.c.0.s8 %v5548
  %v5550 = vlaneseq
  %v5551 = vshrl.u32 %v5550, 7
  %v5552 = vsub.s32 %v5549, %v5551
  %v5553 = vrot.slane %v5539, %v5552
  %v5554 = vcombine.high %v5546, %v5546
  %v5555 = vcombine.high %v5553, %v5553
  %v5556 = vcombine.high %v4786, %v4786
  %v5558 = vunpack.c.l.s4 1983009808
  %v5559 = vunpack.c.0.s8 %v5558
  %v5560 = vlaneseq
  %v5561 = vshrl.u32 %v5560, 7
  %v5562 = vsub.s32 %v5559, %v5561
  %v5563 = vrot.slane %v4786, %v5562
  %v5565 = vunpack.c.l.s4 1983009808
  %v5566 = vunpack.c.0.s8 %v5565
  %v5567 = vlaneseq
  %v5568 = vshrl.u32 %v5567, 7
  %v5569 = vsub.s32 %v5566, %v5568
  %v5570 = vrot.slane %v5556, %v5569
  %v5571 = vcombine.high %v5563, %v5563
  %v5572 = vcombine.high %v5570, %v5570
  %v5573 = vcombine.high %v4787, %v4787
  %v5575 = vunpack.c.l.s4 1983009808
  %v5576 = vunpack.c.0.s8 %v5575
  %v5577 = vlaneseq
  %v5578 = vshrl.u32 %v5577, 7
  %v5579 = vsub.s32 %v5576, %v5578
  %v5580 = vrot.slane %v4787, %v5579
  %v5582 = vunpack.c.l.s4 1983009808
  %v5583 = vunpack.c.0.s8 %v5582
  %v5584 = vlaneseq
  %v5585 = vshrl.u32 %v5584, 7
  %v5586 = vsub.s32 %v5583, %v5585
  %v5587 = vrot.slane %v5573, %v5586
  %v5588 = vcombine.high %v5580, %v5580
  %v5589 = vcombine.high %v5587, %v5587
  %v5590 = vcombine.high %v4788, %v4788
  %v5592 = vunpack.c.l.s4 1983009808
  %v5593 = vunpack.c.0.s8 %v5592
  %v5594 = vlaneseq
  %v5595 = vshrl.u32 %v5594, 7
  %v5596 = vsub.s32 %v5593, %v5595
  %v5597 = vrot.slane %v4788, %v5596
  %v5599 = vunpack.c.l.s4 1983009808
  %v5600 = vunpack.c.0.s8 %v5599
  %v5601 = vlaneseq
  %v5602 = vshrl.u32 %v5601, 7
  %v5603 = vsub.s32 %v5600, %v5602
  %v5604 = vrot.slane %v5590, %v5603
  %v5605 = vcombine.high %v5597, %v5597
  %v5606 = vcombine.high %v5604, %v5604
  %v5607 = vcombine.high %v4789, %v4789
  %v5609 = vunpack.c.l.s4 1983009808
  %v5610 = vunpack.c.0.s8 %v5609
  %v5611 = vlaneseq
  %v5612 = vshrl.u32 %v5611, 7
  %v5613 = vsub.s32 %v5610, %v5612
  %v5614 = vrot.slane %v4789, %v5613
  %v5616 = vunpack.c.l.s4 1983009808
  %v5617 = vunpack.c.0.s8 %v5616
  %v5618 = vlaneseq
  %v5619 = vshrl.u32 %v5618, 7
  %v5620 = vsub.s32 %v5617, %v5619
  %v5621 = vrot.slane %v5607, %v5620
  %v5622 = vcombine.high %v5614, %v5614
  %v5623 = vcombine.high %v5621, %v5621
  %v5624 = vcombine.high %v4790, %v4790
  %v5626 = vunpack.c.l.s4 1983009808
  %v5627 = vunpack.c.0.s8 %v5626
  %v5628 = vlaneseq
  %v5629 = vshrl.u32 %v5628, 7
  %v5630 = vsub.s32 %v5627, %v5629
  %v5631 = vrot.slane %v4790, %v5630
  %v5633 = vunpack.c.l.s4 1983009808
  %v5634 = vunpack.c.0.s8 %v5633
  %v5635 = vlaneseq
  %v5636 = vshrl.u32 %v5635, 7
  %v5637 = vsub.s32 %v5634, %v5636
  %v5638 = vrot.slane %v5624, %v5637
  %v5639 = vcombine.high %v5631, %v5631
  %v5640 = vcombine.high %v5638, %v5638
  %v5641 = vcombine.high %v4791, %v4791
  %v5643 = vunpack.c.l.s4 1983009808
  %v5644 = vunpack.c.0.s8 %v5643
  %v5645 = vlaneseq
  %v5646 = vshrl.u32 %v5645, 7
  %v5647 = vsub.s32 %v5644, %v5646
  %v5648 = vrot.slane %v4791, %v5647
  %v5650 = vunpack.c.l.s4 1983009808
  %v5651 = vunpack.c.0.s8 %v5650
  %v5652 = vlaneseq
  %v5653 = vshrl.u32 %v5652, 7
  %v5654 = vsub.s32 %v5651, %v5653
  %v5655 = vrot.slane %v5641, %v5654
  %v5656 = vcombine.high %v5648, %v5648
  %v5657 = vcombine.high %v5655, %v5655
  %v5658 = vcombine.high %v4792, %v4792
  %v5660 = vunpack.c.l.s4 1983009808
  %v5661 = vunpack.c.0.s8 %v5660
  %v5662 = vlaneseq
  %v5663 = vshrl.u32 %v5662, 7
  %v5664 = vsub.s32 %v5661, %v5663
  %v5665 = vrot.slane %v4792, %v5664
  %v5667 = vunpack.c.l.s4 1983009808
  %v5668 = vunpack.c.0.s8 %v5667
  %v5669 = vlaneseq
  %v5670 = vshrl.u32 %v5669, 7
  %v5671 = vsub.s32 %v5668, %v5670
  %v5672 = vrot.slane %v5658, %v5671
  %v5673 = vcombine.high %v5665, %v5665
  %v5674 = vcombine.high %v5672, %v5672
  %v5675 = vcombine.low %v4849, %v4857
  %v5676 = vcombine.low %v4856, %v4858
  %v5678 = vunpack.c.l.s4 1983009808
  %v5679 = vunpack.c.0.s8 %v5678
  %v5680 = vlaneseq
  %v5681 = vshrl.u32 %v5680, 7
  %v5682 = vsub.s32 %v5679, %v5681
  %v5683 = vrot.slane %v5675, %v5682
  %v5685 = vunpack.c.l.s4 1983009808
  %v5686 = vunpack.c.0.s8 %v5685
  %v5687 = vlaneseq
  %v5688 = vshrl.u32 %v5687, 7
  %v5689 = vsub.s32 %v5686, %v5688
  %v5690 = vrot.slane %v5676, %v5689
  %v5691 = vcombine.low %v5683, %v5690
  %v5692 = vcombine.low %v4866, %v4874
  %v5694 = vunpack.c.l.s4 1983009808
  %v5695 = vunpack.c.0.s8 %v5694
  %v5696 = vlaneseq
  %v5697 = vshrl.u32 %v5696, 7
  %v5698 = vsub.s32 %v5695, %v5697
  %v5699 = vrot.slane %v5692, %v5698
  %v5700 = vcombine.low %v4875, %v4883
  %v5701 = vcombine.low %v4891, %v4890
  %v5703 = vunpack.c.l.s4 1983009808
  %v5704 = vunpack.c.0.s8 %v5703
  %v5705 = vlaneseq
  %v5706 = vshrl.u32 %v5705, 7
  %v5707 = vsub.s32 %v5704, %v5706
  %v5708 = vrot.slane %v5700, %v5707
  %v5710 = vunpack.c.l.s4 1983009808
  %v5711 = vunpack.c.0.s8 %v5710
  %v5712 = vlaneseq
  %v5713 = vshrl.u32 %v5712, 7
  %v5714 = vsub.s32 %v5711, %v5713
  %v5715 = vrot.slane %v5701, %v5714
  %v5716 = vcombine.low %v5708, %v5715
  %v5717 = vcombine.low %v4892, %v4900
  %v5719 = vunpack.c.l.s4 1983009808
  %v5720 = vunpack.c.0.s8 %v5719
  %v5721 = vlaneseq
  %v5722 = vshrl.u32 %v5721, 7
  %v5723 = vsub.s32 %v5720, %v5722
  %v5724 = vrot.slane %v5717, %v5723
  %v5725 = vcombine.low %v4907, %v4909
  %v5726 = vcombine.low %v4917, %v4925
  %v5728 = vunpack.c.l.s4 1983009808
  %v5729 = vunpack.c.0.s8 %v5728
  %v5730 = vlaneseq
  %v5731 = vshrl.u32 %v5730, 7
  %v5732 = vsub.s32 %v5729, %v5731
  %v5733 = vrot.slane %v5725, %v5732
  %v5735 = vunpack.c.l.s4 1983009808
  %v5736 = vunpack.c.0.s8 %v5735
  %v5737 = vlaneseq
  %v5738 = vshrl.u32 %v5737, 7
  %v5739 = vsub.s32 %v5736, %v5738
  %v5740 = vrot.slane %v5726, %v5739
  %v5741 = vcombine.low %v5733, %v5740
  %v5742 = vcombine.low %v4924, %v4926
  %v5744 = vunpack.c.l.s4 1983009808
  %v5745 = vunpack.c.0.s8 %v5744
  %v5746 = vlaneseq
  %v5747 = vshrl.u32 %v5746, 7
  %v5748 = vsub.s32 %v5745, %v5747
  %v5749 = vrot.slane %v5742, %v5748
  %v5750 = vcombine.low %v4942, %v4941
  %v5751 = vcombine.low %v4943, %v4951
  %v5753 = vunpack.c.l.s4 1983009808
  %v5754 = vunpack.c.0.s8 %v5753
  %v5755 = vlaneseq
  %v5756 = vshrl.u32 %v5755, 7
  %v5757 = vsub.s32 %v5754, %v5756
  %v5758 = vrot.slane %v5750, %v5757
  %v5760 = vunpack.c.l.s4 1983009808
  %v5761 = vunpack.c.0.s8 %v5760
  %v5762 = vlaneseq
  %v5763 = vshrl.u32 %v5762, 7
  %v5764 = vsub.s32 %v5761, %v5763
  %v5765 = vrot.slane %v5751, %v5764
  %v5766 = vcombine.low %v5758, %v5765
  %v5767 = vcombine.low %v4959, %v4958
  %v5769 = vunpack.c.l.s4 1983009808
  %v5770 = vunpack.c.0.s8 %v5769
  %v5771 = vlaneseq
  %v5772 = vshrl.u32 %v5771, 7
  %v5773 = vsub.s32 %v5770, %v5772
  %v5774 = vrot.slane %v5767, %v5773
  %v5775 = vcombine.low %v4968, %v4976
  %v5776 = vcombine.low %v4975, %v4977
  %v5778 = vunpack.c.l.s4 1983009808
  %v5779 = vunpack.c.0.s8 %v5778
  %v5780 = vlaneseq
  %v5781 = vshrl.u32 %v5780, 7
  %v5782 = vsub.s32 %v5779, %v5781
  %v5783 = vrot.slane %v5775, %v5782
  %v5785 = vunpack.c.l.s4 1983009808
  %v5786 = vunpack.c.0.s8 %v5785
  %v5787 = vlaneseq
  %v5788 = vshrl.u32 %v5787, 7
  %v5789 = vsub.s32 %v5786, %v5788
  %v5790 = vrot.slane %v5776, %v5789
  %v5791 = vcombine.low %v5783, %v5790
  %v5792 = vcombine.low %v4985, %v4993
  %v5794 = vunpack.c.l.s4 1983009808
  %v5795 = vunpack.c.0.s8 %v5794
  %v5796 = vlaneseq
  %v5797 = vshrl.u32 %v5796, 7
  %v5798 = vsub.s32 %v5795, %v5797
  %v5799 = vrot.slane %v5792, %v5798
  %v5800 = vcombine.low %v4994, %v5002
  %v5801 = vcombine.low %v5010, %v5009
  %v5803 = vunpack.c.l.s4 1983009808
  %v5804 = vunpack.c.0.s8 %v5803
  %v5805 = vlaneseq
  %v5806 = vshrl.u32 %v5805, 7
  %v5807 = vsub.s32 %v5804, %v5806
  %v5808 = vrot.slane %v5800, %v5807
  %v5810 = vunpack.c.l.s4 1983009808
  %v5811 = vunpack.c.0.s8 %v5810
  %v5812 = vlaneseq
  %v5813 = vshrl.u32 %v5812, 7
  %v5814 = vsub.s32 %v5811, %v5813
  %v5815 = vrot.slane %v5801, %v5814
  %v5816 = vcombine.low %v5808, %v5815
  %v5817 = vcombine.low %v5011, %v5019
  %v5819 = vunpack.c.l.s4 1983009808
  %v5820 = vunpack.c.0.s8 %v5819
  %v5821 = vlaneseq
  %v5822 = vshrl.u32 %v5821, 7
  %v5823 = vsub.s32 %v5820, %v5822
  %v5824 = vrot.slane %v5817, %v5823
  %v5825 = vcombine.low %v5026, %v5028
  %v5826 = vcombine.low %v5036, %v5044
  %v5828 = vunpack.c.l.s4 1983009808
  %v5829 = vunpack.c.0.s8 %v5828
  %v5830 = vlaneseq
  %v5831 = vshrl.u32 %v5830, 7
  %v5832 = vsub.s32 %v5829, %v5831
  %v5833 = vrot.slane %v5825, %v5832
  %v5835 = vunpack.c.l.s4 1983009808
  %v5836 = vunpack.c.0.s8 %v5835
  %v5837 = vlaneseq
  %v5838 = vshrl.u32 %v5837, 7
  %v5839 = vsub.s32 %v5836, %v5838
  %v5840 = vrot.slane %v5826, %v5839
  %v5841 = vcombine.low %v5833, %v5840
  %v5842 = vcombine.low %v5043, %v5045
  %v5844 = vunpack.c.l.s4 1983009808
  %v5845 = vunpack.c.0.s8 %v5844
  %v5846 = vlaneseq
  %v5847 = vshrl.u32 %v5846, 7
  %v5848 = vsub.s32 %v5845, %v5847
  %v5849 = vrot.slane %v5842, %v5848
  %v5850 = vcombine.low %v5061, %v5060
  %v5851 = vcombine.low %v5062, %v5070
  %v5853 = vunpack.c.l.s4 1983009808
  %v5854 = vunpack.c.0.s8 %v5853
  %v5855 = vlaneseq
  %v5856 = vshrl.u32 %v5855, 7
  %v5857 = vsub.s32 %v5854, %v5856
  %v5858 = vrot.slane %v5850, %v5857
  %v5860 = vunpack.c.l.s4 1983009808
  %v5861 = vunpack.c.0.s8 %v5860
  %v5862 = vlaneseq
  %v5863 = vshrl.u32 %v5862, 7
  %v5864 = vsub.s32 %v5861, %v5863
  %v5865 = vrot.slane %v5851, %v5864
  %v5866 = vcombine.low %v5858, %v5865
  %v5867 = vcombine.low %v5078, %v5077
  %v5869 = vunpack.c.l.s4 1983009808
  %v5870 = vunpack.c.0.s8 %v5869
  %v5871 = vlaneseq
  %v5872 = vshrl.u32 %v5871, 7
  %v5873 = vsub.s32 %v5870, %v5872
  %v5874 = vrot.slane %v5867, %v5873
  %v5875 = vcombine.low %v5087, %v5095
  %v5876 = vcombine.low %v5094, %v5096
  %v5878 = vunpack.c.l.s4 1983009808
  %v5879 = vunpack.c.0.s8 %v5878
  %v5880 = vlaneseq
  %v5881 = vshrl.u32 %v5880, 7
  %v5882 = vsub.s32 %v5879, %v5881
  %v5883 = vrot.slane %v5875, %v5882
  %v5885 = vunpack.c.l.s4 1983009808
  %v5886 = vunpack.c.0.s8 %v5885
  %v5887 = vlaneseq
  %v5888 = vshrl.u32 %v5887, 7
  %v5889 = vsub.s32 %v5886, %v5888
  %v5890 = vrot.slane %v5876, %v5889
  %v5891 = vcombine.low %v5883, %v5890
  %v5892 = vcombine.low %v5104, %v5112
  %v5894 = vunpack.c.l.s4 1983009808
  %v5895 = vunpack.c.0.s8 %v5894
  %v5896 = vlaneseq
  %v5897 = vshrl.u32 %v5896, 7
  %v5898 = vsub.s32 %v5895, %v5897
  %v5899 = vrot.slane %v5892, %v5898
  %v5900 = vcombine.low %v5113, %v5121
  %v5901 = vcombine.low %v5129, %v5128
  %v5903 = vunpack.c.l.s4 1983009808
  %v5904 = vunpack.c.0.s8 %v5903
  %v5905 = vlaneseq
  %v5906 = vshrl.u32 %v5905, 7
  %v5907 = vsub.s32 %v5904, %v5906
  %v5908 = vrot.slane %v5900, %v5907
  %v5910 = vunpack.c.l.s4 1983009808
  %v5911 = vunpack.c.0.s8 %v5910
  %v5912 = vlaneseq
  %v5913 = vshrl.u32 %v5912, 7
  %v5914 = vsub.s32 %v5911, %v5913
  %v5915 = vrot.slane %v5901, %v5914
  %v5916 = vcombine.low %v5908, %v5915
  %v5917 = vcombine.low %v5130, %v5138
  %v5919 = vunpack.c.l.s4 1983009808
  %v5920 = vunpack.c.0.s8 %v5919
  %v5921 = vlaneseq
  %v5922 = vshrl.u32 %v5921, 7
  %v5923 = vsub.s32 %v5920, %v5922
  %v5924 = vrot.slane %v5917, %v5923
  %v5925 = vcombine.low %v5145, %v5147
  %v5926 = vcombine.low %v5155, %v5163
  %v5928 = vunpack.c.l.s4 1983009808
  %v5929 = vunpack.c.0.s8 %v5928
  %v5930 = vlaneseq
  %v5931 = vshrl.u32 %v5930, 7
  %v5932 = vsub.s32 %v5929, %v5931
  %v5933 = vrot.slane %v5925, %v5932
  %v5935 = vunpack.c.l.s4 1983009808
  %v5936 = vunpack.c.0.s8 %v5935
  %v5937 = vlaneseq
  %v5938 = vshrl.u32 %v5937, 7
  %v5939 = vsub.s32 %v5936, %v5938
  %v5940 = vrot.slane %v5926, %v5939
  %v5941 = vcombine.low %v5933, %v5940
  %v5942 = vcombine.low %v5162, %v5164
  %v5944 = vunpack.c.l.s4 1983009808
  %v5945 = vunpack.c.0.s8 %v5944
  %v5946 = vlaneseq
  %v5947 = vshrl.u32 %v5946, 7
  %v5948 = vsub.s32 %v5945, %v5947
  %v5949 = vrot.slane %v5942, %v5948
  %v5950 = vcombine.low %v5180, %v5179
  %v5951 = vcombine.low %v5181, %v5189
  %v5953 = vunpack.c.l.s4 1983009808
  %v5954 = vunpack.c.0.s8 %v5953
  %v5955 = vlaneseq
  %v5956 = vshrl.u32 %v5955, 7
  %v5957 = vsub.s32 %v5954, %v5956
  %v5958 = vrot.slane %v5950, %v5957
  %v5960 = vunpack.c.l.s4 1983009808
  %v5961 = vunpack.c.0.s8 %v5960
  %v5962 = vlaneseq
  %v5963 = vshrl.u32 %v5962, 7
  %v5964 = vsub.s32 %v5961, %v5963
  %v5965 = vrot.slane %v5951, %v5964
  %v5966 = vcombine.low %v5958, %v5965
  %v5967 = vcombine.low %v5197, %v5196
  %v5969 = vunpack.c.l.s4 1983009808
  %v5970 = vunpack.c.0.s8 %v5969
  %v5971 = vlaneseq
  %v5972 = vshrl.u32 %v5971, 7
  %v5973 = vsub.s32 %v5970, %v5972
  %v5974 = vrot.slane %v5967, %v5973
  %v5975 = vcombine.low %v5264, %v5266
  %v5976 = vcombine.low %v5274, %v5282
  %v5978 = vunpack.c.l.s4 1983009808
  %v5979 = vunpack.c.0.s8 %v5978
  %v5980 = vlaneseq
  %v5981 = vshrl.u32 %v5980, 7
  %v5982 = vsub.s32 %v5979, %v5981
  %v5983 = vrot.slane %v5975, %v5982
  %v5985 = vunpack.c.l.s4 1983009808
  %v5986 = vunpack.c.0.s8 %v5985
  %v5987 = vlaneseq
  %v5988 = vshrl.u32 %v5987, 7
  %v5989 = vsub.s32 %v5986, %v5988
  %v5990 = vrot.slane %v5976, %v5989
  %v5991 = vcombine.low %v5983, %v5990
  %v5992 = vcombine.low %v5281, %v5283
  %v5994 = vunpack.c.l.s4 1983009808
  %v5995 = vunpack.c.0.s8 %v5994
  %v5996 = vlaneseq
  %v5997 = vshrl.u32 %v5996, 7
  %v5998 = vsub.s32 %v5995, %v5997
  %v5999 = vrot.slane %v5992, %v5998
  %v6000 = vcombine.low %v5299, %v5298
  %v6001 = vcombine.low %v5300, %v5308
  %v6003 = vunpack.c.l.s4 1983009808
  %v6004 = vunpack.c.0.s8 %v6003
  %v6005 = vlaneseq
  %v6006 = vshrl.u32 %v6005, 7
  %v6007 = vsub.s32 %v6004, %v6006
  %v6008 = vrot.slane %v6000, %v6007
  %v6010 = vunpack.c.l.s4 1983009808
  %v6011 = vunpack.c.0.s8 %v6010
  %v6012 = vlaneseq
  %v6013 = vshrl.u32 %v6012, 7
  %v6014 = vsub.s32 %v6011, %v6013
  %v6015 = vrot.slane %v6001, %v6014
  %v6016 = vcombine.low %v6008, %v6015
  %v6017 = vcombine.low %v5316, %v5315
  %v6019 = vunpack.c.l.s4 1983009808
  %v6020 = vunpack.c.0.s8 %v6019
  %v6021 = vlaneseq
  %v6022 = vshrl.u32 %v6021, 7
  %v6023 = vsub.s32 %v6020, %v6022
  %v6024 = vrot.slane %v6017, %v6023
  %v6025 = vcombine.low %v5325, %v5333
  %v6026 = vcombine.low %v5332, %v5334
  %v6028 = vunpack.c.l.s4 1983009808
  %v6029 = vunpack.c.0.s8 %v6028
  %v6030 = vlaneseq
  %v6031 = vshrl.u32 %v6030, 7
  %v6032 = vsub.s32 %v6029, %v6031
  %v6033 = vrot.slane %v6025, %v6032
  %v6035 = vunpack.c.l.s4 1983009808
  %v6036 = vunpack.c.0.s8 %v6035
  %v6037 = vlaneseq
  %v6038 = vshrl.u32 %v6037, 7
  %v6039 = vsub.s32 %v6036, %v6038
  %v6040 = vrot.slane %v6026, %v6039
  %v6041 = vcombine.low %v6033, %v6040
  %v6042 = vcombine.low %v5342, %v5350
  %v6044 = vunpack.c.l.s4 1983009808
  %v6045 = vunpack.c.0.s8 %v6044
  %v6046 = vlaneseq
  %v6047 = vshrl.u32 %v6046, 7
  %v6048 = vsub.s32 %v6045, %v6047
  %v6049 = vrot.slane %v6042, %v6048
  %v6050 = vcombine.low %v5351, %v5359
  %v6051 = vcombine.low %v5367, %v5366
  %v6053 = vunpack.c.l.s4 1983009808
  %v6054 = vunpack.c.0.s8 %v6053
  %v6055 = vlaneseq
  %v6056 = vshrl.u32 %v6055, 7
  %v6057 = vsub.s32 %v6054, %v6056
  %v6058 = vrot.slane %v6050, %v6057
  %v6060 = vunpack.c.l.s4 1983009808
  %v6061 = vunpack.c.0.s8 %v6060
  %v6062 = vlaneseq
  %v6063 = vshrl.u32 %v6062, 7
  %v6064 = vsub.s32 %v6061, %v6063
  %v6065 = vrot.slane %v6051, %v6064
  %v6066 = vcombine.low %v6058, %v6065
  %v6067 = vcombine.low %v5368, %v5376
  %v6069 = vunpack.c.l.s4 1983009808
  %v6070 = vunpack.c.0.s8 %v6069
  %v6071 = vlaneseq
  %v6072 = vshrl.u32 %v6071, 7
  %v6073 = vsub.s32 %v6070, %v6072
  %v6074 = vrot.slane %v6067, %v6073
  %v6075 = vcombine.low %v5383, %v5385
  %v6076 = vcombine.low %v5393, %v5401
  %v6078 = vunpack.c.l.s4 1983009808
  %v6079 = vunpack.c.0.s8 %v6078
  %v6080 = vlaneseq
  %v6081 = vshrl.u32 %v6080, 7
  %v6082 = vsub.s32 %v6079, %v6081
  %v6083 = vrot.slane %v6075, %v6082
  %v6085 = vunpack.c.l.s4 1983009808
  %v6086 = vunpack.c.0.s8 %v6085
  %v6087 = vlaneseq
  %v6088 = vshrl.u32 %v6087, 7
  %v6089 = vsub.s32 %v6086, %v6088
  %v6090 = vrot.slane %v6076, %v6089
  %v6091 = vcombine.low %v6083, %v6090
  %v6092 = vcombine.low %v5400, %v5402
  %v6094 = vunpack.c.l.s4 1983009808
  %v6095 = vunpack.c.0.s8 %v6094
  %v6096 = vlaneseq
  %v6097 = vshrl.u32 %v6096, 7
  %v6098 = vsub.s32 %v6095, %v6097
  %v6099 = vrot.slane %v6092, %v6098
  %v6100 = vcombine.low %v5418, %v5417
  %v6101 = vcombine.low %v5419, %v5427
  %v6103 = vunpack.c.l.s4 1983009808
  %v6104 = vunpack.c.0.s8 %v6103
  %v6105 = vlaneseq
  %v6106 = vshrl.u32 %v6105, 7
  %v6107 = vsub.s32 %v6104, %v6106
  %v6108 = vrot.slane %v6100, %v6107
  %v6110 = vunpack.c.l.s4 1983009808
  %v6111 = vunpack.c.0.s8 %v6110
  %v6112 = vlaneseq
  %v6113 = vshrl.u32 %v6112, 7
  %v6114 = vsub.s32 %v6111, %v6113
  %v6115 = vrot.slane %v6101, %v6114
  %v6116 = vcombine.low %v6108, %v6115
  %v6117 = vcombine.low %v5435, %v5434
  %v6119 = vunpack.c.l.s4 1983009808
  %v6120 = vunpack.c.0.s8 %v6119
  %v6121 = vlaneseq
  %v6122 = vshrl.u32 %v6121, 7
  %v6123 = vsub.s32 %v6120, %v6122
  %v6124 = vrot.slane %v6117, %v6123
  %v6125 = vcombine.low %v5444, %v5452
  %v6126 = vcombine.low %v5451, %v5453
  %v6128 = vunpack.c.l.s4 1983009808
  %v6129 = vunpack.c.0.s8 %v6128
  %v6130 = vlaneseq
  %v6131 = vshrl.u32 %v6130, 7
  %v6132 = vsub.s32 %v6129, %v6131
  %v6133 = vrot.slane %v6125, %v6132
  %v6135 = vunpack.c.l.s4 1983009808
  %v6136 = vunpack.c.0.s8 %v6135
  %v6137 = vlaneseq
  %v6138 = vshrl.u32 %v6137, 7
  %v6139 = vsub.s32 %v6136, %v6138
  %v6140 = vrot.slane %v6126, %v6139
  %v6141 = vcombine.low %v6133, %v6140
  %v6142 = vcombine.low %v5461, %v5469
  %v6144 = vunpack.c.l.s4 1983009808
  %v6145 = vunpack.c.0.s8 %v6144
  %v6146 = vlaneseq
  %v6147 = vshrl.u32 %v6146, 7
  %v6148 = vsub.s32 %v6145, %v6147
  %v6149 = vrot.slane %v6142, %v6148
  %v6150 = vcombine.low %v5470, %v5478
  %v6151 = vcombine.low %v5486, %v5485
  %v6153 = vunpack.c.l.s4 1983009808
  %v6154 = vunpack.c.0.s8 %v6153
  %v6155 = vlaneseq
  %v6156 = vshrl.u32 %v6155, 7
  %v6157 = vsub.s32 %v6154, %v6156
  %v6158 = vrot.slane %v6150, %v6157
  %v6160 = vunpack.c.l.s4 1983009808
  %v6161 = vunpack.c.0.s8 %v6160
  %v6162 = vlaneseq
  %v6163 = vshrl.u32 %v6162, 7
  %v6164 = vsub.s32 %v6161, %v6163
  %v6165 = vrot.slane %v6151, %v6164
  %v6166 = vcombine.low %v6158, %v6165
  %v6167 = vcombine.low %v5487, %v5495
  %v6169 = vunpack.c.l.s4 1983009808
  %v6170 = vunpack.c.0.s8 %v6169
  %v6171 = vlaneseq
  %v6172 = vshrl.u32 %v6171, 7
  %v6173 = vsub.s32 %v6170, %v6172
  %v6174 = vrot.slane %v6167, %v6173
  %v6175 = vcombine.low %v5502, %v5504
  %v6176 = vcombine.low %v5512, %v5520
  %v6178 = vunpack.c.l.s4 1983009808
  %v6179 = vunpack.c.0.s8 %v6178
  %v6180 = vlaneseq
  %v6181 = vshrl.u32 %v6180, 7
  %v6182 = vsub.s32 %v6179, %v6181
  %v6183 = vrot.slane %v6175, %v6182
  %v6185 = vunpack.c.l.s4 1983009808
  %v6186 = vunpack.c.0.s8 %v6185
  %v6187 = vlaneseq
  %v6188 = vshrl.u32 %v6187, 7
  %v6189 = vsub.s32 %v6186, %v6188
  %v6190 = vrot.slane %v6176, %v6189
  %v6191 = vcombine.low %v6183, %v6190
  %v6192 = vcombine.low %v5519, %v5521
  %v6194 = vunpack.c.l.s4 1983009808
  %v6195 = vunpack.c.0.s8 %v6194
  %v6196 = vlaneseq
  %v6197 = vshrl.u32 %v6196, 7
  %v6198 = vsub.s32 %v6195, %v6197
  %v6199 = vrot.slane %v6192, %v6198
  %v6200 = vcombine.low %v5537, %v5536
  %v6201 = vcombine.low %v5538, %v5546
  %v6203 = vunpack.c.l.s4 1983009808
  %v6204 = vunpack.c.0.s8 %v6203
  %v6205 = vlaneseq
  %v6206 = vshrl.u32 %v6205, 7
  %v6207 = vsub.s32 %v6204, %v6206
  %v6208 = vrot.slane %v6200, %v6207
  %v6210 = vunpack.c.l.s4 1983009808
  %v6211 = vunpack.c.0.s8 %v6210
  %v6212 = vlaneseq
  %v6213 = vshrl.u32 %v6212, 7
  %v6214 = vsub.s32 %v6211, %v6213
  %v6215 = vrot.slane %v6201, %v6214
  %v6216 = vcombine.low %v6208, %v6215
  %v6217 = vcombine.low %v5554, %v5553
  %v6219 = vunpack.c.l.s4 1983009808
  %v6220 = vunpack.c.0.s8 %v6219
  %v6221 = vlaneseq
  %v6222 = vshrl.u32 %v6221, 7
  %v6223 = vsub.s32 %v6220, %v6222
  %v6224 = vrot.slane %v6217, %v6223
  %v6225 = vcombine.low %v5563, %v5571
  %v6226 = vcombine.low %v5570, %v5572
  %v6228 = vunpack.c.l.s4 1983009808
  %v6229 = vunpack.c.0.s8 %v6228
  %v6230 = vlaneseq
  %v6231 = vshrl.u32 %v6230, 7
  %v6232 = vsub.s32 %v6229, %v6231
  %v6233 = vrot.slane %v6225, %v6232
  %v6235 = vunpack.c.l.s4 1983009808
  %v6236 = vunpack.c.0.s8 %v6235
  %v6237 = vlaneseq
  %v6238 = vshrl.u32 %v6237, 7
  %v6239 = vsub.s32 %v6236, %v6238
  %v6240 = vrot.slane %v6226, %v6239
  %v6241 = vcombine.low %v6233, %v6240
  %v6242 = vcombine.low %v5580, %v5588
  %v6244 = vunpack.c.l.s4 1983009808
  %v6245 = vunpack.c.0.s8 %v6244
  %v6246 = vlaneseq
  %v6247 = vshrl.u32 %v6246, 7
  %v6248 = vsub.s32 %v6245, %v6247
  %v6249 = vrot.slane %v6242, %v6248
  %v6250 = vcombine.low %v5589, %v5597
  %v6251 = vcombine.low %v5605, %v5604
  %v6253 = vunpack.c.l.s4 1983009808
  %v6254 = vunpack.c.0.s8 %v6253
  %v6255 = vlaneseq
  %v6256 = vshrl.u32 %v6255, 7
  %v6257 = vsub.s32 %v6254, %v6256
  %v6258 = vrot.slane %v6250, %v6257
  %v6260 = vunpack.c.l.s4 1983009808
  %v6261 = vunpack.c.0.s8 %v6260
  %v6262 = vlaneseq
  %v6263 = vshrl.u32 %v6262, 7
  %v6264 = vsub.s32 %v6261, %v6263
  %v6265 = vrot.slane %v6251, %v6264
  %v6266 = vcombine.low %v6258, %v6265
  %v6267 = vcombine.low %v5606, %v5614
  %v6269 = vunpack.c.l.s4 1983009808
  %v6270 = vunpack.c.0.s8 %v6269
  %v6271 = vlaneseq
  %v6272 = vshrl.u32 %v6271, 7
  %v6273 = vsub.s32 %v6270, %v6272
  %v6274 = vrot.slane %v6267, %v6273
  %v6324 = vunpack.c.l.s4 1983009808
  %v6325 = vunpack.c.0.s8 %v6324
  %v6326 = vlaneseq
  %v6327 = vshrl.u32 %v6326, 7
  %v6328 = vsub.s32 %v6325, %v6327
  %v6329 = vrot.slane %v4873, %v6328
  %v6330 = vcombine.low %v5699, %v6329
  %v6332 = vunpack.c.l.s4 1983009808
  %v6333 = vunpack.c.0.s8 %v6332
  %v6334 = vlaneseq
  %v6335 = vshrl.u32 %v6334, 7
  %v6336 = vsub.s32 %v6333, %v6335
  %v6337 = vrot.slane %v4908, %v6336
  %v6338 = vcombine.low %v5724, %v6337
  %v6340 = vunpack.c.l.s4 1983009808
  %v6341 = vunpack.c.0.s8 %v6340
  %v6342 = vlaneseq
  %v6343 = vshrl.u32 %v6342, 7
  %v6344 = vsub.s32 %v6341, %v6343
  %v6345 = vrot.slane %v4934, %v6344
  %v6346 = vcombine.low %v5749, %v6345
  %v6348 = vunpack.c.l.s4 1983009808
  %v6349 = vunpack.c.0.s8 %v6348
  %v6350 = vlaneseq
  %v6351 = vshrl.u32 %v6350, 7
  %v6352 = vsub.s32 %v6349, %v6351
  %v6353 = vrot.slane %v4960, %v6352
  %v6354 = vcombine.low %v5774, %v6353
  %v6356 = vunpack.c.l.s4 1983009808
  %v6357 = vunpack.c.0.s8 %v6356
  %v6358 = vlaneseq
  %v6359 = vshrl.u32 %v6358, 7
  %v6360 = vsub.s32 %v6357, %v6359
  %v6361 = vrot.slane %v4992, %v6360
  %v6362 = vcombine.low %v5799, %v6361
  %v6364 = vunpack.c.l.s4 1983009808
  %v6365 = vunpack.c.0.s8 %v6364
  %v6366 = vlaneseq
  %v6367 = vshrl.u32 %v6366, 7
  %v6368 = vsub.s32 %v6365, %v6367
  %v6369 = vrot.slane %v5027, %v6368
  %v6370 = vcombine.low %v5824, %v6369
  %v6372 = vunpack.c.l.s4 1983009808
  %v6373 = vunpack.c.0.s8 %v6372
  %v6374 = vlaneseq
  %v6375 = vshrl.u32 %v6374, 7
  %v6376 = vsub.s32 %v6373, %v6375
  %v6377 = vrot.slane %v5053, %v6376
  %v6378 = vcombine.low %v5849, %v6377
  %v6380 = vunpack.c.l.s4 1983009808
  %v6381 = vunpack.c.0.s8 %v6380
  %v6382 = vlaneseq
  %v6383 = vshrl.u32 %v6382, 7
  %v6384 = vsub.s32 %v6381, %v6383
  %v6385 = vrot.slane %v5079, %v6384
  %v6386 = vcombine.low %v5874, %v6385
  %v6388 = vunpack.c.l.s4 1983009808
  %v6389 = vunpack.c.0.s8 %v6388
  %v6390 = vlaneseq
  %v6391 = vshrl.u32 %v6390, 7
  %v6392 = vsub.s32 %v6389, %v6391
  %v6393 = vrot.slane %v5111, %v6392
  %v6394 = vcombine.low %v5899, %v6393
  %v6396 = vunpack.c.l.s4 1983009808
  %v6397 = vunpack.c.0.s8 %v6396
  %v6398 = vlaneseq
  %v6399 = vshrl.u32 %v6398, 7
  %v6400 = vsub.s32 %v6397, %v6399
  %v6401 = vrot.slane %v5146, %v6400
  %v6402 = vcombine.low %v5924, %v6401
  %v6404 = vunpack.c.l.s4 1983009808
  %v6405 = vunpack.c.0.s8 %v6404
  %v6406 = vlaneseq
  %v6407 = vshrl.u32 %v6406, 7
  %v6408 = vsub.s32 %v6405, %v6407
  %v6409 = vrot.slane %v5172, %v6408
  %v6410 = vcombine.low %v5949, %v6409
  %v6412 = vunpack.c.l.s4 1983009808
  %v6413 = vunpack.c.0.s8 %v6412
  %v6414 = vlaneseq
  %v6415 = vshrl.u32 %v6414, 7
  %v6416 = vsub.s32 %v6413, %v6415
  %v6417 = vrot.slane %v5198, %v6416
  %v6418 = vcombine.low %v5974, %v6417
  %v6420 = vunpack.c.l.s4 1983009808
  %v6421 = vunpack.c.0.s8 %v6420
  %v6422 = vlaneseq
  %v6423 = vshrl.u32 %v6422, 7
  %v6424 = vsub.s32 %v6421, %v6423
  %v6425 = vrot.slane %v5291, %v6424
  %v6426 = vcombine.low %v5999, %v6425
  %v6428 = vunpack.c.l.s4 1983009808
  %v6429 = vunpack.c.0.s8 %v6428
  %v6430 = vlaneseq
  %v6431 = vshrl.u32 %v6430, 7
  %v6432 = vsub.s32 %v6429, %v6431
  %v6433 = vrot.slane %v5317, %v6432
  %v6434 = vcombine.low %v6024, %v6433
  %v6436 = vunpack.c.l.s4 1983009808
  %v6437 = vunpack.c.0.s8 %v6436
  %v6438 = vlaneseq
  %v6439 = vshrl.u32 %v6438, 7
  %v6440 = vsub.s32 %v6437, %v6439
  %v6441 = vrot.slane %v5349, %v6440
  %v6442 = vcombine.low %v6049, %v6441
  %v6444 = vunpack.c.l.s4 1983009808
  %v6445 = vunpack.c.0.s8 %v6444
  %v6446 = vlaneseq
  %v6447 = vshrl.u32 %v6446, 7
  %v6448 = vsub.s32 %v6445, %v6447
  %v6449 = vrot.slane %v5384, %v6448
  %v6450 = vcombine.low %v6074, %v6449
  %v6452 = vunpack.c.l.s4 1983009808
  %v6453 = vunpack.c.0.s8 %v6452
  %v6454 = vlaneseq
  %v6455 = vshrl.u32 %v6454, 7
  %v6456 = vsub.s32 %v6453, %v6455
  %v6457 = vrot.slane %v5410, %v6456
  %v6458 = vcombine.low %v6099, %v6457
  %v6460 = vunpack.c.l.s4 1983009808
  %v6461 = vunpack.c.0.s8 %v6460
  %v6462 = vlaneseq
  %v6463 = vshrl.u32 %v6462, 7
  %v6464 = vsub.s32 %v6461, %v6463
  %v6465 = vrot.slane %v5436, %v6464
  %v6466 = vcombine.low %v6124, %v6465
  %v6468 = vunpack.c.l.s4 1983009808
  %v6469 = vunpack.c.0.s8 %v6468
  %v6470 = vlaneseq
  %v6471 = vshrl.u32 %v6470, 7
  %v6472 = vsub.s32 %v6469, %v6471
  %v6473 = vrot.slane %v5468, %v6472
  %v6474 = vcombine.low %v6149, %v6473
  %v6476 = vunpack.c.l.s4 1983009808
  %v6477 = vunpack.c.0.s8 %v6476
  %v6478 = vlaneseq
  %v6479 = vshrl.u32 %v6478, 7
  %v6480 = vsub.s32 %v6477, %v6479
  %v6481 = vrot.slane %v5503, %v6480
  %v6482 = vcombine.low %v6174, %v6481
  %v6484 = vunpack.c.l.s4 1983009808
  %v6485 = vunpack.c.0.s8 %v6484
  %v6486 = vlaneseq
  %v6487 = vshrl.u32 %v6486, 7
  %v6488 = vsub.s32 %v6485, %v6487
  %v6489 = vrot.slane %v5529, %v6488
  %v6490 = vcombine.low %v6199, %v6489
  %v6492 = vunpack.c.l.s4 1983009808
  %v6493 = vunpack.c.0.s8 %v6492
  %v6494 = vlaneseq
  %v6495 = vshrl.u32 %v6494, 7
  %v6496 = vsub.s32 %v6493, %v6495
  %v6497 = vrot.slane %v5555, %v6496
  %v6498 = vcombine.low %v6224, %v6497
  %v6500 = vunpack.c.l.s4 1983009808
  %v6501 = vunpack.c.0.s8 %v6500
  %v6502 = vlaneseq
  %v6503 = vshrl.u32 %v6502, 7
  %v6504 = vsub.s32 %v6501, %v6503
  %v6505 = vrot.slane %v5587, %v6504
  %v6506 = vcombine.low %v6249, %v6505
  %v6508 = vunpack.c.l.s4 1983009808
  %v6509 = vunpack.c.0.s8 %v6508
  %v6510 = vlaneseq
  %v6511 = vshrl.u32 %v6510, 7
  %v6512 = vsub.s32 %v6509, %v6511
  %v6513 = vrot.slane %v5622, %v6512
  %v6514 = vcombine.low %v6274, %v6513
  %v6515 = vrot.slane %v5691, 1
  %v6516 = vrot.slane %v6330, 1
  %v6517 = vsel %vm138, %v6515, %v6516
  %v6518 = vrot.slane %v5716, 1
  %v6519 = vrot.slane %v6338, 1
  %v6520 = vsel %vm138, %v6518, %v6519
  %v6521 = vrot.slane %v5741, 1
  %v6522 = vrot.slane %v6346, 1
  %v6523 = vsel %vm138, %v6521, %v6522
  %v6524 = vrot.slane %v5766, 1
  %v6525 = vrot.slane %v6354, 1
  %v6526 = vsel %vm138, %v6524, %v6525
  %v6527 = vrot.slane %v5791, 1
  %v6528 = vrot.slane %v6362, 1
  %v6529 = vsel %vm138, %v6527, %v6528
  %v6530 = vrot.slane %v5816, 1
  %v6531 = vrot.slane %v6370, 1
  %v6532 = vsel %vm138, %v6530, %v6531
  %v6533 = vrot.slane %v5841, 1
  %v6534 = vrot.slane %v6378, 1
  %v6535 = vsel %vm138, %v6533, %v6534
  %v6536 = vrot.slane %v5866, 1
  %v6537 = vrot.slane %v6386, 1
  %v6538 = vsel %vm138, %v6536, %v6537
  %v6539 = vrot.slane %v5891, 1
  %v6540 = vrot.slane %v6394, 1
  %v6541 = vsel %vm138, %v6539, %v6540
  %v6542 = vrot.slane %v5916, 1
  %v6543 = vrot.slane %v6402, 1
  %v6544 = vsel %vm138, %v6542, %v6543
  %v6545 = vrot.slane %v5941, 1
  %v6546 = vrot.slane %v6410, 1
  %v6547 = vsel %vm138, %v6545, %v6546
  %v6548 = vrot.slane %v5966, 1
  %v6549 = vrot.slane %v6418, 1
  %v6550 = vsel %vm138, %v6548, %v6549
  %v6551 = vrot.slane %v5991, 1
  %v6552 = vrot.slane %v6426, 1
  %v6553 = vsel %vm138, %v6551, %v6552
  %v6554 = vrot.slane %v6016, 1
  %v6555 = vrot.slane %v6434, 1
  %v6556 = vsel %vm138, %v6554, %v6555
  %v6557 = vrot.slane %v6041, 1
  %v6558 = vrot.slane %v6442, 1
  %v6559 = vsel %vm138, %v6557, %v6558
  %v6560 = vrot.slane %v6066, 1
  %v6561 = vrot.slane %v6450, 1
  %v6562 = vsel %vm138, %v6560, %v6561
  %v6563 = vrot.slane %v6091, 1
  %v6564 = vrot.slane %v6458, 1
  %v6565 = vsel %vm138, %v6563, %v6564
  %v6566 = vrot.slane %v6116, 1
  %v6567 = vrot.slane %v6466, 1
  %v6568 = vsel %vm138, %v6566, %v6567
  %v6569 = vrot.slane %v6141, 1
  %v6570 = vrot.slane %v6474, 1
  %v6571 = vsel %vm138, %v6569, %v6570
  %v6572 = vrot.slane %v6166, 1
  %v6573 = vrot.slane %v6482, 1
  %v6574 = vsel %vm138, %v6572, %v6573
  %v6575 = vrot.slane %v6191, 1
  %v6576 = vrot.slane %v6490, 1
  %v6577 = vsel %vm138, %v6575, %v6576
  %v6578 = vrot.slane %v6216, 1
  %v6579 = vrot.slane %v6498, 1
  %v6580 = vsel %vm138, %v6578, %v6579
  %v6581 = vrot.slane %v6241, 1
  %v6582 = vrot.slane %v6506, 1
  %v6583 = vsel %vm138, %v6581, %v6582
  %v6584 = vrot.slane %v6266, 1
  %v6585 = vrot.slane %v6514, 1
  %v6586 = vsel %vm138, %v6584, %v6585
  %6587 = vrot.lane.b32.xlu0 %v6517, 8
  %v6588 = vpop.permute.xlu0 %6587
  %6589 = vrot.lane.b32.xlu0 %v6516, 8
  %v6590 = vpop.permute.xlu0 %6589
  %6591 = vrot.lane.b32.xlu0 %v6520, 8
  %v6592 = vpop.permute.xlu0 %6591
  %6593 = vrot.lane.b32.xlu0 %v6519, 8
  %v6594 = vpop.permute.xlu0 %6593
  %6595 = vrot.lane.b32.xlu0 %v6523, 8
  %v6596 = vpop.permute.xlu0 %6595
  %6597 = vrot.lane.b32.xlu0 %v6522, 8
  %v6598 = vpop.permute.xlu0 %6597
  %6599 = vrot.lane.b32.xlu0 %v6526, 8
  %v6600 = vpop.permute.xlu0 %6599
  %6601 = vrot.lane.b32.xlu0 %v6525, 8
  %v6602 = vpop.permute.xlu0 %6601
  %6603 = vrot.lane.b32.xlu0 %v6529, 8
  %v6604 = vpop.permute.xlu0 %6603
  %6605 = vrot.lane.b32.xlu0 %v6528, 8
  %v6606 = vpop.permute.xlu0 %6605
  %6607 = vrot.lane.b32.xlu0 %v6532, 8
  %v6608 = vpop.permute.xlu0 %6607
  %6609 = vrot.lane.b32.xlu0 %v6531, 8
  %v6610 = vpop.permute.xlu0 %6609
  %6611 = vrot.lane.b32.xlu0 %v6535, 8
  %v6612 = vpop.permute.xlu0 %6611
  %6613 = vrot.lane.b32.xlu0 %v6534, 8
  %v6614 = vpop.permute.xlu0 %6613
  %6615 = vrot.lane.b32.xlu0 %v6538, 8
  %v6616 = vpop.permute.xlu0 %6615
  %6617 = vrot.lane.b32.xlu0 %v6537, 8
  %v6618 = vpop.permute.xlu0 %6617
  %6619 = vrot.lane.b32.xlu0 %v6541, 8
  %v6620 = vpop.permute.xlu0 %6619
  %6621 = vrot.lane.b32.xlu0 %v6540, 8
  %v6622 = vpop.permute.xlu0 %6621
  %6623 = vrot.lane.b32.xlu0 %v6544, 8
  %v6624 = vpop.permute.xlu0 %6623
  %6625 = vrot.lane.b32.xlu0 %v6543, 8
  %v6626 = vpop.permute.xlu0 %6625
  %6627 = vrot.lane.b32.xlu0 %v6547, 8
  %v6628 = vpop.permute.xlu0 %6627
  %6629 = vrot.lane.b32.xlu0 %v6546, 8
  %v6630 = vpop.permute.xlu0 %6629
  %6631 = vrot.lane.b32.xlu0 %v6550, 8
  %v6632 = vpop.permute.xlu0 %6631
  %6633 = vrot.lane.b32.xlu0 %v6549, 8
  %v6634 = vpop.permute.xlu0 %6633
  %6635 = vrot.lane.b32.xlu0 %v6553, 8
  %v6636 = vpop.permute.xlu0 %6635
  %6637 = vrot.lane.b32.xlu0 %v6552, 8
  %v6638 = vpop.permute.xlu0 %6637
  %6639 = vrot.lane.b32.xlu0 %v6556, 8
  %v6640 = vpop.permute.xlu0 %6639
  %6641 = vrot.lane.b32.xlu0 %v6555, 8
  %v6642 = vpop.permute.xlu0 %6641
  %6643 = vrot.lane.b32.xlu0 %v6559, 8
  %v6644 = vpop.permute.xlu0 %6643
  %6645 = vrot.lane.b32.xlu0 %v6558, 8
  %v6646 = vpop.permute.xlu0 %6645
  %6647 = vrot.lane.b32.xlu0 %v6562, 8
  %v6648 = vpop.permute.xlu0 %6647
  %6649 = vrot.lane.b32.xlu0 %v6561, 8
  %v6650 = vpop.permute.xlu0 %6649
  %6651 = vrot.lane.b32.xlu0 %v6565, 8
  %v6652 = vpop.permute.xlu0 %6651
  %6653 = vrot.lane.b32.xlu0 %v6564, 8
  %v6654 = vpop.permute.xlu0 %6653
  %6655 = vrot.lane.b32.xlu0 %v6568, 8
  %v6656 = vpop.permute.xlu0 %6655
  %6657 = vrot.lane.b32.xlu0 %v6567, 8
  %v6658 = vpop.permute.xlu0 %6657
  %6659 = vrot.lane.b32.xlu0 %v6571, 8
  %v6660 = vpop.permute.xlu0 %6659
  %6661 = vrot.lane.b32.xlu0 %v6570, 8
  %v6662 = vpop.permute.xlu0 %6661
  %6663 = vrot.lane.b32.xlu0 %v6574, 8
  %v6664 = vpop.permute.xlu0 %6663
  %6665 = vrot.lane.b32.xlu0 %v6573, 8
  %v6666 = vpop.permute.xlu0 %6665
  %6667 = vrot.lane.b32.xlu0 %v6577, 8
  %v6668 = vpop.permute.xlu0 %6667
  %6669 = vrot.lane.b32.xlu0 %v6576, 8
  %v6670 = vpop.permute.xlu0 %6669
  %6671 = vrot.lane.b32.xlu0 %v6580, 8
  %v6672 = vpop.permute.xlu0 %6671
  %6673 = vrot.lane.b32.xlu0 %v6579, 8
  %v6674 = vpop.permute.xlu0 %6673
  %6675 = vrot.lane.b32.xlu0 %v6583, 8
  %v6676 = vpop.permute.xlu0 %6675
  %6677 = vrot.lane.b32.xlu0 %v6582, 8
  %v6678 = vpop.permute.xlu0 %6677
  %6679 = vrot.lane.b32.xlu0 %v6586, 8
  %v6680 = vpop.permute.xlu0 %6679
  %6681 = vrot.lane.b32.xlu0 %v6585, 8
  %v6682 = vpop.permute.xlu0 %6681
  %v6731 = vcombine.low %v4857, %v4856
  %v6732 = vcombine.low %v4858, %v4866
  %v6734 = vunpack.c.l.s4 1983009808
  %v6735 = vunpack.c.0.s8 %v6734
  %v6736 = vlaneseq
  %v6737 = vshrl.u32 %v6736, 7
  %v6738 = vsub.s32 %v6735, %v6737
  %v6739 = vrot.slane %v6731, %v6738
  %v6741 = vunpack.c.l.s4 1983009808
  %v6742 = vunpack.c.0.s8 %v6741
  %v6743 = vlaneseq
  %v6744 = vshrl.u32 %v6743, 7
  %v6745 = vsub.s32 %v6742, %v6744
  %v6746 = vrot.slane %v6732, %v6745
  %v6747 = vcombine.low %v6739, %v6746
  %v6748 = vcombine.low %v4874, %v4873
  %v6750 = vunpack.c.l.s4 1983009808
  %v6751 = vunpack.c.0.s8 %v6750
  %v6752 = vlaneseq
  %v6753 = vshrl.u32 %v6752, 7
  %v6754 = vsub.s32 %v6751, %v6753
  %v6755 = vrot.slane %v6748, %v6754
  %v6756 = vcombine.low %v4883, %v4891
  %v6757 = vcombine.low %v4890, %v4892
  %v6759 = vunpack.c.l.s4 1983009808
  %v6760 = vunpack.c.0.s8 %v6759
  %v6761 = vlaneseq
  %v6762 = vshrl.u32 %v6761, 7
  %v6763 = vsub.s32 %v6760, %v6762
  %v6764 = vrot.slane %v6756, %v6763
  %v6766 = vunpack.c.l.s4 1983009808
  %v6767 = vunpack.c.0.s8 %v6766
  %v6768 = vlaneseq
  %v6769 = vshrl.u32 %v6768, 7
  %v6770 = vsub.s32 %v6767, %v6769
  %v6771 = vrot.slane %v6757, %v6770
  %v6772 = vcombine.low %v6764, %v6771
  %v6773 = vcombine.low %v4900, %v4908
  %v6775 = vunpack.c.l.s4 1983009808
  %v6776 = vunpack.c.0.s8 %v6775
  %v6777 = vlaneseq
  %v6778 = vshrl.u32 %v6777, 7
  %v6779 = vsub.s32 %v6776, %v6778
  %v6780 = vrot.slane %v6773, %v6779
  %v6781 = vcombine.low %v4909, %v4917
  %v6782 = vcombine.low %v4925, %v4924
  %v6784 = vunpack.c.l.s4 1983009808
  %v6785 = vunpack.c.0.s8 %v6784
  %v6786 = vlaneseq
  %v6787 = vshrl.u32 %v6786, 7
  %v6788 = vsub.s32 %v6785, %v6787
  %v6789 = vrot.slane %v6781, %v6788
  %v6791 = vunpack.c.l.s4 1983009808
  %v6792 = vunpack.c.0.s8 %v6791
  %v6793 = vlaneseq
  %v6794 = vshrl.u32 %v6793, 7
  %v6795 = vsub.s32 %v6792, %v6794
  %v6796 = vrot.slane %v6782, %v6795
  %v6797 = vcombine.low %v6789, %v6796
  %v6798 = vcombine.low %v4926, %v4934
  %v6800 = vunpack.c.l.s4 1983009808
  %v6801 = vunpack.c.0.s8 %v6800
  %v6802 = vlaneseq
  %v6803 = vshrl.u32 %v6802, 7
  %v6804 = vsub.s32 %v6801, %v6803
  %v6805 = vrot.slane %v6798, %v6804
  %v6806 = vcombine.low %v4941, %v4943
  %v6807 = vcombine.low %v4951, %v4959
  %v6809 = vunpack.c.l.s4 1983009808
  %v6810 = vunpack.c.0.s8 %v6809
  %v6811 = vlaneseq
  %v6812 = vshrl.u32 %v6811, 7
  %v6813 = vsub.s32 %v6810, %v6812
  %v6814 = vrot.slane %v6806, %v6813
  %v6816 = vunpack.c.l.s4 1983009808
  %v6817 = vunpack.c.0.s8 %v6816
  %v6818 = vlaneseq
  %v6819 = vshrl.u32 %v6818, 7
  %v6820 = vsub.s32 %v6817, %v6819
  %v6821 = vrot.slane %v6807, %v6820
  %v6822 = vcombine.low %v6814, %v6821
  %v6823 = vcombine.low %v4958, %v4960
  %v6825 = vunpack.c.l.s4 1983009808
  %v6826 = vunpack.c.0.s8 %v6825
  %v6827 = vlaneseq
  %v6828 = vshrl.u32 %v6827, 7
  %v6829 = vsub.s32 %v6826, %v6828
  %v6830 = vrot.slane %v6823, %v6829
  %v6831 = vcombine.low %v4976, %v4975
  %v6832 = vcombine.low %v4977, %v4985
  %v6834 = vunpack.c.l.s4 1983009808
  %v6835 = vunpack.c.0.s8 %v6834
  %v6836 = vlaneseq
  %v6837 = vshrl.u32 %v6836, 7
  %v6838 = vsub.s32 %v6835, %v6837
  %v6839 = vrot.slane %v6831, %v6838
  %v6841 = vunpack.c.l.s4 1983009808
  %v6842 = vunpack.c.0.s8 %v6841
  %v6843 = vlaneseq
  %v6844 = vshrl.u32 %v6843, 7
  %v6845 = vsub.s32 %v6842, %v6844
  %v6846 = vrot.slane %v6832, %v6845
  %v6847 = vcombine.low %v6839, %v6846
  %v6848 = vcombine.low %v4993, %v4992
  %v6850 = vunpack.c.l.s4 1983009808
  %v6851 = vunpack.c.0.s8 %v6850
  %v6852 = vlaneseq
  %v6853 = vshrl.u32 %v6852, 7
  %v6854 = vsub.s32 %v6851, %v6853
  %v6855 = vrot.slane %v6848, %v6854
  %v6856 = vcombine.low %v5002, %v5010
  %v6857 = vcombine.low %v5009, %v5011
  %v6859 = vunpack.c.l.s4 1983009808
  %v6860 = vunpack.c.0.s8 %v6859
  %v6861 = vlaneseq
  %v6862 = vshrl.u32 %v6861, 7
  %v6863 = vsub.s32 %v6860, %v6862
  %v6864 = vrot.slane %v6856, %v6863
  %v6866 = vunpack.c.l.s4 1983009808
  %v6867 = vunpack.c.0.s8 %v6866
  %v6868 = vlaneseq
  %v6869 = vshrl.u32 %v6868, 7
  %v6870 = vsub.s32 %v6867, %v6869
  %v6871 = vrot.slane %v6857, %v6870
  %v6872 = vcombine.low %v6864, %v6871
  %v6873 = vcombine.low %v5019, %v5027
  %v6875 = vunpack.c.l.s4 1983009808
  %v6876 = vunpack.c.0.s8 %v6875
  %v6877 = vlaneseq
  %v6878 = vshrl.u32 %v6877, 7
  %v6879 = vsub.s32 %v6876, %v6878
  %v6880 = vrot.slane %v6873, %v6879
  %v6881 = vcombine.low %v5028, %v5036
  %v6882 = vcombine.low %v5044, %v5043
  %v6884 = vunpack.c.l.s4 1983009808
  %v6885 = vunpack.c.0.s8 %v6884
  %v6886 = vlaneseq
  %v6887 = vshrl.u32 %v6886, 7
  %v6888 = vsub.s32 %v6885, %v6887
  %v6889 = vrot.slane %v6881, %v6888
  %v6891 = vunpack.c.l.s4 1983009808
  %v6892 = vunpack.c.0.s8 %v6891
  %v6893 = vlaneseq
  %v6894 = vshrl.u32 %v6893, 7
  %v6895 = vsub.s32 %v6892, %v6894
  %v6896 = vrot.slane %v6882, %v6895
  %v6897 = vcombine.low %v6889, %v6896
  %v6898 = vcombine.low %v5045, %v5053
  %v6900 = vunpack.c.l.s4 1983009808
  %v6901 = vunpack.c.0.s8 %v6900
  %v6902 = vlaneseq
  %v6903 = vshrl.u32 %v6902, 7
  %v6904 = vsub.s32 %v6901, %v6903
  %v6905 = vrot.slane %v6898, %v6904
  %v6906 = vcombine.low %v5060, %v5062
  %v6907 = vcombine.low %v5070, %v5078
  %v6909 = vunpack.c.l.s4 1983009808
  %v6910 = vunpack.c.0.s8 %v6909
  %v6911 = vlaneseq
  %v6912 = vshrl.u32 %v6911, 7
  %v6913 = vsub.s32 %v6910, %v6912
  %v6914 = vrot.slane %v6906, %v6913
  %v6916 = vunpack.c.l.s4 1983009808
  %v6917 = vunpack.c.0.s8 %v6916
  %v6918 = vlaneseq
  %v6919 = vshrl.u32 %v6918, 7
  %v6920 = vsub.s32 %v6917, %v6919
  %v6921 = vrot.slane %v6907, %v6920
  %v6922 = vcombine.low %v6914, %v6921
  %v6923 = vcombine.low %v5077, %v5079
  %v6925 = vunpack.c.l.s4 1983009808
  %v6926 = vunpack.c.0.s8 %v6925
  %v6927 = vlaneseq
  %v6928 = vshrl.u32 %v6927, 7
  %v6929 = vsub.s32 %v6926, %v6928
  %v6930 = vrot.slane %v6923, %v6929
  %v6931 = vcombine.low %v5095, %v5094
  %v6932 = vcombine.low %v5096, %v5104
  %v6934 = vunpack.c.l.s4 1983009808
  %v6935 = vunpack.c.0.s8 %v6934
  %v6936 = vlaneseq
  %v6937 = vshrl.u32 %v6936, 7
  %v6938 = vsub.s32 %v6935, %v6937
  %v6939 = vrot.slane %v6931, %v6938
  %v6941 = vunpack.c.l.s4 1983009808
  %v6942 = vunpack.c.0.s8 %v6941
  %v6943 = vlaneseq
  %v6944 = vshrl.u32 %v6943, 7
  %v6945 = vsub.s32 %v6942, %v6944
  %v6946 = vrot.slane %v6932, %v6945
  %v6947 = vcombine.low %v6939, %v6946
  %v6948 = vcombine.low %v5112, %v5111
  %v6950 = vunpack.c.l.s4 1983009808
  %v6951 = vunpack.c.0.s8 %v6950
  %v6952 = vlaneseq
  %v6953 = vshrl.u32 %v6952, 7
  %v6954 = vsub.s32 %v6951, %v6953
  %v6955 = vrot.slane %v6948, %v6954
  %v6956 = vcombine.low %v5121, %v5129
  %v6957 = vcombine.low %v5128, %v5130
  %v6959 = vunpack.c.l.s4 1983009808
  %v6960 = vunpack.c.0.s8 %v6959
  %v6961 = vlaneseq
  %v6962 = vshrl.u32 %v6961, 7
  %v6963 = vsub.s32 %v6960, %v6962
  %v6964 = vrot.slane %v6956, %v6963
  %v6966 = vunpack.c.l.s4 1983009808
  %v6967 = vunpack.c.0.s8 %v6966
  %v6968 = vlaneseq
  %v6969 = vshrl.u32 %v6968, 7
  %v6970 = vsub.s32 %v6967, %v6969
  %v6971 = vrot.slane %v6957, %v6970
  %v6972 = vcombine.low %v6964, %v6971
  %v6973 = vcombine.low %v5138, %v5146
  %v6975 = vunpack.c.l.s4 1983009808
  %v6976 = vunpack.c.0.s8 %v6975
  %v6977 = vlaneseq
  %v6978 = vshrl.u32 %v6977, 7
  %v6979 = vsub.s32 %v6976, %v6978
  %v6980 = vrot.slane %v6973, %v6979
  %v6981 = vcombine.low %v5147, %v5155
  %v6982 = vcombine.low %v5163, %v5162
  %v6984 = vunpack.c.l.s4 1983009808
  %v6985 = vunpack.c.0.s8 %v6984
  %v6986 = vlaneseq
  %v6987 = vshrl.u32 %v6986, 7
  %v6988 = vsub.s32 %v6985, %v6987
  %v6989 = vrot.slane %v6981, %v6988
  %v6991 = vunpack.c.l.s4 1983009808
  %v6992 = vunpack.c.0.s8 %v6991
  %v6993 = vlaneseq
  %v6994 = vshrl.u32 %v6993, 7
  %v6995 = vsub.s32 %v6992, %v6994
  %v6996 = vrot.slane %v6982, %v6995
  %v6997 = vcombine.low %v6989, %v6996
  %v6998 = vcombine.low %v5164, %v5172
  %v7000 = vunpack.c.l.s4 1983009808
  %v7001 = vunpack.c.0.s8 %v7000
  %v7002 = vlaneseq
  %v7003 = vshrl.u32 %v7002, 7
  %v7004 = vsub.s32 %v7001, %v7003
  %v7005 = vrot.slane %v6998, %v7004
  %v7006 = vcombine.low %v5179, %v5181
  %v7007 = vcombine.low %v5189, %v5197
  %v7009 = vunpack.c.l.s4 1983009808
  %v7010 = vunpack.c.0.s8 %v7009
  %v7011 = vlaneseq
  %v7012 = vshrl.u32 %v7011, 7
  %v7013 = vsub.s32 %v7010, %v7012
  %v7014 = vrot.slane %v7006, %v7013
  %v7016 = vunpack.c.l.s4 1983009808
  %v7017 = vunpack.c.0.s8 %v7016
  %v7018 = vlaneseq
  %v7019 = vshrl.u32 %v7018, 7
  %v7020 = vsub.s32 %v7017, %v7019
  %v7021 = vrot.slane %v7007, %v7020
  %v7022 = vcombine.low %v7014, %v7021
  %v7023 = vcombine.low %v5196, %v5198
  %v7025 = vunpack.c.l.s4 1983009808
  %v7026 = vunpack.c.0.s8 %v7025
  %v7027 = vlaneseq
  %v7028 = vshrl.u32 %v7027, 7
  %v7029 = vsub.s32 %v7026, %v7028
  %v7030 = vrot.slane %v7023, %v7029
  %v7031 = vcombine.low %v5266, %v5274
  %v7032 = vcombine.low %v5282, %v5281
  %v7034 = vunpack.c.l.s4 1983009808
  %v7035 = vunpack.c.0.s8 %v7034
  %v7036 = vlaneseq
  %v7037 = vshrl.u32 %v7036, 7
  %v7038 = vsub.s32 %v7035, %v7037
  %v7039 = vrot.slane %v7031, %v7038
  %v7041 = vunpack.c.l.s4 1983009808
  %v7042 = vunpack.c.0.s8 %v7041
  %v7043 = vlaneseq
  %v7044 = vshrl.u32 %v7043, 7
  %v7045 = vsub.s32 %v7042, %v7044
  %v7046 = vrot.slane %v7032, %v7045
  %v7047 = vcombine.low %v7039, %v7046
  %v7048 = vcombine.low %v5283, %v5291
  %v7050 = vunpack.c.l.s4 1983009808
  %v7051 = vunpack.c.0.s8 %v7050
  %v7052 = vlaneseq
  %v7053 = vshrl.u32 %v7052, 7
  %v7054 = vsub.s32 %v7051, %v7053
  %v7055 = vrot.slane %v7048, %v7054
  %v7056 = vcombine.low %v5298, %v5300
  %v7057 = vcombine.low %v5308, %v5316
  %v7059 = vunpack.c.l.s4 1983009808
  %v7060 = vunpack.c.0.s8 %v7059
  %v7061 = vlaneseq
  %v7062 = vshrl.u32 %v7061, 7
  %v7063 = vsub.s32 %v7060, %v7062
  %v7064 = vrot.slane %v7056, %v7063
  %v7066 = vunpack.c.l.s4 1983009808
  %v7067 = vunpack.c.0.s8 %v7066
  %v7068 = vlaneseq
  %v7069 = vshrl.u32 %v7068, 7
  %v7070 = vsub.s32 %v7067, %v7069
  %v7071 = vrot.slane %v7057, %v7070
  %v7072 = vcombine.low %v7064, %v7071
  %v7073 = vcombine.low %v5315, %v5317
  %v7075 = vunpack.c.l.s4 1983009808
  %v7076 = vunpack.c.0.s8 %v7075
  %v7077 = vlaneseq
  %v7078 = vshrl.u32 %v7077, 7
  %v7079 = vsub.s32 %v7076, %v7078
  %v7080 = vrot.slane %v7073, %v7079
  %v7081 = vcombine.low %v5333, %v5332
  %v7082 = vcombine.low %v5334, %v5342
  %v7084 = vunpack.c.l.s4 1983009808
  %v7085 = vunpack.c.0.s8 %v7084
  %v7086 = vlaneseq
  %v7087 = vshrl.u32 %v7086, 7
  %v7088 = vsub.s32 %v7085, %v7087
  %v7089 = vrot.slane %v7081, %v7088
  %v7091 = vunpack.c.l.s4 1983009808
  %v7092 = vunpack.c.0.s8 %v7091
  %v7093 = vlaneseq
  %v7094 = vshrl.u32 %v7093, 7
  %v7095 = vsub.s32 %v7092, %v7094
  %v7096 = vrot.slane %v7082, %v7095
  %v7097 = vcombine.low %v7089, %v7096
  %v7098 = vcombine.low %v5350, %v5349
  %v7100 = vunpack.c.l.s4 1983009808
  %v7101 = vunpack.c.0.s8 %v7100
  %v7102 = vlaneseq
  %v7103 = vshrl.u32 %v7102, 7
  %v7104 = vsub.s32 %v7101, %v7103
  %v7105 = vrot.slane %v7098, %v7104
  %v7106 = vcombine.low %v5359, %v5367
  %v7107 = vcombine.low %v5366, %v5368
  %v7109 = vunpack.c.l.s4 1983009808
  %v7110 = vunpack.c.0.s8 %v7109
  %v7111 = vlaneseq
  %v7112 = vshrl.u32 %v7111, 7
  %v7113 = vsub.s32 %v7110, %v7112
  %v7114 = vrot.slane %v7106, %v7113
  %v7116 = vunpack.c.l.s4 1983009808
  %v7117 = vunpack.c.0.s8 %v7116
  %v7118 = vlaneseq
  %v7119 = vshrl.u32 %v7118, 7
  %v7120 = vsub.s32 %v7117, %v7119
  %v7121 = vrot.slane %v7107, %v7120
  %v7122 = vcombine.low %v7114, %v7121
  %v7123 = vcombine.low %v5376, %v5384
  %v7125 = vunpack.c.l.s4 1983009808
  %v7126 = vunpack.c.0.s8 %v7125
  %v7127 = vlaneseq
  %v7128 = vshrl.u32 %v7127, 7
  %v7129 = vsub.s32 %v7126, %v7128
  %v7130 = vrot.slane %v7123, %v7129
  %v7131 = vcombine.low %v5385, %v5393
  %v7132 = vcombine.low %v5401, %v5400
  %v7134 = vunpack.c.l.s4 1983009808
  %v7135 = vunpack.c.0.s8 %v7134
  %v7136 = vlaneseq
  %v7137 = vshrl.u32 %v7136, 7
  %v7138 = vsub.s32 %v7135, %v7137
  %v7139 = vrot.slane %v7131, %v7138
  %v7141 = vunpack.c.l.s4 1983009808
  %v7142 = vunpack.c.0.s8 %v7141
  %v7143 = vlaneseq
  %v7144 = vshrl.u32 %v7143, 7
  %v7145 = vsub.s32 %v7142, %v7144
  %v7146 = vrot.slane %v7132, %v7145
  %v7147 = vcombine.low %v7139, %v7146
  %v7148 = vcombine.low %v5402, %v5410
  %v7150 = vunpack.c.l.s4 1983009808
  %v7151 = vunpack.c.0.s8 %v7150
  %v7152 = vlaneseq
  %v7153 = vshrl.u32 %v7152, 7
  %v7154 = vsub.s32 %v7151, %v7153
  %v7155 = vrot.slane %v7148, %v7154
  %v7156 = vcombine.low %v5417, %v5419
  %v7157 = vcombine.low %v5427, %v5435
  %v7159 = vunpack.c.l.s4 1983009808
  %v7160 = vunpack.c.0.s8 %v7159
  %v7161 = vlaneseq
  %v7162 = vshrl.u32 %v7161, 7
  %v7163 = vsub.s32 %v7160, %v7162
  %v7164 = vrot.slane %v7156, %v7163
  %v7166 = vunpack.c.l.s4 1983009808
  %v7167 = vunpack.c.0.s8 %v7166
  %v7168 = vlaneseq
  %v7169 = vshrl.u32 %v7168, 7
  %v7170 = vsub.s32 %v7167, %v7169
  %v7171 = vrot.slane %v7157, %v7170
  %v7172 = vcombine.low %v7164, %v7171
  %v7173 = vcombine.low %v5434, %v5436
  %v7175 = vunpack.c.l.s4 1983009808
  %v7176 = vunpack.c.0.s8 %v7175
  %v7177 = vlaneseq
  %v7178 = vshrl.u32 %v7177, 7
  %v7179 = vsub.s32 %v7176, %v7178
  %v7180 = vrot.slane %v7173, %v7179
  %v7181 = vcombine.low %v5452, %v5451
  %v7182 = vcombine.low %v5453, %v5461
  %v7184 = vunpack.c.l.s4 1983009808
  %v7185 = vunpack.c.0.s8 %v7184
  %v7186 = vlaneseq
  %v7187 = vshrl.u32 %v7186, 7
  %v7188 = vsub.s32 %v7185, %v7187
  %v7189 = vrot.slane %v7181, %v7188
  %v7191 = vunpack.c.l.s4 1983009808
  %v7192 = vunpack.c.0.s8 %v7191
  %v7193 = vlaneseq
  %v7194 = vshrl.u32 %v7193, 7
  %v7195 = vsub.s32 %v7192, %v7194
  %v7196 = vrot.slane %v7182, %v7195
  %v7197 = vcombine.low %v7189, %v7196
  %v7198 = vcombine.low %v5469, %v5468
  %v7200 = vunpack.c.l.s4 1983009808
  %v7201 = vunpack.c.0.s8 %v7200
  %v7202 = vlaneseq
  %v7203 = vshrl.u32 %v7202, 7
  %v7204 = vsub.s32 %v7201, %v7203
  %v7205 = vrot.slane %v7198, %v7204
  %v7206 = vcombine.low %v5478, %v5486
  %v7207 = vcombine.low %v5485, %v5487
  %v7209 = vunpack.c.l.s4 1983009808
  %v7210 = vunpack.c.0.s8 %v7209
  %v7211 = vlaneseq
  %v7212 = vshrl.u32 %v7211, 7
  %v7213 = vsub.s32 %v7210, %v7212
  %v7214 = vrot.slane %v7206, %v7213
  %v7216 = vunpack.c.l.s4 1983009808
  %v7217 = vunpack.c.0.s8 %v7216
  %v7218 = vlaneseq
  %v7219 = vshrl.u32 %v7218, 7
  %v7220 = vsub.s32 %v7217, %v7219
  %v7221 = vrot.slane %v7207, %v7220
  %v7222 = vcombine.low %v7214, %v7221
  %v7223 = vcombine.low %v5495, %v5503
  %v7225 = vunpack.c.l.s4 1983009808
  %v7226 = vunpack.c.0.s8 %v7225
  %v7227 = vlaneseq
  %v7228 = vshrl.u32 %v7227, 7
  %v7229 = vsub.s32 %v7226, %v7228
  %v7230 = vrot.slane %v7223, %v7229
  %v7231 = vcombine.low %v5504, %v5512
  %v7232 = vcombine.low %v5520, %v5519
  %v7234 = vunpack.c.l.s4 1983009808
  %v7235 = vunpack.c.0.s8 %v7234
  %v7236 = vlaneseq
  %v7237 = vshrl.u32 %v7236, 7
  %v7238 = vsub.s32 %v7235, %v7237
  %v7239 = vrot.slane %v7231, %v7238
  %v7241 = vunpack.c.l.s4 1983009808
  %v7242 = vunpack.c.0.s8 %v7241
  %v7243 = vlaneseq
  %v7244 = vshrl.u32 %v7243, 7
  %v7245 = vsub.s32 %v7242, %v7244
  %v7246 = vrot.slane %v7232, %v7245
  %v7247 = vcombine.low %v7239, %v7246
  %v7248 = vcombine.low %v5521, %v5529
  %v7250 = vunpack.c.l.s4 1983009808
  %v7251 = vunpack.c.0.s8 %v7250
  %v7252 = vlaneseq
  %v7253 = vshrl.u32 %v7252, 7
  %v7254 = vsub.s32 %v7251, %v7253
  %v7255 = vrot.slane %v7248, %v7254
  %v7256 = vcombine.low %v5536, %v5538
  %v7257 = vcombine.low %v5546, %v5554
  %v7259 = vunpack.c.l.s4 1983009808
  %v7260 = vunpack.c.0.s8 %v7259
  %v7261 = vlaneseq
  %v7262 = vshrl.u32 %v7261, 7
  %v7263 = vsub.s32 %v7260, %v7262
  %v7264 = vrot.slane %v7256, %v7263
  %v7266 = vunpack.c.l.s4 1983009808
  %v7267 = vunpack.c.0.s8 %v7266
  %v7268 = vlaneseq
  %v7269 = vshrl.u32 %v7268, 7
  %v7270 = vsub.s32 %v7267, %v7269
  %v7271 = vrot.slane %v7257, %v7270
  %v7272 = vcombine.low %v7264, %v7271
  %v7273 = vcombine.low %v5553, %v5555
  %v7275 = vunpack.c.l.s4 1983009808
  %v7276 = vunpack.c.0.s8 %v7275
  %v7277 = vlaneseq
  %v7278 = vshrl.u32 %v7277, 7
  %v7279 = vsub.s32 %v7276, %v7278
  %v7280 = vrot.slane %v7273, %v7279
  %v7281 = vcombine.low %v5571, %v5570
  %v7282 = vcombine.low %v5572, %v5580
  %v7284 = vunpack.c.l.s4 1983009808
  %v7285 = vunpack.c.0.s8 %v7284
  %v7286 = vlaneseq
  %v7287 = vshrl.u32 %v7286, 7
  %v7288 = vsub.s32 %v7285, %v7287
  %v7289 = vrot.slane %v7281, %v7288
  %v7291 = vunpack.c.l.s4 1983009808
  %v7292 = vunpack.c.0.s8 %v7291
  %v7293 = vlaneseq
  %v7294 = vshrl.u32 %v7293, 7
  %v7295 = vsub.s32 %v7292, %v7294
  %v7296 = vrot.slane %v7282, %v7295
  %v7297 = vcombine.low %v7289, %v7296
  %v7298 = vcombine.low %v5588, %v5587
  %v7300 = vunpack.c.l.s4 1983009808
  %v7301 = vunpack.c.0.s8 %v7300
  %v7302 = vlaneseq
  %v7303 = vshrl.u32 %v7302, 7
  %v7304 = vsub.s32 %v7301, %v7303
  %v7305 = vrot.slane %v7298, %v7304
  %v7306 = vcombine.low %v5597, %v5605
  %v7307 = vcombine.low %v5604, %v5606
  %v7309 = vunpack.c.l.s4 1983009808
  %v7310 = vunpack.c.0.s8 %v7309
  %v7311 = vlaneseq
  %v7312 = vshrl.u32 %v7311, 7
  %v7313 = vsub.s32 %v7310, %v7312
  %v7314 = vrot.slane %v7306, %v7313
  %v7316 = vunpack.c.l.s4 1983009808
  %v7317 = vunpack.c.0.s8 %v7316
  %v7318 = vlaneseq
  %v7319 = vshrl.u32 %v7318, 7
  %v7320 = vsub.s32 %v7317, %v7319
  %v7321 = vrot.slane %v7307, %v7320
  %v7322 = vcombine.low %v7314, %v7321
  %v7323 = vcombine.low %v5614, %v5622
  %v7325 = vunpack.c.l.s4 1983009808
  %v7326 = vunpack.c.0.s8 %v7325
  %v7327 = vlaneseq
  %v7328 = vshrl.u32 %v7327, 7
  %v7329 = vsub.s32 %v7326, %v7328
  %v7330 = vrot.slane %v7323, %v7329
  %7331 = vrot.lane.b32.xlu0 %v6747, 16
  %v7332 = vpop.permute.xlu0 %7331
  %7333 = vrot.lane.b32.xlu0 %v6755, 16
  %v7334 = vpop.permute.xlu0 %7333
  %7335 = vrot.lane.b32.xlu0 %v6772, 16
  %v7336 = vpop.permute.xlu0 %7335
  %7337 = vrot.lane.b32.xlu0 %v6780, 16
  %v7338 = vpop.permute.xlu0 %7337
  %7339 = vrot.lane.b32.xlu0 %v6797, 16
  %v7340 = vpop.permute.xlu0 %7339
  %7341 = vrot.lane.b32.xlu0 %v6805, 16
  %v7342 = vpop.permute.xlu0 %7341
  %7343 = vrot.lane.b32.xlu0 %v6822, 16
  %v7344 = vpop.permute.xlu0 %7343
  %7345 = vrot.lane.b32.xlu0 %v6830, 16
  %v7346 = vpop.permute.xlu0 %7345
  %7347 = vrot.lane.b32.xlu0 %v6847, 16
  %v7348 = vpop.permute.xlu0 %7347
  %7349 = vrot.lane.b32.xlu0 %v6855, 16
  %v7350 = vpop.permute.xlu0 %7349
  %7351 = vrot.lane.b32.xlu0 %v6872, 16
  %v7352 = vpop.permute.xlu0 %7351
  %7353 = vrot.lane.b32.xlu0 %v6880, 16
  %v7354 = vpop.permute.xlu0 %7353
  %7355 = vrot.lane.b32.xlu0 %v6897, 16
  %v7356 = vpop.permute.xlu0 %7355
  %7357 = vrot.lane.b32.xlu0 %v6905, 16
  %v7358 = vpop.permute.xlu0 %7357
  %7359 = vrot.lane.b32.xlu0 %v6922, 16
  %v7360 = vpop.permute.xlu0 %7359
  %7361 = vrot.lane.b32.xlu0 %v6930, 16
  %v7362 = vpop.permute.xlu0 %7361
  %7363 = vrot.lane.b32.xlu0 %v6947, 16
  %v7364 = vpop.permute.xlu0 %7363
  %7365 = vrot.lane.b32.xlu0 %v6955, 16
  %v7366 = vpop.permute.xlu0 %7365
  %7367 = vrot.lane.b32.xlu0 %v6972, 16
  %v7368 = vpop.permute.xlu0 %7367
  %7369 = vrot.lane.b32.xlu0 %v6980, 16
  %v7370 = vpop.permute.xlu0 %7369
  %7371 = vrot.lane.b32.xlu0 %v6997, 16
  %v7372 = vpop.permute.xlu0 %7371
  %7373 = vrot.lane.b32.xlu0 %v7005, 16
  %v7374 = vpop.permute.xlu0 %7373
  %7375 = vrot.lane.b32.xlu0 %v7022, 16
  %v7376 = vpop.permute.xlu0 %7375
  %7377 = vrot.lane.b32.xlu0 %v7030, 16
  %v7378 = vpop.permute.xlu0 %7377
  %7379 = vrot.lane.b32.xlu0 %v7047, 16
  %v7380 = vpop.permute.xlu0 %7379
  %7381 = vrot.lane.b32.xlu0 %v7055, 16
  %v7382 = vpop.permute.xlu0 %7381
  %7383 = vrot.lane.b32.xlu0 %v7072, 16
  %v7384 = vpop.permute.xlu0 %7383
  %7385 = vrot.lane.b32.xlu0 %v7080, 16
  %v7386 = vpop.permute.xlu0 %7385
  %7387 = vrot.lane.b32.xlu0 %v7097, 16
  %v7388 = vpop.permute.xlu0 %7387
  %7389 = vrot.lane.b32.xlu0 %v7105, 16
  %v7390 = vpop.permute.xlu0 %7389
  %7391 = vrot.lane.b32.xlu0 %v7122, 16
  %v7392 = vpop.permute.xlu0 %7391
  %7393 = vrot.lane.b32.xlu0 %v7130, 16
  %v7394 = vpop.permute.xlu0 %7393
  %7395 = vrot.lane.b32.xlu0 %v7147, 16
  %v7396 = vpop.permute.xlu0 %7395
  %7397 = vrot.lane.b32.xlu0 %v7155, 16
  %v7398 = vpop.permute.xlu0 %7397
  %7399 = vrot.lane.b32.xlu0 %v7172, 16
  %v7400 = vpop.permute.xlu0 %7399
  %7401 = vrot.lane.b32.xlu0 %v7180, 16
  %v7402 = vpop.permute.xlu0 %7401
  %7403 = vrot.lane.b32.xlu0 %v7197, 16
  %v7404 = vpop.permute.xlu0 %7403
  %7405 = vrot.lane.b32.xlu0 %v7205, 16
  %v7406 = vpop.permute.xlu0 %7405
  %7407 = vrot.lane.b32.xlu0 %v7222, 16
  %v7408 = vpop.permute.xlu0 %7407
  %7409 = vrot.lane.b32.xlu0 %v7230, 16
  %v7410 = vpop.permute.xlu0 %7409
  %7411 = vrot.lane.b32.xlu0 %v7247, 16
  %v7412 = vpop.permute.xlu0 %7411
  %7413 = vrot.lane.b32.xlu0 %v7255, 16
  %v7414 = vpop.permute.xlu0 %7413
  %7415 = vrot.lane.b32.xlu0 %v7272, 16
  %v7416 = vpop.permute.xlu0 %7415
  %7417 = vrot.lane.b32.xlu0 %v7280, 16
  %v7418 = vpop.permute.xlu0 %7417
  %7419 = vrot.lane.b32.xlu0 %v7297, 16
  %v7420 = vpop.permute.xlu0 %7419
  %7421 = vrot.lane.b32.xlu0 %v7305, 16
  %v7422 = vpop.permute.xlu0 %7421
  %7423 = vrot.lane.b32.xlu0 %v7322, 16
  %v7424 = vpop.permute.xlu0 %7423
  %7425 = vrot.lane.b32.xlu0 %v7330, 16
  %v7426 = vpop.permute.xlu0 %7425
  %v7475 = vcombine.low %v5206, %v5214
  %v7476 = vcombine.low %v5213, %v5215
  %v7478 = vunpack.c.l.s4 1983009808
  %v7479 = vunpack.c.0.s8 %v7478
  %v7480 = vlaneseq
  %v7481 = vshrl.u32 %v7480, 7
  %v7482 = vsub.s32 %v7479, %v7481
  %v7483 = vrot.slane %v7475, %v7482
  %v7485 = vunpack.c.l.s4 1983009808
  %v7486 = vunpack.c.0.s8 %v7485
  %v7487 = vlaneseq
  %v7488 = vshrl.u32 %v7487, 7
  %v7489 = vsub.s32 %v7486, %v7488
  %v7490 = vrot.slane %v7476, %v7489
  %v7491 = vcombine.low %v7483, %v7490
  %v7492 = vcombine.low %v5223, %v5231
  %v7494 = vunpack.c.l.s4 1983009808
  %v7495 = vunpack.c.0.s8 %v7494
  %v7496 = vlaneseq
  %v7497 = vshrl.u32 %v7496, 7
  %v7498 = vsub.s32 %v7495, %v7497
  %v7499 = vrot.slane %v7492, %v7498
  %v7500 = vcombine.low %v5621, %v5623
  %v7501 = vcombine.low %v5631, %v5639
  %v7503 = vunpack.c.l.s4 1983009808
  %v7504 = vunpack.c.0.s8 %v7503
  %v7505 = vlaneseq
  %v7506 = vshrl.u32 %v7505, 7
  %v7507 = vsub.s32 %v7504, %v7506
  %v7508 = vrot.slane %v7500, %v7507
  %v7510 = vunpack.c.l.s4 1983009808
  %v7511 = vunpack.c.0.s8 %v7510
  %v7512 = vlaneseq
  %v7513 = vshrl.u32 %v7512, 7
  %v7514 = vsub.s32 %v7511, %v7513
  %v7515 = vrot.slane %v7501, %v7514
  %v7516 = vcombine.low %v7508, %v7515
  %v7517 = vcombine.low %v5638, %v5640
  %v7519 = vunpack.c.l.s4 1983009808
  %v7520 = vunpack.c.0.s8 %v7519
  %v7521 = vlaneseq
  %v7522 = vshrl.u32 %v7521, 7
  %v7523 = vsub.s32 %v7520, %v7522
  %v7524 = vrot.slane %v7517, %v7523
  %7525 = vrot.lane.b32.xlu0 %v5716, 24
  %v7526 = vpop.permute.xlu0 %7525
  %7527 = vrot.lane.b32.xlu0 %v5724, 24
  %v7528 = vpop.permute.xlu0 %7527
  %7529 = vrot.lane.b32.xlu0 %v5741, 24
  %v7530 = vpop.permute.xlu0 %7529
  %7531 = vrot.lane.b32.xlu0 %v5749, 24
  %v7532 = vpop.permute.xlu0 %7531
  %7533 = vrot.lane.b32.xlu0 %v5766, 24
  %v7534 = vpop.permute.xlu0 %7533
  %7535 = vrot.lane.b32.xlu0 %v5774, 24
  %v7536 = vpop.permute.xlu0 %7535
  %7537 = vrot.lane.b32.xlu0 %v5791, 24
  %v7538 = vpop.permute.xlu0 %7537
  %7539 = vrot.lane.b32.xlu0 %v5799, 24
  %v7540 = vpop.permute.xlu0 %7539
  %7541 = vrot.lane.b32.xlu0 %v5816, 24
  %v7542 = vpop.permute.xlu0 %7541
  %7543 = vrot.lane.b32.xlu0 %v5824, 24
  %v7544 = vpop.permute.xlu0 %7543
  %7545 = vrot.lane.b32.xlu0 %v5841, 24
  %v7546 = vpop.permute.xlu0 %7545
  %7547 = vrot.lane.b32.xlu0 %v5849, 24
  %v7548 = vpop.permute.xlu0 %7547
  %7549 = vrot.lane.b32.xlu0 %v5866, 24
  %v7550 = vpop.permute.xlu0 %7549
  %7551 = vrot.lane.b32.xlu0 %v5874, 24
  %v7552 = vpop.permute.xlu0 %7551
  %7553 = vrot.lane.b32.xlu0 %v5891, 24
  %v7554 = vpop.permute.xlu0 %7553
  %7555 = vrot.lane.b32.xlu0 %v5899, 24
  %v7556 = vpop.permute.xlu0 %7555
  %7557 = vrot.lane.b32.xlu0 %v5916, 24
  %v7558 = vpop.permute.xlu0 %7557
  %7559 = vrot.lane.b32.xlu0 %v5924, 24
  %v7560 = vpop.permute.xlu0 %7559
  %7561 = vrot.lane.b32.xlu0 %v5941, 24
  %v7562 = vpop.permute.xlu0 %7561
  %7563 = vrot.lane.b32.xlu0 %v5949, 24
  %v7564 = vpop.permute.xlu0 %7563
  %7565 = vrot.lane.b32.xlu0 %v5966, 24
  %v7566 = vpop.permute.xlu0 %7565
  %7567 = vrot.lane.b32.xlu0 %v5974, 24
  %v7568 = vpop.permute.xlu0 %7567
  %7569 = vrot.lane.b32.xlu0 %v7491, 24
  %v7570 = vpop.permute.xlu0 %7569
  %7571 = vrot.lane.b32.xlu0 %v7499, 24
  %v7572 = vpop.permute.xlu0 %7571
  %7573 = vrot.lane.b32.xlu0 %v6016, 24
  %v7574 = vpop.permute.xlu0 %7573
  %7575 = vrot.lane.b32.xlu0 %v6024, 24
  %v7576 = vpop.permute.xlu0 %7575
  %7577 = vrot.lane.b32.xlu0 %v6041, 24
  %v7578 = vpop.permute.xlu0 %7577
  %7579 = vrot.lane.b32.xlu0 %v6049, 24
  %v7580 = vpop.permute.xlu0 %7579
  %7581 = vrot.lane.b32.xlu0 %v6066, 24
  %v7582 = vpop.permute.xlu0 %7581
  %7583 = vrot.lane.b32.xlu0 %v6074, 24
  %v7584 = vpop.permute.xlu0 %7583
  %7585 = vrot.lane.b32.xlu0 %v6091, 24
  %v7586 = vpop.permute.xlu0 %7585
  %7587 = vrot.lane.b32.xlu0 %v6099, 24
  %v7588 = vpop.permute.xlu0 %7587
  %7589 = vrot.lane.b32.xlu0 %v6116, 24
  %v7590 = vpop.permute.xlu0 %7589
  %7591 = vrot.lane.b32.xlu0 %v6124, 24
  %v7592 = vpop.permute.xlu0 %7591
  %7593 = vrot.lane.b32.xlu0 %v6141, 24
  %v7594 = vpop.permute.xlu0 %7593
  %7595 = vrot.lane.b32.xlu0 %v6149, 24
  %v7596 = vpop.permute.xlu0 %7595
  %7597 = vrot.lane.b32.xlu0 %v6166, 24
  %v7598 = vpop.permute.xlu0 %7597
  %7599 = vrot.lane.b32.xlu0 %v6174, 24
  %v7600 = vpop.permute.xlu0 %7599
  %7601 = vrot.lane.b32.xlu0 %v6191, 24
  %v7602 = vpop.permute.xlu0 %7601
  %7603 = vrot.lane.b32.xlu0 %v6199, 24
  %v7604 = vpop.permute.xlu0 %7603
  %7605 = vrot.lane.b32.xlu0 %v6216, 24
  %v7606 = vpop.permute.xlu0 %7605
  %7607 = vrot.lane.b32.xlu0 %v6224, 24
  %v7608 = vpop.permute.xlu0 %7607
  %7609 = vrot.lane.b32.xlu0 %v6241, 24
  %v7610 = vpop.permute.xlu0 %7609
  %7611 = vrot.lane.b32.xlu0 %v6249, 24
  %v7612 = vpop.permute.xlu0 %7611
  %7613 = vrot.lane.b32.xlu0 %v6266, 24
  %v7614 = vpop.permute.xlu0 %7613
  %7615 = vrot.lane.b32.xlu0 %v6274, 24
  %v7616 = vpop.permute.xlu0 %7615
  %7617 = vrot.lane.b32.xlu0 %v7516, 24
  %v7618 = vpop.permute.xlu0 %7617
  %7619 = vrot.lane.b32.xlu0 %v7524, 24
  %v7620 = vpop.permute.xlu0 %7619
  %v7670 = vunpack.c.l.s4 1983009808
  %v7671 = vunpack.c.0.s8 %v7670
  %v7672 = vlaneseq
  %v7673 = vshrl.u32 %v7672, 7
  %v7674 = vsub.s32 %v7671, %v7673
  %v7675 = vrot.slane %v5230, %v7674
  %v7676 = vcombine.low %v7499, %v7675
  %v7678 = vunpack.c.l.s4 1983009808
  %v7679 = vunpack.c.0.s8 %v7678
  %v7680 = vlaneseq
  %v7681 = vshrl.u32 %v7680, 7
  %v7682 = vsub.s32 %v7679, %v7681
  %v7683 = vrot.slane %v5648, %v7682
  %v7684 = vcombine.low %v7524, %v7683
  %v7685 = vrot.slane %v7491, 1
  %v7686 = vrot.slane %v7676, 1
  %v7687 = vsel %vm138, %v7685, %v7686
  %v7688 = vrot.slane %v7516, 1
  %v7689 = vrot.slane %v7684, 1
  %v7690 = vsel %vm138, %v7688, %v7689
  %7691 = vrot.lane.b32.xlu0 %v6520, 32
  %v7692 = vpop.permute.xlu0 %7691
  %7693 = vrot.lane.b32.xlu0 %v6519, 32
  %v7694 = vpop.permute.xlu0 %7693
  %7695 = vrot.lane.b32.xlu0 %v6523, 32
  %v7696 = vpop.permute.xlu0 %7695
  %7697 = vrot.lane.b32.xlu0 %v6522, 32
  %v7698 = vpop.permute.xlu0 %7697
  %7699 = vrot.lane.b32.xlu0 %v6526, 32
  %v7700 = vpop.permute.xlu0 %7699
  %7701 = vrot.lane.b32.xlu0 %v6525, 32
  %v7702 = vpop.permute.xlu0 %7701
  %7703 = vrot.lane.b32.xlu0 %v6529, 32
  %v7704 = vpop.permute.xlu0 %7703
  %7705 = vrot.lane.b32.xlu0 %v6528, 32
  %v7706 = vpop.permute.xlu0 %7705
  %7707 = vrot.lane.b32.xlu0 %v6532, 32
  %v7708 = vpop.permute.xlu0 %7707
  %7709 = vrot.lane.b32.xlu0 %v6531, 32
  %v7710 = vpop.permute.xlu0 %7709
  %7711 = vrot.lane.b32.xlu0 %v6535, 32
  %v7712 = vpop.permute.xlu0 %7711
  %7713 = vrot.lane.b32.xlu0 %v6534, 32
  %v7714 = vpop.permute.xlu0 %7713
  %7715 = vrot.lane.b32.xlu0 %v6538, 32
  %v7716 = vpop.permute.xlu0 %7715
  %7717 = vrot.lane.b32.xlu0 %v6537, 32
  %v7718 = vpop.permute.xlu0 %7717
  %7719 = vrot.lane.b32.xlu0 %v6541, 32
  %v7720 = vpop.permute.xlu0 %7719
  %7721 = vrot.lane.b32.xlu0 %v6540, 32
  %v7722 = vpop.permute.xlu0 %7721
  %7723 = vrot.lane.b32.xlu0 %v6544, 32
  %v7724 = vpop.permute.xlu0 %7723
  %7725 = vrot.lane.b32.xlu0 %v6543, 32
  %v7726 = vpop.permute.xlu0 %7725
  %7727 = vrot.lane.b32.xlu0 %v6547, 32
  %v7728 = vpop.permute.xlu0 %7727
  %7729 = vrot.lane.b32.xlu0 %v6546, 32
  %v7730 = vpop.permute.xlu0 %7729
  %7731 = vrot.lane.b32.xlu0 %v6550, 32
  %v7732 = vpop.permute.xlu0 %7731
  %7733 = vrot.lane.b32.xlu0 %v6549, 32
  %v7734 = vpop.permute.xlu0 %7733
  %7735 = vrot.lane.b32.xlu0 %v7687, 32
  %v7736 = vpop.permute.xlu0 %7735
  %7737 = vrot.lane.b32.xlu0 %v7686, 32
  %v7738 = vpop.permute.xlu0 %7737
  %7739 = vrot.lane.b32.xlu0 %v6556, 32
  %v7740 = vpop.permute.xlu0 %7739
  %7741 = vrot.lane.b32.xlu0 %v6555, 32
  %v7742 = vpop.permute.xlu0 %7741
  %7743 = vrot.lane.b32.xlu0 %v6559, 32
  %v7744 = vpop.permute.xlu0 %7743
  %7745 = vrot.lane.b32.xlu0 %v6558, 32
  %v7746 = vpop.permute.xlu0 %7745
  %7747 = vrot.lane.b32.xlu0 %v6562, 32
  %v7748 = vpop.permute.xlu0 %7747
  %7749 = vrot.lane.b32.xlu0 %v6561, 32
  %v7750 = vpop.permute.xlu0 %7749
  %7751 = vrot.lane.b32.xlu0 %v6565, 32
  %v7752 = vpop.permute.xlu0 %7751
  %7753 = vrot.lane.b32.xlu0 %v6564, 32
  %v7754 = vpop.permute.xlu0 %7753
  %7755 = vrot.lane.b32.xlu0 %v6568, 32
  %v7756 = vpop.permute.xlu0 %7755
  %7757 = vrot.lane.b32.xlu0 %v6567, 32
  %v7758 = vpop.permute.xlu0 %7757
  %7759 = vrot.lane.b32.xlu0 %v6571, 32
  %v7760 = vpop.permute.xlu0 %7759
  %7761 = vrot.lane.b32.xlu0 %v6570, 32
  %v7762 = vpop.permute.xlu0 %7761
  %7763 = vrot.lane.b32.xlu0 %v6574, 32
  %v7764 = vpop.permute.xlu0 %7763
  %7765 = vrot.lane.b32.xlu0 %v6573, 32
  %v7766 = vpop.permute.xlu0 %7765
  %7767 = vrot.lane.b32.xlu0 %v6577, 32
  %v7768 = vpop.permute.xlu0 %7767
  %7769 = vrot.lane.b32.xlu0 %v6576, 32
  %v7770 = vpop.permute.xlu0 %7769
  %7771 = vrot.lane.b32.xlu0 %v6580, 32
  %v7772 = vpop.permute.xlu0 %7771
  %7773 = vrot.lane.b32.xlu0 %v6579, 32
  %v7774 = vpop.permute.xlu0 %7773
  %7775 = vrot.lane.b32.xlu0 %v6583, 32
  %v7776 = vpop.permute.xlu0 %7775
  %7777 = vrot.lane.b32.xlu0 %v6582, 32
  %v7778 = vpop.permute.xlu0 %7777
  %7779 = vrot.lane.b32.xlu0 %v6586, 32
  %v7780 = vpop.permute.xlu0 %7779
  %7781 = vrot.lane.b32.xlu0 %v6585, 32
  %v7782 = vpop.permute.xlu0 %7781
  %7783 = vrot.lane.b32.xlu0 %v7690, 32
  %v7784 = vpop.permute.xlu0 %7783
  %7785 = vrot.lane.b32.xlu0 %v7689, 32
  %v7786 = vpop.permute.xlu0 %7785
  %v7835 = vcombine.low %v5214, %v5213
  %v7836 = vcombine.low %v5215, %v5223
  %v7838 = vunpack.c.l.s4 1983009808
  %v7839 = vunpack.c.0.s8 %v7838
  %v7840 = vlaneseq
  %v7841 = vshrl.u32 %v7840, 7
  %v7842 = vsub.s32 %v7839, %v7841
  %v7843 = vrot.slane %v7835, %v7842
  %v7845 = vunpack.c.l.s4 1983009808
  %v7846 = vunpack.c.0.s8 %v7845
  %v7847 = vlaneseq
  %v7848 = vshrl.u32 %v7847, 7
  %v7849 = vsub.s32 %v7846, %v7848
  %v7850 = vrot.slane %v7836, %v7849
  %v7851 = vcombine.low %v7843, %v7850
  %v7852 = vcombine.low %v5231, %v5230
  %v7854 = vunpack.c.l.s4 1983009808
  %v7855 = vunpack.c.0.s8 %v7854
  %v7856 = vlaneseq
  %v7857 = vshrl.u32 %v7856, 7
  %v7858 = vsub.s32 %v7855, %v7857
  %v7859 = vrot.slane %v7852, %v7858
  %v7860 = vcombine.low %v5623, %v5631
  %v7861 = vcombine.low %v5639, %v5638
  %v7863 = vunpack.c.l.s4 1983009808
  %v7864 = vunpack.c.0.s8 %v7863
  %v7865 = vlaneseq
  %v7866 = vshrl.u32 %v7865, 7
  %v7867 = vsub.s32 %v7864, %v7866
  %v7868 = vrot.slane %v7860, %v7867
  %v7870 = vunpack.c.l.s4 1983009808
  %v7871 = vunpack.c.0.s8 %v7870
  %v7872 = vlaneseq
  %v7873 = vshrl.u32 %v7872, 7
  %v7874 = vsub.s32 %v7871, %v7873
  %v7875 = vrot.slane %v7861, %v7874
  %v7876 = vcombine.low %v7868, %v7875
  %v7877 = vcombine.low %v5640, %v5648
  %v7879 = vunpack.c.l.s4 1983009808
  %v7880 = vunpack.c.0.s8 %v7879
  %v7881 = vlaneseq
  %v7882 = vshrl.u32 %v7881, 7
  %v7883 = vsub.s32 %v7880, %v7882
  %v7884 = vrot.slane %v7877, %v7883
  %7885 = vrot.lane.b32.xlu0 %v6772, 40
  %v7886 = vpop.permute.xlu0 %7885
  %7887 = vrot.lane.b32.xlu0 %v6780, 40
  %v7888 = vpop.permute.xlu0 %7887
  %7889 = vrot.lane.b32.xlu0 %v6797, 40
  %v7890 = vpop.permute.xlu0 %7889
  %7891 = vrot.lane.b32.xlu0 %v6805, 40
  %v7892 = vpop.permute.xlu0 %7891
  %7893 = vrot.lane.b32.xlu0 %v6822, 40
  %v7894 = vpop.permute.xlu0 %7893
  %7895 = vrot.lane.b32.xlu0 %v6830, 40
  %v7896 = vpop.permute.xlu0 %7895
  %7897 = vrot.lane.b32.xlu0 %v6847, 40
  %v7898 = vpop.permute.xlu0 %7897
  %7899 = vrot.lane.b32.xlu0 %v6855, 40
  %v7900 = vpop.permute.xlu0 %7899
  %7901 = vrot.lane.b32.xlu0 %v6872, 40
  %v7902 = vpop.permute.xlu0 %7901
  %7903 = vrot.lane.b32.xlu0 %v6880, 40
  %v7904 = vpop.permute.xlu0 %7903
  %7905 = vrot.lane.b32.xlu0 %v6897, 40
  %v7906 = vpop.permute.xlu0 %7905
  %7907 = vrot.lane.b32.xlu0 %v6905, 40
  %v7908 = vpop.permute.xlu0 %7907
  %7909 = vrot.lane.b32.xlu0 %v6922, 40
  %v7910 = vpop.permute.xlu0 %7909
  %7911 = vrot.lane.b32.xlu0 %v6930, 40
  %v7912 = vpop.permute.xlu0 %7911
  %7913 = vrot.lane.b32.xlu0 %v6947, 40
  %v7914 = vpop.permute.xlu0 %7913
  %7915 = vrot.lane.b32.xlu0 %v6955, 40
  %v7916 = vpop.permute.xlu0 %7915
  %7917 = vrot.lane.b32.xlu0 %v6972, 40
  %v7918 = vpop.permute.xlu0 %7917
  %7919 = vrot.lane.b32.xlu0 %v6980, 40
  %v7920 = vpop.permute.xlu0 %7919
  %7921 = vrot.lane.b32.xlu0 %v6997, 40
  %v7922 = vpop.permute.xlu0 %7921
  %7923 = vrot.lane.b32.xlu0 %v7005, 40
  %v7924 = vpop.permute.xlu0 %7923
  %7925 = vrot.lane.b32.xlu0 %v7022, 40
  %v7926 = vpop.permute.xlu0 %7925
  %7927 = vrot.lane.b32.xlu0 %v7030, 40
  %v7928 = vpop.permute.xlu0 %7927
  %7929 = vrot.lane.b32.xlu0 %v7851, 40
  %v7930 = vpop.permute.xlu0 %7929
  %7931 = vrot.lane.b32.xlu0 %v7859, 40
  %v7932 = vpop.permute.xlu0 %7931
  %7933 = vrot.lane.b32.xlu0 %v7072, 40
  %v7934 = vpop.permute.xlu0 %7933
  %7935 = vrot.lane.b32.xlu0 %v7080, 40
  %v7936 = vpop.permute.xlu0 %7935
  %7937 = vrot.lane.b32.xlu0 %v7097, 40
  %v7938 = vpop.permute.xlu0 %7937
  %7939 = vrot.lane.b32.xlu0 %v7105, 40
  %v7940 = vpop.permute.xlu0 %7939
  %7941 = vrot.lane.b32.xlu0 %v7122, 40
  %v7942 = vpop.permute.xlu0 %7941
  %7943 = vrot.lane.b32.xlu0 %v7130, 40
  %v7944 = vpop.permute.xlu0 %7943
  %7945 = vrot.lane.b32.xlu0 %v7147, 40
  %v7946 = vpop.permute.xlu0 %7945
  %7947 = vrot.lane.b32.xlu0 %v7155, 40
  %v7948 = vpop.permute.xlu0 %7947
  %7949 = vrot.lane.b32.xlu0 %v7172, 40
  %v7950 = vpop.permute.xlu0 %7949
  %7951 = vrot.lane.b32.xlu0 %v7180, 40
  %v7952 = vpop.permute.xlu0 %7951
  %7953 = vrot.lane.b32.xlu0 %v7197, 40
  %v7954 = vpop.permute.xlu0 %7953
  %7955 = vrot.lane.b32.xlu0 %v7205, 40
  %v7956 = vpop.permute.xlu0 %7955
  %7957 = vrot.lane.b32.xlu0 %v7222, 40
  %v7958 = vpop.permute.xlu0 %7957
  %7959 = vrot.lane.b32.xlu0 %v7230, 40
  %v7960 = vpop.permute.xlu0 %7959
  %7961 = vrot.lane.b32.xlu0 %v7247, 40
  %v7962 = vpop.permute.xlu0 %7961
  %7963 = vrot.lane.b32.xlu0 %v7255, 40
  %v7964 = vpop.permute.xlu0 %7963
  %7965 = vrot.lane.b32.xlu0 %v7272, 40
  %v7966 = vpop.permute.xlu0 %7965
  %7967 = vrot.lane.b32.xlu0 %v7280, 40
  %v7968 = vpop.permute.xlu0 %7967
  %7969 = vrot.lane.b32.xlu0 %v7297, 40
  %v7970 = vpop.permute.xlu0 %7969
  %7971 = vrot.lane.b32.xlu0 %v7305, 40
  %v7972 = vpop.permute.xlu0 %7971
  %7973 = vrot.lane.b32.xlu0 %v7322, 40
  %v7974 = vpop.permute.xlu0 %7973
  %7975 = vrot.lane.b32.xlu0 %v7330, 40
  %v7976 = vpop.permute.xlu0 %7975
  %7977 = vrot.lane.b32.xlu0 %v7876, 40
  %v7978 = vpop.permute.xlu0 %7977
  %7979 = vrot.lane.b32.xlu0 %v7884, 40
  %v7980 = vpop.permute.xlu0 %7979
  %v8029 = vcombine.low %v5232, %v5240
  %v8030 = vcombine.low %v5248, %v5247
  %v8032 = vunpack.c.l.s4 1983009808
  %v8033 = vunpack.c.0.s8 %v8032
  %v8034 = vlaneseq
  %v8035 = vshrl.u32 %v8034, 7
  %v8036 = vsub.s32 %v8033, %v8035
  %v8037 = vrot.slane %v8029, %v8036
  %v8039 = vunpack.c.l.s4 1983009808
  %v8040 = vunpack.c.0.s8 %v8039
  %v8041 = vlaneseq
  %v8042 = vshrl.u32 %v8041, 7
  %v8043 = vsub.s32 %v8040, %v8042
  %v8044 = vrot.slane %v8030, %v8043
  %v8045 = vcombine.low %v8037, %v8044
  %v8046 = vcombine.low %v5249, %v5257
  %v8048 = vunpack.c.l.s4 1983009808
  %v8049 = vunpack.c.0.s8 %v8048
  %v8050 = vlaneseq
  %v8051 = vshrl.u32 %v8050, 7
  %v8052 = vsub.s32 %v8049, %v8051
  %v8053 = vrot.slane %v8046, %v8052
  %v8054 = vcombine.low %v5656, %v5655
  %v8055 = vcombine.low %v5657, %v5665
  %v8057 = vunpack.c.l.s4 1983009808
  %v8058 = vunpack.c.0.s8 %v8057
  %v8059 = vlaneseq
  %v8060 = vshrl.u32 %v8059, 7
  %v8061 = vsub.s32 %v8058, %v8060
  %v8062 = vrot.slane %v8054, %v8061
  %v8064 = vunpack.c.l.s4 1983009808
  %v8065 = vunpack.c.0.s8 %v8064
  %v8066 = vlaneseq
  %v8067 = vshrl.u32 %v8066, 7
  %v8068 = vsub.s32 %v8065, %v8067
  %v8069 = vrot.slane %v8055, %v8068
  %v8070 = vcombine.low %v8062, %v8069
  %v8071 = vcombine.low %v5673, %v5672
  %v8073 = vunpack.c.l.s4 1983009808
  %v8074 = vunpack.c.0.s8 %v8073
  %v8075 = vlaneseq
  %v8076 = vshrl.u32 %v8075, 7
  %v8077 = vsub.s32 %v8074, %v8076
  %v8078 = vrot.slane %v8071, %v8077
  %8079 = vrot.lane.b32.xlu0 %v5741, 48
  %v8080 = vpop.permute.xlu0 %8079
  %8081 = vrot.lane.b32.xlu0 %v5749, 48
  %v8082 = vpop.permute.xlu0 %8081
  %8083 = vrot.lane.b32.xlu0 %v5766, 48
  %v8084 = vpop.permute.xlu0 %8083
  %8085 = vrot.lane.b32.xlu0 %v5774, 48
  %v8086 = vpop.permute.xlu0 %8085
  %8087 = vrot.lane.b32.xlu0 %v5791, 48
  %v8088 = vpop.permute.xlu0 %8087
  %8089 = vrot.lane.b32.xlu0 %v5799, 48
  %v8090 = vpop.permute.xlu0 %8089
  %8091 = vrot.lane.b32.xlu0 %v5816, 48
  %v8092 = vpop.permute.xlu0 %8091
  %8093 = vrot.lane.b32.xlu0 %v5824, 48
  %v8094 = vpop.permute.xlu0 %8093
  %8095 = vrot.lane.b32.xlu0 %v5841, 48
  %v8096 = vpop.permute.xlu0 %8095
  %8097 = vrot.lane.b32.xlu0 %v5849, 48
  %v8098 = vpop.permute.xlu0 %8097
  %8099 = vrot.lane.b32.xlu0 %v5866, 48
  %v8100 = vpop.permute.xlu0 %8099
  %8101 = vrot.lane.b32.xlu0 %v5874, 48
  %v8102 = vpop.permute.xlu0 %8101
  %8103 = vrot.lane.b32.xlu0 %v5891, 48
  %v8104 = vpop.permute.xlu0 %8103
  %8105 = vrot.lane.b32.xlu0 %v5899, 48
  %v8106 = vpop.permute.xlu0 %8105
  %8107 = vrot.lane.b32.xlu0 %v5916, 48
  %v8108 = vpop.permute.xlu0 %8107
  %8109 = vrot.lane.b32.xlu0 %v5924, 48
  %v8110 = vpop.permute.xlu0 %8109
  %8111 = vrot.lane.b32.xlu0 %v5941, 48
  %v8112 = vpop.permute.xlu0 %8111
  %8113 = vrot.lane.b32.xlu0 %v5949, 48
  %v8114 = vpop.permute.xlu0 %8113
  %8115 = vrot.lane.b32.xlu0 %v5966, 48
  %v8116 = vpop.permute.xlu0 %8115
  %8117 = vrot.lane.b32.xlu0 %v5974, 48
  %v8118 = vpop.permute.xlu0 %8117
  %8119 = vrot.lane.b32.xlu0 %v7491, 48
  %v8120 = vpop.permute.xlu0 %8119
  %8121 = vrot.lane.b32.xlu0 %v7499, 48
  %v8122 = vpop.permute.xlu0 %8121
  %8123 = vrot.lane.b32.xlu0 %v8045, 48
  %v8124 = vpop.permute.xlu0 %8123
  %8125 = vrot.lane.b32.xlu0 %v8053, 48
  %v8126 = vpop.permute.xlu0 %8125
  %8127 = vrot.lane.b32.xlu0 %v6041, 48
  %v8128 = vpop.permute.xlu0 %8127
  %8129 = vrot.lane.b32.xlu0 %v6049, 48
  %v8130 = vpop.permute.xlu0 %8129
  %8131 = vrot.lane.b32.xlu0 %v6066, 48
  %v8132 = vpop.permute.xlu0 %8131
  %8133 = vrot.lane.b32.xlu0 %v6074, 48
  %v8134 = vpop.permute.xlu0 %8133
  %8135 = vrot.lane.b32.xlu0 %v6091, 48
  %v8136 = vpop.permute.xlu0 %8135
  %8137 = vrot.lane.b32.xlu0 %v6099, 48
  %v8138 = vpop.permute.xlu0 %8137
  %8139 = vrot.lane.b32.xlu0 %v6116, 48
  %v8140 = vpop.permute.xlu0 %8139
  %8141 = vrot.lane.b32.xlu0 %v6124, 48
  %v8142 = vpop.permute.xlu0 %8141
  %8143 = vrot.lane.b32.xlu0 %v6141, 48
  %v8144 = vpop.permute.xlu0 %8143
  %8145 = vrot.lane.b32.xlu0 %v6149, 48
  %v8146 = vpop.permute.xlu0 %8145
  %8147 = vrot.lane.b32.xlu0 %v6166, 48
  %v8148 = vpop.permute.xlu0 %8147
  %8149 = vrot.lane.b32.xlu0 %v6174, 48
  %v8150 = vpop.permute.xlu0 %8149
  %8151 = vrot.lane.b32.xlu0 %v6191, 48
  %v8152 = vpop.permute.xlu0 %8151
  %8153 = vrot.lane.b32.xlu0 %v6199, 48
  %v8154 = vpop.permute.xlu0 %8153
  %8155 = vrot.lane.b32.xlu0 %v6216, 48
  %v8156 = vpop.permute.xlu0 %8155
  %8157 = vrot.lane.b32.xlu0 %v6224, 48
  %v8158 = vpop.permute.xlu0 %8157
  %8159 = vrot.lane.b32.xlu0 %v6241, 48
  %v8160 = vpop.permute.xlu0 %8159
  %8161 = vrot.lane.b32.xlu0 %v6249, 48
  %v8162 = vpop.permute.xlu0 %8161
  %8163 = vrot.lane.b32.xlu0 %v6266, 48
  %v8164 = vpop.permute.xlu0 %8163
  %8165 = vrot.lane.b32.xlu0 %v6274, 48
  %v8166 = vpop.permute.xlu0 %8165
  %8167 = vrot.lane.b32.xlu0 %v7516, 48
  %v8168 = vpop.permute.xlu0 %8167
  %8169 = vrot.lane.b32.xlu0 %v7524, 48
  %v8170 = vpop.permute.xlu0 %8169
  %8171 = vrot.lane.b32.xlu0 %v8070, 48
  %v8172 = vpop.permute.xlu0 %8171
  %8173 = vrot.lane.b32.xlu0 %v8078, 48
  %v8174 = vpop.permute.xlu0 %8173
  %v8224 = vunpack.c.l.s4 1983009808
  %v8225 = vunpack.c.0.s8 %v8224
  %v8226 = vlaneseq
  %v8227 = vshrl.u32 %v8226, 7
  %v8228 = vsub.s32 %v8225, %v8227
  %v8229 = vrot.slane %v5265, %v8228
  %v8230 = vcombine.low %v8053, %v8229
  %v8232 = vunpack.c.l.s4 1983009808
  %v8233 = vunpack.c.0.s8 %v8232
  %v8234 = vlaneseq
  %v8235 = vshrl.u32 %v8234, 7
  %v8236 = vsub.s32 %v8233, %v8235
  %v8237 = vrot.slane %v5674, %v8236
  %v8238 = vcombine.low %v8078, %v8237
  %v8239 = vrot.slane %v8045, 1
  %v8240 = vrot.slane %v8230, 1
  %v8241 = vsel %vm138, %v8239, %v8240
  %v8242 = vrot.slane %v8070, 1
  %v8243 = vrot.slane %v8238, 1
  %v8244 = vsel %vm138, %v8242, %v8243
  %8245 = vrot.lane.b32.xlu0 %v6523, 56
  %v8246 = vpop.permute.xlu0 %8245
  %8247 = vrot.lane.b32.xlu0 %v6522, 56
  %v8248 = vpop.permute.xlu0 %8247
  %8249 = vrot.lane.b32.xlu0 %v6526, 56
  %v8250 = vpop.permute.xlu0 %8249
  %8251 = vrot.lane.b32.xlu0 %v6525, 56
  %v8252 = vpop.permute.xlu0 %8251
  %8253 = vrot.lane.b32.xlu0 %v6529, 56
  %v8254 = vpop.permute.xlu0 %8253
  %8255 = vrot.lane.b32.xlu0 %v6528, 56
  %v8256 = vpop.permute.xlu0 %8255
  %8257 = vrot.lane.b32.xlu0 %v6532, 56
  %v8258 = vpop.permute.xlu0 %8257
  %8259 = vrot.lane.b32.xlu0 %v6531, 56
  %v8260 = vpop.permute.xlu0 %8259
  %8261 = vrot.lane.b32.xlu0 %v6535, 56
  %v8262 = vpop.permute.xlu0 %8261
  %8263 = vrot.lane.b32.xlu0 %v6534, 56
  %v8264 = vpop.permute.xlu0 %8263
  %8265 = vrot.lane.b32.xlu0 %v6538, 56
  %v8266 = vpop.permute.xlu0 %8265
  %8267 = vrot.lane.b32.xlu0 %v6537, 56
  %v8268 = vpop.permute.xlu0 %8267
  %8269 = vrot.lane.b32.xlu0 %v6541, 56
  %v8270 = vpop.permute.xlu0 %8269
  %8271 = vrot.lane.b32.xlu0 %v6540, 56
  %v8272 = vpop.permute.xlu0 %8271
  %8273 = vrot.lane.b32.xlu0 %v6544, 56
  %v8274 = vpop.permute.xlu0 %8273
  %8275 = vrot.lane.b32.xlu0 %v6543, 56
  %v8276 = vpop.permute.xlu0 %8275
  %8277 = vrot.lane.b32.xlu0 %v6547, 56
  %v8278 = vpop.permute.xlu0 %8277
  %8279 = vrot.lane.b32.xlu0 %v6546, 56
  %v8280 = vpop.permute.xlu0 %8279
  %8281 = vrot.lane.b32.xlu0 %v6550, 56
  %v8282 = vpop.permute.xlu0 %8281
  %8283 = vrot.lane.b32.xlu0 %v6549, 56
  %v8284 = vpop.permute.xlu0 %8283
  %8285 = vrot.lane.b32.xlu0 %v7687, 56
  %v8286 = vpop.permute.xlu0 %8285
  %8287 = vrot.lane.b32.xlu0 %v7686, 56
  %v8288 = vpop.permute.xlu0 %8287
  %8289 = vrot.lane.b32.xlu0 %v8241, 56
  %v8290 = vpop.permute.xlu0 %8289
  %8291 = vrot.lane.b32.xlu0 %v8240, 56
  %v8292 = vpop.permute.xlu0 %8291
  %8293 = vrot.lane.b32.xlu0 %v6559, 56
  %v8294 = vpop.permute.xlu0 %8293
  %8295 = vrot.lane.b32.xlu0 %v6558, 56
  %v8296 = vpop.permute.xlu0 %8295
  %8297 = vrot.lane.b32.xlu0 %v6562, 56
  %v8298 = vpop.permute.xlu0 %8297
  %8299 = vrot.lane.b32.xlu0 %v6561, 56
  %v8300 = vpop.permute.xlu0 %8299
  %8301 = vrot.lane.b32.xlu0 %v6565, 56
  %v8302 = vpop.permute.xlu0 %8301
  %8303 = vrot.lane.b32.xlu0 %v6564, 56
  %v8304 = vpop.permute.xlu0 %8303
  %8305 = vrot.lane.b32.xlu0 %v6568, 56
  %v8306 = vpop.permute.xlu0 %8305
  %8307 = vrot.lane.b32.xlu0 %v6567, 56
  %v8308 = vpop.permute.xlu0 %8307
  %8309 = vrot.lane.b32.xlu0 %v6571, 56
  %v8310 = vpop.permute.xlu0 %8309
  %8311 = vrot.lane.b32.xlu0 %v6570, 56
  %v8312 = vpop.permute.xlu0 %8311
  %8313 = vrot.lane.b32.xlu0 %v6574, 56
  %v8314 = vpop.permute.xlu0 %8313
  %8315 = vrot.lane.b32.xlu0 %v6573, 56
  %v8316 = vpop.permute.xlu0 %8315
  %8317 = vrot.lane.b32.xlu0 %v6577, 56
  %v8318 = vpop.permute.xlu0 %8317
  %8319 = vrot.lane.b32.xlu0 %v6576, 56
  %v8320 = vpop.permute.xlu0 %8319
  %8321 = vrot.lane.b32.xlu0 %v6580, 56
  %v8322 = vpop.permute.xlu0 %8321
  %8323 = vrot.lane.b32.xlu0 %v6579, 56
  %v8324 = vpop.permute.xlu0 %8323
  %8325 = vrot.lane.b32.xlu0 %v6583, 56
  %v8326 = vpop.permute.xlu0 %8325
  %8327 = vrot.lane.b32.xlu0 %v6582, 56
  %v8328 = vpop.permute.xlu0 %8327
  %8329 = vrot.lane.b32.xlu0 %v6586, 56
  %v8330 = vpop.permute.xlu0 %8329
  %8331 = vrot.lane.b32.xlu0 %v6585, 56
  %v8332 = vpop.permute.xlu0 %8331
  %8333 = vrot.lane.b32.xlu0 %v7690, 56
  %v8334 = vpop.permute.xlu0 %8333
  %8335 = vrot.lane.b32.xlu0 %v7689, 56
  %v8336 = vpop.permute.xlu0 %8335
  %8337 = vrot.lane.b32.xlu0 %v8244, 56
  %v8338 = vpop.permute.xlu0 %8337
  %8339 = vrot.lane.b32.xlu0 %v8243, 56
  %v8340 = vpop.permute.xlu0 %8339
  %v8389 = vcombine.low %v5240, %v5248
  %v8390 = vcombine.low %v5247, %v5249
  %v8392 = vunpack.c.l.s4 1983009808
  %v8393 = vunpack.c.0.s8 %v8392
  %v8394 = vlaneseq
  %v8395 = vshrl.u32 %v8394, 7
  %v8396 = vsub.s32 %v8393, %v8395
  %v8397 = vrot.slane %v8389, %v8396
  %v8399 = vunpack.c.l.s4 1983009808
  %v8400 = vunpack.c.0.s8 %v8399
  %v8401 = vlaneseq
  %v8402 = vshrl.u32 %v8401, 7
  %v8403 = vsub.s32 %v8400, %v8402
  %v8404 = vrot.slane %v8390, %v8403
  %v8405 = vcombine.low %v8397, %v8404
  %v8406 = vcombine.low %v5257, %v5265
  %v8408 = vunpack.c.l.s4 1983009808
  %v8409 = vunpack.c.0.s8 %v8408
  %v8410 = vlaneseq
  %v8411 = vshrl.u32 %v8410, 7
  %v8412 = vsub.s32 %v8409, %v8411
  %v8413 = vrot.slane %v8406, %v8412
  %v8414 = vcombine.low %v5655, %v5657
  %v8415 = vcombine.low %v5665, %v5673
  %v8417 = vunpack.c.l.s4 1983009808
  %v8418 = vunpack.c.0.s8 %v8417
  %v8419 = vlaneseq
  %v8420 = vshrl.u32 %v8419, 7
  %v8421 = vsub.s32 %v8418, %v8420
  %v8422 = vrot.slane %v8414, %v8421
  %v8424 = vunpack.c.l.s4 1983009808
  %v8425 = vunpack.c.0.s8 %v8424
  %v8426 = vlaneseq
  %v8427 = vshrl.u32 %v8426, 7
  %v8428 = vsub.s32 %v8425, %v8427
  %v8429 = vrot.slane %v8415, %v8428
  %v8430 = vcombine.low %v8422, %v8429
  %v8431 = vcombine.low %v5672, %v5674
  %v8433 = vunpack.c.l.s4 1983009808
  %v8434 = vunpack.c.0.s8 %v8433
  %v8435 = vlaneseq
  %v8436 = vshrl.u32 %v8435, 7
  %v8437 = vsub.s32 %v8434, %v8436
  %v8438 = vrot.slane %v8431, %v8437
  %8439 = vrot.lane.b32.xlu0 %v6797, 64
  %v8440 = vpop.permute.xlu0 %8439
  %8441 = vrot.lane.b32.xlu0 %v6805, 64
  %v8442 = vpop.permute.xlu0 %8441
  %8443 = vrot.lane.b32.xlu0 %v6822, 64
  %v8444 = vpop.permute.xlu0 %8443
  %8445 = vrot.lane.b32.xlu0 %v6830, 64
  %v8446 = vpop.permute.xlu0 %8445
  %8447 = vrot.lane.b32.xlu0 %v6847, 64
  %v8448 = vpop.permute.xlu0 %8447
  %8449 = vrot.lane.b32.xlu0 %v6855, 64
  %v8450 = vpop.permute.xlu0 %8449
  %8451 = vrot.lane.b32.xlu0 %v6872, 64
  %v8452 = vpop.permute.xlu0 %8451
  %8453 = vrot.lane.b32.xlu0 %v6880, 64
  %v8454 = vpop.permute.xlu0 %8453
  %8455 = vrot.lane.b32.xlu0 %v6897, 64
  %v8456 = vpop.permute.xlu0 %8455
  %8457 = vrot.lane.b32.xlu0 %v6905, 64
  %v8458 = vpop.permute.xlu0 %8457
  %8459 = vrot.lane.b32.xlu0 %v6922, 64
  %v8460 = vpop.permute.xlu0 %8459
  %8461 = vrot.lane.b32.xlu0 %v6930, 64
  %v8462 = vpop.permute.xlu0 %8461
  %8463 = vrot.lane.b32.xlu0 %v6947, 64
  %v8464 = vpop.permute.xlu0 %8463
  %8465 = vrot.lane.b32.xlu0 %v6955, 64
  %v8466 = vpop.permute.xlu0 %8465
  %8467 = vrot.lane.b32.xlu0 %v6972, 64
  %v8468 = vpop.permute.xlu0 %8467
  %8469 = vrot.lane.b32.xlu0 %v6980, 64
  %v8470 = vpop.permute.xlu0 %8469
  %8471 = vrot.lane.b32.xlu0 %v6997, 64
  %v8472 = vpop.permute.xlu0 %8471
  %8473 = vrot.lane.b32.xlu0 %v7005, 64
  %v8474 = vpop.permute.xlu0 %8473
  %8475 = vrot.lane.b32.xlu0 %v7022, 64
  %v8476 = vpop.permute.xlu0 %8475
  %8477 = vrot.lane.b32.xlu0 %v7030, 64
  %v8478 = vpop.permute.xlu0 %8477
  %8479 = vrot.lane.b32.xlu0 %v7851, 64
  %v8480 = vpop.permute.xlu0 %8479
  %8481 = vrot.lane.b32.xlu0 %v7859, 64
  %v8482 = vpop.permute.xlu0 %8481
  %8483 = vrot.lane.b32.xlu0 %v8405, 64
  %v8484 = vpop.permute.xlu0 %8483
  %8485 = vrot.lane.b32.xlu0 %v8413, 64
  %v8486 = vpop.permute.xlu0 %8485
  %8487 = vrot.lane.b32.xlu0 %v7097, 64
  %v8488 = vpop.permute.xlu0 %8487
  %8489 = vrot.lane.b32.xlu0 %v7105, 64
  %v8490 = vpop.permute.xlu0 %8489
  %8491 = vrot.lane.b32.xlu0 %v7122, 64
  %v8492 = vpop.permute.xlu0 %8491
  %8493 = vrot.lane.b32.xlu0 %v7130, 64
  %v8494 = vpop.permute.xlu0 %8493
  %8495 = vrot.lane.b32.xlu0 %v7147, 64
  %v8496 = vpop.permute.xlu0 %8495
  %8497 = vrot.lane.b32.xlu0 %v7155, 64
  %v8498 = vpop.permute.xlu0 %8497
  %8499 = vrot.lane.b32.xlu0 %v7172, 64
  %v8500 = vpop.permute.xlu0 %8499
  %8501 = vrot.lane.b32.xlu0 %v7180, 64
  %v8502 = vpop.permute.xlu0 %8501
  %8503 = vrot.lane.b32.xlu0 %v7197, 64
  %v8504 = vpop.permute.xlu0 %8503
  %8505 = vrot.lane.b32.xlu0 %v7205, 64
  %v8506 = vpop.permute.xlu0 %8505
  %8507 = vrot.lane.b32.xlu0 %v7222, 64
  %v8508 = vpop.permute.xlu0 %8507
  %8509 = vrot.lane.b32.xlu0 %v7230, 64
  %v8510 = vpop.permute.xlu0 %8509
  %8511 = vrot.lane.b32.xlu0 %v7247, 64
  %v8512 = vpop.permute.xlu0 %8511
  %8513 = vrot.lane.b32.xlu0 %v7255, 64
  %v8514 = vpop.permute.xlu0 %8513
  %8515 = vrot.lane.b32.xlu0 %v7272, 64
  %v8516 = vpop.permute.xlu0 %8515
  %8517 = vrot.lane.b32.xlu0 %v7280, 64
  %v8518 = vpop.permute.xlu0 %8517
  %8519 = vrot.lane.b32.xlu0 %v7297, 64
  %v8520 = vpop.permute.xlu0 %8519
  %8521 = vrot.lane.b32.xlu0 %v7305, 64
  %v8522 = vpop.permute.xlu0 %8521
  %8523 = vrot.lane.b32.xlu0 %v7322, 64
  %v8524 = vpop.permute.xlu0 %8523
  %8525 = vrot.lane.b32.xlu0 %v7330, 64
  %v8526 = vpop.permute.xlu0 %8525
  %8527 = vrot.lane.b32.xlu0 %v7876, 64
  %v8528 = vpop.permute.xlu0 %8527
  %8529 = vrot.lane.b32.xlu0 %v7884, 64
  %v8530 = vpop.permute.xlu0 %8529
  %8531 = vrot.lane.b32.xlu0 %v8430, 64
  %v8532 = vpop.permute.xlu0 %8531
  %8533 = vrot.lane.b32.xlu0 %v8438, 64
  %v8534 = vpop.permute.xlu0 %8533
  %v8583 = vsel %vm1741, %v5691, %v6588
  %v8584 = vsel %vm1741, %v5699, %v6590
  %v8585 = vsel %vm1741, %v5716, %v6592
  %v8586 = vsel %vm1741, %v5724, %v6594
  %v8587 = vsel %vm1741, %v5741, %v6596
  %v8588 = vsel %vm1741, %v5749, %v6598
  %v8589 = vsel %vm1741, %v5766, %v6600
  %v8590 = vsel %vm1741, %v5774, %v6602
  %v8591 = vsel %vm1741, %v5791, %v6604
  %v8592 = vsel %vm1741, %v5799, %v6606
  %v8593 = vsel %vm1741, %v5816, %v6608
  %v8594 = vsel %vm1741, %v5824, %v6610
  %v8595 = vsel %vm1741, %v5841, %v6612
  %v8596 = vsel %vm1741, %v5849, %v6614
  %v8597 = vsel %vm1741, %v5866, %v6616
  %v8598 = vsel %vm1741, %v5874, %v6618
  %v8599 = vsel %vm1741, %v5891, %v6620
  %v8600 = vsel %vm1741, %v5899, %v6622
  %v8601 = vsel %vm1741, %v5916, %v6624
  %v8602 = vsel %vm1741, %v5924, %v6626
  %v8603 = vsel %vm1741, %v5941, %v6628
  %v8604 = vsel %vm1741, %v5949, %v6630
  %v8605 = vsel %vm1741, %v5966, %v6632
  %v8606 = vsel %vm1741, %v5974, %v6634
  %v8607 = vsel %vm1741, %v5991, %v6636
  %v8608 = vsel %vm1741, %v5999, %v6638
  %v8609 = vsel %vm1741, %v6016, %v6640
  %v8610 = vsel %vm1741, %v6024, %v6642
  %v8611 = vsel %vm1741, %v6041, %v6644
  %v8612 = vsel %vm1741, %v6049, %v6646
  %v8613 = vsel %vm1741, %v6066, %v6648
  %v8614 = vsel %vm1741, %v6074, %v6650
  %v8615 = vsel %vm1741, %v6091, %v6652
  %v8616 = vsel %vm1741, %v6099, %v6654
  %v8617 = vsel %vm1741, %v6116, %v6656
  %v8618 = vsel %vm1741, %v6124, %v6658
  %v8619 = vsel %vm1741, %v6141, %v6660
  %v8620 = vsel %vm1741, %v6149, %v6662
  %v8621 = vsel %vm1741, %v6166, %v6664
  %v8622 = vsel %vm1741, %v6174, %v6666
  %v8623 = vsel %vm1741, %v6191, %v6668
  %v8624 = vsel %vm1741, %v6199, %v6670
  %v8625 = vsel %vm1741, %v6216, %v6672
  %v8626 = vsel %vm1741, %v6224, %v6674
  %v8627 = vsel %vm1741, %v6241, %v6676
  %v8628 = vsel %vm1741, %v6249, %v6678
  %v8629 = vsel %vm1741, %v6266, %v6680
  %v8630 = vsel %vm1741, %v6274, %v6682
  %v8631 = vsel %vm1855, %v8583, %v7332
  %v8632 = vsel %vm1855, %v8584, %v7334
  %v8633 = vsel %vm1855, %v8585, %v7336
  %v8634 = vsel %vm1855, %v8586, %v7338
  %v8635 = vsel %vm1855, %v8587, %v7340
  %v8636 = vsel %vm1855, %v8588, %v7342
  %v8637 = vsel %vm1855, %v8589, %v7344
  %v8638 = vsel %vm1855, %v8590, %v7346
  %v8639 = vsel %vm1855, %v8591, %v7348
  %v8640 = vsel %vm1855, %v8592, %v7350
  %v8641 = vsel %vm1855, %v8593, %v7352
  %v8642 = vsel %vm1855, %v8594, %v7354
  %v8643 = vsel %vm1855, %v8595, %v7356
  %v8644 = vsel %vm1855, %v8596, %v7358
  %v8645 = vsel %vm1855, %v8597, %v7360
  %v8646 = vsel %vm1855, %v8598, %v7362
  %v8647 = vsel %vm1855, %v8599, %v7364
  %v8648 = vsel %vm1855, %v8600, %v7366
  %v8649 = vsel %vm1855, %v8601, %v7368
  %v8650 = vsel %vm1855, %v8602, %v7370
  %v8651 = vsel %vm1855, %v8603, %v7372
  %v8652 = vsel %vm1855, %v8604, %v7374
  %v8653 = vsel %vm1855, %v8605, %v7376
  %v8654 = vsel %vm1855, %v8606, %v7378
  %v8655 = vsel %vm1855, %v8607, %v7380
  %v8656 = vsel %vm1855, %v8608, %v7382
  %v8657 = vsel %vm1855, %v8609, %v7384
  %v8658 = vsel %vm1855, %v8610, %v7386
  %v8659 = vsel %vm1855, %v8611, %v7388
  %v8660 = vsel %vm1855, %v8612, %v7390
  %v8661 = vsel %vm1855, %v8613, %v7392
  %v8662 = vsel %vm1855, %v8614, %v7394
  %v8663 = vsel %vm1855, %v8615, %v7396
  %v8664 = vsel %vm1855, %v8616, %v7398
  %v8665 = vsel %vm1855, %v8617, %v7400
  %v8666 = vsel %vm1855, %v8618, %v7402
  %v8667 = vsel %vm1855, %v8619, %v7404
  %v8668 = vsel %vm1855, %v8620, %v7406
  %v8669 = vsel %vm1855, %v8621, %v7408
  %v8670 = vsel %vm1855, %v8622, %v7410
  %v8671 = vsel %vm1855, %v8623, %v7412
  %v8672 = vsel %vm1855, %v8624, %v7414
  %v8673 = vsel %vm1855, %v8625, %v7416
  %v8674 = vsel %vm1855, %v8626, %v7418
  %v8675 = vsel %vm1855, %v8627, %v7420
  %v8676 = vsel %vm1855, %v8628, %v7422
  %v8677 = vsel %vm1855, %v8629, %v7424
  %v8678 = vsel %vm1855, %v8630, %v7426
  %v8679 = vsel %vm1969, %v8631, %v7526
  %v8680 = vsel %vm1969, %v8632, %v7528
  %v8681 = vsel %vm1969, %v8633, %v7530
  %v8682 = vsel %vm1969, %v8634, %v7532
  %v8683 = vsel %vm1969, %v8635, %v7534
  %v8684 = vsel %vm1969, %v8636, %v7536
  %v8685 = vsel %vm1969, %v8637, %v7538
  %v8686 = vsel %vm1969, %v8638, %v7540
  %v8687 = vsel %vm1969, %v8639, %v7542
  %v8688 = vsel %vm1969, %v8640, %v7544
  %v8689 = vsel %vm1969, %v8641, %v7546
  %v8690 = vsel %vm1969, %v8642, %v7548
  %v8691 = vsel %vm1969, %v8643, %v7550
  %v8692 = vsel %vm1969, %v8644, %v7552
  %v8693 = vsel %vm1969, %v8645, %v7554
  %v8694 = vsel %vm1969, %v8646, %v7556
  %v8695 = vsel %vm1969, %v8647, %v7558
  %v8696 = vsel %vm1969, %v8648, %v7560
  %v8697 = vsel %vm1969, %v8649, %v7562
  %v8698 = vsel %vm1969, %v8650, %v7564
  %v8699 = vsel %vm1969, %v8651, %v7566
  %v8700 = vsel %vm1969, %v8652, %v7568
  %v8701 = vsel %vm1969, %v8653, %v7570
  %v8702 = vsel %vm1969, %v8654, %v7572
  %v8703 = vsel %vm1969, %v8655, %v7574
  %v8704 = vsel %vm1969, %v8656, %v7576
  %v8705 = vsel %vm1969, %v8657, %v7578
  %v8706 = vsel %vm1969, %v8658, %v7580
  %v8707 = vsel %vm1969, %v8659, %v7582
  %v8708 = vsel %vm1969, %v8660, %v7584
  %v8709 = vsel %vm1969, %v8661, %v7586
  %v8710 = vsel %vm1969, %v8662, %v7588
  %v8711 = vsel %vm1969, %v8663, %v7590
  %v8712 = vsel %vm1969, %v8664, %v7592
  %v8713 = vsel %vm1969, %v8665, %v7594
  %v8714 = vsel %vm1969, %v8666, %v7596
  %v8715 = vsel %vm1969, %v8667, %v7598
  %v8716 = vsel %vm1969, %v8668, %v7600
  %v8717 = vsel %vm1969, %v8669, %v7602
  %v8718 = vsel %vm1969, %v8670, %v7604
  %v8719 = vsel %vm1969, %v8671, %v7606
  %v8720 = vsel %vm1969, %v8672, %v7608
  %v8721 = vsel %vm1969, %v8673, %v7610
  %v8722 = vsel %vm1969, %v8674, %v7612
  %v8723 = vsel %vm1969, %v8675, %v7614
  %v8724 = vsel %vm1969, %v8676, %v7616
  %v8725 = vsel %vm1969, %v8677, %v7618
  %v8726 = vsel %vm1969, %v8678, %v7620
  %v8727 = vsel %vm2083, %v8679, %v7692
  %v8728 = vsel %vm2083, %v8680, %v7694
  %v8729 = vsel %vm2083, %v8681, %v7696
  %v8730 = vsel %vm2083, %v8682, %v7698
  %v8731 = vsel %vm2083, %v8683, %v7700
  %v8732 = vsel %vm2083, %v8684, %v7702
  %v8733 = vsel %vm2083, %v8685, %v7704
  %v8734 = vsel %vm2083, %v8686, %v7706
  %v8735 = vsel %vm2083, %v8687, %v7708
  %v8736 = vsel %vm2083, %v8688, %v7710
  %v8737 = vsel %vm2083, %v8689, %v7712
  %v8738 = vsel %vm2083, %v8690, %v7714
  %v8739 = vsel %vm2083, %v8691, %v7716
  %v8740 = vsel %vm2083, %v8692, %v7718
  %v8741 = vsel %vm2083, %v8693, %v7720
  %v8742 = vsel %vm2083, %v8694, %v7722
  %v8743 = vsel %vm2083, %v8695, %v7724
  %v8744 = vsel %vm2083, %v8696, %v7726
  %v8745 = vsel %vm2083, %v8697, %v7728
  %v8746 = vsel %vm2083, %v8698, %v7730
  %v8747 = vsel %vm2083, %v8699, %v7732
  %v8748 = vsel %vm2083, %v8700, %v7734
  %v8749 = vsel %vm2083, %v8701, %v7736
  %v8750 = vsel %vm2083, %v8702, %v7738
  %v8751 = vsel %vm2083, %v8703, %v7740
  %v8752 = vsel %vm2083, %v8704, %v7742
  %v8753 = vsel %vm2083, %v8705, %v7744
  %v8754 = vsel %vm2083, %v8706, %v7746
  %v8755 = vsel %vm2083, %v8707, %v7748
  %v8756 = vsel %vm2083, %v8708, %v7750
  %v8757 = vsel %vm2083, %v8709, %v7752
  %v8758 = vsel %vm2083, %v8710, %v7754
  %v8759 = vsel %vm2083, %v8711, %v7756
  %v8760 = vsel %vm2083, %v8712, %v7758
  %v8761 = vsel %vm2083, %v8713, %v7760
  %v8762 = vsel %vm2083, %v8714, %v7762
  %v8763 = vsel %vm2083, %v8715, %v7764
  %v8764 = vsel %vm2083, %v8716, %v7766
  %v8765 = vsel %vm2083, %v8717, %v7768
  %v8766 = vsel %vm2083, %v8718, %v7770
  %v8767 = vsel %vm2083, %v8719, %v7772
  %v8768 = vsel %vm2083, %v8720, %v7774
  %v8769 = vsel %vm2083, %v8721, %v7776
  %v8770 = vsel %vm2083, %v8722, %v7778
  %v8771 = vsel %vm2083, %v8723, %v7780
  %v8772 = vsel %vm2083, %v8724, %v7782
  %v8773 = vsel %vm2083, %v8725, %v7784
  %v8774 = vsel %vm2083, %v8726, %v7786
  %vm8775 = vcmask 326656
  %v8776 = vsel %vm8775, %v8727, %v7886
  %v8777 = vsel %vm8775, %v8728, %v7888
  %v8778 = vsel %vm8775, %v8729, %v7890
  %v8779 = vsel %vm8775, %v8730, %v7892
  %v8780 = vsel %vm8775, %v8731, %v7894
  %v8781 = vsel %vm8775, %v8732, %v7896
  %v8782 = vsel %vm8775, %v8733, %v7898
  %v8783 = vsel %vm8775, %v8734, %v7900
  %v8784 = vsel %vm8775, %v8735, %v7902
  %v8785 = vsel %vm8775, %v8736, %v7904
  %v8786 = vsel %vm8775, %v8737, %v7906
  %v8787 = vsel %vm8775, %v8738, %v7908
  %v8788 = vsel %vm8775, %v8739, %v7910
  %v8789 = vsel %vm8775, %v8740, %v7912
  %v8790 = vsel %vm8775, %v8741, %v7914
  %v8791 = vsel %vm8775, %v8742, %v7916
  %v8792 = vsel %vm8775, %v8743, %v7918
  %v8793 = vsel %vm8775, %v8744, %v7920
  %v8794 = vsel %vm8775, %v8745, %v7922
  %v8795 = vsel %vm8775, %v8746, %v7924
  %v8796 = vsel %vm8775, %v8747, %v7926
  %v8797 = vsel %vm8775, %v8748, %v7928
  %v8798 = vsel %vm8775, %v8749, %v7930
  %v8799 = vsel %vm8775, %v8750, %v7932
  %v8800 = vsel %vm8775, %v8751, %v7934
  %v8801 = vsel %vm8775, %v8752, %v7936
  %v8802 = vsel %vm8775, %v8753, %v7938
  %v8803 = vsel %vm8775, %v8754, %v7940
  %v8804 = vsel %vm8775, %v8755, %v7942
  %v8805 = vsel %vm8775, %v8756, %v7944
  %v8806 = vsel %vm8775, %v8757, %v7946
  %v8807 = vsel %vm8775, %v8758, %v7948
  %v8808 = vsel %vm8775, %v8759, %v7950
  %v8809 = vsel %vm8775, %v8760, %v7952
  %v8810 = vsel %vm8775, %v8761, %v7954
  %v8811 = vsel %vm8775, %v8762, %v7956
  %v8812 = vsel %vm8775, %v8763, %v7958
  %v8813 = vsel %vm8775, %v8764, %v7960
  %v8814 = vsel %vm8775, %v8765, %v7962
  %v8815 = vsel %vm8775, %v8766, %v7964
  %v8816 = vsel %vm8775, %v8767, %v7966
  %v8817 = vsel %vm8775, %v8768, %v7968
  %v8818 = vsel %vm8775, %v8769, %v7970
  %v8819 = vsel %vm8775, %v8770, %v7972
  %v8820 = vsel %vm8775, %v8771, %v7974
  %v8821 = vsel %vm8775, %v8772, %v7976
  %v8822 = vsel %vm8775, %v8773, %v7978
  %v8823 = vsel %vm8775, %v8774, %v7980
  %vm8824 = vcmask 392192
  %v8825 = vsel %vm8824, %v8776, %v8080
  %v8826 = vsel %vm8824, %v8777, %v8082
  %v8827 = vsel %vm8824, %v8778, %v8084
  %v8828 = vsel %vm8824, %v8779, %v8086
  %v8829 = vsel %vm8824, %v8780, %v8088
  %v8830 = vsel %vm8824, %v8781, %v8090
  %v8831 = vsel %vm8824, %v8782, %v8092
  %v8832 = vsel %vm8824, %v8783, %v8094
  %v8833 = vsel %vm8824, %v8784, %v8096
  %v8834 = vsel %vm8824, %v8785, %v8098
  %v8835 = vsel %vm8824, %v8786, %v8100
  %v8836 = vsel %vm8824, %v8787, %v8102
  %v8837 = vsel %vm8824, %v8788, %v8104
  %v8838 = vsel %vm8824, %v8789, %v8106
  %v8839 = vsel %vm8824, %v8790, %v8108
  %v8840 = vsel %vm8824, %v8791, %v8110
  %v8841 = vsel %vm8824, %v8792, %v8112
  %v8842 = vsel %vm8824, %v8793, %v8114
  %v8843 = vsel %vm8824, %v8794, %v8116
  %v8844 = vsel %vm8824, %v8795, %v8118
  %v8845 = vsel %vm8824, %v8796, %v8120
  %v8846 = vsel %vm8824, %v8797, %v8122
  %v8847 = vsel %vm8824, %v8798, %v8124
  %v8848 = vsel %vm8824, %v8799, %v8126
  %v8849 = vsel %vm8824, %v8800, %v8128
  %v8850 = vsel %vm8824, %v8801, %v8130
  %v8851 = vsel %vm8824, %v8802, %v8132
  %v8852 = vsel %vm8824, %v8803, %v8134
  %v8853 = vsel %vm8824, %v8804, %v8136
  %v8854 = vsel %vm8824, %v8805, %v8138
  %v8855 = vsel %vm8824, %v8806, %v8140
  %v8856 = vsel %vm8824, %v8807, %v8142
  %v8857 = vsel %vm8824, %v8808, %v8144
  %v8858 = vsel %vm8824, %v8809, %v8146
  %v8859 = vsel %vm8824, %v8810, %v8148
  %v8860 = vsel %vm8824, %v8811, %v8150
  %v8861 = vsel %vm8824, %v8812, %v8152
  %v8862 = vsel %vm8824, %v8813, %v8154
  %v8863 = vsel %vm8824, %v8814, %v8156
  %v8864 = vsel %vm8824, %v8815, %v8158
  %v8865 = vsel %vm8824, %v8816, %v8160
  %v8866 = vsel %vm8824, %v8817, %v8162
  %v8867 = vsel %vm8824, %v8818, %v8164
  %v8868 = vsel %vm8824, %v8819, %v8166
  %v8869 = vsel %vm8824, %v8820, %v8168
  %v8870 = vsel %vm8824, %v8821, %v8170
  %v8871 = vsel %vm8824, %v8822, %v8172
  %v8872 = vsel %vm8824, %v8823, %v8174
  %vm8873 = vcmask 457728
  %v8874 = vsel %vm8873, %v8825, %v8246
  %v8875 = vsel %vm8873, %v8826, %v8248
  %v8876 = vsel %vm8873, %v8827, %v8250
  %v8877 = vsel %vm8873, %v8828, %v8252
  %v8878 = vsel %vm8873, %v8829, %v8254
  %v8879 = vsel %vm8873, %v8830, %v8256
  %v8880 = vsel %vm8873, %v8831, %v8258
  %v8881 = vsel %vm8873, %v8832, %v8260
  %v8882 = vsel %vm8873, %v8833, %v8262
  %v8883 = vsel %vm8873, %v8834, %v8264
  %v8884 = vsel %vm8873, %v8835, %v8266
  %v8885 = vsel %vm8873, %v8836, %v8268
  %v8886 = vsel %vm8873, %v8837, %v8270
  %v8887 = vsel %vm8873, %v8838, %v8272
  %v8888 = vsel %vm8873, %v8839, %v8274
  %v8889 = vsel %vm8873, %v8840, %v8276
  %v8890 = vsel %vm8873, %v8841, %v8278
  %v8891 = vsel %vm8873, %v8842, %v8280
  %v8892 = vsel %vm8873, %v8843, %v8282
  %v8893 = vsel %vm8873, %v8844, %v8284
  %v8894 = vsel %vm8873, %v8845, %v8286
  %v8895 = vsel %vm8873, %v8846, %v8288
  %v8896 = vsel %vm8873, %v8847, %v8290
  %v8897 = vsel %vm8873, %v8848, %v8292
  %v8898 = vsel %vm8873, %v8849, %v8294
  %v8899 = vsel %vm8873, %v8850, %v8296
  %v8900 = vsel %vm8873, %v8851, %v8298
  %v8901 = vsel %vm8873, %v8852, %v8300
  %v8902 = vsel %vm8873, %v8853, %v8302
  %v8903 = vsel %vm8873, %v8854, %v8304
  %v8904 = vsel %vm8873, %v8855, %v8306
  %v8905 = vsel %vm8873, %v8856, %v8308
  %v8906 = vsel %vm8873, %v8857, %v8310
  %v8907 = vsel %vm8873, %v8858, %v8312
  %v8908 = vsel %vm8873, %v8859, %v8314
  %v8909 = vsel %vm8873, %v8860, %v8316
  %v8910 = vsel %vm8873, %v8861, %v8318
  %v8911 = vsel %vm8873, %v8862, %v8320
  %v8912 = vsel %vm8873, %v8863, %v8322
  %v8913 = vsel %vm8873, %v8864, %v8324
  %v8914 = vsel %vm8873, %v8865, %v8326
  %v8915 = vsel %vm8873, %v8866, %v8328
  %v8916 = vsel %vm8873, %v8867, %v8330
  %v8917 = vsel %vm8873, %v8868, %v8332
  %v8918 = vsel %vm8873, %v8869, %v8334
  %v8919 = vsel %vm8873, %v8870, %v8336
  %v8920 = vsel %vm8873, %v8871, %v8338
  %v8921 = vsel %vm8873, %v8872, %v8340
  %vm8922 = vcmask 523264
  %v8923 = vsel %vm8922, %v8874, %v8440
  %v8924 = vsel %vm8922, %v8875, %v8442
  %v8925 = vsel %vm8922, %v8876, %v8444
  %v8926 = vsel %vm8922, %v8877, %v8446
  %v8927 = vsel %vm8922, %v8878, %v8448
  %v8928 = vsel %vm8922, %v8879, %v8450
  %v8929 = vsel %vm8922, %v8880, %v8452
  %v8930 = vsel %vm8922, %v8881, %v8454
  %v8931 = vsel %vm8922, %v8882, %v8456
  %v8932 = vsel %vm8922, %v8883, %v8458
  %v8933 = vsel %vm8922, %v8884, %v8460
  %v8934 = vsel %vm8922, %v8885, %v8462
  %v8935 = vsel %vm8922, %v8886, %v8464
  %v8936 = vsel %vm8922, %v8887, %v8466
  %v8937 = vsel %vm8922, %v8888, %v8468
  %v8938 = vsel %vm8922, %v8889, %v8470
  %v8939 = vsel %vm8922, %v8890, %v8472
  %v8940 = vsel %vm8922, %v8891, %v8474
  %v8941 = vsel %vm8922, %v8892, %v8476
  %v8942 = vsel %vm8922, %v8893, %v8478
  %v8943 = vsel %vm8922, %v8894, %v8480
  %v8944 = vsel %vm8922, %v8895, %v8482
  %v8945 = vsel %vm8922, %v8896, %v8484
  %v8946 = vsel %vm8922, %v8897, %v8486
  %v8947 = vsel %vm8922, %v8898, %v8488
  %v8948 = vsel %vm8922, %v8899, %v8490
  %v8949 = vsel %vm8922, %v8900, %v8492
  %v8950 = vsel %vm8922, %v8901, %v8494
  %v8951 = vsel %vm8922, %v8902, %v8496
  %v8952 = vsel %vm8922, %v8903, %v8498
  %v8953 = vsel %vm8922, %v8904, %v8500
  %v8954 = vsel %vm8922, %v8905, %v8502
  %v8955 = vsel %vm8922, %v8906, %v8504
  %v8956 = vsel %vm8922, %v8907, %v8506
  %v8957 = vsel %vm8922, %v8908, %v8508
  %v8958 = vsel %vm8922, %v8909, %v8510
  %v8959 = vsel %vm8922, %v8910, %v8512
  %v8960 = vsel %vm8922, %v8911, %v8514
  %v8961 = vsel %vm8922, %v8912, %v8516
  %v8962 = vsel %vm8922, %v8913, %v8518
  %v8963 = vsel %vm8922, %v8914, %v8520
  %v8964 = vsel %vm8922, %v8915, %v8522
  %v8965 = vsel %vm8922, %v8916, %v8524
  %v8966 = vsel %vm8922, %v8917, %v8526
  %v8967 = vsel %vm8922, %v8918, %v8528
  %v8968 = vsel %vm8922, %v8919, %v8530
  %v8969 = vsel %vm8922, %v8920, %v8532
  %v8970 = vsel %vm8922, %v8921, %v8534
  %v9019 = vcombine.high %v8923, %v8923
  %v9020 = vcombine.high %v8925, %v8925
  %v9021 = vcombine.high %v8927, %v8927
  %v9022 = vcombine.high %v8929, %v8929
  %v9023 = vcombine.high %v8931, %v8931
  %v9024 = vcombine.high %v8933, %v8933
  %v9025 = vcombine.high %v8935, %v8935
  %v9026 = vcombine.high %v8937, %v8937
  %v9027 = vcombine.high %v8939, %v8939
  %v9028 = vcombine.high %v8941, %v8941
  %v9029 = vcombine.high %v8943, %v8943
  %v9030 = vcombine.high %v8945, %v8945
  %v9031 = vcombine.high %v8947, %v8947
  %v9032 = vcombine.high %v8949, %v8949
  %v9033 = vcombine.high %v8951, %v8951
  %v9034 = vcombine.high %v8953, %v8953
  %v9035 = vcombine.high %v8955, %v8955
  %v9036 = vcombine.high %v8957, %v8957
  %v9037 = vcombine.high %v8959, %v8959
  %v9038 = vcombine.high %v8961, %v8961
  %v9039 = vcombine.high %v8963, %v8963
  %v9040 = vcombine.high %v8965, %v8965
  %v9041 = vcombine.high %v8967, %v8967
  %v9042 = vcombine.high %v8969, %v8969
  %v9043 = vld [vmem:[%s2] sm:$0xff]
  %v9044 = vld [vmem:[%s2 + $0x8] sm:$0xff]
  %v9045 = vld [vmem:[%s2 + $0x10] sm:$0xff]
  %v9046 = vld [vmem:[%s2 + $0x18] sm:$0xff]
  %v9047 = vld [vmem:[%s2 + $0x20] sm:$0xff]
  %v9048 = vld [vmem:[%s2 + $0x28] sm:$0xff]
  %v9049 = vld [vmem:[%s2 + $0x30] sm:$0xff]
  %v9050 = vld [vmem:[%s2 + $0x38] sm:$0xff]
  %v9051 = vld [vmem:[%s2 + $0x40] sm:$0xff]
  %v9052 = vlaneseq
  %v9053 = vshrl.u32 %v9052, 7
  %v9054 = vsub.s32 2, %v9053
  %v9055 = vrot.slane %v81, %v9054
  %v9056 = vcombine.low %v8923, %v9019
  %v9057 = vcombine.low %v8924, %v8925
  %v9058 = vcombine.low %v9020, %v8926
  %v9059 = vcombine.low %v8927, %v9021
  %v9060 = vcombine.low %v8928, %v8929
  %v9061 = vcombine.low %v9022, %v8930
  %v9062 = vcombine.low %v8931, %v9023
  %v9063 = vcombine.low %v8932, %v8933
  %v9064 = vcombine.low %v9024, %v8934
  %v9065 = vcombine.low %v8935, %v9025
  %v9066 = vcombine.low %v8936, %v8937
  %v9067 = vcombine.low %v9026, %v8938
  %v9068 = vcombine.low %v8939, %v9027
  %v9069 = vcombine.low %v8940, %v8941
  %v9070 = vcombine.low %v9028, %v8942
  %v9071 = vcombine.low %v8943, %v9029
  %v9072 = vcombine.low %v8944, %v8945
  %v9073 = vcombine.low %v9030, %v8946
  %v9074 = vcombine.low %v8947, %v9031
  %v9075 = vcombine.low %v8948, %v8949
  %v9076 = vcombine.low %v9032, %v8950
  %v9077 = vcombine.low %v8951, %v9033
  %v9078 = vcombine.low %v8952, %v8953
  %v9079 = vcombine.low %v9034, %v8954
  %v9080 = vcombine.low %v8955, %v9035
  %v9081 = vcombine.low %v8956, %v8957
  %v9082 = vcombine.low %v9036, %v8958
  %v9083 = vcombine.low %v8959, %v9037
  %v9084 = vcombine.low %v8960, %v8961
  %v9085 = vcombine.low %v9038, %v8962
  %v9086 = vcombine.low %v8963, %v9039
  %v9087 = vcombine.low %v8964, %v8965
  %v9088 = vcombine.low %v9040, %v8966
  %v9089 = vcombine.low %v8967, %v9041
  %v9090 = vcombine.low %v8968, %v8969
  %v9091 = vcombine.low %v9042, %v8970
  %vm9092 = vcmask 588800
  %v9093 = vsel %vm9092, %v9056, 0
  %v9095 = vsel %vm9092, %v9057, 0
  %v9097 = vsel %vm9092, %v9058, 0
  %v9099 = vsel %vm9092, %v9059, 0
  %v9101 = vsel %vm9092, %v9060, 0
  %v9103 = vsel %vm9092, %v9061, 0
  %v9105 = vsel %vm9092, %v9062, 0
  %v9107 = vsel %vm9092, %v9063, 0
  %v9109 = vsel %vm9092, %v9064, 0
  %v9111 = vsel %vm9092, %v9065, 0
  %v9113 = vsel %vm9092, %v9066, 0
  %v9115 = vsel %vm9092, %v9067, 0
  %v9117 = vsel %vm9092, %v9068, 0
  %v9119 = vsel %vm9092, %v9069, 0
  %v9121 = vsel %vm9092, %v9070, 0
  %v9123 = vsel %vm9092, %v9071, 0
  %v9125 = vsel %vm9092, %v9072, 0
  %v9127 = vsel %vm9092, %v9073, 0
  %v9129 = vsel %vm9092, %v9074, 0
  %v9131 = vsel %vm9092, %v9075, 0
  %v9133 = vsel %vm9092, %v9076, 0
  %v9135 = vsel %vm9092, %v9077, 0
  %v9137 = vsel %vm9092, %v9078, 0
  %v9139 = vsel %vm9092, %v9079, 0
  %v9141 = vsel %vm9092, %v9080, 0
  %v9143 = vsel %vm9092, %v9081, 0
  %v9145 = vsel %vm9092, %v9082, 0
  %v9147 = vsel %vm9092, %v9083, 0
  %v9149 = vsel %vm9092, %v9084, 0
  %v9151 = vsel %vm9092, %v9085, 0
  %v9153 = vsel %vm9092, %v9086, 0
  %v9155 = vsel %vm9092, %v9087, 0
  %v9157 = vsel %vm9092, %v9088, 0
  %v9159 = vsel %vm9092, %v9089, 0
  %v9161 = vsel %vm9092, %v9090, 0
  %v9163 = vsel %vm9092, %v9091, 0
  %9165 = vmatprep.subr.mxu0 0.0
  %9166 = vmatpush1.msra.mxu0 %v9043
  %9167 = vmatprep.subr.mxu0 0.0
  %9168 = vmatpush1.msra.mxu0 %v9044
  %9169 = vmatprep.subr.mxu0 0.0
  %9170 = vmatpush1.msra.mxu0 %v9045
  %9171 = vmatprep.subr.mxu0 0.0
  %9172 = vmatpush1.msra.mxu0 %v9046
  %9173 = vmatprep.subr.mxu0 0.0
  %9174 = vmatpush1.msra.mxu0 %v9047
  %9175 = vmatprep.subr.mxu0 0.0
  %9176 = vmatpush1.msra.mxu0 %v9048
  %9177 = vmatprep.subr.mxu0 0.0
  %9178 = vmatpush1.msra.mxu0 %v9049
  %9179 = vmatprep.subr.mxu0 0.0
  %9180 = vmatpush1.msra.mxu0 %v9050
  %9181 = vmatprep.subr.mxu0 0.0
  %9182 = vmatpush1.msra.mxu0 %v9051
  %9183 = vmatprep.subr.mxu0 0.0
  %9184 = vmatpush1.msra.mxu0 0.0
  %9185 = vmatprep.subr.mxu0 0.0
  %9186 = vmatpush1.msra.mxu0 0.0
  %9187 = vmatprep.subr.mxu0 0.0
  %9188 = vmatpush1.msra.mxu0 0.0
  %9189 = vmatprep.subr.mxu0 0.0
  %9190 = vmatpush1.msra.mxu0 0.0
  %9191 = vmatprep.subr.mxu0 0.0
  %9192 = vmatpush1.msra.mxu0 0.0
  %9193 = vmatprep.subr.mxu0 0.0
  %9194 = vmatpush1.msra.mxu0 0.0
  %9195 = vmatprep.subr.mxu0 0.0
  %9196 = vmatpush1.msra.mxu0 0.0
  %9197 = vmatprep.subr.mxu0 0.0
  %9198 = vmatpush1.msra.mxu0 0.0
  %9199 = vmatprep.subr.mxu0 0.0
  %9200 = vmatpush1.msra.mxu0 0.0
  %9201 = vmatprep.subr.mxu0 0.0
  %9202 = vmatpush1.msra.mxu0 0.0
  %9203 = vmatprep.subr.mxu0 0.0
  %9204 = vmatpush1.msra.mxu0 0.0
  %9205 = vmatprep.subr.mxu0 0.0
  %9206 = vmatpush1.msra.mxu0 0.0
  %9207 = vmatprep.subr.mxu0 0.0
  %9208 = vmatpush1.msra.mxu0 0.0
  %9209 = vmatprep.subr.mxu0 0.0
  %9210 = vmatpush1.msra.mxu0 0.0
  %9211 = vmatprep.subr.mxu0 0.0
  %9212 = vmatpush1.msra.mxu0 0.0
  %9213 = vmatprep.subr.mxu0 0.0
  %9214 = vmatpush1.msra.mxu0 0.0
  %9215 = vmatprep.subr.mxu0 0.0
  %9216 = vmatpush1.msra.mxu0 0.0
  %9217 = vmatprep.subr.mxu0 0.0
  %9218 = vmatpush1.msra.mxu0 0.0
  %9219 = vmatprep.subr.mxu0 0.0
  %9220 = vmatpush1.msra.mxu0 0.0
  %9221 = vmatprep.subr.mxu0 0.0
  %9222 = vmatpush1.msra.mxu0 0.0
  %9223 = vmatprep.subr.mxu0 0.0
  %9224 = vmatpush1.msra.mxu0 0.0
  %9225 = vmatprep.subr.mxu0 0.0
  %9226 = vmatpush1.msra.mxu0 0.0
  %9227 = vmatprep.subr.mxu0 0.0
  %9228 = vmatpush1.msra.mxu0 0.0
  %9229 = vmatprep.mubr.f32.mxu0 0.0
  %9230 = vmatmul.mubr.f32.gmra.mrb[0].mxu0 %v9093
  %v9231 = vpop.f32.mrb[0].mxu0
  %v9232 = vadd.f32 %v9055, %v9231
  %v9233 = vpop.f32.mrb[0].mxu0
  %9234 = vmatprep.mubr.f32.mxu0 0.0
  %9235 = vmatmul.mubr.f32.gmra.mrb[0].mxu0 %v9095
  %v9236 = vpop.f32.mrb[0].mxu0
  %v9237 = vadd.f32 %v9055, %v9236
  %v9238 = vpop.f32.mrb[0].mxu0
  %9239 = vmatprep.mubr.f32.mxu0 0.0
  %9240 = vmatmul.mubr.f32.gmra.mrb[0].mxu0 %v9097
  %v9241 = vpop.f32.mrb[0].mxu0
  %v9242 = vadd.f32 %v9055, %v9241
  %v9243 = vpop.f32.mrb[0].mxu0
  %9244 = vmatprep.mubr.f32.mxu0 0.0
  %9245 = vmatmul.mubr.f32.gmra.mrb[0].mxu0 %v9099
  %v9246 = vpop.f32.mrb[0].mxu0
  %v9247 = vadd.f32 %v9055, %v9246
  %v9248 = vpop.f32.mrb[0].mxu0
  %9249 = vmatprep.mubr.f32.mxu0 0.0
  %9250 = vmatmul.mubr.f32.gmra.mrb[0].mxu0 %v9101
  %v9251 = vpop.f32.mrb[0].mxu0
  %v9252 = vadd.f32 %v9055, %v9251
  %v9253 = vpop.f32.mrb[0].mxu0
  %9254 = vmatprep.mubr.f32.mxu0 0.0
  %9255 = vmatmul.mubr.f32.gmra.mrb[0].mxu0 %v9103
  %v9256 = vpop.f32.mrb[0].mxu0
  %v9257 = vadd.f32 %v9055, %v9256
  %v9258 = vpop.f32.mrb[0].mxu0
  %9259 = vmatprep.mubr.f32.mxu0 0.0
  %9260 = vmatmul.mubr.f32.gmra.mrb[0].mxu0 %v9105
  %v9261 = vpop.f32.mrb[0].mxu0
  %v9262 = vadd.f32 %v9055, %v9261
  %v9263 = vpop.f32.mrb[0].mxu0
  %9264 = vmatprep.mubr.f32.mxu0 0.0
  %9265 = vmatmul.mubr.f32.gmra.mrb[0].mxu0 %v9107
  %v9266 = vpop.f32.mrb[0].mxu0
  %v9267 = vadd.f32 %v9055, %v9266
  %v9268 = vpop.f32.mrb[0].mxu0
  %9269 = vmatprep.mubr.f32.mxu0 0.0
  %9270 = vmatmul.mubr.f32.gmra.mrb[0].mxu0 %v9109
  %v9271 = vpop.f32.mrb[0].mxu0
  %v9272 = vadd.f32 %v9055, %v9271
  %v9273 = vpop.f32.mrb[0].mxu0
  %9274 = vmatprep.mubr.f32.mxu0 0.0
  %9275 = vmatmul.mubr.f32.gmra.mrb[0].mxu0 %v9111
  %v9276 = vpop.f32.mrb[0].mxu0
  %v9277 = vadd.f32 %v9055, %v9276
  %v9278 = vpop.f32.mrb[0].mxu0
  %9279 = vmatprep.mubr.f32.mxu0 0.0
  %9280 = vmatmul.mubr.f32.gmra.mrb[0].mxu0 %v9113
  %v9281 = vpop.f32.mrb[0].mxu0
  %v9282 = vadd.f32 %v9055, %v9281
  %v9283 = vpop.f32.mrb[0].mxu0
  %9284 = vmatprep.mubr.f32.mxu0 0.0
  %9285 = vmatmul.mubr.f32.gmra.mrb[0].mxu0 %v9115
  %v9286 = vpop.f32.mrb[0].mxu0
  %v9287 = vadd.f32 %v9055, %v9286
  %v9288 = vpop.f32.mrb[0].mxu0
  %9289 = vmatprep.mubr.f32.mxu0 0.0
  %9290 = vmatmul.mubr.f32.gmra.mrb[0].mxu0 %v9117
  %v9291 = vpop.f32.mrb[0].mxu0
  %v9292 = vadd.f32 %v9055, %v9291
  %v9293 = vpop.f32.mrb[0].mxu0
  %9294 = vmatprep.mubr.f32.mxu0 0.0
  %9295 = vmatmul.mubr.f32.gmra.mrb[0].mxu0 %v9119
  %v9296 = vpop.f32.mrb[0].mxu0
  %v9297 = vadd.f32 %v9055, %v9296
  %v9298 = vpop.f32.mrb[0].mxu0
  %9299 = vmatprep.mubr.f32.mxu0 0.0
  %9300 = vmatmul.mubr.f32.gmra.mrb[0].mxu0 %v9121
  %v9301 = vpop.f32.mrb[0].mxu0
  %v9302 = vadd.f32 %v9055, %v9301
  %v9303 = vpop.f32.mrb[0].mxu0
  %9304 = vmatprep.mubr.f32.mxu0 0.0
  %9305 = vmatmul.mubr.f32.gmra.mrb[0].mxu0 %v9123
  %v9306 = vpop.f32.mrb[0].mxu0
  %v9307 = vadd.f32 %v9055, %v9306
  %v9308 = vpop.f32.mrb[0].mxu0
  %9309 = vmatprep.mubr.f32.mxu0 0.0
  %9310 = vmatmul.mubr.f32.gmra.mrb[0].mxu0 %v9125
  %v9311 = vpop.f32.mrb[0].mxu0
  %v9312 = vadd.f32 %v9055, %v9311
  %v9313 = vpop.f32.mrb[0].mxu0
  %9314 = vmatprep.mubr.f32.mxu0 0.0
  %9315 = vmatmul.mubr.f32.gmra.mrb[0].mxu0 %v9127
  %v9316 = vpop.f32.mrb[0].mxu0
  %v9317 = vadd.f32 %v9055, %v9316
  %v9318 = vpop.f32.mrb[0].mxu0
  %9319 = vmatprep.mubr.f32.mxu0 0.0
  %9320 = vmatmul.mubr.f32.gmra.mrb[0].mxu0 %v9129
  %v9321 = vpop.f32.mrb[0].mxu0
  %v9322 = vadd.f32 %v9055, %v9321
  %v9323 = vpop.f32.mrb[0].mxu0
  %9324 = vmatprep.mubr.f32.mxu0 0.0
  %9325 = vmatmul.mubr.f32.gmra.mrb[0].mxu0 %v9131
  %v9326 = vpop.f32.mrb[0].mxu0
  %v9327 = vadd.f32 %v9055, %v9326
  %v9328 = vpop.f32.mrb[0].mxu0
  %9329 = vmatprep.mubr.f32.mxu0 0.0
  %9330 = vmatmul.mubr.f32.gmra.mrb[0].mxu0 %v9133
  %v9331 = vpop.f32.mrb[0].mxu0
  %v9332 = vadd.f32 %v9055, %v9331
  %v9333 = vpop.f32.mrb[0].mxu0
  %9334 = vmatprep.mubr.f32.mxu0 0.0
  %9335 = vmatmul.mubr.f32.gmra.mrb[0].mxu0 %v9135
  %v9336 = vpop.f32.mrb[0].mxu0
  %v9337 = vadd.f32 %v9055, %v9336
  %v9338 = vpop.f32.mrb[0].mxu0
  %9339 = vmatprep.mubr.f32.mxu0 0.0
  %9340 = vmatmul.mubr.f32.gmra.mrb[0].mxu0 %v9137
  %v9341 = vpop.f32.mrb[0].mxu0
  %v9342 = vadd.f32 %v9055, %v9341
  %v9343 = vpop.f32.mrb[0].mxu0
  %9344 = vmatprep.mubr.f32.mxu0 0.0
  %9345 = vmatmul.mubr.f32.gmra.mrb[0].mxu0 %v9139
  %v9346 = vpop.f32.mrb[0].mxu0
  %v9347 = vadd.f32 %v9055, %v9346
  %v9348 = vpop.f32.mrb[0].mxu0
  %9349 = vmatprep.mubr.f32.mxu0 0.0
  %9350 = vmatmul.mubr.f32.gmra.mrb[0].mxu0 %v9141
  %v9351 = vpop.f32.mrb[0].mxu0
  %v9352 = vadd.f32 %v9055, %v9351
  %v9353 = vpop.f32.mrb[0].mxu0
  %9354 = vmatprep.mubr.f32.mxu0 0.0
  %9355 = vmatmul.mubr.f32.gmra.mrb[0].mxu0 %v9143
  %v9356 = vpop.f32.mrb[0].mxu0
  %v9357 = vadd.f32 %v9055, %v9356
  %v9358 = vpop.f32.mrb[0].mxu0
  %9359 = vmatprep.mubr.f32.mxu0 0.0
  %9360 = vmatmul.mubr.f32.gmra.mrb[0].mxu0 %v9145
  %v9361 = vpop.f32.mrb[0].mxu0
  %v9362 = vadd.f32 %v9055, %v9361
  %v9363 = vpop.f32.mrb[0].mxu0
  %9364 = vmatprep.mubr.f32.mxu0 0.0
  %9365 = vmatmul.mubr.f32.gmra.mrb[0].mxu0 %v9147
  %v9366 = vpop.f32.mrb[0].mxu0
  %v9367 = vadd.f32 %v9055, %v9366
  %v9368 = vpop.f32.mrb[0].mxu0
  %9369 = vmatprep.mubr.f32.mxu0 0.0
  %9370 = vmatmul.mubr.f32.gmra.mrb[0].mxu0 %v9149
  %v9371 = vpop.f32.mrb[0].mxu0
  %v9372 = vadd.f32 %v9055, %v9371
  %v9373 = vpop.f32.mrb[0].mxu0
  %9374 = vmatprep.mubr.f32.mxu0 0.0
  %9375 = vmatmul.mubr.f32.gmra.mrb[0].mxu0 %v9151
  %v9376 = vpop.f32.mrb[0].mxu0
  %v9377 = vadd.f32 %v9055, %v9376
  %v9378 = vpop.f32.mrb[0].mxu0
  %9379 = vmatprep.mubr.f32.mxu0 0.0
  %9380 = vmatmul.mubr.f32.gmra.mrb[0].mxu0 %v9153
  %v9381 = vpop.f32.mrb[0].mxu0
  %v9382 = vadd.f32 %v9055, %v9381
  %v9383 = vpop.f32.mrb[0].mxu0
  %9384 = vmatprep.mubr.f32.mxu0 0.0
  %9385 = vmatmul.mubr.f32.gmra.mrb[0].mxu0 %v9155
  %v9386 = vpop.f32.mrb[0].mxu0
  %v9387 = vadd.f32 %v9055, %v9386
  %v9388 = vpop.f32.mrb[0].mxu0
  %9389 = vmatprep.mubr.f32.mxu0 0.0
  %9390 = vmatmul.mubr.f32.gmra.mrb[0].mxu0 %v9157
  %v9391 = vpop.f32.mrb[0].mxu0
  %v9392 = vadd.f32 %v9055, %v9391
  %v9393 = vpop.f32.mrb[0].mxu0
  %9394 = vmatprep.mubr.f32.mxu0 0.0
  %9395 = vmatmul.mubr.f32.gmra.mrb[0].mxu0 %v9159
  %v9396 = vpop.f32.mrb[0].mxu0
  %v9397 = vadd.f32 %v9055, %v9396
  %v9398 = vpop.f32.mrb[0].mxu0
  %9399 = vmatprep.mubr.f32.mxu0 0.0
  %9400 = vmatmul.mubr.f32.gmra.mrb[0].mxu0 %v9161
  %v9401 = vpop.f32.mrb[0].mxu0
  %v9402 = vadd.f32 %v9055, %v9401
  %v9403 = vpop.f32.mrb[0].mxu0
  %9404 = vmatprep.mubr.f32.mxu0 0.0
  %9405 = vmatmul.mubr.f32.gmra.mrb[0].mxu0 %v9163
  %v9406 = vpop.f32.mrb[0].mxu0
  %v9407 = vadd.f32 %v9055, %v9406
  %v9408 = vpop.f32.mrb[0].mxu0
  %9409 = vdwg.mxu0
  %v9410 = vmax.f32 %v9232, 0.0
  %v9411 = vmax.f32 %v9237, 0.0
  %v9412 = vmax.f32 %v9242, 0.0
  %v9413 = vmax.f32 %v9247, 0.0
  %v9414 = vmax.f32 %v9252, 0.0
  %v9415 = vmax.f32 %v9257, 0.0
  %v9416 = vmax.f32 %v9262, 0.0
  %v9417 = vmax.f32 %v9267, 0.0
  %v9418 = vmax.f32 %v9272, 0.0
  %v9419 = vmax.f32 %v9277, 0.0
  %v9420 = vmax.f32 %v9282, 0.0
  %v9421 = vmax.f32 %v9287, 0.0
  %v9422 = vmax.f32 %v9292, 0.0
  %v9423 = vmax.f32 %v9297, 0.0
  %v9424 = vmax.f32 %v9302, 0.0
  %v9425 = vmax.f32 %v9307, 0.0
  %v9426 = vmax.f32 %v9312, 0.0
  %v9427 = vmax.f32 %v9317, 0.0
  %v9428 = vmax.f32 %v9322, 0.0
  %v9429 = vmax.f32 %v9327, 0.0
  %v9430 = vmax.f32 %v9332, 0.0
  %v9431 = vmax.f32 %v9337, 0.0
  %v9432 = vmax.f32 %v9342, 0.0
  %v9433 = vmax.f32 %v9347, 0.0
  %v9434 = vmax.f32 %v9352, 0.0
  %v9435 = vmax.f32 %v9357, 0.0
  %v9436 = vmax.f32 %v9362, 0.0
  %v9437 = vmax.f32 %v9367, 0.0
  %v9438 = vmax.f32 %v9372, 0.0
  %v9439 = vmax.f32 %v9377, 0.0
  %v9440 = vmax.f32 %v9382, 0.0
  %v9441 = vmax.f32 %v9387, 0.0
  %v9442 = vmax.f32 %v9392, 0.0
  %v9443 = vmax.f32 %v9397, 0.0
  %v9444 = vmax.f32 %v9402, 0.0
  %v9445 = vmax.f32 %v9407, 0.0
  %9446 = vst [vmem:[%s4] sm:$0xff] %v9410
  %9447 = vst [vmem:[%s4 + $0x8] sm:$0xff] %v9411
  %9448 = vst [vmem:[%s4 + $0x10] sm:$0xff] %v9412
  %9449 = vst [vmem:[%s4 + $0x18] sm:$0xff] %v9413
  %9450 = vst [vmem:[%s4 + $0x20] sm:$0xff] %v9414
  %9451 = vst [vmem:[%s4 + $0x28] sm:$0xff] %v9415
  %9452 = vst [vmem:[%s4 + $0x30] sm:$0xff] %v9416
  %9453 = vst [vmem:[%s4 + $0x38] sm:$0xff] %v9417
  %9454 = vst [vmem:[%s4 + $0x40] sm:$0xff] %v9418
  %9455 = vst [vmem:[%s4 + $0x48] sm:$0xff] %v9419
  %9456 = vst [vmem:[%s4 + $0x50] sm:$0xff] %v9420
  %9457 = vst [vmem:[%s4 + $0x58] sm:$0xff] %v9421
  %9458 = vst [vmem:[%s4 + $0x60] sm:$0xff] %v9422
  %9459 = vst [vmem:[%s4 + $0x68] sm:$0xff] %v9423
  %9460 = vst [vmem:[%s4 + $0x70] sm:$0xff] %v9424
  %9461 = vst [vmem:[%s4 + $0x78] sm:$0xff] %v9425
  %9462 = vst [vmem:[%s4 + $0x80] sm:$0xff] %v9426
  %9463 = vst [vmem:[%s4 + $0x88] sm:$0xff] %v9427
  %9464 = vst [vmem:[%s4 + $0x90] sm:$0xff] %v9428
  %9465 = vst [vmem:[%s4 + $0x98] sm:$0xff] %v9429
  %9466 = vst [vmem:[%s4 + $0xa0] sm:$0xff] %v9430
  %9467 = vst [vmem:[%s4 + $0xa8] sm:$0xff] %v9431
  %9468 = vst [vmem:[%s4 + $0xb0] sm:$0xff] %v9432
  %9469 = vst [vmem:[%s4 + $0xb8] sm:$0xff] %v9433
  %9470 = vst [vmem:[%s4 + $0xc0] sm:$0xff] %v9434
  %9471 = vst [vmem:[%s4 + $0xc8] sm:$0xff] %v9435
  %9472 = vst [vmem:[%s4 + $0xd0] sm:$0xff] %v9436
  %9473 = vst [vmem:[%s4 + $0xd8] sm:$0xff] %v9437
  %9474 = vst [vmem:[%s4 + $0xe0] sm:$0xff] %v9438
  %9475 = vst [vmem:[%s4 + $0xe8] sm:$0xff] %v9439
  %9476 = vst [vmem:[%s4 + $0xf0] sm:$0xff] %v9440
  %9477 = vst [vmem:[%s4 + $0xf8] sm:$0xff] %v9441
  %9478 = vst [vmem:[%s4 + $0x100] sm:$0xff] %v9442
  %9479 = vst [vmem:[%s4 + $0x108] sm:$0xff] %v9443
  %9480 = vst [vmem:[%s4 + $0x110] sm:$0xff] %v9444
  %9481 = vst [vmem:[%s4 + $0x118] sm:$0xff] %v9445
  // Predicated region
  $region18: #{conv_block_forward.1} parent=0 // pred_check
    _
  $region19: #{conv_block_forward.1} parent=0 // pred_check_branch
    %9483 = sbr.rel (0) target = $region21
  $region20: #{conv_block_forward.1} parent=0 // pred_region
    _
  $region21: #{conv_block_forward.1} parent=0 // pred_fallthru
    _
  // Predicated region
  $region22: #{conv_block_forward.1} parent=0 // pred_check
    _
  $region23: #{conv_block_forward.1} parent=0 // pred_check_branch
    %9485 = sbr.rel (0) target = $region25
  $region24: #{conv_block_forward.1} parent=0 // pred_region
    _
  $region25: #{conv_block_forward.1} parent=0 // pred_fallthru
    _

</llo_original>
